<compile_context>
chip_gen: v7x
topology: tpu7x:2x2x1
jax: 0.10.0
libtpu: 0.0.40
codegen_flags: <defaults>
</compile_context>

<pallas_src>
import jax
import jax.numpy as jnp
from jax import lax
from jax.experimental import pallas as pl
from jax.experimental.pallas import tpu as pltpu


def _round_up(x, m):
    return (x + m - 1) // m * m


# ---------------------------------------------------------------------------
# Pallas kernels
# ---------------------------------------------------------------------------
def _conv1_pool_relu_kernel(p_ref, w_ref, b_ref, o_ref):
    """Fused conv1 (im2col matmul) + 2x2 max-pool + bias + ReLU.

    The 4 pool corners are stacked along rows of p_ref, so one tall matmul
    feeds the MXU; the pool is the max of 4 static row slices.
      p_ref : (4*TM, KP) bf16   rows ordered (corner, row)
      w_ref : (KP, C1)   bf16
      b_ref : (1, C1)    f32
      o_ref : (TM, C1)   bf16
    """
    tm = o_ref.shape[0]
    acc = jnp.dot(p_ref[...], w_ref[...], preferred_element_type=jnp.float32)
    m = jnp.maximum(jnp.maximum(acc[0:tm], acc[tm:2 * tm]),
                    jnp.maximum(acc[2 * tm:3 * tm], acc[3 * tm:4 * tm]))
    o_ref[...] = jnp.maximum(m + b_ref[...], 0.0).astype(o_ref.dtype)


def _conv2_fc_kernel(p_ref, wc_ref, bc_ref, w1_ref, b1_ref, w2_ref, b2_ref,
                     o_ref):
    """Fused conv2 + max-pool + ReLU + flatten + fc1 + ReLU + fc2.

    Rows of p_ref are ordered (corner, pooled-position, image) so that the
    4-corner max is a static slice max of one tall matmul and fc1 becomes 16
    small aligned matmuls (one per pooled position) contracting over the real
    conv2 channels only.  The pooled feature block stays in VMEM.
      p_ref : (4*16*IMG, K2P) bf16
      wc_ref: (K2P, C2P) bf16     bc_ref: (1, C2P) f32
      w1_ref: (16, C2P, HP) bf16  b1_ref: (1, HP) f32
      w2_ref: (HP, NP) bf16       b2_ref: (1, NP) f32
      o_ref : (IMG, NP) f32
    """
    img = o_ref.shape[0]
    npos = w1_ref.shape[0]
    rows = npos * img

    acc = jnp.dot(p_ref[...], wc_ref[...], preferred_element_type=jnp.float32)
    m = jnp.maximum(jnp.maximum(acc[0:rows], acc[rows:2 * rows]),
                    jnp.maximum(acc[2 * rows:3 * rows], acc[3 * rows:4 * rows]))
    feat = jnp.maximum(m + bc_ref[...], 0.0).astype(jnp.bfloat16)  # (16*IMG, C2P)

    w1 = w1_ref[...]
    h = jnp.dot(feat[0:img, :], w1[0], preferred_element_type=jnp.float32)
    for pos in range(1, npos):
        h = h + jnp.dot(feat[pos * img:(pos + 1) * img, :], w1[pos],
                        preferred_element_type=jnp.float32)
    h = jnp.maximum(h + b1_ref[...], 0.0).astype(jnp.bfloat16)      # (IMG, HP)
    o_ref[...] = jnp.dot(h, w2_ref[...],
                         preferred_element_type=jnp.float32) + b2_ref[...]


# ---------------------------------------------------------------------------
# XLA-side patch extraction (one patches op per pool corner, no Python taps)
# ---------------------------------------------------------------------------
def _corner_patches(x_nhwc, k):
    """4 pooled-corner im2col patch tensors, each (B, Hp, Wp, C*k*k).

    Corner (dy, dx), row (b, ph, pw) holds the receptive field of conv-output
    position (2*ph+dy, 2*pw+dx); features are in PyTorch's (Cin, kh, kw)
    flatten order (conv_general_dilated_patches is channel-major).
    """
    out = []
    for dy in (0, 1):
        for dx in (0, 1):
            out.append(lax.conv_general_dilated_patches(
                x_nhwc[:, dy:, dx:, :], (k, k), (2, 2), "VALID",
                dimension_numbers=("NHWC", "HWIO", "NHWC")))
    return out


# ---------------------------------------------------------------------------
# stage wrappers
# ---------------------------------------------------------------------------
def conv1_stage(x_nhwc, w, b, *, imgs_per_tile):
    """conv1 + maxpool(2) + ReLU.  x_nhwc: (Bp, 28, 28, 1) bf16.
    Returns (Bp, 12, 12, Cout) bf16 with exactly Cout (=10) channels."""
    Bp, H, W, Cin = x_nhwc.shape
    Cout, _, k, _ = w.shape
    Ho, Wo = H - k + 1, W - k + 1
    assert Ho % 2 == 0 and Wo % 2 == 0, "pooled conv output must be even"
    assert Bp % imgs_per_tile == 0
    Hp, Wp = Ho // 2, Wo // 2
    K = Cin * k * k
    Kp = _round_up(K, 16)
    n_tiles = Bp // imgs_per_tile
    tm = imgs_per_tile * Hp * Wp                        # rows per grid step

    # (4, Bp, Hp, Wp, K) -> rows ordered (tile, corner, img, ph, pw)
    p = jnp.stack(_corner_patches(x_nhwc, k), axis=0)
    p = p.reshape(4, n_tiles, imgs_per_tile, Hp, Wp, K)
    p = jnp.transpose(p, (1, 0, 2, 3, 4, 5))
    p = jnp.pad(p, ((0, 0),) * 5 + ((0, Kp - K),))
    p = p.reshape(n_tiles * 4 * tm, Kp)

    wm = jnp.pad(w.reshape(Cout, K).T, ((0, Kp - K), (0, 0))).astype(jnp.bfloat16)
    bm = b.reshape(1, Cout).astype(jnp.float32)

    out = pl.pallas_call(
        _conv1_pool_relu_kernel,
        out_shape=jax.ShapeDtypeStruct((Bp * Hp * Wp, Cout), jnp.bfloat16),
        grid_spec=pltpu.PrefetchScalarGridSpec(
            num_scalar_prefetch=0,
            grid=(n_tiles,),
            in_specs=[pl.BlockSpec((4 * tm, Kp), lambda i: (i, 0)),
                      pl.BlockSpec((Kp, Cout), lambda i: (0, 0)),
                      pl.BlockSpec((1, Cout), lambda i: (0, 0))],
            out_specs=pl.BlockSpec((tm, Cout), lambda i: (i, 0)),
        ),
        compiler_params=pltpu.CompilerParams(
            dimension_semantics=("parallel",),
            vmem_limit_bytes=32 * 1024 * 1024,
        ),
    )(p, wm, bm)
    return out.reshape(Bp, Hp, Wp, Cout)


def conv2_fc_stage(y1, conv2_w, conv2_b, fc1_w, fc1_b, fc2_w, fc2_b, *,
                   imgs_per_tile, c2_pad=32, h_pad=64, n_pad=128):
    """conv2 + maxpool(2) + ReLU + flatten + fc1 + ReLU + fc2, one pallas_call.
    y1: (Bp, 12, 12, C1) bf16.  Returns (Bp, n_pad) f32 padded logits."""
    Bp, Hin, Win, C1 = y1.shape
    Cout2, Cin2, k, _ = conv2_w.shape
    assert Cin2 == C1 and Bp % imgs_per_tile == 0
    Ho, Wo = Hin - k + 1, Win - k + 1
    assert Ho % 2 == 0 and Wo % 2 == 0
    Hp, Wp = Ho // 2, Wo // 2
    npos = Hp * Wp                                      # 16 pooled positions
    assert fc1_w.shape[1] == Cout2 * npos
    K2 = C1 * k * k                                     # 250
    K2p = _round_up(K2, 16)                             # 256
    n_tiles = Bp // imgs_per_tile
    rows = 4 * npos * imgs_per_tile                     # rows per grid step

    # (4, Bp, Hp, Wp, K2) -> rows ordered (tile, corner, pos, img)
    p = jnp.stack(_corner_patches(y1, k), axis=0)
    p = p.reshape(4, n_tiles, imgs_per_tile, Hp, Wp, K2)
    p = jnp.transpose(p, (1, 0, 3, 4, 2, 5))
    p = jnp.pad(p, ((0, 0),) * 5 + ((0, K2p - K2),))
    p = p.reshape(n_tiles * rows, K2p)

    # conv2 weight in patch feature order (Cin, kh, kw), K/C padded.
    wc = conv2_w.reshape(Cout2, K2).T
    wc = jnp.pad(wc, ((0, K2p - K2), (0, c2_pad - Cout2))).astype(jnp.bfloat16)
    bc = jnp.pad(conv2_b, (0, c2_pad - Cout2)).reshape(1, c2_pad).astype(jnp.float32)

    # fc1 weight: PyTorch flatten index = c*16 + pos  ->  per-position (c, n).
    Hdim = fc1_w.shape[0]                               # 50
    w1 = fc1_w.reshape(Hdim, Cout2, npos)               # (n, c, pos)
    w1 = jnp.transpose(w1, (2, 1, 0))                   # (pos, c, n)
    w1 = jnp.pad(w1, ((0, 0), (0, c2_pad - Cout2), (0, h_pad - Hdim)))
    w1 = w1.astype(jnp.bfloat16)
    b1 = jnp.pad(fc1_b, (0, h_pad - Hdim)).reshape(1, h_pad).astype(jnp.float32)

    n_out = fc2_w.shape[0]                              # 10
    w2 = jnp.pad(fc2_w.T, ((0, h_pad - Hdim), (0, n_pad - n_out))).astype(jnp.bfloat16)
    b2 = jnp.pad(fc2_b, (0, n_pad - n_out)).reshape(1, n_pad).astype(jnp.float32)

    out = pl.pallas_call(
        _conv2_fc_kernel,
        out_shape=jax.ShapeDtypeStruct((Bp, n_pad), jnp.float32),
        grid_spec=pltpu.PrefetchScalarGridSpec(
            num_scalar_prefetch=0,
            grid=(n_tiles,),
            in_specs=[pl.BlockSpec((rows, K2p), lambda i: (i, 0)),
                      pl.BlockSpec((K2p, c2_pad), lambda i: (0, 0)),
                      pl.BlockSpec((1, c2_pad), lambda i: (0, 0)),
                      pl.BlockSpec((npos, c2_pad, h_pad), lambda i: (0, 0, 0)),
                      pl.BlockSpec((1, h_pad), lambda i: (0, 0)),
                      pl.BlockSpec((h_pad, n_pad), lambda i: (0, 0)),
                      pl.BlockSpec((1, n_pad), lambda i: (0, 0))],
            out_specs=pl.BlockSpec((imgs_per_tile, n_pad), lambda i: (i, 0)),
        ),
        compiler_params=pltpu.CompilerParams(
            dimension_semantics=("parallel",),
            vmem_limit_bytes=32 * 1024 * 1024,
        ),
    )(p, wc, bc, w1, b1, w2, b2)
    return out


# ---------------------------------------------------------------------------
# full forward + params + pure-JAX reference
# ---------------------------------------------------------------------------
def init_params(key):
    ks = jax.random.split(key, 8)
    s = 0.1
    return {
        "w1":    s * jax.random.normal(ks[0], (10, 1, 5, 5), jnp.float32),
        "b1":    s * jax.random.normal(ks[1], (10,), jnp.float32),
        "w2":    s * jax.random.normal(ks[2], (20, 10, 5, 5), jnp.float32),
        "b2":    s * jax.random.normal(ks[3], (20,), jnp.float32),
        "fc1_w": s * jax.random.normal(ks[4], (50, 320), jnp.float32),
        "fc1_b": s * jax.random.normal(ks[5], (50,), jnp.float32),
        "fc2_w": s * jax.random.normal(ks[6], (10, 50), jnp.float32),
        "fc2_b": s * jax.random.normal(ks[7], (10,), jnp.float32),
    }


def mnist_cnn_forward(x, params):
    """x: (B, 1, 28, 28) float32 NCHW  ->  (B, 10) float32 logits."""
    B = x.shape[0]
    assert x.shape[1:] == (1, 28, 28), "Mnist_CNN expects (B, 1, 28, 28)"
    n_out = params["fc2_w"].shape[0]

    # One batch pad for both stages: multiple of 16 (bf16 sublane tile per
    # image group) and >= 32 so both grids have >= 2 "parallel" steps.
    B_pad = _round_up(max(B, 32), 16)
    ipt1 = 8                                            # 8*144 = 1152-row tiles
    ipt2 = 32 if (B_pad >= 512 and B_pad % 32 == 0) else 16

    x_nhwc = jnp.transpose(x, (0, 2, 3, 1)).astype(jnp.bfloat16)
    x_nhwc = jnp.pad(x_nhwc, ((0, B_pad - B), (0, 0), (0, 0), (0, 0)))

    # conv1 + maxpool(2) + relu                          -> (B_pad, 12, 12, 10)
    y1 = conv1_stage(x_nhwc, params["w1"], params["b1"], imgs_per_tile=ipt1)

    # conv2 + Dropout2d(eval) + maxpool(2) + relu + flatten + fc1 + relu
    # + F.dropout(eval) + fc2, all fused                 -> (B_pad, 128)
    logits = conv2_fc_stage(y1, params["w2"], params["b2"],
                            params["fc1_w"], params["fc1_b"],
                            params["fc2_w"], params["fc2_b"],
                            imgs_per_tile=ipt2)
    return logits[:B, :n_out]


def _reference_forward(x, params):
    """Pure-JAX f32 reference (eval mode) for validation."""
    dn = ("NCHW", "OIHW", "NCHW")
    y = lax.conv_general_dilated(x, params["w1"], (1, 1), "VALID",
                                 dimension_numbers=dn)
    y = y + params["b1"][None, :, None, None]
    y = lax.reduce_window(y, -jnp.inf, lax.max, (1, 1, 2, 2), (1, 1, 2, 2),
                          "VALID")
    y = jnp.maximum(y, 0.0)
    y = lax.conv_general_dilated(y, params["w2"], (1, 1), "VALID",
                                 dimension_numbers=dn)
    y = y + params["b2"][None, :, None, None]
    y = lax.reduce_window(y, -jnp.inf, lax.max, (1, 1, 2, 2), (1, 1, 2, 2),
                          "VALID")
    y = jnp.maximum(y, 0.0)
    y = y.reshape(y.shape[0], -1)
    y = jnp.maximum(y @ params["fc1_w"].T + params["fc1_b"], 0.0)
    return y @ params["fc2_w"].T + params["fc2_b"]


if __name__ == "__main__":
    key = jax.random.PRNGKey(0)
    kp, kx = jax.random.split(key)
    params = init_params(kp)
    # MNIST-shaped input (batch=2); 28x28 is required by fc1's 320 = 20*4*4.
    x = jax.random.normal(kx, (2, 1, 28, 28), jnp.float32)

    fwd = jax.jit(mnist_cnn_forward)
    logits = fwd(x, params)
    jax.block_until_ready(logits)

    assert logits.shape == (2, 10)
    assert bool(jnp.all(jnp.isfinite(logits)))
    ref = _reference_forward(x, params)
    err = float(jnp.max(jnp.abs(logits - ref)))
    assert err < 0.15, f"mismatch vs f32 reference: max abs err {err}"
    print("KERNEL_OK")
</pallas_src>

<mosaic_0001>
module attributes {stable_mosaic.version = 11 : i64} {
  func.func @_conv1_pool_relu_kernel(%arg0: i32, %arg1: memref<4608x32xbf16, #tpu.memory_space<vmem>>, %arg2: memref<32x10xbf16, #tpu.memory_space<vmem>>, %arg3: memref<1x10xf32, #tpu.memory_space<vmem>>, %arg4: memref<1152x10xbf16, #tpu.memory_space<vmem>>) attributes {dimension_semantics = [#tpu.dimension_semantics<parallel>], iteration_bounds = array<i64: 4>, scalar_prefetch = 0 : i64, scratch_operands = 0 : i64, tpu.core_type = #tpu.core_type<tc>, window_params = [{transform_indices = @transform_0, window_bounds = array<i64: 4608, 32>}, {pipeline_mode = #tpu.pipeline_mode<synchronous>, transform_indices = @transform_1, window_bounds = array<i64: 32, 10>}, {pipeline_mode = #tpu.pipeline_mode<synchronous>, transform_indices = @transform_2, window_bounds = array<i64: 1, 10>}, {transform_indices = @transform_3, window_bounds = array<i64: 1152, 10>}]} {
    %c0 = arith.constant 0 : index
    %c0_0 = arith.constant 0 : index
    %0 = vector.load %arg1[%c0, %c0_0] : memref<4608x32xbf16, #tpu.memory_space<vmem>>, vector<4608x32xbf16>
    %c0_1 = arith.constant 0 : index
    %c0_2 = arith.constant 0 : index
    %1 = vector.load %arg2[%c0_1, %c0_2] : memref<32x10xbf16, #tpu.memory_space<vmem>>, vector<32x10xbf16>
    %cst = arith.constant dense<0.000000e+00> : vector<4608x10xf32>
    %2 = tpu.matmul %0, %1, %cst {dimension_numbers = #tpu.dot_dimension_numbers<[1], [0], [0], [1], [0, 0, 1, 1], [], []>} : vector<4608x32xbf16>, vector<32x10xbf16>, vector<4608x10xf32> -> vector<4608x10xf32>
    %3 = vector.extract_strided_slice %2 {offsets = [0, 0], sizes = [1152, 10], strides = [1, 1]} : vector<4608x10xf32> to vector<1152x10xf32>
    %4 = vector.extract_strided_slice %2 {offsets = [1152, 0], sizes = [1152, 10], strides = [1, 1]} : vector<4608x10xf32> to vector<1152x10xf32>
    %5 = arith.maximumf %3, %4 : vector<1152x10xf32>
    %6 = vector.extract_strided_slice %2 {offsets = [2304, 0], sizes = [1152, 10], strides = [1, 1]} : vector<4608x10xf32> to vector<1152x10xf32>
    %7 = vector.extract_strided_slice %2 {offsets = [3456, 0], sizes = [1152, 10], strides = [1, 1]} : vector<4608x10xf32> to vector<1152x10xf32>
    %8 = arith.maximumf %6, %7 : vector<1152x10xf32>
    %9 = arith.maximumf %5, %8 : vector<1152x10xf32>
    %c0_3 = arith.constant 0 : index
    %c0_4 = arith.constant 0 : index
    %10 = vector.load %arg3[%c0_3, %c0_4] : memref<1x10xf32, #tpu.memory_space<vmem>>, vector<1x10xf32>
    %11 = vector.broadcast %10 : vector<1x10xf32> to vector<1152x10xf32>
    %12 = arith.addf %9, %11 : vector<1152x10xf32>
    %cst_5 = arith.constant 0.000000e+00 : f32
    %13 = vector.broadcast %cst_5 : f32 to vector<1152x10xf32>
    %14 = arith.maximumf %12, %13 : vector<1152x10xf32>
    %15 = arith.truncf %14 : vector<1152x10xf32> to vector<1152x10xbf16>
    %c0_6 = arith.constant 0 : index
    %c0_7 = arith.constant 0 : index
    %16 = vector.load %arg4[%c0_6, %c0_7] : memref<1152x10xbf16, #tpu.memory_space<vmem>>, vector<1152x10xbf16>
    tpu.vector_store %arg4[%c0_6, %c0_7], %15 {strides = array<i32>} : memref<1152x10xbf16, #tpu.memory_space<vmem>>, vector<1152x10xbf16>,
    return
  }
  func.func @transform_0(%arg0: i32) -> (i32, i32) {
    %c0_i32 = arith.constant 0 : i32
    %c0_i32_0 = arith.constant 0 : i32
    return %arg0, %c0_i32 : i32, i32
  }
  func.func @transform_1(%arg0: i32) -> (i32, i32) {
    %c0_i32 = arith.constant 0 : i32
    %c0_i32_0 = arith.constant 0 : i32
    %c0_i32_1 = arith.constant 0 : i32
    return %c0_i32, %c0_i32_0 : i32, i32
  }
  func.func @transform_2(%arg0: i32) -> (i32, i32) {
    %c0_i32 = arith.constant 0 : i32
    %c0_i32_0 = arith.constant 0 : i32
    %c0_i32_1 = arith.constant 0 : i32
    return %c0_i32, %c0_i32_0 : i32, i32
  }
  func.func @transform_3(%arg0: i32) -> (i32, i32) {
    %c0_i32 = arith.constant 0 : i32
    %c0_i32_0 = arith.constant 0 : i32
    return %arg0, %c0_i32 : i32, i32
  }
}

module attributes {stable_mosaic.version = 11 : i64} {
  func.func @_conv2_fc_kernel(%arg0: i32, %arg1: memref<1024x256xbf16, #tpu.memory_space<vmem>>, %arg2: memref<256x32xbf16, #tpu.memory_space<vmem>>, %arg3: memref<1x32xf32, #tpu.memory_space<vmem>>, %arg4: memref<16x32x64xbf16, #tpu.memory_space<vmem>>, %arg5: memref<1x64xf32, #tpu.memory_space<vmem>>, %arg6: memref<64x128xbf16, #tpu.memory_space<vmem>>, %arg7: memref<1x128xf32, #tpu.memory_space<vmem>>, %arg8: memref<16x128xf32, #tpu.memory_space<vmem>>) attributes {dimension_semantics = [#tpu.dimension_semantics<parallel>], iteration_bounds = array<i64: 2>, scalar_prefetch = 0 : i64, scratch_operands = 0 : i64, tpu.core_type = #tpu.core_type<tc>, window_params = [{transform_indices = @transform_0, window_bounds = array<i64: 1024, 256>}, {pipeline_mode = #tpu.pipeline_mode<synchronous>, transform_indices = @transform_1, window_bounds = array<i64: 256, 32>}, {pipeline_mode = #tpu.pipeline_mode<synchronous>, transform_indices = @transform_2, window_bounds = array<i64: 1, 32>}, {pipeline_mode = #tpu.pipeline_mode<synchronous>, transform_indices = @transform_3, window_bounds = array<i64: 16, 32, 64>}, {pipeline_mode = #tpu.pipeline_mode<synchronous>, transform_indices = @transform_4, window_bounds = array<i64: 1, 64>}, {pipeline_mode = #tpu.pipeline_mode<synchronous>, transform_indices = @transform_5, window_bounds = array<i64: 64, 128>}, {pipeline_mode = #tpu.pipeline_mode<synchronous>, transform_indices = @transform_6, window_bounds = array<i64: 1, 128>}, {transform_indices = @transform_7, window_bounds = array<i64: 16, 128>}]} {
    %c0 = arith.constant 0 : index
    %c0_0 = arith.constant 0 : index
    %0 = vector.load %arg1[%c0, %c0_0] : memref<1024x256xbf16, #tpu.memory_space<vmem>>, vector<1024x256xbf16>
    %c0_1 = arith.constant 0 : index
    %c0_2 = arith.constant 0 : index
    %1 = vector.load %arg2[%c0_1, %c0_2] : memref<256x32xbf16, #tpu.memory_space<vmem>>, vector<256x32xbf16>
    %cst = arith.constant dense<0.000000e+00> : vector<1024x32xf32>
    %2 = tpu.matmul %0, %1, %cst {dimension_numbers = #tpu.dot_dimension_numbers<[1], [0], [0], [1], [0, 0, 1, 1], [], []>} : vector<1024x256xbf16>, vector<256x32xbf16>, vector<1024x32xf32> -> vector<1024x32xf32>
    %3 = vector.extract_strided_slice %2 {offsets = [0, 0], sizes = [256, 32], strides = [1, 1]} : vector<1024x32xf32> to vector<256x32xf32>
    %4 = vector.extract_strided_slice %2 {offsets = [256, 0], sizes = [256, 32], strides = [1, 1]} : vector<1024x32xf32> to vector<256x32xf32>
    %5 = arith.maximumf %3, %4 : vector<256x32xf32>
    %6 = vector.extract_strided_slice %2 {offsets = [512, 0], sizes = [256, 32], strides = [1, 1]} : vector<1024x32xf32> to vector<256x32xf32>
    %7 = vector.extract_strided_slice %2 {offsets = [768, 0], sizes = [256, 32], strides = [1, 1]} : vector<1024x32xf32> to vector<256x32xf32>
    %8 = arith.maximumf %6, %7 : vector<256x32xf32>
    %9 = arith.maximumf %5, %8 : vector<256x32xf32>
    %c0_3 = arith.constant 0 : index
    %c0_4 = arith.constant 0 : index
    %10 = vector.load %arg3[%c0_3, %c0_4] : memref<1x32xf32, #tpu.memory_space<vmem>>, vector<1x32xf32>
    %11 = vector.broadcast %10 : vector<1x32xf32> to vector<256x32xf32>
    %12 = arith.addf %9, %11 : vector<256x32xf32>
    %cst_5 = arith.constant 0.000000e+00 : f32
    %13 = vector.broadcast %cst_5 : f32 to vector<256x32xf32>
    %14 = arith.maximumf %12, %13 : vector<256x32xf32>
    %15 = arith.truncf %14 : vector<256x32xf32> to vector<256x32xbf16>
    %c0_6 = arith.constant 0 : index
    %c0_7 = arith.constant 0 : index
    %c0_8 = arith.constant 0 : index
    %16 = vector.load %arg4[%c0_6, %c0_7, %c0_8] : memref<16x32x64xbf16, #tpu.memory_space<vmem>>, vector<16x32x64xbf16>
    %17 = vector.extract_strided_slice %15 {offsets = [0, 0], sizes = [16, 32], strides = [1, 1]} : vector<256x32xbf16> to vector<16x32xbf16>
    %18 = vector.extract_strided_slice %16 {offsets = [0, 0, 0], sizes = [1, 32, 64], strides = [1, 1, 1]} : vector<16x32x64xbf16> to vector<1x32x64xbf16>
    %19 = vector.shape_cast %18 : vector<1x32x64xbf16> to vector<32x64xbf16>
    %cst_9 = arith.constant dense<0.000000e+00> : vector<16x64xf32>
    %20 = tpu.matmul %17, %19, %cst_9 {dimension_numbers = #tpu.dot_dimension_numbers<[1], [0], [0], [1], [0, 0, 1, 1], [], []>} : vector<16x32xbf16>, vector<32x64xbf16>, vector<16x64xf32> -> vector<16x64xf32>
    %21 = vector.extract_strided_slice %15 {offsets = [16, 0], sizes = [16, 32], strides = [1, 1]} : vector<256x32xbf16> to vector<16x32xbf16>
    %22 = vector.extract_strided_slice %16 {offsets = [1, 0, 0], sizes = [1, 32, 64], strides = [1, 1, 1]} : vector<16x32x64xbf16> to vector<1x32x64xbf16>
    %23 = vector.shape_cast %22 : vector<1x32x64xbf16> to vector<32x64xbf16>
    %cst_10 = arith.constant dense<0.000000e+00> : vector<16x64xf32>
    %24 = tpu.matmul %21, %23, %cst_10 {dimension_numbers = #tpu.dot_dimension_numbers<[1], [0], [0], [1], [0, 0, 1, 1], [], []>} : vector<16x32xbf16>, vector<32x64xbf16>, vector<16x64xf32> -> vector<16x64xf32>
    %25 = arith.addf %20, %24 : vector<16x64xf32>
    %26 = vector.extract_strided_slice %15 {offsets = [32, 0], sizes = [16, 32], strides = [1, 1]} : vector<256x32xbf16> to vector<16x32xbf16>
    %27 = vector.extract_strided_slice %16 {offsets = [2, 0, 0], sizes = [1, 32, 64], strides = [1, 1, 1]} : vector<16x32x64xbf16> to vector<1x32x64xbf16>
    %28 = vector.shape_cast %27 : vector<1x32x64xbf16> to vector<32x64xbf16>
    %cst_11 = arith.constant dense<0.000000e+00> : vector<16x64xf32>
    %29 = tpu.matmul %26, %28, %cst_11 {dimension_numbers = #tpu.dot_dimension_numbers<[1], [0], [0], [1], [0, 0, 1, 1], [], []>} : vector<16x32xbf16>, vector<32x64xbf16>, vector<16x64xf32> -> vector<16x64xf32>
    %30 = arith.addf %25, %29 : vector<16x64xf32>
    %31 = vector.extract_strided_slice %15 {offsets = [48, 0], sizes = [16, 32], strides = [1, 1]} : vector<256x32xbf16> to vector<16x32xbf16>
    %32 = vector.extract_strided_slice %16 {offsets = [3, 0, 0], sizes = [1, 32, 64], strides = [1, 1, 1]} : vector<16x32x64xbf16> to vector<1x32x64xbf16>
    %33 = vector.shape_cast %32 : vector<1x32x64xbf16> to vector<32x64xbf16>
    %cst_12 = arith.constant dense<0.000000e+00> : vector<16x64xf32>
    %34 = tpu.matmul %31, %33, %cst_12 {dimension_numbers = #tpu.dot_dimension_numbers<[1], [0], [0], [1], [0, 0, 1, 1], [], []>} : vector<16x32xbf16>, vector<32x64xbf16>, vector<16x64xf32> -> vector<16x64xf32>
    %35 = arith.addf %30, %34 : vector<16x64xf32>
    %36 = vector.extract_strided_slice %15 {offsets = [64, 0], sizes = [16, 32], strides = [1, 1]} : vector<256x32xbf16> to vector<16x32xbf16>
    %37 = vector.extract_strided_slice %16 {offsets = [4, 0, 0], sizes = [1, 32, 64], strides = [1, 1, 1]} : vector<16x32x64xbf16> to vector<1x32x64xbf16>
    %38 = vector.shape_cast %37 : vector<1x32x64xbf16> to vector<32x64xbf16>
    %cst_13 = arith.constant dense<0.000000e+00> : vector<16x64xf32>
    %39 = tpu.matmul %36, %38, %cst_13 {dimension_numbers = #tpu.dot_dimension_numbers<[1], [0], [0], [1], [0, 0, 1, 1], [], []>} : vector<16x32xbf16>, vector<32x64xbf16>, vector<16x64xf32> -> vector<16x64xf32>
    %40 = arith.addf %35, %39 : vector<16x64xf32>
    %41 = vector.extract_strided_slice %15 {offsets = [80, 0], sizes = [16, 32], strides = [1, 1]} : vector<256x32xbf16> to vector<16x32xbf16>
    %42 = vector.extract_strided_slice %16 {offsets = [5, 0, 0], sizes = [1, 32, 64], strides = [1, 1, 1]} : vector<16x32x64xbf16> to vector<1x32x64xbf16>
    %43 = vector.shape_cast %42 : vector<1x32x64xbf16> to vector<32x64xbf16>
    %cst_14 = arith.constant dense<0.000000e+00> : vector<16x64xf32>
    %44 = tpu.matmul %41, %43, %cst_14 {dimension_numbers = #tpu.dot_dimension_numbers<[1], [0], [0], [1], [0, 0, 1, 1], [], []>} : vector<16x32xbf16>, vector<32x64xbf16>, vector<16x64xf32> -> vector<16x64xf32>
    %45 = arith.addf %40, %44 : vector<16x64xf32>
    %46 = vector.extract_strided_slice %15 {offsets = [96, 0], sizes = [16, 32], strides = [1, 1]} : vector<256x32xbf16> to vector<16x32xbf16>
    %47 = vector.extract_strided_slice %16 {offsets = [6, 0, 0], sizes = [1, 32, 64], strides = [1, 1, 1]} : vector<16x32x64xbf16> to vector<1x32x64xbf16>
    %48 = vector.shape_cast %47 : vector<1x32x64xbf16> to vector<32x64xbf16>
    %cst_15 = arith.constant dense<0.000000e+00> : vector<16x64xf32>
    %49 = tpu.matmul %46, %48, %cst_15 {dimension_numbers = #tpu.dot_dimension_numbers<[1], [0], [0], [1], [0, 0, 1, 1], [], []>} : vector<16x32xbf16>, vector<32x64xbf16>, vector<16x64xf32> -> vector<16x64xf32>
    %50 = arith.addf %45, %49 : vector<16x64xf32>
    %51 = vector.extract_strided_slice %15 {offsets = [112, 0], sizes = [16, 32], strides = [1, 1]} : vector<256x32xbf16> to vector<16x32xbf16>
    %52 = vector.extract_strided_slice %16 {offsets = [7, 0, 0], sizes = [1, 32, 64], strides = [1, 1, 1]} : vector<16x32x64xbf16> to vector<1x32x64xbf16>
    %53 = vector.shape_cast %52 : vector<1x32x64xbf16> to vector<32x64xbf16>
    %cst_16 = arith.constant dense<0.000000e+00> : vector<16x64xf32>
    %54 = tpu.matmul %51, %53, %cst_16 {dimension_numbers = #tpu.dot_dimension_numbers<[1], [0], [0], [1], [0, 0, 1, 1], [], []>} : vector<16x32xbf16>, vector<32x64xbf16>, vector<16x64xf32> -> vector<16x64xf32>
    %55 = arith.addf %50, %54 : vector<16x64xf32>
    %56 = vector.extract_strided_slice %15 {offsets = [128, 0], sizes = [16, 32], strides = [1, 1]} : vector<256x32xbf16> to vector<16x32xbf16>
    %57 = vector.extract_strided_slice %16 {offsets = [8, 0, 0], sizes = [1, 32, 64], strides = [1, 1, 1]} : vector<16x32x64xbf16> to vector<1x32x64xbf16>
    %58 = vector.shape_cast %57 : vector<1x32x64xbf16> to vector<32x64xbf16>
    %cst_17 = arith.constant dense<0.000000e+00> : vector<16x64xf32>
    %59 = tpu.matmul %56, %58, %cst_17 {dimension_numbers = #tpu.dot_dimension_numbers<[1], [0], [0], [1], [0, 0, 1, 1], [], []>} : vector<16x32xbf16>, vector<32x64xbf16>, vector<16x64xf32> -> vector<16x64xf32>
    %60 = arith.addf %55, %59 : vector<16x64xf32>
    %61 = vector.extract_strided_slice %15 {offsets = [144, 0], sizes = [16, 32], strides = [1, 1]} : vector<256x32xbf16> to vector<16x32xbf16>
    %62 = vector.extract_strided_slice %16 {offsets = [9, 0, 0], sizes = [1, 32, 64], strides = [1, 1, 1]} : vector<16x32x64xbf16> to vector<1x32x64xbf16>
    %63 = vector.shape_cast %62 : vector<1x32x64xbf16> to vector<32x64xbf16>
    %cst_18 = arith.constant dense<0.000000e+00> : vector<16x64xf32>
    %64 = tpu.matmul %61, %63, %cst_18 {dimension_numbers = #tpu.dot_dimension_numbers<[1], [0], [0], [1], [0, 0, 1, 1], [], []>} : vector<16x32xbf16>, vector<32x64xbf16>, vector<16x64xf32> -> vector<16x64xf32>
    %65 = arith.addf %60, %64 : vector<16x64xf32>
    %66 = vector.extract_strided_slice %15 {offsets = [160, 0], sizes = [16, 32], strides = [1, 1]} : vector<256x32xbf16> to vector<16x32xbf16>
    %67 = vector.extract_strided_slice %16 {offsets = [10, 0, 0], sizes = [1, 32, 64], strides = [1, 1, 1]} : vector<16x32x64xbf16> to vector<1x32x64xbf16>
    %68 = vector.shape_cast %67 : vector<1x32x64xbf16> to vector<32x64xbf16>
    %cst_19 = arith.constant dense<0.000000e+00> : vector<16x64xf32>
    %69 = tpu.matmul %66, %68, %cst_19 {dimension_numbers = #tpu.dot_dimension_numbers<[1], [0], [0], [1], [0, 0, 1, 1], [], []>} : vector<16x32xbf16>, vector<32x64xbf16>, vector<16x64xf32> -> vector<16x64xf32>
    %70 = arith.addf %65, %69 : vector<16x64xf32>
    %71 = vector.extract_strided_slice %15 {offsets = [176, 0], sizes = [16, 32], strides = [1, 1]} : vector<256x32xbf16> to vector<16x32xbf16>
    %72 = vector.extract_strided_slice %16 {offsets = [11, 0, 0], sizes = [1, 32, 64], strides = [1, 1, 1]} : vector<16x32x64xbf16> to vector<1x32x64xbf16>
    %73 = vector.shape_cast %72 : vector<1x32x64xbf16> to vector<32x64xbf16>
    %cst_20 = arith.constant dense<0.000000e+00> : vector<16x64xf32>
    %74 = tpu.matmul %71, %73, %cst_20 {dimension_numbers = #tpu.dot_dimension_numbers<[1], [0], [0], [1], [0, 0, 1, 1], [], []>} : vector<16x32xbf16>, vector<32x64xbf16>, vector<16x64xf32> -> vector<16x64xf32>
    %75 = arith.addf %70, %74 : vector<16x64xf32>
    %76 = vector.extract_strided_slice %15 {offsets = [192, 0], sizes = [16, 32], strides = [1, 1]} : vector<256x32xbf16> to vector<16x32xbf16>
    %77 = vector.extract_strided_slice %16 {offsets = [12, 0, 0], sizes = [1, 32, 64], strides = [1, 1, 1]} : vector<16x32x64xbf16> to vector<1x32x64xbf16>
    %78 = vector.shape_cast %77 : vector<1x32x64xbf16> to vector<32x64xbf16>
    %cst_21 = arith.constant dense<0.000000e+00> : vector<16x64xf32>
    %79 = tpu.matmul %76, %78, %cst_21 {dimension_numbers = #tpu.dot_dimension_numbers<[1], [0], [0], [1], [0, 0, 1, 1], [], []>} : vector<16x32xbf16>, vector<32x64xbf16>, vector<16x64xf32> -> vector<16x64xf32>
    %80 = arith.addf %75, %79 : vector<16x64xf32>
    %81 = vector.extract_strided_slice %15 {offsets = [208, 0], sizes = [16, 32], strides = [1, 1]} : vector<256x32xbf16> to vector<16x32xbf16>
    %82 = vector.extract_strided_slice %16 {offsets = [13, 0, 0], sizes = [1, 32, 64], strides = [1, 1, 1]} : vector<16x32x64xbf16> to vector<1x32x64xbf16>
    %83 = vector.shape_cast %82 : vector<1x32x64xbf16> to vector<32x64xbf16>
    %cst_22 = arith.constant dense<0.000000e+00> : vector<16x64xf32>
    %84 = tpu.matmul %81, %83, %cst_22 {dimension_numbers = #tpu.dot_dimension_numbers<[1], [0], [0], [1], [0, 0, 1, 1], [], []>} : vector<16x32xbf16>, vector<32x64xbf16>, vector<16x64xf32> -> vector<16x64xf32>
    %85 = arith.addf %80, %84 : vector<16x64xf32>
    %86 = vector.extract_strided_slice %15 {offsets = [224, 0], sizes = [16, 32], strides = [1, 1]} : vector<256x32xbf16> to vector<16x32xbf16>
    %87 = vector.extract_strided_slice %16 {offsets = [14, 0, 0], sizes = [1, 32, 64], strides = [1, 1, 1]} : vector<16x32x64xbf16> to vector<1x32x64xbf16>
    %88 = vector.shape_cast %87 : vector<1x32x64xbf16> to vector<32x64xbf16>
    %cst_23 = arith.constant dense<0.000000e+00> : vector<16x64xf32>
    %89 = tpu.matmul %86, %88, %cst_23 {dimension_numbers = #tpu.dot_dimension_numbers<[1], [0], [0], [1], [0, 0, 1, 1], [], []>} : vector<16x32xbf16>, vector<32x64xbf16>, vector<16x64xf32> -> vector<16x64xf32>
    %90 = arith.addf %85, %89 : vector<16x64xf32>
    %91 = vector.extract_strided_slice %15 {offsets = [240, 0], sizes = [16, 32], strides = [1, 1]} : vector<256x32xbf16> to vector<16x32xbf16>
    %92 = vector.extract_strided_slice %16 {offsets = [15, 0, 0], sizes = [1, 32, 64], strides = [1, 1, 1]} : vector<16x32x64xbf16> to vector<1x32x64xbf16>
    %93 = vector.shape_cast %92 : vector<1x32x64xbf16> to vector<32x64xbf16>
    %cst_24 = arith.constant dense<0.000000e+00> : vector<16x64xf32>
    %94 = tpu.matmul %91, %93, %cst_24 {dimension_numbers = #tpu.dot_dimension_numbers<[1], [0], [0], [1], [0, 0, 1, 1], [], []>} : vector<16x32xbf16>, vector<32x64xbf16>, vector<16x64xf32> -> vector<16x64xf32>
    %95 = arith.addf %90, %94 : vector<16x64xf32>
    %c0_25 = arith.constant 0 : index
    %c0_26 = arith.constant 0 : index
    %96 = vector.load %arg5[%c0_25, %c0_26] : memref<1x64xf32, #tpu.memory_space<vmem>>, vector<1x64xf32>
    %97 = vector.broadcast %96 : vector<1x64xf32> to vector<16x64xf32>
    %98 = arith.addf %95, %97 : vector<16x64xf32>
    %cst_27 = arith.constant 0.000000e+00 : f32
    %99 = vector.broadcast %cst_27 : f32 to vector<16x64xf32>
    %100 = arith.maximumf %98, %99 : vector<16x64xf32>
    %101 = arith.truncf %100 : vector<16x64xf32> to vector<16x64xbf16>
    %c0_28 = arith.constant 0 : index
    %c0_29 = arith.constant 0 : index
    %102 = vector.load %arg6[%c0_28, %c0_29] : memref<64x128xbf16, #tpu.memory_space<vmem>>, vector<64x128xbf16>
    %cst_30 = arith.constant dense<0.000000e+00> : vector<16x128xf32>
    %103 = tpu.matmul %101, %102, %cst_30 {dimension_numbers = #tpu.dot_dimension_numbers<[1], [0], [0], [1], [0, 0, 1, 1], [], []>} : vector<16x64xbf16>, vector<64x128xbf16>, vector<16x128xf32> -> vector<16x128xf32>
    %c0_31 = arith.constant 0 : index
    %c0_32 = arith.constant 0 : index
    %104 = vector.load %arg7[%c0_31, %c0_32] : memref<1x128xf32, #tpu.memory_space<vmem>>, vector<1x128xf32>
    %105 = vector.broadcast %104 : vector<1x128xf32> to vector<16x128xf32>
    %106 = arith.addf %103, %105 : vector<16x128xf32>
    %c0_33 = arith.constant 0 : index
    %c0_34 = arith.constant 0 : index
    %107 = vector.load %arg8[%c0_33, %c0_34] : memref<16x128xf32, #tpu.memory_space<vmem>>, vector<16x128xf32>
    tpu.vector_store %arg8[%c0_33, %c0_34], %106 {strides = array<i32>} : memref<16x128xf32, #tpu.memory_space<vmem>>, vector<16x128xf32>,
    return
  }
  func.func @transform_0(%arg0: i32) -> (i32, i32) {
    %c0_i32 = arith.constant 0 : i32
    %c0_i32_0 = arith.constant 0 : i32
    return %arg0, %c0_i32 : i32, i32
  }
  func.func @transform_1(%arg0: i32) -> (i32, i32) {
    %c0_i32 = arith.constant 0 : i32
    %c0_i32_0 = arith.constant 0 : i32
    %c0_i32_1 = arith.constant 0 : i32
    return %c0_i32, %c0_i32_0 : i32, i32
  }
  func.func @transform_2(%arg0: i32) -> (i32, i32) {
    %c0_i32 = arith.constant 0 : i32
    %c0_i32_0 = arith.constant 0 : i32
    %c0_i32_1 = arith.constant 0 : i32
    return %c0_i32, %c0_i32_0 : i32, i32
  }
  func.func @transform_3(%arg0: i32) -> (i32, i32, i32) {
    %c0_i32 = arith.constant 0 : i32
    %c0_i32_0 = arith.constant 0 : i32
    %c0_i32_1 = arith.constant 0 : i32
    %c0_i32_2 = arith.constant 0 : i32
    return %c0_i32, %c0_i32_0, %c0_i32_1 : i32, i32, i32
  }
  func.func @transform_4(%arg0: i32) -> (i32, i32) {
    %c0_i32 = arith.constant 0 : i32
    %c0_i32_0 = arith.constant 0 : i32
    %c0_i32_1 = arith.constant 0 : i32
    return %c0_i32, %c0_i32_0 : i32, i32
  }
  func.func @transform_5(%arg0: i32) -> (i32, i32) {
    %c0_i32 = arith.constant 0 : i32
    %c0_i32_0 = arith.constant 0 : i32
    %c0_i32_1 = arith.constant 0 : i32
    return %c0_i32, %c0_i32_0 : i32, i32
  }
  func.func @transform_6(%arg0: i32) -> (i32, i32) {
    %c0_i32 = arith.constant 0 : i32
    %c0_i32_0 = arith.constant 0 : i32
    %c0_i32_1 = arith.constant 0 : i32
    return %c0_i32, %c0_i32_0 : i32, i32
  }
  func.func @transform_7(%arg0: i32) -> (i32, i32) {
    %c0_i32 = arith.constant 0 : i32
    %c0_i32_0 = arith.constant 0 : i32
    return %arg0, %c0_i32 : i32, i32
  }
}

</mosaic_0001>

<llo_original>
// kernel: mnist_cnn_forward.2
$region0: #{mnist_cnn_forward.2}
  #allocation0 [shape = 'u32[]', space=smem, size = 0x4, offset = 0x4, fixed_abs, tag = 'smem constant byte address 0x4 - core index']
  #allocation1 [shape = 'u32[144,128]{1,0:T(1,128)}', space=vmem, size = 0x12000, scoped, tag = 'internal scratch']
  %s0 = inlined_call_operand.vmem [shape: bf16[18432,32], index: 0, kind: input, shape index: {}]
  %s1 = inlined_call_operand.vmem [shape: bf16[32,10], index: 1, kind: input, shape index: {}]
  %s2 = inlined_call_operand.vmem [shape: f32[1,10], index: 2, kind: input, shape index: {}]
  %s3 = inlined_call_operand.vmem [shape: bf16[4608,10], index: 3, kind: output, shape index: {}]
  %s4 = sld [smem:[#allocation0]]
  $region45: #{mnist_cnn_forward.2} parent=0
    _
  %s6 = ssub.s32 1, %s4
  %s7 = scalar_select 0, %s6, %s4
  loop: start=0, step=1, limit=6
  $region2: #{mnist_cnn_forward.2} parent=0 // loop_pre_header
    _
  $region3: #{mnist_cnn_forward.2} parent=0 // loop_header
    %s9 = sphi 0, %s13
    %p10 = scmp.ge.s32.totalorder %s9, 6
    %s19 = sphi 0, %s21
    %s22 = sphi 0, %s19
    %s23 = sphi 0, %s22
    %s39 = sphi 0, %s23
    %s43 = sphi 0, %s43
    %s45 = sphi 0, %s43
    %s46 = sphi 0, %s45
    %s60 = sphi 0, %s46
    %s64 = sphi 0, %s64
    %s66 = sphi 0, %s64
    %s67 = sphi 0, %s66
    %s81 = sphi 0, %s67
    %s87 = sphi 0, %s89
    %s90 = sphi 0, %s87
    %s91 = sphi 0, %s90
    %s107 = sphi 0, %s91
  $region4: #{mnist_cnn_forward.2} parent=0 // loop_header_branch
    %12 = sbr.rel (%p10) target = $region8
  $region5: #{mnist_cnn_forward.2} parent=0 // loop_body
    %s14 = ssub.s32 %s9, 1
    %s15 = ssub.s32 %s9, 2
    %s16 = sadd.s32 %s9, 1
    %s17 = ssub.s32 %s9, %s16
    %p18 = scmp.eq.s32.totalorder %s17, 0
    %s20 = sadd.s32 %s19, 1
    %s21 = scalar_select %p18, %s19, %s20
    %p24 = pneg %p18
    %p25 = scmp.eq.s32.totalorder %s9, 3
    %p26 = por %p24, %p25
    %p27 = scmp.ne.s32.totalorder %s19, %s22
    %p28 = scmp.eq.s32.totalorder %s9, 0
    %p29 = por %p27, %p28
    %p30 = scmp.ne.s32.totalorder %s19, %s22
    %p31 = scmp.eq.s32.totalorder %s14, 3
    %p32 = por %p30, %p31
    %p33 = scmp.ne.s32.totalorder %s22, %s23
    %p34 = scmp.eq.s32.totalorder %s14, 0
    %p35 = por %p33, %p34
    %p36 = scmp.ne.s32.totalorder %s22, %s23
    %p37 = scmp.eq.s32.totalorder %s15, 3
    %p38 = por %p36, %p37
    %p40 = scmp.ne.s32.totalorder %s23, %s39
    %p41 = scmp.eq.s32.totalorder %s15, 0
    %p42 = por %p40, %p41
    %s44 = sadd.s32 %s43, 1
    %p47 = scmp.eq.s32.totalorder %s9, 3
    %p48 = scmp.ne.s32.totalorder %s43, %s45
    %p49 = scmp.eq.s32.totalorder %s9, 0
    %p50 = por %p48, %p49
    %p51 = scmp.ne.s32.totalorder %s43, %s45
    %p52 = scmp.eq.s32.totalorder %s14, 3
    %p53 = por %p51, %p52
    %p54 = scmp.ne.s32.totalorder %s45, %s46
    %p55 = scmp.eq.s32.totalorder %s14, 0
    %p56 = por %p54, %p55
    %p57 = scmp.ne.s32.totalorder %s45, %s46
    %p58 = scmp.eq.s32.totalorder %s15, 3
    %p59 = por %p57, %p58
    %p61 = scmp.ne.s32.totalorder %s46, %s60
    %p62 = scmp.eq.s32.totalorder %s15, 0
    %p63 = por %p61, %p62
    %s65 = sadd.s32 %s64, 1
    %p68 = scmp.eq.s32.totalorder %s9, 3
    %p69 = scmp.ne.s32.totalorder %s64, %s66
    %p70 = scmp.eq.s32.totalorder %s9, 0
    %p71 = por %p69, %p70
    %p72 = scmp.ne.s32.totalorder %s64, %s66
    %p73 = scmp.eq.s32.totalorder %s14, 3
    %p74 = por %p72, %p73
    %p75 = scmp.ne.s32.totalorder %s66, %s67
    %p76 = scmp.eq.s32.totalorder %s14, 0
    %p77 = por %p75, %p76
    %p78 = scmp.ne.s32.totalorder %s66, %s67
    %p79 = scmp.eq.s32.totalorder %s15, 3
    %p80 = por %p78, %p79
    %p82 = scmp.ne.s32.totalorder %s67, %s81
    %p83 = scmp.eq.s32.totalorder %s15, 0
    %p84 = por %p82, %p83
    %s85 = ssub.s32 %s9, %s16
    %p86 = scmp.eq.s32.totalorder %s85, 0
    %s88 = sadd.s32 %s87, 1
    %s89 = scalar_select %p86, %s87, %s88
    %p92 = pneg %p86
    %p93 = scmp.eq.s32.totalorder %s9, 3
    %p94 = por %p92, %p93
    %p95 = scmp.ne.s32.totalorder %s87, %s90
    %p96 = scmp.eq.s32.totalorder %s9, 0
    %p97 = por %p95, %p96
    %p98 = scmp.ne.s32.totalorder %s87, %s90
    %p99 = scmp.eq.s32.totalorder %s14, 3
    %p100 = por %p98, %p99
    %p101 = scmp.ne.s32.totalorder %s90, %s91
    %p102 = scmp.eq.s32.totalorder %s14, 0
    %p103 = por %p101, %p102
    %p104 = scmp.ne.s32.totalorder %s90, %s91
    %p105 = scmp.eq.s32.totalorder %s15, 3
    %p106 = por %p104, %p105
    %p108 = scmp.ne.s32.totalorder %s91, %s107
    %p109 = scmp.eq.s32.totalorder %s15, 0
    %p110 = por %p108, %p109
    %p111 = scmp.le.s32.totalorder 1, %s9
    %p112 = scmp.lt.s32.totalorder %s9, 5
    %p113 = pnand %p111, %p112
    %p114 = pneg %p113
    // Predicated region
    $region9: #{mnist_cnn_forward.2} parent=5 // pred_check
      _
    $region10: #{mnist_cnn_forward.2} parent=5 // pred_check_branch
      %116 = sbr.rel (%p113) target = $region12
    $region11: #{mnist_cnn_forward.2} parent=5 // pred_region
      %s117 = ssub.s32 %s9, 1
      // Predicated region
      $region13: #{mnist_cnn_forward.2} parent=11 // pred_check
        %p118 = pneg %p56
      $region14: #{mnist_cnn_forward.2} parent=11 // pred_check_branch
        %120 = sbr.rel (%p118) target = $region16
      $region15: #{mnist_cnn_forward.2} parent=11 // pred_region
        _
      $region16: #{mnist_cnn_forward.2} parent=11 // pred_fallthru
        _
      // Predicated region
      $region17: #{mnist_cnn_forward.2} parent=11 // pred_check
        %p121 = pneg %p77
      $region18: #{mnist_cnn_forward.2} parent=11 // pred_check_branch
        %123 = sbr.rel (%p121) target = $region20
      $region19: #{mnist_cnn_forward.2} parent=11 // pred_region
        _
      $region20: #{mnist_cnn_forward.2} parent=11 // pred_fallthru
        _
    $region12: #{mnist_cnn_forward.2} parent=5 // pred_fallthru
      _
    %p124 = scmp.lt.s32.totalorder %s9, 4
    // Predicated region
    $region21: #{mnist_cnn_forward.2} parent=5 // pred_check
      %p125 = pneg %p124
    $region22: #{mnist_cnn_forward.2} parent=5 // pred_check_branch
      %127 = sbr.rel (%p125) target = $region24
    $region23: #{mnist_cnn_forward.2} parent=5 // pred_region
      // Predicated region
      $region25: #{mnist_cnn_forward.2} parent=23 // pred_check
        %p128 = pneg %p29
      $region26: #{mnist_cnn_forward.2} parent=23 // pred_check_branch
        %130 = sbr.rel (%p128) target = $region28
      $region27: #{mnist_cnn_forward.2} parent=23 // pred_region
        %s131 = smul.u32 576, %s9
        %p132 = scmp.lt.s32.totalorder %s131, 2303
        %s133 = scalar_select %p132, %s131, 2303
        %s134 = smul.addr %s133, 4
        %s135 = scalar_lea.vmem %s0, %s134
        %s136 = smul.u32 576, %s9
      $region28: #{mnist_cnn_forward.2} parent=23 // pred_fallthru
        _
    $region24: #{mnist_cnn_forward.2} parent=5 // pred_fallthru
      _
    %p137 = scmp.le.s32.totalorder 1, %s9
    %p138 = scmp.lt.s32.totalorder %s9, 5
    %p139 = pnand %p137, %p138
    %p140 = pneg %p139
    // Predicated region
    $region29: #{mnist_cnn_forward.2} parent=5 // pred_check
      _
    $region30: #{mnist_cnn_forward.2} parent=5 // pred_check_branch
      %142 = sbr.rel (%p139) target = $region32
    $region31: #{mnist_cnn_forward.2} parent=5 // pred_region
      %s143 = ssub.s32 %s9, 1
      %s144 = smul.u32 576, %s14
      %p145 = scmp.lt.s32.totalorder %s144, 2303
      %s146 = scalar_select %p145, %s144, 2303
      %s147 = smul.addr %s146, 4
      %s148 = scalar_lea.vmem %s0, %s147
      %p149 = pneg %p35
      %p150 = pneg %p32
      %p151 = pneg %p56
      %p152 = pneg %p53
      %p153 = pneg %p77
      %p154 = pneg %p74
      %p155 = pneg %p103
      %p156 = pneg %p100
      %s157 = smul.u32 144, %s14
      %p158 = scmp.lt.s32.totalorder %s157, 575
      %s159 = scalar_select %p158, %s157, 575
      %s160 = smul.addr %s159, 4
      %s161 = scalar_lea.vmem %s3, %s160
      %s162 = smul.u32 576, %s14
      %p163 = scmp.lt.s32.totalorder %s162, 2303
      %s164 = scalar_select %p163, %s162, 2303
      %s165 = smul.addr %s164, 4
      %s166 = scalar_lea.vmem %s0, %s165
      %s167 = smul.u32 576, %s14
      %s168 = smul.u32 144, %s14
      %p169 = scmp.lt.s32.totalorder %s168, 575
      %s170 = scalar_select %p169, %s168, 575
      %s171 = smul.addr %s170, 4
      %s172 = scalar_lea.vmem %s3, %s171
      %s173 = smul.u32 144, %s14
      %v175 = vld [vmem:[%s166] sm:$0xf]
      %v176 = vld [vmem:[%s166 + $0x4] sm:$0xf]
      %v177 = vld [vmem:[%s166 + $0x8] sm:$0xf]
      %v178 = vld [vmem:[%s166 + $0xc] sm:$0xf]
      %v179 = vld [vmem:[%s166 + $0x10] sm:$0xf]
      %v180 = vld [vmem:[%s166 + $0x14] sm:$0xf]
      %v181 = vld [vmem:[%s166 + $0x18] sm:$0xf]
      %v182 = vld [vmem:[%s166 + $0x1c] sm:$0xf]
      %v183 = vld [vmem:[%s166 + $0x20] sm:$0xf]
      %v184 = vld [vmem:[%s166 + $0x24] sm:$0xf]
      %v185 = vld [vmem:[%s166 + $0x28] sm:$0xf]
      %v186 = vld [vmem:[%s166 + $0x2c] sm:$0xf]
      %v187 = vld [vmem:[%s166 + $0x30] sm:$0xf]
      %v188 = vld [vmem:[%s166 + $0x34] sm:$0xf]
      %v189 = vld [vmem:[%s166 + $0x38] sm:$0xf]
      %v190 = vld [vmem:[%s166 + $0x3c] sm:$0xf]
      %v191 = vld [vmem:[%s166 + $0x40] sm:$0xf]
      %v192 = vld [vmem:[%s166 + $0x44] sm:$0xf]
      %v193 = vld [vmem:[%s166 + $0x48] sm:$0xf]
      %v194 = vld [vmem:[%s166 + $0x4c] sm:$0xf]
      %v195 = vld [vmem:[%s166 + $0x50] sm:$0xf]
      %v196 = vld [vmem:[%s166 + $0x54] sm:$0xf]
      %v197 = vld [vmem:[%s166 + $0x58] sm:$0xf]
      %v198 = vld [vmem:[%s166 + $0x5c] sm:$0xf]
      %v199 = vld [vmem:[%s166 + $0x60] sm:$0xf]
      %v200 = vld [vmem:[%s166 + $0x64] sm:$0xf]
      %v201 = vld [vmem:[%s166 + $0x68] sm:$0xf]
      %v202 = vld [vmem:[%s166 + $0x6c] sm:$0xf]
      %v203 = vld [vmem:[%s166 + $0x70] sm:$0xf]
      %v204 = vld [vmem:[%s166 + $0x74] sm:$0xf]
      %v205 = vld [vmem:[%s166 + $0x78] sm:$0xf]
      %v206 = vld [vmem:[%s166 + $0x7c] sm:$0xf]
      %v207 = vld [vmem:[%s166 + $0x80] sm:$0xf]
      %v208 = vld [vmem:[%s166 + $0x84] sm:$0xf]
      %v209 = vld [vmem:[%s166 + $0x88] sm:$0xf]
      %v210 = vld [vmem:[%s166 + $0x8c] sm:$0xf]
      %v211 = vld [vmem:[%s166 + $0x90] sm:$0xf]
      %v212 = vld [vmem:[%s166 + $0x94] sm:$0xf]
      %v213 = vld [vmem:[%s166 + $0x98] sm:$0xf]
      %v214 = vld [vmem:[%s166 + $0x9c] sm:$0xf]
      %v215 = vld [vmem:[%s166 + $0xa0] sm:$0xf]
      %v216 = vld [vmem:[%s166 + $0xa4] sm:$0xf]
      %v217 = vld [vmem:[%s166 + $0xa8] sm:$0xf]
      %v218 = vld [vmem:[%s166 + $0xac] sm:$0xf]
      %v219 = vld [vmem:[%s166 + $0xb0] sm:$0xf]
      %v220 = vld [vmem:[%s166 + $0xb4] sm:$0xf]
      %v221 = vld [vmem:[%s166 + $0xb8] sm:$0xf]
      %v222 = vld [vmem:[%s166 + $0xbc] sm:$0xf]
      %v223 = vld [vmem:[%s166 + $0xc0] sm:$0xf]
      %v224 = vld [vmem:[%s166 + $0xc4] sm:$0xf]
      %v225 = vld [vmem:[%s166 + $0xc8] sm:$0xf]
      %v226 = vld [vmem:[%s166 + $0xcc] sm:$0xf]
      %v227 = vld [vmem:[%s166 + $0xd0] sm:$0xf]
      %v228 = vld [vmem:[%s166 + $0xd4] sm:$0xf]
      %v229 = vld [vmem:[%s166 + $0xd8] sm:$0xf]
      %v230 = vld [vmem:[%s166 + $0xdc] sm:$0xf]
      %v231 = vld [vmem:[%s166 + $0xe0] sm:$0xf]
      %v232 = vld [vmem:[%s166 + $0xe4] sm:$0xf]
      %v233 = vld [vmem:[%s166 + $0xe8] sm:$0xf]
      %v234 = vld [vmem:[%s166 + $0xec] sm:$0xf]
      %v235 = vld [vmem:[%s166 + $0xf0] sm:$0xf]
      %v236 = vld [vmem:[%s166 + $0xf4] sm:$0xf]
      %v237 = vld [vmem:[%s166 + $0xf8] sm:$0xf]
      %v238 = vld [vmem:[%s166 + $0xfc] sm:$0xf]
      %v239 = vld [vmem:[%s166 + $0x100] sm:$0xf]
      %v240 = vld [vmem:[%s166 + $0x104] sm:$0xf]
      %v241 = vld [vmem:[%s166 + $0x108] sm:$0xf]
      %v242 = vld [vmem:[%s166 + $0x10c] sm:$0xf]
      %v243 = vld [vmem:[%s166 + $0x110] sm:$0xf]
      %v244 = vld [vmem:[%s166 + $0x114] sm:$0xf]
      %v245 = vld [vmem:[%s166 + $0x118] sm:$0xf]
      %v246 = vld [vmem:[%s166 + $0x11c] sm:$0xf]
      %v247 = vld [vmem:[%s166 + $0x120] sm:$0xf]
      %v248 = vld [vmem:[%s166 + $0x124] sm:$0xf]
      %v249 = vld [vmem:[%s166 + $0x128] sm:$0xf]
      %v250 = vld [vmem:[%s166 + $0x12c] sm:$0xf]
      %v251 = vld [vmem:[%s166 + $0x130] sm:$0xf]
      %v252 = vld [vmem:[%s166 + $0x134] sm:$0xf]
      %v253 = vld [vmem:[%s166 + $0x138] sm:$0xf]
      %v254 = vld [vmem:[%s166 + $0x13c] sm:$0xf]
      %v255 = vld [vmem:[%s166 + $0x140] sm:$0xf]
      %v256 = vld [vmem:[%s166 + $0x144] sm:$0xf]
      %v257 = vld [vmem:[%s166 + $0x148] sm:$0xf]
      %v258 = vld [vmem:[%s166 + $0x14c] sm:$0xf]
      %v259 = vld [vmem:[%s166 + $0x150] sm:$0xf]
      %v260 = vld [vmem:[%s166 + $0x154] sm:$0xf]
      %v261 = vld [vmem:[%s166 + $0x158] sm:$0xf]
      %v262 = vld [vmem:[%s166 + $0x15c] sm:$0xf]
      %v263 = vld [vmem:[%s166 + $0x160] sm:$0xf]
      %v264 = vld [vmem:[%s166 + $0x164] sm:$0xf]
      %v265 = vld [vmem:[%s166 + $0x168] sm:$0xf]
      %v266 = vld [vmem:[%s166 + $0x16c] sm:$0xf]
      %v267 = vld [vmem:[%s166 + $0x170] sm:$0xf]
      %v268 = vld [vmem:[%s166 + $0x174] sm:$0xf]
      %v269 = vld [vmem:[%s166 + $0x178] sm:$0xf]
      %v270 = vld [vmem:[%s166 + $0x17c] sm:$0xf]
      %v271 = vld [vmem:[%s166 + $0x180] sm:$0xf]
      %v272 = vld [vmem:[%s166 + $0x184] sm:$0xf]
      %v273 = vld [vmem:[%s166 + $0x188] sm:$0xf]
      %v274 = vld [vmem:[%s166 + $0x18c] sm:$0xf]
      %v275 = vld [vmem:[%s166 + $0x190] sm:$0xf]
      %v276 = vld [vmem:[%s166 + $0x194] sm:$0xf]
      %v277 = vld [vmem:[%s166 + $0x198] sm:$0xf]
      %v278 = vld [vmem:[%s166 + $0x19c] sm:$0xf]
      %v279 = vld [vmem:[%s166 + $0x1a0] sm:$0xf]
      %v280 = vld [vmem:[%s166 + $0x1a4] sm:$0xf]
      %v281 = vld [vmem:[%s166 + $0x1a8] sm:$0xf]
      %v282 = vld [vmem:[%s166 + $0x1ac] sm:$0xf]
      %v283 = vld [vmem:[%s166 + $0x1b0] sm:$0xf]
      %v284 = vld [vmem:[%s166 + $0x1b4] sm:$0xf]
      %v285 = vld [vmem:[%s166 + $0x1b8] sm:$0xf]
      %v286 = vld [vmem:[%s166 + $0x1bc] sm:$0xf]
      %v287 = vld [vmem:[%s166 + $0x1c0] sm:$0xf]
      %v288 = vld [vmem:[%s166 + $0x1c4] sm:$0xf]
      %v289 = vld [vmem:[%s166 + $0x1c8] sm:$0xf]
      %v290 = vld [vmem:[%s166 + $0x1cc] sm:$0xf]
      %v291 = vld [vmem:[%s166 + $0x1d0] sm:$0xf]
      %v292 = vld [vmem:[%s166 + $0x1d4] sm:$0xf]
      %v293 = vld [vmem:[%s166 + $0x1d8] sm:$0xf]
      %v294 = vld [vmem:[%s166 + $0x1dc] sm:$0xf]
      %v295 = vld [vmem:[%s166 + $0x1e0] sm:$0xf]
      %v296 = vld [vmem:[%s166 + $0x1e4] sm:$0xf]
      %v297 = vld [vmem:[%s166 + $0x1e8] sm:$0xf]
      %v298 = vld [vmem:[%s166 + $0x1ec] sm:$0xf]
      %v299 = vld [vmem:[%s166 + $0x1f0] sm:$0xf]
      %v300 = vld [vmem:[%s166 + $0x1f4] sm:$0xf]
      %v301 = vld [vmem:[%s166 + $0x1f8] sm:$0xf]
      %v302 = vld [vmem:[%s166 + $0x1fc] sm:$0xf]
      %v303 = vld [vmem:[%s166 + $0x200] sm:$0xf]
      %v304 = vld [vmem:[%s166 + $0x204] sm:$0xf]
      %v305 = vld [vmem:[%s166 + $0x208] sm:$0xf]
      %v306 = vld [vmem:[%s166 + $0x20c] sm:$0xf]
      %v307 = vld [vmem:[%s166 + $0x210] sm:$0xf]
      %v308 = vld [vmem:[%s166 + $0x214] sm:$0xf]
      %v309 = vld [vmem:[%s166 + $0x218] sm:$0xf]
      %v310 = vld [vmem:[%s166 + $0x21c] sm:$0xf]
      %v311 = vld [vmem:[%s166 + $0x220] sm:$0xf]
      %v312 = vld [vmem:[%s166 + $0x224] sm:$0xf]
      %v313 = vld [vmem:[%s166 + $0x228] sm:$0xf]
      %v314 = vld [vmem:[%s166 + $0x22c] sm:$0xf]
      %v315 = vld [vmem:[%s166 + $0x230] sm:$0xf]
      %v316 = vld [vmem:[%s166 + $0x234] sm:$0xf]
      %v317 = vld [vmem:[%s166 + $0x238] sm:$0xf]
      %v318 = vld [vmem:[%s166 + $0x23c] sm:$0xf]
      %v319 = vld [vmem:[%s166 + $0x240] sm:$0xf]
      %v320 = vld [vmem:[%s166 + $0x244] sm:$0xf]
      %v321 = vld [vmem:[%s166 + $0x248] sm:$0xf]
      %v322 = vld [vmem:[%s166 + $0x24c] sm:$0xf]
      %v323 = vld [vmem:[%s166 + $0x250] sm:$0xf]
      %v324 = vld [vmem:[%s166 + $0x254] sm:$0xf]
      %v325 = vld [vmem:[%s166 + $0x258] sm:$0xf]
      %v326 = vld [vmem:[%s166 + $0x25c] sm:$0xf]
      %v327 = vld [vmem:[%s166 + $0x260] sm:$0xf]
      %v328 = vld [vmem:[%s166 + $0x264] sm:$0xf]
      %v329 = vld [vmem:[%s166 + $0x268] sm:$0xf]
      %v330 = vld [vmem:[%s166 + $0x26c] sm:$0xf]
      %v331 = vld [vmem:[%s166 + $0x270] sm:$0xf]
      %v332 = vld [vmem:[%s166 + $0x274] sm:$0xf]
      %v333 = vld [vmem:[%s166 + $0x278] sm:$0xf]
      %v334 = vld [vmem:[%s166 + $0x27c] sm:$0xf]
      %v335 = vld [vmem:[%s166 + $0x280] sm:$0xf]
      %v336 = vld [vmem:[%s166 + $0x284] sm:$0xf]
      %v337 = vld [vmem:[%s166 + $0x288] sm:$0xf]
      %v338 = vld [vmem:[%s166 + $0x28c] sm:$0xf]
      %v339 = vld [vmem:[%s166 + $0x290] sm:$0xf]
      %v340 = vld [vmem:[%s166 + $0x294] sm:$0xf]
      %v341 = vld [vmem:[%s166 + $0x298] sm:$0xf]
      %v342 = vld [vmem:[%s166 + $0x29c] sm:$0xf]
      %v343 = vld [vmem:[%s166 + $0x2a0] sm:$0xf]
      %v344 = vld [vmem:[%s166 + $0x2a4] sm:$0xf]
      %v345 = vld [vmem:[%s166 + $0x2a8] sm:$0xf]
      %v346 = vld [vmem:[%s166 + $0x2ac] sm:$0xf]
      %v347 = vld [vmem:[%s166 + $0x2b0] sm:$0xf]
      %v348 = vld [vmem:[%s166 + $0x2b4] sm:$0xf]
      %v349 = vld [vmem:[%s166 + $0x2b8] sm:$0xf]
      %v350 = vld [vmem:[%s166 + $0x2bc] sm:$0xf]
      %v351 = vld [vmem:[%s166 + $0x2c0] sm:$0xf]
      %v352 = vld [vmem:[%s166 + $0x2c4] sm:$0xf]
      %v353 = vld [vmem:[%s166 + $0x2c8] sm:$0xf]
      %v354 = vld [vmem:[%s166 + $0x2cc] sm:$0xf]
      %v355 = vld [vmem:[%s166 + $0x2d0] sm:$0xf]
      %v356 = vld [vmem:[%s166 + $0x2d4] sm:$0xf]
      %v357 = vld [vmem:[%s166 + $0x2d8] sm:$0xf]
      %v358 = vld [vmem:[%s166 + $0x2dc] sm:$0xf]
      %v359 = vld [vmem:[%s166 + $0x2e0] sm:$0xf]
      %v360 = vld [vmem:[%s166 + $0x2e4] sm:$0xf]
      %v361 = vld [vmem:[%s166 + $0x2e8] sm:$0xf]
      %v362 = vld [vmem:[%s166 + $0x2ec] sm:$0xf]
      %v363 = vld [vmem:[%s166 + $0x2f0] sm:$0xf]
      %v364 = vld [vmem:[%s166 + $0x2f4] sm:$0xf]
      %v365 = vld [vmem:[%s166 + $0x2f8] sm:$0xf]
      %v366 = vld [vmem:[%s166 + $0x2fc] sm:$0xf]
      %v367 = vld [vmem:[%s166 + $0x300] sm:$0xf]
      %v368 = vld [vmem:[%s166 + $0x304] sm:$0xf]
      %v369 = vld [vmem:[%s166 + $0x308] sm:$0xf]
      %v370 = vld [vmem:[%s166 + $0x30c] sm:$0xf]
      %v371 = vld [vmem:[%s166 + $0x310] sm:$0xf]
      %v372 = vld [vmem:[%s166 + $0x314] sm:$0xf]
      %v373 = vld [vmem:[%s166 + $0x318] sm:$0xf]
      %v374 = vld [vmem:[%s166 + $0x31c] sm:$0xf]
      %v375 = vld [vmem:[%s166 + $0x320] sm:$0xf]
      %v376 = vld [vmem:[%s166 + $0x324] sm:$0xf]
      %v377 = vld [vmem:[%s166 + $0x328] sm:$0xf]
      %v378 = vld [vmem:[%s166 + $0x32c] sm:$0xf]
      %v379 = vld [vmem:[%s166 + $0x330] sm:$0xf]
      %v380 = vld [vmem:[%s166 + $0x334] sm:$0xf]
      %v381 = vld [vmem:[%s166 + $0x338] sm:$0xf]
      %v382 = vld [vmem:[%s166 + $0x33c] sm:$0xf]
      %v383 = vld [vmem:[%s166 + $0x340] sm:$0xf]
      %v384 = vld [vmem:[%s166 + $0x344] sm:$0xf]
      %v385 = vld [vmem:[%s166 + $0x348] sm:$0xf]
      %v386 = vld [vmem:[%s166 + $0x34c] sm:$0xf]
      %v387 = vld [vmem:[%s166 + $0x350] sm:$0xf]
      %v388 = vld [vmem:[%s166 + $0x354] sm:$0xf]
      %v389 = vld [vmem:[%s166 + $0x358] sm:$0xf]
      %v390 = vld [vmem:[%s166 + $0x35c] sm:$0xf]
      %v391 = vld [vmem:[%s166 + $0x360] sm:$0xf]
      %v392 = vld [vmem:[%s166 + $0x364] sm:$0xf]
      %v393 = vld [vmem:[%s166 + $0x368] sm:$0xf]
      %v394 = vld [vmem:[%s166 + $0x36c] sm:$0xf]
      %v395 = vld [vmem:[%s166 + $0x370] sm:$0xf]
      %v396 = vld [vmem:[%s166 + $0x374] sm:$0xf]
      %v397 = vld [vmem:[%s166 + $0x378] sm:$0xf]
      %v398 = vld [vmem:[%s166 + $0x37c] sm:$0xf]
      %v399 = vld [vmem:[%s166 + $0x380] sm:$0xf]
      %v400 = vld [vmem:[%s166 + $0x384] sm:$0xf]
      %v401 = vld [vmem:[%s166 + $0x388] sm:$0xf]
      %v402 = vld [vmem:[%s166 + $0x38c] sm:$0xf]
      %v403 = vld [vmem:[%s166 + $0x390] sm:$0xf]
      %v404 = vld [vmem:[%s166 + $0x394] sm:$0xf]
      %v405 = vld [vmem:[%s166 + $0x398] sm:$0xf]
      %v406 = vld [vmem:[%s166 + $0x39c] sm:$0xf]
      %v407 = vld [vmem:[%s166 + $0x3a0] sm:$0xf]
      %v408 = vld [vmem:[%s166 + $0x3a4] sm:$0xf]
      %v409 = vld [vmem:[%s166 + $0x3a8] sm:$0xf]
      %v410 = vld [vmem:[%s166 + $0x3ac] sm:$0xf]
      %v411 = vld [vmem:[%s166 + $0x3b0] sm:$0xf]
      %v412 = vld [vmem:[%s166 + $0x3b4] sm:$0xf]
      %v413 = vld [vmem:[%s166 + $0x3b8] sm:$0xf]
      %v414 = vld [vmem:[%s166 + $0x3bc] sm:$0xf]
      %v415 = vld [vmem:[%s166 + $0x3c0] sm:$0xf]
      %v416 = vld [vmem:[%s166 + $0x3c4] sm:$0xf]
      %v417 = vld [vmem:[%s166 + $0x3c8] sm:$0xf]
      %v418 = vld [vmem:[%s166 + $0x3cc] sm:$0xf]
      %v419 = vld [vmem:[%s166 + $0x3d0] sm:$0xf]
      %v420 = vld [vmem:[%s166 + $0x3d4] sm:$0xf]
      %v421 = vld [vmem:[%s166 + $0x3d8] sm:$0xf]
      %v422 = vld [vmem:[%s166 + $0x3dc] sm:$0xf]
      %v423 = vld [vmem:[%s166 + $0x3e0] sm:$0xf]
      %v424 = vld [vmem:[%s166 + $0x3e4] sm:$0xf]
      %v425 = vld [vmem:[%s166 + $0x3e8] sm:$0xf]
      %v426 = vld [vmem:[%s166 + $0x3ec] sm:$0xf]
      %v427 = vld [vmem:[%s166 + $0x3f0] sm:$0xf]
      %v428 = vld [vmem:[%s166 + $0x3f4] sm:$0xf]
      %v429 = vld [vmem:[%s166 + $0x3f8] sm:$0xf]
      %v430 = vld [vmem:[%s166 + $0x3fc] sm:$0xf]
      %v431 = vld [vmem:[%s166 + $0x400] sm:$0xf]
      %v432 = vld [vmem:[%s166 + $0x404] sm:$0xf]
      %v433 = vld [vmem:[%s166 + $0x408] sm:$0xf]
      %v434 = vld [vmem:[%s166 + $0x40c] sm:$0xf]
      %v435 = vld [vmem:[%s166 + $0x410] sm:$0xf]
      %v436 = vld [vmem:[%s166 + $0x414] sm:$0xf]
      %v437 = vld [vmem:[%s166 + $0x418] sm:$0xf]
      %v438 = vld [vmem:[%s166 + $0x41c] sm:$0xf]
      %v439 = vld [vmem:[%s166 + $0x420] sm:$0xf]
      %v440 = vld [vmem:[%s166 + $0x424] sm:$0xf]
      %v441 = vld [vmem:[%s166 + $0x428] sm:$0xf]
      %v442 = vld [vmem:[%s166 + $0x42c] sm:$0xf]
      %v443 = vld [vmem:[%s166 + $0x430] sm:$0xf]
      %v444 = vld [vmem:[%s166 + $0x434] sm:$0xf]
      %v445 = vld [vmem:[%s166 + $0x438] sm:$0xf]
      %v446 = vld [vmem:[%s166 + $0x43c] sm:$0xf]
      %v447 = vld [vmem:[%s166 + $0x440] sm:$0xf]
      %v448 = vld [vmem:[%s166 + $0x444] sm:$0xf]
      %v449 = vld [vmem:[%s166 + $0x448] sm:$0xf]
      %v450 = vld [vmem:[%s166 + $0x44c] sm:$0xf]
      %v451 = vld [vmem:[%s166 + $0x450] sm:$0xf]
      %v452 = vld [vmem:[%s166 + $0x454] sm:$0xf]
      %v453 = vld [vmem:[%s166 + $0x458] sm:$0xf]
      %v454 = vld [vmem:[%s166 + $0x45c] sm:$0xf]
      %v455 = vld [vmem:[%s166 + $0x460] sm:$0xf]
      %v456 = vld [vmem:[%s166 + $0x464] sm:$0xf]
      %v457 = vld [vmem:[%s166 + $0x468] sm:$0xf]
      %v458 = vld [vmem:[%s166 + $0x46c] sm:$0xf]
      %v459 = vld [vmem:[%s166 + $0x470] sm:$0xf]
      %v460 = vld [vmem:[%s166 + $0x474] sm:$0xf]
      %v461 = vld [vmem:[%s166 + $0x478] sm:$0xf]
      %v462 = vld [vmem:[%s166 + $0x47c] sm:$0xf]
      %v463 = vld [vmem:[%s166 + $0x480] sm:$0xf]
      %v464 = vld [vmem:[%s166 + $0x484] sm:$0xf]
      %v465 = vld [vmem:[%s166 + $0x488] sm:$0xf]
      %v466 = vld [vmem:[%s166 + $0x48c] sm:$0xf]
      %v467 = vld [vmem:[%s166 + $0x490] sm:$0xf]
      %v468 = vld [vmem:[%s166 + $0x494] sm:$0xf]
      %v469 = vld [vmem:[%s166 + $0x498] sm:$0xf]
      %v470 = vld [vmem:[%s166 + $0x49c] sm:$0xf]
      %v471 = vld [vmem:[%s166 + $0x4a0] sm:$0xf]
      %v472 = vld [vmem:[%s166 + $0x4a4] sm:$0xf]
      %v473 = vld [vmem:[%s166 + $0x4a8] sm:$0xf]
      %v474 = vld [vmem:[%s166 + $0x4ac] sm:$0xf]
      %v475 = vld [vmem:[%s166 + $0x4b0] sm:$0xf]
      %v476 = vld [vmem:[%s166 + $0x4b4] sm:$0xf]
      %v477 = vld [vmem:[%s166 + $0x4b8] sm:$0xf]
      %v478 = vld [vmem:[%s166 + $0x4bc] sm:$0xf]
      %v479 = vld [vmem:[%s166 + $0x4c0] sm:$0xf]
      %v480 = vld [vmem:[%s166 + $0x4c4] sm:$0xf]
      %v481 = vld [vmem:[%s166 + $0x4c8] sm:$0xf]
      %v482 = vld [vmem:[%s166 + $0x4cc] sm:$0xf]
      %v483 = vld [vmem:[%s166 + $0x4d0] sm:$0xf]
      %v484 = vld [vmem:[%s166 + $0x4d4] sm:$0xf]
      %v485 = vld [vmem:[%s166 + $0x4d8] sm:$0xf]
      %v486 = vld [vmem:[%s166 + $0x4dc] sm:$0xf]
      %v487 = vld [vmem:[%s166 + $0x4e0] sm:$0xf]
      %v488 = vld [vmem:[%s166 + $0x4e4] sm:$0xf]
      %v489 = vld [vmem:[%s166 + $0x4e8] sm:$0xf]
      %v490 = vld [vmem:[%s166 + $0x4ec] sm:$0xf]
      %v491 = vld [vmem:[%s166 + $0x4f0] sm:$0xf]
      %v492 = vld [vmem:[%s166 + $0x4f4] sm:$0xf]
      %v493 = vld [vmem:[%s166 + $0x4f8] sm:$0xf]
      %v494 = vld [vmem:[%s166 + $0x4fc] sm:$0xf]
      %v495 = vld [vmem:[%s166 + $0x500] sm:$0xf]
      %v496 = vld [vmem:[%s166 + $0x504] sm:$0xf]
      %v497 = vld [vmem:[%s166 + $0x508] sm:$0xf]
      %v498 = vld [vmem:[%s166 + $0x50c] sm:$0xf]
      %v499 = vld [vmem:[%s166 + $0x510] sm:$0xf]
      %v500 = vld [vmem:[%s166 + $0x514] sm:$0xf]
      %v501 = vld [vmem:[%s166 + $0x518] sm:$0xf]
      %v502 = vld [vmem:[%s166 + $0x51c] sm:$0xf]
      %v503 = vld [vmem:[%s166 + $0x520] sm:$0xf]
      %v504 = vld [vmem:[%s166 + $0x524] sm:$0xf]
      %v505 = vld [vmem:[%s166 + $0x528] sm:$0xf]
      %v506 = vld [vmem:[%s166 + $0x52c] sm:$0xf]
      %v507 = vld [vmem:[%s166 + $0x530] sm:$0xf]
      %v508 = vld [vmem:[%s166 + $0x534] sm:$0xf]
      %v509 = vld [vmem:[%s166 + $0x538] sm:$0xf]
      %v510 = vld [vmem:[%s166 + $0x53c] sm:$0xf]
      %v511 = vld [vmem:[%s166 + $0x540] sm:$0xf]
      %v512 = vld [vmem:[%s166 + $0x544] sm:$0xf]
      %v513 = vld [vmem:[%s166 + $0x548] sm:$0xf]
      %v514 = vld [vmem:[%s166 + $0x54c] sm:$0xf]
      %v515 = vld [vmem:[%s166 + $0x550] sm:$0xf]
      %v516 = vld [vmem:[%s166 + $0x554] sm:$0xf]
      %v517 = vld [vmem:[%s166 + $0x558] sm:$0xf]
      %v518 = vld [vmem:[%s166 + $0x55c] sm:$0xf]
      %v519 = vld [vmem:[%s166 + $0x560] sm:$0xf]
      %v520 = vld [vmem:[%s166 + $0x564] sm:$0xf]
      %v521 = vld [vmem:[%s166 + $0x568] sm:$0xf]
      %v522 = vld [vmem:[%s166 + $0x56c] sm:$0xf]
      %v523 = vld [vmem:[%s166 + $0x570] sm:$0xf]
      %v524 = vld [vmem:[%s166 + $0x574] sm:$0xf]
      %v525 = vld [vmem:[%s166 + $0x578] sm:$0xf]
      %v526 = vld [vmem:[%s166 + $0x57c] sm:$0xf]
      %v527 = vld [vmem:[%s166 + $0x580] sm:$0xf]
      %v528 = vld [vmem:[%s166 + $0x584] sm:$0xf]
      %v529 = vld [vmem:[%s166 + $0x588] sm:$0xf]
      %v530 = vld [vmem:[%s166 + $0x58c] sm:$0xf]
      %v531 = vld [vmem:[%s166 + $0x590] sm:$0xf]
      %v532 = vld [vmem:[%s166 + $0x594] sm:$0xf]
      %v533 = vld [vmem:[%s166 + $0x598] sm:$0xf]
      %v534 = vld [vmem:[%s166 + $0x59c] sm:$0xf]
      %v535 = vld [vmem:[%s166 + $0x5a0] sm:$0xf]
      %v536 = vld [vmem:[%s166 + $0x5a4] sm:$0xf]
      %v537 = vld [vmem:[%s166 + $0x5a8] sm:$0xf]
      %v538 = vld [vmem:[%s166 + $0x5ac] sm:$0xf]
      %v539 = vld [vmem:[%s166 + $0x5b0] sm:$0xf]
      %v540 = vld [vmem:[%s166 + $0x5b4] sm:$0xf]
      %v541 = vld [vmem:[%s166 + $0x5b8] sm:$0xf]
      %v542 = vld [vmem:[%s166 + $0x5bc] sm:$0xf]
      %v543 = vld [vmem:[%s166 + $0x5c0] sm:$0xf]
      %v544 = vld [vmem:[%s166 + $0x5c4] sm:$0xf]
      %v545 = vld [vmem:[%s166 + $0x5c8] sm:$0xf]
      %v546 = vld [vmem:[%s166 + $0x5cc] sm:$0xf]
      %v547 = vld [vmem:[%s166 + $0x5d0] sm:$0xf]
      %v548 = vld [vmem:[%s166 + $0x5d4] sm:$0xf]
      %v549 = vld [vmem:[%s166 + $0x5d8] sm:$0xf]
      %v550 = vld [vmem:[%s166 + $0x5dc] sm:$0xf]
      %v551 = vld [vmem:[%s166 + $0x5e0] sm:$0xf]
      %v552 = vld [vmem:[%s166 + $0x5e4] sm:$0xf]
      %v553 = vld [vmem:[%s166 + $0x5e8] sm:$0xf]
      %v554 = vld [vmem:[%s166 + $0x5ec] sm:$0xf]
      %v555 = vld [vmem:[%s166 + $0x5f0] sm:$0xf]
      %v556 = vld [vmem:[%s166 + $0x5f4] sm:$0xf]
      %v557 = vld [vmem:[%s166 + $0x5f8] sm:$0xf]
      %v558 = vld [vmem:[%s166 + $0x5fc] sm:$0xf]
      %v559 = vld [vmem:[%s166 + $0x600] sm:$0xf]
      %v560 = vld [vmem:[%s166 + $0x604] sm:$0xf]
      %v561 = vld [vmem:[%s166 + $0x608] sm:$0xf]
      %v562 = vld [vmem:[%s166 + $0x60c] sm:$0xf]
      %v563 = vld [vmem:[%s166 + $0x610] sm:$0xf]
      %v564 = vld [vmem:[%s166 + $0x614] sm:$0xf]
      %v565 = vld [vmem:[%s166 + $0x618] sm:$0xf]
      %v566 = vld [vmem:[%s166 + $0x61c] sm:$0xf]
      %v567 = vld [vmem:[%s166 + $0x620] sm:$0xf]
      %v568 = vld [vmem:[%s166 + $0x624] sm:$0xf]
      %v569 = vld [vmem:[%s166 + $0x628] sm:$0xf]
      %v570 = vld [vmem:[%s166 + $0x62c] sm:$0xf]
      %v571 = vld [vmem:[%s166 + $0x630] sm:$0xf]
      %v572 = vld [vmem:[%s166 + $0x634] sm:$0xf]
      %v573 = vld [vmem:[%s166 + $0x638] sm:$0xf]
      %v574 = vld [vmem:[%s166 + $0x63c] sm:$0xf]
      %v575 = vld [vmem:[%s166 + $0x640] sm:$0xf]
      %v576 = vld [vmem:[%s166 + $0x644] sm:$0xf]
      %v577 = vld [vmem:[%s166 + $0x648] sm:$0xf]
      %v578 = vld [vmem:[%s166 + $0x64c] sm:$0xf]
      %v579 = vld [vmem:[%s166 + $0x650] sm:$0xf]
      %v580 = vld [vmem:[%s166 + $0x654] sm:$0xf]
      %v581 = vld [vmem:[%s166 + $0x658] sm:$0xf]
      %v582 = vld [vmem:[%s166 + $0x65c] sm:$0xf]
      %v583 = vld [vmem:[%s166 + $0x660] sm:$0xf]
      %v584 = vld [vmem:[%s166 + $0x664] sm:$0xf]
      %v585 = vld [vmem:[%s166 + $0x668] sm:$0xf]
      %v586 = vld [vmem:[%s166 + $0x66c] sm:$0xf]
      %v587 = vld [vmem:[%s166 + $0x670] sm:$0xf]
      %v588 = vld [vmem:[%s166 + $0x674] sm:$0xf]
      %v589 = vld [vmem:[%s166 + $0x678] sm:$0xf]
      %v590 = vld [vmem:[%s166 + $0x67c] sm:$0xf]
      %v591 = vld [vmem:[%s166 + $0x680] sm:$0xf]
      %v592 = vld [vmem:[%s166 + $0x684] sm:$0xf]
      %v593 = vld [vmem:[%s166 + $0x688] sm:$0xf]
      %v594 = vld [vmem:[%s166 + $0x68c] sm:$0xf]
      %v595 = vld [vmem:[%s166 + $0x690] sm:$0xf]
      %v596 = vld [vmem:[%s166 + $0x694] sm:$0xf]
      %v597 = vld [vmem:[%s166 + $0x698] sm:$0xf]
      %v598 = vld [vmem:[%s166 + $0x69c] sm:$0xf]
      %v599 = vld [vmem:[%s166 + $0x6a0] sm:$0xf]
      %v600 = vld [vmem:[%s166 + $0x6a4] sm:$0xf]
      %v601 = vld [vmem:[%s166 + $0x6a8] sm:$0xf]
      %v602 = vld [vmem:[%s166 + $0x6ac] sm:$0xf]
      %v603 = vld [vmem:[%s166 + $0x6b0] sm:$0xf]
      %v604 = vld [vmem:[%s166 + $0x6b4] sm:$0xf]
      %v605 = vld [vmem:[%s166 + $0x6b8] sm:$0xf]
      %v606 = vld [vmem:[%s166 + $0x6bc] sm:$0xf]
      %v607 = vld [vmem:[%s166 + $0x6c0] sm:$0xf]
      %v608 = vld [vmem:[%s166 + $0x6c4] sm:$0xf]
      %v609 = vld [vmem:[%s166 + $0x6c8] sm:$0xf]
      %v610 = vld [vmem:[%s166 + $0x6cc] sm:$0xf]
      %v611 = vld [vmem:[%s166 + $0x6d0] sm:$0xf]
      %v612 = vld [vmem:[%s166 + $0x6d4] sm:$0xf]
      %v613 = vld [vmem:[%s166 + $0x6d8] sm:$0xf]
      %v614 = vld [vmem:[%s166 + $0x6dc] sm:$0xf]
      %v615 = vld [vmem:[%s166 + $0x6e0] sm:$0xf]
      %v616 = vld [vmem:[%s166 + $0x6e4] sm:$0xf]
      %v617 = vld [vmem:[%s166 + $0x6e8] sm:$0xf]
      %v618 = vld [vmem:[%s166 + $0x6ec] sm:$0xf]
      %v619 = vld [vmem:[%s166 + $0x6f0] sm:$0xf]
      %v620 = vld [vmem:[%s166 + $0x6f4] sm:$0xf]
      %v621 = vld [vmem:[%s166 + $0x6f8] sm:$0xf]
      %v622 = vld [vmem:[%s166 + $0x6fc] sm:$0xf]
      %v623 = vld [vmem:[%s166 + $0x700] sm:$0xf]
      %v624 = vld [vmem:[%s166 + $0x704] sm:$0xf]
      %v625 = vld [vmem:[%s166 + $0x708] sm:$0xf]
      %v626 = vld [vmem:[%s166 + $0x70c] sm:$0xf]
      %v627 = vld [vmem:[%s166 + $0x710] sm:$0xf]
      %v628 = vld [vmem:[%s166 + $0x714] sm:$0xf]
      %v629 = vld [vmem:[%s166 + $0x718] sm:$0xf]
      %v630 = vld [vmem:[%s166 + $0x71c] sm:$0xf]
      %v631 = vld [vmem:[%s166 + $0x720] sm:$0xf]
      %v632 = vld [vmem:[%s166 + $0x724] sm:$0xf]
      %v633 = vld [vmem:[%s166 + $0x728] sm:$0xf]
      %v634 = vld [vmem:[%s166 + $0x72c] sm:$0xf]
      %v635 = vld [vmem:[%s166 + $0x730] sm:$0xf]
      %v636 = vld [vmem:[%s166 + $0x734] sm:$0xf]
      %v637 = vld [vmem:[%s166 + $0x738] sm:$0xf]
      %v638 = vld [vmem:[%s166 + $0x73c] sm:$0xf]
      %v639 = vld [vmem:[%s166 + $0x740] sm:$0xf]
      %v640 = vld [vmem:[%s166 + $0x744] sm:$0xf]
      %v641 = vld [vmem:[%s166 + $0x748] sm:$0xf]
      %v642 = vld [vmem:[%s166 + $0x74c] sm:$0xf]
      %v643 = vld [vmem:[%s166 + $0x750] sm:$0xf]
      %v644 = vld [vmem:[%s166 + $0x754] sm:$0xf]
      %v645 = vld [vmem:[%s166 + $0x758] sm:$0xf]
      %v646 = vld [vmem:[%s166 + $0x75c] sm:$0xf]
      %v647 = vld [vmem:[%s166 + $0x760] sm:$0xf]
      %v648 = vld [vmem:[%s166 + $0x764] sm:$0xf]
      %v649 = vld [vmem:[%s166 + $0x768] sm:$0xf]
      %v650 = vld [vmem:[%s166 + $0x76c] sm:$0xf]
      %v651 = vld [vmem:[%s166 + $0x770] sm:$0xf]
      %v652 = vld [vmem:[%s166 + $0x774] sm:$0xf]
      %v653 = vld [vmem:[%s166 + $0x778] sm:$0xf]
      %v654 = vld [vmem:[%s166 + $0x77c] sm:$0xf]
      %v655 = vld [vmem:[%s166 + $0x780] sm:$0xf]
      %v656 = vld [vmem:[%s166 + $0x784] sm:$0xf]
      %v657 = vld [vmem:[%s166 + $0x788] sm:$0xf]
      %v658 = vld [vmem:[%s166 + $0x78c] sm:$0xf]
      %v659 = vld [vmem:[%s166 + $0x790] sm:$0xf]
      %v660 = vld [vmem:[%s166 + $0x794] sm:$0xf]
      %v661 = vld [vmem:[%s166 + $0x798] sm:$0xf]
      %v662 = vld [vmem:[%s166 + $0x79c] sm:$0xf]
      %v663 = vld [vmem:[%s166 + $0x7a0] sm:$0xf]
      %v664 = vld [vmem:[%s166 + $0x7a4] sm:$0xf]
      %v665 = vld [vmem:[%s166 + $0x7a8] sm:$0xf]
      %v666 = vld [vmem:[%s166 + $0x7ac] sm:$0xf]
      %v667 = vld [vmem:[%s166 + $0x7b0] sm:$0xf]
      %v668 = vld [vmem:[%s166 + $0x7b4] sm:$0xf]
      %v669 = vld [vmem:[%s166 + $0x7b8] sm:$0xf]
      %v670 = vld [vmem:[%s166 + $0x7bc] sm:$0xf]
      %v671 = vld [vmem:[%s166 + $0x7c0] sm:$0xf]
      %v672 = vld [vmem:[%s166 + $0x7c4] sm:$0xf]
      %v673 = vld [vmem:[%s166 + $0x7c8] sm:$0xf]
      %v674 = vld [vmem:[%s166 + $0x7cc] sm:$0xf]
      %v675 = vld [vmem:[%s166 + $0x7d0] sm:$0xf]
      %v676 = vld [vmem:[%s166 + $0x7d4] sm:$0xf]
      %v677 = vld [vmem:[%s166 + $0x7d8] sm:$0xf]
      %v678 = vld [vmem:[%s166 + $0x7dc] sm:$0xf]
      %v679 = vld [vmem:[%s166 + $0x7e0] sm:$0xf]
      %v680 = vld [vmem:[%s166 + $0x7e4] sm:$0xf]
      %v681 = vld [vmem:[%s166 + $0x7e8] sm:$0xf]
      %v682 = vld [vmem:[%s166 + $0x7ec] sm:$0xf]
      %v683 = vld [vmem:[%s166 + $0x7f0] sm:$0xf]
      %v684 = vld [vmem:[%s166 + $0x7f4] sm:$0xf]
      %v685 = vld [vmem:[%s166 + $0x7f8] sm:$0xf]
      %v686 = vld [vmem:[%s166 + $0x7fc] sm:$0xf]
      %v687 = vld [vmem:[%s166 + $0x800] sm:$0xf]
      %v688 = vld [vmem:[%s166 + $0x804] sm:$0xf]
      %v689 = vld [vmem:[%s166 + $0x808] sm:$0xf]
      %v690 = vld [vmem:[%s166 + $0x80c] sm:$0xf]
      %v691 = vld [vmem:[%s166 + $0x810] sm:$0xf]
      %v692 = vld [vmem:[%s166 + $0x814] sm:$0xf]
      %v693 = vld [vmem:[%s166 + $0x818] sm:$0xf]
      %v694 = vld [vmem:[%s166 + $0x81c] sm:$0xf]
      %v695 = vld [vmem:[%s166 + $0x820] sm:$0xf]
      %v696 = vld [vmem:[%s166 + $0x824] sm:$0xf]
      %v697 = vld [vmem:[%s166 + $0x828] sm:$0xf]
      %v698 = vld [vmem:[%s166 + $0x82c] sm:$0xf]
      %v699 = vld [vmem:[%s166 + $0x830] sm:$0xf]
      %v700 = vld [vmem:[%s166 + $0x834] sm:$0xf]
      %v701 = vld [vmem:[%s166 + $0x838] sm:$0xf]
      %v702 = vld [vmem:[%s166 + $0x83c] sm:$0xf]
      %v703 = vld [vmem:[%s166 + $0x840] sm:$0xf]
      %v704 = vld [vmem:[%s166 + $0x844] sm:$0xf]
      %v705 = vld [vmem:[%s166 + $0x848] sm:$0xf]
      %v706 = vld [vmem:[%s166 + $0x84c] sm:$0xf]
      %v707 = vld [vmem:[%s166 + $0x850] sm:$0xf]
      %v708 = vld [vmem:[%s166 + $0x854] sm:$0xf]
      %v709 = vld [vmem:[%s166 + $0x858] sm:$0xf]
      %v710 = vld [vmem:[%s166 + $0x85c] sm:$0xf]
      %v711 = vld [vmem:[%s166 + $0x860] sm:$0xf]
      %v712 = vld [vmem:[%s166 + $0x864] sm:$0xf]
      %v713 = vld [vmem:[%s166 + $0x868] sm:$0xf]
      %v714 = vld [vmem:[%s166 + $0x86c] sm:$0xf]
      %v715 = vld [vmem:[%s166 + $0x870] sm:$0xf]
      %v716 = vld [vmem:[%s166 + $0x874] sm:$0xf]
      %v717 = vld [vmem:[%s166 + $0x878] sm:$0xf]
      %v718 = vld [vmem:[%s166 + $0x87c] sm:$0xf]
      %v719 = vld [vmem:[%s166 + $0x880] sm:$0xf]
      %v720 = vld [vmem:[%s166 + $0x884] sm:$0xf]
      %v721 = vld [vmem:[%s166 + $0x888] sm:$0xf]
      %v722 = vld [vmem:[%s166 + $0x88c] sm:$0xf]
      %v723 = vld [vmem:[%s166 + $0x890] sm:$0xf]
      %v724 = vld [vmem:[%s166 + $0x894] sm:$0xf]
      %v725 = vld [vmem:[%s166 + $0x898] sm:$0xf]
      %v726 = vld [vmem:[%s166 + $0x89c] sm:$0xf]
      %v727 = vld [vmem:[%s166 + $0x8a0] sm:$0xf]
      %v728 = vld [vmem:[%s166 + $0x8a4] sm:$0xf]
      %v729 = vld [vmem:[%s166 + $0x8a8] sm:$0xf]
      %v730 = vld [vmem:[%s166 + $0x8ac] sm:$0xf]
      %v731 = vld [vmem:[%s166 + $0x8b0] sm:$0xf]
      %v732 = vld [vmem:[%s166 + $0x8b4] sm:$0xf]
      %v733 = vld [vmem:[%s166 + $0x8b8] sm:$0xf]
      %v734 = vld [vmem:[%s166 + $0x8bc] sm:$0xf]
      %v735 = vld [vmem:[%s166 + $0x8c0] sm:$0xf]
      %v736 = vld [vmem:[%s166 + $0x8c4] sm:$0xf]
      %v737 = vld [vmem:[%s166 + $0x8c8] sm:$0xf]
      %v738 = vld [vmem:[%s166 + $0x8cc] sm:$0xf]
      %v739 = vld [vmem:[%s166 + $0x8d0] sm:$0xf]
      %v740 = vld [vmem:[%s166 + $0x8d4] sm:$0xf]
      %v741 = vld [vmem:[%s166 + $0x8d8] sm:$0xf]
      %v742 = vld [vmem:[%s166 + $0x8dc] sm:$0xf]
      %v743 = vld [vmem:[%s166 + $0x8e0] sm:$0xf]
      %v744 = vld [vmem:[%s166 + $0x8e4] sm:$0xf]
      %v745 = vld [vmem:[%s166 + $0x8e8] sm:$0xf]
      %v746 = vld [vmem:[%s166 + $0x8ec] sm:$0xf]
      %v747 = vld [vmem:[%s166 + $0x8f0] sm:$0xf]
      %v748 = vld [vmem:[%s166 + $0x8f4] sm:$0xf]
      %v749 = vld [vmem:[%s166 + $0x8f8] sm:$0xf]
      %v750 = vld [vmem:[%s166 + $0x8fc] sm:$0xf]
      %v751 = vld [vmem:[%s1] sm:$0xf]
      %v752 = vld [vmem:[%s1 + $0x4] sm:$0xf]
      %v753 = vld [vmem:[%s1 + $0x8] sm:$0xf]
      %v754 = vld [vmem:[%s1 + $0xc] sm:$0xf]
      %v1331 = vunpack.c.l.b16 %v175
      %v1332 = vunpack.c.l.b16 %v176
      %v1333 = vunpack.c.l.b16 %v177
      %v1334 = vunpack.c.l.b16 %v178
      %v1335 = vunpack.c.l.b16 %v179
      %v1336 = vunpack.c.l.b16 %v180
      %v1337 = vunpack.c.l.b16 %v181
      %v1338 = vunpack.c.l.b16 %v182
      %v1339 = vunpack.c.l.b16 %v183
      %v1340 = vunpack.c.l.b16 %v184
      %v1341 = vunpack.c.l.b16 %v185
      %v1342 = vunpack.c.l.b16 %v186
      %v1343 = vunpack.c.l.b16 %v187
      %v1344 = vunpack.c.l.b16 %v188
      %v1345 = vunpack.c.l.b16 %v189
      %v1346 = vunpack.c.l.b16 %v190
      %v1347 = vunpack.c.l.b16 %v191
      %v1348 = vunpack.c.l.b16 %v192
      %v1349 = vunpack.c.l.b16 %v193
      %v1350 = vunpack.c.l.b16 %v194
      %v1351 = vunpack.c.l.b16 %v195
      %v1352 = vunpack.c.l.b16 %v196
      %v1353 = vunpack.c.l.b16 %v197
      %v1354 = vunpack.c.l.b16 %v198
      %v1355 = vunpack.c.l.b16 %v199
      %v1356 = vunpack.c.l.b16 %v200
      %v1357 = vunpack.c.l.b16 %v201
      %v1358 = vunpack.c.l.b16 %v202
      %v1359 = vunpack.c.l.b16 %v203
      %v1360 = vunpack.c.l.b16 %v204
      %v1361 = vunpack.c.l.b16 %v205
      %v1362 = vunpack.c.l.b16 %v206
      %v1363 = vunpack.c.l.b16 %v207
      %v1364 = vunpack.c.l.b16 %v208
      %v1365 = vunpack.c.l.b16 %v209
      %v1366 = vunpack.c.l.b16 %v210
      %v1367 = vunpack.c.l.b16 %v211
      %v1368 = vunpack.c.l.b16 %v212
      %v1369 = vunpack.c.l.b16 %v213
      %v1370 = vunpack.c.l.b16 %v214
      %v1371 = vunpack.c.l.b16 %v215
      %v1372 = vunpack.c.l.b16 %v216
      %v1373 = vunpack.c.l.b16 %v217
      %v1374 = vunpack.c.l.b16 %v218
      %v1375 = vunpack.c.l.b16 %v219
      %v1376 = vunpack.c.l.b16 %v220
      %v1377 = vunpack.c.l.b16 %v221
      %v1378 = vunpack.c.l.b16 %v222
      %v1379 = vunpack.c.l.b16 %v223
      %v1380 = vunpack.c.l.b16 %v224
      %v1381 = vunpack.c.l.b16 %v225
      %v1382 = vunpack.c.l.b16 %v226
      %v1383 = vunpack.c.l.b16 %v227
      %v1384 = vunpack.c.l.b16 %v228
      %v1385 = vunpack.c.l.b16 %v229
      %v1386 = vunpack.c.l.b16 %v230
      %v1387 = vunpack.c.l.b16 %v231
      %v1388 = vunpack.c.l.b16 %v232
      %v1389 = vunpack.c.l.b16 %v233
      %v1390 = vunpack.c.l.b16 %v234
      %v1391 = vunpack.c.l.b16 %v235
      %v1392 = vunpack.c.l.b16 %v236
      %v1393 = vunpack.c.l.b16 %v237
      %v1394 = vunpack.c.l.b16 %v238
      %v1395 = vunpack.c.l.b16 %v239
      %v1396 = vunpack.c.l.b16 %v240
      %v1397 = vunpack.c.l.b16 %v241
      %v1398 = vunpack.c.l.b16 %v242
      %v1399 = vunpack.c.l.b16 %v243
      %v1400 = vunpack.c.l.b16 %v244
      %v1401 = vunpack.c.l.b16 %v245
      %v1402 = vunpack.c.l.b16 %v246
      %v1403 = vunpack.c.l.b16 %v247
      %v1404 = vunpack.c.l.b16 %v248
      %v1405 = vunpack.c.l.b16 %v249
      %v1406 = vunpack.c.l.b16 %v250
      %v1407 = vunpack.c.l.b16 %v251
      %v1408 = vunpack.c.l.b16 %v252
      %v1409 = vunpack.c.l.b16 %v253
      %v1410 = vunpack.c.l.b16 %v254
      %v1411 = vunpack.c.l.b16 %v255
      %v1412 = vunpack.c.l.b16 %v256
      %v1413 = vunpack.c.l.b16 %v257
      %v1414 = vunpack.c.l.b16 %v258
      %v1415 = vunpack.c.l.b16 %v259
      %v1416 = vunpack.c.l.b16 %v260
      %v1417 = vunpack.c.l.b16 %v261
      %v1418 = vunpack.c.l.b16 %v262
      %v1419 = vunpack.c.l.b16 %v263
      %v1420 = vunpack.c.l.b16 %v264
      %v1421 = vunpack.c.l.b16 %v265
      %v1422 = vunpack.c.l.b16 %v266
      %v1423 = vunpack.c.l.b16 %v267
      %v1424 = vunpack.c.l.b16 %v268
      %v1425 = vunpack.c.l.b16 %v269
      %v1426 = vunpack.c.l.b16 %v270
      %v1427 = vunpack.c.l.b16 %v271
      %v1428 = vunpack.c.l.b16 %v272
      %v1429 = vunpack.c.l.b16 %v273
      %v1430 = vunpack.c.l.b16 %v274
      %v1431 = vunpack.c.l.b16 %v275
      %v1432 = vunpack.c.l.b16 %v276
      %v1433 = vunpack.c.l.b16 %v277
      %v1434 = vunpack.c.l.b16 %v278
      %v1435 = vunpack.c.l.b16 %v279
      %v1436 = vunpack.c.l.b16 %v280
      %v1437 = vunpack.c.l.b16 %v281
      %v1438 = vunpack.c.l.b16 %v282
      %v1439 = vunpack.c.l.b16 %v283
      %v1440 = vunpack.c.l.b16 %v284
      %v1441 = vunpack.c.l.b16 %v285
      %v1442 = vunpack.c.l.b16 %v286
      %v1443 = vunpack.c.l.b16 %v287
      %v1444 = vunpack.c.l.b16 %v288
      %v1445 = vunpack.c.l.b16 %v289
      %v1446 = vunpack.c.l.b16 %v290
      %v1447 = vunpack.c.l.b16 %v291
      %v1448 = vunpack.c.l.b16 %v292
      %v1449 = vunpack.c.l.b16 %v293
      %v1450 = vunpack.c.l.b16 %v294
      %v1451 = vunpack.c.l.b16 %v295
      %v1452 = vunpack.c.l.b16 %v296
      %v1453 = vunpack.c.l.b16 %v297
      %v1454 = vunpack.c.l.b16 %v298
      %v1455 = vunpack.c.l.b16 %v299
      %v1456 = vunpack.c.l.b16 %v300
      %v1457 = vunpack.c.l.b16 %v301
      %v1458 = vunpack.c.l.b16 %v302
      %v1459 = vunpack.c.l.b16 %v303
      %v1460 = vunpack.c.l.b16 %v304
      %v1461 = vunpack.c.l.b16 %v305
      %v1462 = vunpack.c.l.b16 %v306
      %v1463 = vunpack.c.l.b16 %v307
      %v1464 = vunpack.c.l.b16 %v308
      %v1465 = vunpack.c.l.b16 %v309
      %v1466 = vunpack.c.l.b16 %v310
      %v1467 = vunpack.c.l.b16 %v311
      %v1468 = vunpack.c.l.b16 %v312
      %v1469 = vunpack.c.l.b16 %v313
      %v1470 = vunpack.c.l.b16 %v314
      %v1471 = vunpack.c.l.b16 %v315
      %v1472 = vunpack.c.l.b16 %v316
      %v1473 = vunpack.c.l.b16 %v317
      %v1474 = vunpack.c.l.b16 %v318
      %v1475 = vunpack.c.l.b16 %v319
      %v1476 = vunpack.c.l.b16 %v320
      %v1477 = vunpack.c.l.b16 %v321
      %v1478 = vunpack.c.l.b16 %v322
      %v1479 = vunpack.c.l.b16 %v323
      %v1480 = vunpack.c.l.b16 %v324
      %v1481 = vunpack.c.l.b16 %v325
      %v1482 = vunpack.c.l.b16 %v326
      %v1483 = vunpack.c.l.b16 %v327
      %v1484 = vunpack.c.l.b16 %v328
      %v1485 = vunpack.c.l.b16 %v329
      %v1486 = vunpack.c.l.b16 %v330
      %v1487 = vunpack.c.l.b16 %v331
      %v1488 = vunpack.c.l.b16 %v332
      %v1489 = vunpack.c.l.b16 %v333
      %v1490 = vunpack.c.l.b16 %v334
      %v1491 = vunpack.c.l.b16 %v335
      %v1492 = vunpack.c.l.b16 %v336
      %v1493 = vunpack.c.l.b16 %v337
      %v1494 = vunpack.c.l.b16 %v338
      %v1495 = vunpack.c.l.b16 %v339
      %v1496 = vunpack.c.l.b16 %v340
      %v1497 = vunpack.c.l.b16 %v341
      %v1498 = vunpack.c.l.b16 %v342
      %v1499 = vunpack.c.l.b16 %v343
      %v1500 = vunpack.c.l.b16 %v344
      %v1501 = vunpack.c.l.b16 %v345
      %v1502 = vunpack.c.l.b16 %v346
      %v1503 = vunpack.c.l.b16 %v347
      %v1504 = vunpack.c.l.b16 %v348
      %v1505 = vunpack.c.l.b16 %v349
      %v1506 = vunpack.c.l.b16 %v350
      %v1507 = vunpack.c.l.b16 %v351
      %v1508 = vunpack.c.l.b16 %v352
      %v1509 = vunpack.c.l.b16 %v353
      %v1510 = vunpack.c.l.b16 %v354
      %v1511 = vunpack.c.l.b16 %v355
      %v1512 = vunpack.c.l.b16 %v356
      %v1513 = vunpack.c.l.b16 %v357
      %v1514 = vunpack.c.l.b16 %v358
      %v1515 = vunpack.c.l.b16 %v359
      %v1516 = vunpack.c.l.b16 %v360
      %v1517 = vunpack.c.l.b16 %v361
      %v1518 = vunpack.c.l.b16 %v362
      %v1519 = vunpack.c.l.b16 %v363
      %v1520 = vunpack.c.l.b16 %v364
      %v1521 = vunpack.c.l.b16 %v365
      %v1522 = vunpack.c.l.b16 %v366
      %v1523 = vunpack.c.l.b16 %v367
      %v1524 = vunpack.c.l.b16 %v368
      %v1525 = vunpack.c.l.b16 %v369
      %v1526 = vunpack.c.l.b16 %v370
      %v1527 = vunpack.c.l.b16 %v371
      %v1528 = vunpack.c.l.b16 %v372
      %v1529 = vunpack.c.l.b16 %v373
      %v1530 = vunpack.c.l.b16 %v374
      %v1531 = vunpack.c.l.b16 %v375
      %v1532 = vunpack.c.l.b16 %v376
      %v1533 = vunpack.c.l.b16 %v377
      %v1534 = vunpack.c.l.b16 %v378
      %v1535 = vunpack.c.l.b16 %v379
      %v1536 = vunpack.c.l.b16 %v380
      %v1537 = vunpack.c.l.b16 %v381
      %v1538 = vunpack.c.l.b16 %v382
      %v1539 = vunpack.c.l.b16 %v383
      %v1540 = vunpack.c.l.b16 %v384
      %v1541 = vunpack.c.l.b16 %v385
      %v1542 = vunpack.c.l.b16 %v386
      %v1543 = vunpack.c.l.b16 %v387
      %v1544 = vunpack.c.l.b16 %v388
      %v1545 = vunpack.c.l.b16 %v389
      %v1546 = vunpack.c.l.b16 %v390
      %v1547 = vunpack.c.l.b16 %v391
      %v1548 = vunpack.c.l.b16 %v392
      %v1549 = vunpack.c.l.b16 %v393
      %v1550 = vunpack.c.l.b16 %v394
      %v1551 = vunpack.c.l.b16 %v395
      %v1552 = vunpack.c.l.b16 %v396
      %v1553 = vunpack.c.l.b16 %v397
      %v1554 = vunpack.c.l.b16 %v398
      %v1555 = vunpack.c.l.b16 %v399
      %v1556 = vunpack.c.l.b16 %v400
      %v1557 = vunpack.c.l.b16 %v401
      %v1558 = vunpack.c.l.b16 %v402
      %v1559 = vunpack.c.l.b16 %v403
      %v1560 = vunpack.c.l.b16 %v404
      %v1561 = vunpack.c.l.b16 %v405
      %v1562 = vunpack.c.l.b16 %v406
      %v1563 = vunpack.c.l.b16 %v407
      %v1564 = vunpack.c.l.b16 %v408
      %v1565 = vunpack.c.l.b16 %v409
      %v1566 = vunpack.c.l.b16 %v410
      %v1567 = vunpack.c.l.b16 %v411
      %v1568 = vunpack.c.l.b16 %v412
      %v1569 = vunpack.c.l.b16 %v413
      %v1570 = vunpack.c.l.b16 %v414
      %v1571 = vunpack.c.l.b16 %v415
      %v1572 = vunpack.c.l.b16 %v416
      %v1573 = vunpack.c.l.b16 %v417
      %v1574 = vunpack.c.l.b16 %v418
      %v1575 = vunpack.c.l.b16 %v419
      %v1576 = vunpack.c.l.b16 %v420
      %v1577 = vunpack.c.l.b16 %v421
      %v1578 = vunpack.c.l.b16 %v422
      %v1579 = vunpack.c.l.b16 %v423
      %v1580 = vunpack.c.l.b16 %v424
      %v1581 = vunpack.c.l.b16 %v425
      %v1582 = vunpack.c.l.b16 %v426
      %v1583 = vunpack.c.l.b16 %v427
      %v1584 = vunpack.c.l.b16 %v428
      %v1585 = vunpack.c.l.b16 %v429
      %v1586 = vunpack.c.l.b16 %v430
      %v1587 = vunpack.c.l.b16 %v431
      %v1588 = vunpack.c.l.b16 %v432
      %v1589 = vunpack.c.l.b16 %v433
      %v1590 = vunpack.c.l.b16 %v434
      %v1591 = vunpack.c.l.b16 %v435
      %v1592 = vunpack.c.l.b16 %v436
      %v1593 = vunpack.c.l.b16 %v437
      %v1594 = vunpack.c.l.b16 %v438
      %v1595 = vunpack.c.l.b16 %v439
      %v1596 = vunpack.c.l.b16 %v440
      %v1597 = vunpack.c.l.b16 %v441
      %v1598 = vunpack.c.l.b16 %v442
      %v1599 = vunpack.c.l.b16 %v443
      %v1600 = vunpack.c.l.b16 %v444
      %v1601 = vunpack.c.l.b16 %v445
      %v1602 = vunpack.c.l.b16 %v446
      %v1603 = vunpack.c.l.b16 %v447
      %v1604 = vunpack.c.l.b16 %v448
      %v1605 = vunpack.c.l.b16 %v449
      %v1606 = vunpack.c.l.b16 %v450
      %v1607 = vunpack.c.l.b16 %v451
      %v1608 = vunpack.c.l.b16 %v452
      %v1609 = vunpack.c.l.b16 %v453
      %v1610 = vunpack.c.l.b16 %v454
      %v1611 = vunpack.c.l.b16 %v455
      %v1612 = vunpack.c.l.b16 %v456
      %v1613 = vunpack.c.l.b16 %v457
      %v1614 = vunpack.c.l.b16 %v458
      %v1615 = vunpack.c.l.b16 %v459
      %v1616 = vunpack.c.l.b16 %v460
      %v1617 = vunpack.c.l.b16 %v461
      %v1618 = vunpack.c.l.b16 %v462
      %v1619 = vunpack.c.l.b16 %v463
      %v1620 = vunpack.c.l.b16 %v464
      %v1621 = vunpack.c.l.b16 %v465
      %v1622 = vunpack.c.l.b16 %v466
      %v1623 = vunpack.c.l.b16 %v467
      %v1624 = vunpack.c.l.b16 %v468
      %v1625 = vunpack.c.l.b16 %v469
      %v1626 = vunpack.c.l.b16 %v470
      %v1627 = vunpack.c.l.b16 %v471
      %v1628 = vunpack.c.l.b16 %v472
      %v1629 = vunpack.c.l.b16 %v473
      %v1630 = vunpack.c.l.b16 %v474
      %v1631 = vunpack.c.l.b16 %v475
      %v1632 = vunpack.c.l.b16 %v476
      %v1633 = vunpack.c.l.b16 %v477
      %v1634 = vunpack.c.l.b16 %v478
      %v1635 = vunpack.c.l.b16 %v479
      %v1636 = vunpack.c.l.b16 %v480
      %v1637 = vunpack.c.l.b16 %v481
      %v1638 = vunpack.c.l.b16 %v482
      %v1639 = vunpack.c.l.b16 %v483
      %v1640 = vunpack.c.l.b16 %v484
      %v1641 = vunpack.c.l.b16 %v485
      %v1642 = vunpack.c.l.b16 %v486
      %v1643 = vunpack.c.l.b16 %v487
      %v1644 = vunpack.c.l.b16 %v488
      %v1645 = vunpack.c.l.b16 %v489
      %v1646 = vunpack.c.l.b16 %v490
      %v1647 = vunpack.c.l.b16 %v491
      %v1648 = vunpack.c.l.b16 %v492
      %v1649 = vunpack.c.l.b16 %v493
      %v1650 = vunpack.c.l.b16 %v494
      %v1651 = vunpack.c.l.b16 %v495
      %v1652 = vunpack.c.l.b16 %v496
      %v1653 = vunpack.c.l.b16 %v497
      %v1654 = vunpack.c.l.b16 %v498
      %v1655 = vunpack.c.l.b16 %v499
      %v1656 = vunpack.c.l.b16 %v500
      %v1657 = vunpack.c.l.b16 %v501
      %v1658 = vunpack.c.l.b16 %v502
      %v1659 = vunpack.c.l.b16 %v503
      %v1660 = vunpack.c.l.b16 %v504
      %v1661 = vunpack.c.l.b16 %v505
      %v1662 = vunpack.c.l.b16 %v506
      %v1663 = vunpack.c.l.b16 %v507
      %v1664 = vunpack.c.l.b16 %v508
      %v1665 = vunpack.c.l.b16 %v509
      %v1666 = vunpack.c.l.b16 %v510
      %v1667 = vunpack.c.l.b16 %v511
      %v1668 = vunpack.c.l.b16 %v512
      %v1669 = vunpack.c.l.b16 %v513
      %v1670 = vunpack.c.l.b16 %v514
      %v1671 = vunpack.c.l.b16 %v515
      %v1672 = vunpack.c.l.b16 %v516
      %v1673 = vunpack.c.l.b16 %v517
      %v1674 = vunpack.c.l.b16 %v518
      %v1675 = vunpack.c.l.b16 %v519
      %v1676 = vunpack.c.l.b16 %v520
      %v1677 = vunpack.c.l.b16 %v521
      %v1678 = vunpack.c.l.b16 %v522
      %v1679 = vunpack.c.l.b16 %v523
      %v1680 = vunpack.c.l.b16 %v524
      %v1681 = vunpack.c.l.b16 %v525
      %v1682 = vunpack.c.l.b16 %v526
      %v1683 = vunpack.c.l.b16 %v527
      %v1684 = vunpack.c.l.b16 %v528
      %v1685 = vunpack.c.l.b16 %v529
      %v1686 = vunpack.c.l.b16 %v530
      %v1687 = vunpack.c.l.b16 %v531
      %v1688 = vunpack.c.l.b16 %v532
      %v1689 = vunpack.c.l.b16 %v533
      %v1690 = vunpack.c.l.b16 %v534
      %v1691 = vunpack.c.l.b16 %v535
      %v1692 = vunpack.c.l.b16 %v536
      %v1693 = vunpack.c.l.b16 %v537
      %v1694 = vunpack.c.l.b16 %v538
      %v1695 = vunpack.c.l.b16 %v539
      %v1696 = vunpack.c.l.b16 %v540
      %v1697 = vunpack.c.l.b16 %v541
      %v1698 = vunpack.c.l.b16 %v542
      %v1699 = vunpack.c.l.b16 %v543
      %v1700 = vunpack.c.l.b16 %v544
      %v1701 = vunpack.c.l.b16 %v545
      %v1702 = vunpack.c.l.b16 %v546
      %v1703 = vunpack.c.l.b16 %v547
      %v1704 = vunpack.c.l.b16 %v548
      %v1705 = vunpack.c.l.b16 %v549
      %v1706 = vunpack.c.l.b16 %v550
      %v1707 = vunpack.c.l.b16 %v551
      %v1708 = vunpack.c.l.b16 %v552
      %v1709 = vunpack.c.l.b16 %v553
      %v1710 = vunpack.c.l.b16 %v554
      %v1711 = vunpack.c.l.b16 %v555
      %v1712 = vunpack.c.l.b16 %v556
      %v1713 = vunpack.c.l.b16 %v557
      %v1714 = vunpack.c.l.b16 %v558
      %v1715 = vunpack.c.l.b16 %v559
      %v1716 = vunpack.c.l.b16 %v560
      %v1717 = vunpack.c.l.b16 %v561
      %v1718 = vunpack.c.l.b16 %v562
      %v1719 = vunpack.c.l.b16 %v563
      %v1720 = vunpack.c.l.b16 %v564
      %v1721 = vunpack.c.l.b16 %v565
      %v1722 = vunpack.c.l.b16 %v566
      %v1723 = vunpack.c.l.b16 %v567
      %v1724 = vunpack.c.l.b16 %v568
      %v1725 = vunpack.c.l.b16 %v569
      %v1726 = vunpack.c.l.b16 %v570
      %v1727 = vunpack.c.l.b16 %v571
      %v1728 = vunpack.c.l.b16 %v572
      %v1729 = vunpack.c.l.b16 %v573
      %v1730 = vunpack.c.l.b16 %v574
      %v1731 = vunpack.c.l.b16 %v575
      %v1732 = vunpack.c.l.b16 %v576
      %v1733 = vunpack.c.l.b16 %v577
      %v1734 = vunpack.c.l.b16 %v578
      %v1735 = vunpack.c.l.b16 %v579
      %v1736 = vunpack.c.l.b16 %v580
      %v1737 = vunpack.c.l.b16 %v581
      %v1738 = vunpack.c.l.b16 %v582
      %v1739 = vunpack.c.l.b16 %v583
      %v1740 = vunpack.c.l.b16 %v584
      %v1741 = vunpack.c.l.b16 %v585
      %v1742 = vunpack.c.l.b16 %v586
      %v1743 = vunpack.c.l.b16 %v587
      %v1744 = vunpack.c.l.b16 %v588
      %v1745 = vunpack.c.l.b16 %v589
      %v1746 = vunpack.c.l.b16 %v590
      %v1747 = vunpack.c.l.b16 %v591
      %v1748 = vunpack.c.l.b16 %v592
      %v1749 = vunpack.c.l.b16 %v593
      %v1750 = vunpack.c.l.b16 %v594
      %v1751 = vunpack.c.l.b16 %v595
      %v1752 = vunpack.c.l.b16 %v596
      %v1753 = vunpack.c.l.b16 %v597
      %v1754 = vunpack.c.l.b16 %v598
      %v1755 = vunpack.c.l.b16 %v599
      %v1756 = vunpack.c.l.b16 %v600
      %v1757 = vunpack.c.l.b16 %v601
      %v1758 = vunpack.c.l.b16 %v602
      %v1759 = vunpack.c.l.b16 %v603
      %v1760 = vunpack.c.l.b16 %v604
      %v1761 = vunpack.c.l.b16 %v605
      %v1762 = vunpack.c.l.b16 %v606
      %v1763 = vunpack.c.l.b16 %v607
      %v1764 = vunpack.c.l.b16 %v608
      %v1765 = vunpack.c.l.b16 %v609
      %v1766 = vunpack.c.l.b16 %v610
      %v1767 = vunpack.c.l.b16 %v611
      %v1768 = vunpack.c.l.b16 %v612
      %v1769 = vunpack.c.l.b16 %v613
      %v1770 = vunpack.c.l.b16 %v614
      %v1771 = vunpack.c.l.b16 %v615
      %v1772 = vunpack.c.l.b16 %v616
      %v1773 = vunpack.c.l.b16 %v617
      %v1774 = vunpack.c.l.b16 %v618
      %v1775 = vunpack.c.l.b16 %v619
      %v1776 = vunpack.c.l.b16 %v620
      %v1777 = vunpack.c.l.b16 %v621
      %v1778 = vunpack.c.l.b16 %v622
      %v1779 = vunpack.c.l.b16 %v623
      %v1780 = vunpack.c.l.b16 %v624
      %v1781 = vunpack.c.l.b16 %v625
      %v1782 = vunpack.c.l.b16 %v626
      %v1783 = vunpack.c.l.b16 %v627
      %v1784 = vunpack.c.l.b16 %v628
      %v1785 = vunpack.c.l.b16 %v629
      %v1786 = vunpack.c.l.b16 %v630
      %v1787 = vunpack.c.l.b16 %v631
      %v1788 = vunpack.c.l.b16 %v632
      %v1789 = vunpack.c.l.b16 %v633
      %v1790 = vunpack.c.l.b16 %v634
      %v1791 = vunpack.c.l.b16 %v635
      %v1792 = vunpack.c.l.b16 %v636
      %v1793 = vunpack.c.l.b16 %v637
      %v1794 = vunpack.c.l.b16 %v638
      %v1795 = vunpack.c.l.b16 %v639
      %v1796 = vunpack.c.l.b16 %v640
      %v1797 = vunpack.c.l.b16 %v641
      %v1798 = vunpack.c.l.b16 %v642
      %v1799 = vunpack.c.l.b16 %v643
      %v1800 = vunpack.c.l.b16 %v644
      %v1801 = vunpack.c.l.b16 %v645
      %v1802 = vunpack.c.l.b16 %v646
      %v1803 = vunpack.c.l.b16 %v647
      %v1804 = vunpack.c.l.b16 %v648
      %v1805 = vunpack.c.l.b16 %v649
      %v1806 = vunpack.c.l.b16 %v650
      %v1807 = vunpack.c.l.b16 %v651
      %v1808 = vunpack.c.l.b16 %v652
      %v1809 = vunpack.c.l.b16 %v653
      %v1810 = vunpack.c.l.b16 %v654
      %v1811 = vunpack.c.l.b16 %v655
      %v1812 = vunpack.c.l.b16 %v656
      %v1813 = vunpack.c.l.b16 %v657
      %v1814 = vunpack.c.l.b16 %v658
      %v1815 = vunpack.c.l.b16 %v659
      %v1816 = vunpack.c.l.b16 %v660
      %v1817 = vunpack.c.l.b16 %v661
      %v1818 = vunpack.c.l.b16 %v662
      %v1819 = vunpack.c.l.b16 %v663
      %v1820 = vunpack.c.l.b16 %v664
      %v1821 = vunpack.c.l.b16 %v665
      %v1822 = vunpack.c.l.b16 %v666
      %v1823 = vunpack.c.l.b16 %v667
      %v1824 = vunpack.c.l.b16 %v668
      %v1825 = vunpack.c.l.b16 %v669
      %v1826 = vunpack.c.l.b16 %v670
      %v1827 = vunpack.c.l.b16 %v671
      %v1828 = vunpack.c.l.b16 %v672
      %v1829 = vunpack.c.l.b16 %v673
      %v1830 = vunpack.c.l.b16 %v674
      %v1831 = vunpack.c.l.b16 %v675
      %v1832 = vunpack.c.l.b16 %v676
      %v1833 = vunpack.c.l.b16 %v677
      %v1834 = vunpack.c.l.b16 %v678
      %v1835 = vunpack.c.l.b16 %v679
      %v1836 = vunpack.c.l.b16 %v680
      %v1837 = vunpack.c.l.b16 %v681
      %v1838 = vunpack.c.l.b16 %v682
      %v1839 = vunpack.c.l.b16 %v683
      %v1840 = vunpack.c.l.b16 %v684
      %v1841 = vunpack.c.l.b16 %v685
      %v1842 = vunpack.c.l.b16 %v686
      %v1843 = vunpack.c.l.b16 %v687
      %v1844 = vunpack.c.l.b16 %v688
      %v1845 = vunpack.c.l.b16 %v689
      %v1846 = vunpack.c.l.b16 %v690
      %v1847 = vunpack.c.l.b16 %v691
      %v1848 = vunpack.c.l.b16 %v692
      %v1849 = vunpack.c.l.b16 %v693
      %v1850 = vunpack.c.l.b16 %v694
      %v1851 = vunpack.c.l.b16 %v695
      %v1852 = vunpack.c.l.b16 %v696
      %v1853 = vunpack.c.l.b16 %v697
      %v1854 = vunpack.c.l.b16 %v698
      %v1855 = vunpack.c.l.b16 %v699
      %v1856 = vunpack.c.l.b16 %v700
      %v1857 = vunpack.c.l.b16 %v701
      %v1858 = vunpack.c.l.b16 %v702
      %v1859 = vunpack.c.l.b16 %v703
      %v1860 = vunpack.c.l.b16 %v704
      %v1861 = vunpack.c.l.b16 %v705
      %v1862 = vunpack.c.l.b16 %v706
      %v1863 = vunpack.c.l.b16 %v707
      %v1864 = vunpack.c.l.b16 %v708
      %v1865 = vunpack.c.l.b16 %v709
      %v1866 = vunpack.c.l.b16 %v710
      %v1867 = vunpack.c.l.b16 %v711
      %v1868 = vunpack.c.l.b16 %v712
      %v1869 = vunpack.c.l.b16 %v713
      %v1870 = vunpack.c.l.b16 %v714
      %v1871 = vunpack.c.l.b16 %v715
      %v1872 = vunpack.c.l.b16 %v716
      %v1873 = vunpack.c.l.b16 %v717
      %v1874 = vunpack.c.l.b16 %v718
      %v1875 = vunpack.c.l.b16 %v719
      %v1876 = vunpack.c.l.b16 %v720
      %v1877 = vunpack.c.l.b16 %v721
      %v1878 = vunpack.c.l.b16 %v722
      %v1879 = vunpack.c.l.b16 %v723
      %v1880 = vunpack.c.l.b16 %v724
      %v1881 = vunpack.c.l.b16 %v725
      %v1882 = vunpack.c.l.b16 %v726
      %v1883 = vunpack.c.l.b16 %v727
      %v1884 = vunpack.c.l.b16 %v728
      %v1885 = vunpack.c.l.b16 %v729
      %v1886 = vunpack.c.l.b16 %v730
      %v1887 = vunpack.c.l.b16 %v731
      %v1888 = vunpack.c.l.b16 %v732
      %v1889 = vunpack.c.l.b16 %v733
      %v1890 = vunpack.c.l.b16 %v734
      %v1891 = vunpack.c.l.b16 %v735
      %v1892 = vunpack.c.l.b16 %v736
      %v1893 = vunpack.c.l.b16 %v737
      %v1894 = vunpack.c.l.b16 %v738
      %v1895 = vunpack.c.l.b16 %v739
      %v1896 = vunpack.c.l.b16 %v740
      %v1897 = vunpack.c.l.b16 %v741
      %v1898 = vunpack.c.l.b16 %v742
      %v1899 = vunpack.c.l.b16 %v743
      %v1900 = vunpack.c.l.b16 %v744
      %v1901 = vunpack.c.l.b16 %v745
      %v1902 = vunpack.c.l.b16 %v746
      %v1903 = vunpack.c.l.b16 %v747
      %v1904 = vunpack.c.l.b16 %v748
      %v1905 = vunpack.c.l.b16 %v749
      %v1906 = vunpack.c.l.b16 %v750
      %v1907 = vpack.c.b16 %v1332, %v1331
      %v1908 = vpack.c.b16 %v1334, %v1333
      %v1909 = vpack.c.b16 %v1336, %v1335
      %v1910 = vpack.c.b16 %v1338, %v1337
      %v1911 = vpack.c.b16 %v1340, %v1339
      %v1912 = vpack.c.b16 %v1342, %v1341
      %v1913 = vpack.c.b16 %v1344, %v1343
      %v1914 = vpack.c.b16 %v1346, %v1345
      %v1915 = vpack.c.b16 %v1348, %v1347
      %v1916 = vpack.c.b16 %v1350, %v1349
      %v1917 = vpack.c.b16 %v1352, %v1351
      %v1918 = vpack.c.b16 %v1354, %v1353
      %v1919 = vpack.c.b16 %v1356, %v1355
      %v1920 = vpack.c.b16 %v1358, %v1357
      %v1921 = vpack.c.b16 %v1360, %v1359
      %v1922 = vpack.c.b16 %v1362, %v1361
      %v1923 = vpack.c.b16 %v1364, %v1363
      %v1924 = vpack.c.b16 %v1366, %v1365
      %v1925 = vpack.c.b16 %v1368, %v1367
      %v1926 = vpack.c.b16 %v1370, %v1369
      %v1927 = vpack.c.b16 %v1372, %v1371
      %v1928 = vpack.c.b16 %v1374, %v1373
      %v1929 = vpack.c.b16 %v1376, %v1375
      %v1930 = vpack.c.b16 %v1378, %v1377
      %v1931 = vpack.c.b16 %v1380, %v1379
      %v1932 = vpack.c.b16 %v1382, %v1381
      %v1933 = vpack.c.b16 %v1384, %v1383
      %v1934 = vpack.c.b16 %v1386, %v1385
      %v1935 = vpack.c.b16 %v1388, %v1387
      %v1936 = vpack.c.b16 %v1390, %v1389
      %v1937 = vpack.c.b16 %v1392, %v1391
      %v1938 = vpack.c.b16 %v1394, %v1393
      %v1939 = vpack.c.b16 %v1396, %v1395
      %v1940 = vpack.c.b16 %v1398, %v1397
      %v1941 = vpack.c.b16 %v1400, %v1399
      %v1942 = vpack.c.b16 %v1402, %v1401
      %v1943 = vpack.c.b16 %v1404, %v1403
      %v1944 = vpack.c.b16 %v1406, %v1405
      %v1945 = vpack.c.b16 %v1408, %v1407
      %v1946 = vpack.c.b16 %v1410, %v1409
      %v1947 = vpack.c.b16 %v1412, %v1411
      %v1948 = vpack.c.b16 %v1414, %v1413
      %v1949 = vpack.c.b16 %v1416, %v1415
      %v1950 = vpack.c.b16 %v1418, %v1417
      %v1951 = vpack.c.b16 %v1420, %v1419
      %v1952 = vpack.c.b16 %v1422, %v1421
      %v1953 = vpack.c.b16 %v1424, %v1423
      %v1954 = vpack.c.b16 %v1426, %v1425
      %v1955 = vpack.c.b16 %v1428, %v1427
      %v1956 = vpack.c.b16 %v1430, %v1429
      %v1957 = vpack.c.b16 %v1432, %v1431
      %v1958 = vpack.c.b16 %v1434, %v1433
      %v1959 = vpack.c.b16 %v1436, %v1435
      %v1960 = vpack.c.b16 %v1438, %v1437
      %v1961 = vpack.c.b16 %v1440, %v1439
      %v1962 = vpack.c.b16 %v1442, %v1441
      %v1963 = vpack.c.b16 %v1444, %v1443
      %v1964 = vpack.c.b16 %v1446, %v1445
      %v1965 = vpack.c.b16 %v1448, %v1447
      %v1966 = vpack.c.b16 %v1450, %v1449
      %v1967 = vpack.c.b16 %v1452, %v1451
      %v1968 = vpack.c.b16 %v1454, %v1453
      %v1969 = vpack.c.b16 %v1456, %v1455
      %v1970 = vpack.c.b16 %v1458, %v1457
      %v1971 = vpack.c.b16 %v1460, %v1459
      %v1972 = vpack.c.b16 %v1462, %v1461
      %v1973 = vpack.c.b16 %v1464, %v1463
      %v1974 = vpack.c.b16 %v1466, %v1465
      %v1975 = vpack.c.b16 %v1468, %v1467
      %v1976 = vpack.c.b16 %v1470, %v1469
      %v1977 = vpack.c.b16 %v1472, %v1471
      %v1978 = vpack.c.b16 %v1474, %v1473
      %v1979 = vpack.c.b16 %v1476, %v1475
      %v1980 = vpack.c.b16 %v1478, %v1477
      %v1981 = vpack.c.b16 %v1480, %v1479
      %v1982 = vpack.c.b16 %v1482, %v1481
      %v1983 = vpack.c.b16 %v1484, %v1483
      %v1984 = vpack.c.b16 %v1486, %v1485
      %v1985 = vpack.c.b16 %v1488, %v1487
      %v1986 = vpack.c.b16 %v1490, %v1489
      %v1987 = vpack.c.b16 %v1492, %v1491
      %v1988 = vpack.c.b16 %v1494, %v1493
      %v1989 = vpack.c.b16 %v1496, %v1495
      %v1990 = vpack.c.b16 %v1498, %v1497
      %v1991 = vpack.c.b16 %v1500, %v1499
      %v1992 = vpack.c.b16 %v1502, %v1501
      %v1993 = vpack.c.b16 %v1504, %v1503
      %v1994 = vpack.c.b16 %v1506, %v1505
      %v1995 = vpack.c.b16 %v1508, %v1507
      %v1996 = vpack.c.b16 %v1510, %v1509
      %v1997 = vpack.c.b16 %v1512, %v1511
      %v1998 = vpack.c.b16 %v1514, %v1513
      %v1999 = vpack.c.b16 %v1516, %v1515
      %v2000 = vpack.c.b16 %v1518, %v1517
      %v2001 = vpack.c.b16 %v1520, %v1519
      %v2002 = vpack.c.b16 %v1522, %v1521
      %v2003 = vpack.c.b16 %v1524, %v1523
      %v2004 = vpack.c.b16 %v1526, %v1525
      %v2005 = vpack.c.b16 %v1528, %v1527
      %v2006 = vpack.c.b16 %v1530, %v1529
      %v2007 = vpack.c.b16 %v1532, %v1531
      %v2008 = vpack.c.b16 %v1534, %v1533
      %v2009 = vpack.c.b16 %v1536, %v1535
      %v2010 = vpack.c.b16 %v1538, %v1537
      %v2011 = vpack.c.b16 %v1540, %v1539
      %v2012 = vpack.c.b16 %v1542, %v1541
      %v2013 = vpack.c.b16 %v1544, %v1543
      %v2014 = vpack.c.b16 %v1546, %v1545
      %v2015 = vpack.c.b16 %v1548, %v1547
      %v2016 = vpack.c.b16 %v1550, %v1549
      %v2017 = vpack.c.b16 %v1552, %v1551
      %v2018 = vpack.c.b16 %v1554, %v1553
      %v2019 = vpack.c.b16 %v1556, %v1555
      %v2020 = vpack.c.b16 %v1558, %v1557
      %v2021 = vpack.c.b16 %v1560, %v1559
      %v2022 = vpack.c.b16 %v1562, %v1561
      %v2023 = vpack.c.b16 %v1564, %v1563
      %v2024 = vpack.c.b16 %v1566, %v1565
      %v2025 = vpack.c.b16 %v1568, %v1567
      %v2026 = vpack.c.b16 %v1570, %v1569
      %v2027 = vpack.c.b16 %v1572, %v1571
      %v2028 = vpack.c.b16 %v1574, %v1573
      %v2029 = vpack.c.b16 %v1576, %v1575
      %v2030 = vpack.c.b16 %v1578, %v1577
      %v2031 = vpack.c.b16 %v1580, %v1579
      %v2032 = vpack.c.b16 %v1582, %v1581
      %v2033 = vpack.c.b16 %v1584, %v1583
      %v2034 = vpack.c.b16 %v1586, %v1585
      %v2035 = vpack.c.b16 %v1588, %v1587
      %v2036 = vpack.c.b16 %v1590, %v1589
      %v2037 = vpack.c.b16 %v1592, %v1591
      %v2038 = vpack.c.b16 %v1594, %v1593
      %v2039 = vpack.c.b16 %v1596, %v1595
      %v2040 = vpack.c.b16 %v1598, %v1597
      %v2041 = vpack.c.b16 %v1600, %v1599
      %v2042 = vpack.c.b16 %v1602, %v1601
      %v2043 = vpack.c.b16 %v1604, %v1603
      %v2044 = vpack.c.b16 %v1606, %v1605
      %v2045 = vpack.c.b16 %v1608, %v1607
      %v2046 = vpack.c.b16 %v1610, %v1609
      %v2047 = vpack.c.b16 %v1612, %v1611
      %v2048 = vpack.c.b16 %v1614, %v1613
      %v2049 = vpack.c.b16 %v1616, %v1615
      %v2050 = vpack.c.b16 %v1618, %v1617
      %v2051 = vpack.c.b16 %v1620, %v1619
      %v2052 = vpack.c.b16 %v1622, %v1621
      %v2053 = vpack.c.b16 %v1624, %v1623
      %v2054 = vpack.c.b16 %v1626, %v1625
      %v2055 = vpack.c.b16 %v1628, %v1627
      %v2056 = vpack.c.b16 %v1630, %v1629
      %v2057 = vpack.c.b16 %v1632, %v1631
      %v2058 = vpack.c.b16 %v1634, %v1633
      %v2059 = vpack.c.b16 %v1636, %v1635
      %v2060 = vpack.c.b16 %v1638, %v1637
      %v2061 = vpack.c.b16 %v1640, %v1639
      %v2062 = vpack.c.b16 %v1642, %v1641
      %v2063 = vpack.c.b16 %v1644, %v1643
      %v2064 = vpack.c.b16 %v1646, %v1645
      %v2065 = vpack.c.b16 %v1648, %v1647
      %v2066 = vpack.c.b16 %v1650, %v1649
      %v2067 = vpack.c.b16 %v1652, %v1651
      %v2068 = vpack.c.b16 %v1654, %v1653
      %v2069 = vpack.c.b16 %v1656, %v1655
      %v2070 = vpack.c.b16 %v1658, %v1657
      %v2071 = vpack.c.b16 %v1660, %v1659
      %v2072 = vpack.c.b16 %v1662, %v1661
      %v2073 = vpack.c.b16 %v1664, %v1663
      %v2074 = vpack.c.b16 %v1666, %v1665
      %v2075 = vpack.c.b16 %v1668, %v1667
      %v2076 = vpack.c.b16 %v1670, %v1669
      %v2077 = vpack.c.b16 %v1672, %v1671
      %v2078 = vpack.c.b16 %v1674, %v1673
      %v2079 = vpack.c.b16 %v1676, %v1675
      %v2080 = vpack.c.b16 %v1678, %v1677
      %v2081 = vpack.c.b16 %v1680, %v1679
      %v2082 = vpack.c.b16 %v1682, %v1681
      %v2083 = vpack.c.b16 %v1684, %v1683
      %v2084 = vpack.c.b16 %v1686, %v1685
      %v2085 = vpack.c.b16 %v1688, %v1687
      %v2086 = vpack.c.b16 %v1690, %v1689
      %v2087 = vpack.c.b16 %v1692, %v1691
      %v2088 = vpack.c.b16 %v1694, %v1693
      %v2089 = vpack.c.b16 %v1696, %v1695
      %v2090 = vpack.c.b16 %v1698, %v1697
      %v2091 = vpack.c.b16 %v1700, %v1699
      %v2092 = vpack.c.b16 %v1702, %v1701
      %v2093 = vpack.c.b16 %v1704, %v1703
      %v2094 = vpack.c.b16 %v1706, %v1705
      %v2095 = vpack.c.b16 %v1708, %v1707
      %v2096 = vpack.c.b16 %v1710, %v1709
      %v2097 = vpack.c.b16 %v1712, %v1711
      %v2098 = vpack.c.b16 %v1714, %v1713
      %v2099 = vpack.c.b16 %v1716, %v1715
      %v2100 = vpack.c.b16 %v1718, %v1717
      %v2101 = vpack.c.b16 %v1720, %v1719
      %v2102 = vpack.c.b16 %v1722, %v1721
      %v2103 = vpack.c.b16 %v1724, %v1723
      %v2104 = vpack.c.b16 %v1726, %v1725
      %v2105 = vpack.c.b16 %v1728, %v1727
      %v2106 = vpack.c.b16 %v1730, %v1729
      %v2107 = vpack.c.b16 %v1732, %v1731
      %v2108 = vpack.c.b16 %v1734, %v1733
      %v2109 = vpack.c.b16 %v1736, %v1735
      %v2110 = vpack.c.b16 %v1738, %v1737
      %v2111 = vpack.c.b16 %v1740, %v1739
      %v2112 = vpack.c.b16 %v1742, %v1741
      %v2113 = vpack.c.b16 %v1744, %v1743
      %v2114 = vpack.c.b16 %v1746, %v1745
      %v2115 = vpack.c.b16 %v1748, %v1747
      %v2116 = vpack.c.b16 %v1750, %v1749
      %v2117 = vpack.c.b16 %v1752, %v1751
      %v2118 = vpack.c.b16 %v1754, %v1753
      %v2119 = vpack.c.b16 %v1756, %v1755
      %v2120 = vpack.c.b16 %v1758, %v1757
      %v2121 = vpack.c.b16 %v1760, %v1759
      %v2122 = vpack.c.b16 %v1762, %v1761
      %v2123 = vpack.c.b16 %v1764, %v1763
      %v2124 = vpack.c.b16 %v1766, %v1765
      %v2125 = vpack.c.b16 %v1768, %v1767
      %v2126 = vpack.c.b16 %v1770, %v1769
      %v2127 = vpack.c.b16 %v1772, %v1771
      %v2128 = vpack.c.b16 %v1774, %v1773
      %v2129 = vpack.c.b16 %v1776, %v1775
      %v2130 = vpack.c.b16 %v1778, %v1777
      %v2131 = vpack.c.b16 %v1780, %v1779
      %v2132 = vpack.c.b16 %v1782, %v1781
      %v2133 = vpack.c.b16 %v1784, %v1783
      %v2134 = vpack.c.b16 %v1786, %v1785
      %v2135 = vpack.c.b16 %v1788, %v1787
      %v2136 = vpack.c.b16 %v1790, %v1789
      %v2137 = vpack.c.b16 %v1792, %v1791
      %v2138 = vpack.c.b16 %v1794, %v1793
      %v2139 = vpack.c.b16 %v1796, %v1795
      %v2140 = vpack.c.b16 %v1798, %v1797
      %v2141 = vpack.c.b16 %v1800, %v1799
      %v2142 = vpack.c.b16 %v1802, %v1801
      %v2143 = vpack.c.b16 %v1804, %v1803
      %v2144 = vpack.c.b16 %v1806, %v1805
      %v2145 = vpack.c.b16 %v1808, %v1807
      %v2146 = vpack.c.b16 %v1810, %v1809
      %v2147 = vpack.c.b16 %v1812, %v1811
      %v2148 = vpack.c.b16 %v1814, %v1813
      %v2149 = vpack.c.b16 %v1816, %v1815
      %v2150 = vpack.c.b16 %v1818, %v1817
      %v2151 = vpack.c.b16 %v1820, %v1819
      %v2152 = vpack.c.b16 %v1822, %v1821
      %v2153 = vpack.c.b16 %v1824, %v1823
      %v2154 = vpack.c.b16 %v1826, %v1825
      %v2155 = vpack.c.b16 %v1828, %v1827
      %v2156 = vpack.c.b16 %v1830, %v1829
      %v2157 = vpack.c.b16 %v1832, %v1831
      %v2158 = vpack.c.b16 %v1834, %v1833
      %v2159 = vpack.c.b16 %v1836, %v1835
      %v2160 = vpack.c.b16 %v1838, %v1837
      %v2161 = vpack.c.b16 %v1840, %v1839
      %v2162 = vpack.c.b16 %v1842, %v1841
      %v2163 = vpack.c.b16 %v1844, %v1843
      %v2164 = vpack.c.b16 %v1846, %v1845
      %v2165 = vpack.c.b16 %v1848, %v1847
      %v2166 = vpack.c.b16 %v1850, %v1849
      %v2167 = vpack.c.b16 %v1852, %v1851
      %v2168 = vpack.c.b16 %v1854, %v1853
      %v2169 = vpack.c.b16 %v1856, %v1855
      %v2170 = vpack.c.b16 %v1858, %v1857
      %v2171 = vpack.c.b16 %v1860, %v1859
      %v2172 = vpack.c.b16 %v1862, %v1861
      %v2173 = vpack.c.b16 %v1864, %v1863
      %v2174 = vpack.c.b16 %v1866, %v1865
      %v2175 = vpack.c.b16 %v1868, %v1867
      %v2176 = vpack.c.b16 %v1870, %v1869
      %v2177 = vpack.c.b16 %v1872, %v1871
      %v2178 = vpack.c.b16 %v1874, %v1873
      %v2179 = vpack.c.b16 %v1876, %v1875
      %v2180 = vpack.c.b16 %v1878, %v1877
      %v2181 = vpack.c.b16 %v1880, %v1879
      %v2182 = vpack.c.b16 %v1882, %v1881
      %v2183 = vpack.c.b16 %v1884, %v1883
      %v2184 = vpack.c.b16 %v1886, %v1885
      %v2185 = vpack.c.b16 %v1888, %v1887
      %v2186 = vpack.c.b16 %v1890, %v1889
      %v2187 = vpack.c.b16 %v1892, %v1891
      %v2188 = vpack.c.b16 %v1894, %v1893
      %v2189 = vpack.c.b16 %v1896, %v1895
      %v2190 = vpack.c.b16 %v1898, %v1897
      %v2191 = vpack.c.b16 %v1900, %v1899
      %v2192 = vpack.c.b16 %v1902, %v1901
      %v2193 = vpack.c.b16 %v1904, %v1903
      %v2194 = vpack.c.b16 %v1906, %v1905
      %v2199 = vunpack.c.l.b16 %v751
      %v2200 = vunpack.c.l.b16 %v752
      %v2201 = vunpack.c.l.b16 %v753
      %v2202 = vunpack.c.l.b16 %v754
      %v2203 = vpack.c.b16 %v2200, %v2199
      %v2204 = vpack.c.b16 %v2202, %v2201
      %vm2207 = vcmask 261120
      %v2209 = vsel %vm2207, %v1907, 0
      %v2212 = vsel %vm2207, %v1908, 0
      %v2215 = vsel %vm2207, %v1909, 0
      %v2218 = vsel %vm2207, %v1910, 0
      %v2221 = vsel %vm2207, %v1911, 0
      %v2224 = vsel %vm2207, %v1912, 0
      %v2227 = vsel %vm2207, %v1913, 0
      %v2230 = vsel %vm2207, %v1914, 0
      %v2233 = vsel %vm2207, %v1915, 0
      %v2236 = vsel %vm2207, %v1916, 0
      %v2239 = vsel %vm2207, %v1917, 0
      %v2242 = vsel %vm2207, %v1918, 0
      %v2245 = vsel %vm2207, %v1919, 0
      %v2248 = vsel %vm2207, %v1920, 0
      %v2251 = vsel %vm2207, %v1921, 0
      %v2254 = vsel %vm2207, %v1922, 0
      %v2257 = vsel %vm2207, %v1923, 0
      %v2260 = vsel %vm2207, %v1924, 0
      %v2263 = vsel %vm2207, %v1925, 0
      %v2266 = vsel %vm2207, %v1926, 0
      %v2269 = vsel %vm2207, %v1927, 0
      %v2272 = vsel %vm2207, %v1928, 0
      %v2275 = vsel %vm2207, %v1929, 0
      %v2278 = vsel %vm2207, %v1930, 0
      %v2281 = vsel %vm2207, %v1931, 0
      %v2284 = vsel %vm2207, %v1932, 0
      %v2287 = vsel %vm2207, %v1933, 0
      %v2290 = vsel %vm2207, %v1934, 0
      %v2293 = vsel %vm2207, %v1935, 0
      %v2296 = vsel %vm2207, %v1936, 0
      %v2299 = vsel %vm2207, %v1937, 0
      %v2302 = vsel %vm2207, %v1938, 0
      %v2305 = vsel %vm2207, %v1939, 0
      %v2308 = vsel %vm2207, %v1940, 0
      %v2311 = vsel %vm2207, %v1941, 0
      %v2314 = vsel %vm2207, %v1942, 0
      %v2317 = vsel %vm2207, %v1943, 0
      %v2320 = vsel %vm2207, %v1944, 0
      %v2323 = vsel %vm2207, %v1945, 0
      %v2326 = vsel %vm2207, %v1946, 0
      %v2329 = vsel %vm2207, %v1947, 0
      %v2332 = vsel %vm2207, %v1948, 0
      %v2335 = vsel %vm2207, %v1949, 0
      %v2338 = vsel %vm2207, %v1950, 0
      %v2341 = vsel %vm2207, %v1951, 0
      %v2344 = vsel %vm2207, %v1952, 0
      %v2347 = vsel %vm2207, %v1953, 0
      %v2350 = vsel %vm2207, %v1954, 0
      %v2353 = vsel %vm2207, %v1955, 0
      %v2356 = vsel %vm2207, %v1956, 0
      %v2359 = vsel %vm2207, %v1957, 0
      %v2362 = vsel %vm2207, %v1958, 0
      %v2365 = vsel %vm2207, %v1959, 0
      %v2368 = vsel %vm2207, %v1960, 0
      %v2371 = vsel %vm2207, %v1961, 0
      %v2374 = vsel %vm2207, %v1962, 0
      %v2377 = vsel %vm2207, %v1963, 0
      %v2380 = vsel %vm2207, %v1964, 0
      %v2383 = vsel %vm2207, %v1965, 0
      %v2386 = vsel %vm2207, %v1966, 0
      %v2389 = vsel %vm2207, %v1967, 0
      %v2392 = vsel %vm2207, %v1968, 0
      %v2395 = vsel %vm2207, %v1969, 0
      %v2398 = vsel %vm2207, %v1970, 0
      %v2401 = vsel %vm2207, %v1971, 0
      %v2404 = vsel %vm2207, %v1972, 0
      %v2407 = vsel %vm2207, %v1973, 0
      %v2410 = vsel %vm2207, %v1974, 0
      %v2413 = vsel %vm2207, %v1975, 0
      %v2416 = vsel %vm2207, %v1976, 0
      %v2419 = vsel %vm2207, %v1977, 0
      %v2422 = vsel %vm2207, %v1978, 0
      %v2425 = vsel %vm2207, %v1979, 0
      %v2428 = vsel %vm2207, %v1980, 0
      %v2431 = vsel %vm2207, %v1981, 0
      %v2434 = vsel %vm2207, %v1982, 0
      %v2437 = vsel %vm2207, %v1983, 0
      %v2440 = vsel %vm2207, %v1984, 0
      %v2443 = vsel %vm2207, %v1985, 0
      %v2446 = vsel %vm2207, %v1986, 0
      %v2449 = vsel %vm2207, %v1987, 0
      %v2452 = vsel %vm2207, %v1988, 0
      %v2455 = vsel %vm2207, %v1989, 0
      %v2458 = vsel %vm2207, %v1990, 0
      %v2461 = vsel %vm2207, %v1991, 0
      %v2464 = vsel %vm2207, %v1992, 0
      %v2467 = vsel %vm2207, %v1993, 0
      %v2470 = vsel %vm2207, %v1994, 0
      %v2473 = vsel %vm2207, %v1995, 0
      %v2476 = vsel %vm2207, %v1996, 0
      %v2479 = vsel %vm2207, %v1997, 0
      %v2482 = vsel %vm2207, %v1998, 0
      %v2485 = vsel %vm2207, %v1999, 0
      %v2488 = vsel %vm2207, %v2000, 0
      %v2491 = vsel %vm2207, %v2001, 0
      %v2494 = vsel %vm2207, %v2002, 0
      %v2497 = vsel %vm2207, %v2003, 0
      %v2500 = vsel %vm2207, %v2004, 0
      %v2503 = vsel %vm2207, %v2005, 0
      %v2506 = vsel %vm2207, %v2006, 0
      %v2509 = vsel %vm2207, %v2007, 0
      %v2512 = vsel %vm2207, %v2008, 0
      %v2515 = vsel %vm2207, %v2009, 0
      %v2518 = vsel %vm2207, %v2010, 0
      %v2521 = vsel %vm2207, %v2011, 0
      %v2524 = vsel %vm2207, %v2012, 0
      %v2527 = vsel %vm2207, %v2013, 0
      %v2530 = vsel %vm2207, %v2014, 0
      %v2533 = vsel %vm2207, %v2015, 0
      %v2536 = vsel %vm2207, %v2016, 0
      %v2539 = vsel %vm2207, %v2017, 0
      %v2542 = vsel %vm2207, %v2018, 0
      %v2545 = vsel %vm2207, %v2019, 0
      %v2548 = vsel %vm2207, %v2020, 0
      %v2551 = vsel %vm2207, %v2021, 0
      %v2554 = vsel %vm2207, %v2022, 0
      %v2557 = vsel %vm2207, %v2023, 0
      %v2560 = vsel %vm2207, %v2024, 0
      %v2563 = vsel %vm2207, %v2025, 0
      %v2566 = vsel %vm2207, %v2026, 0
      %v2569 = vsel %vm2207, %v2027, 0
      %v2572 = vsel %vm2207, %v2028, 0
      %v2575 = vsel %vm2207, %v2029, 0
      %v2578 = vsel %vm2207, %v2030, 0
      %v2581 = vsel %vm2207, %v2031, 0
      %v2584 = vsel %vm2207, %v2032, 0
      %v2587 = vsel %vm2207, %v2033, 0
      %v2590 = vsel %vm2207, %v2034, 0
      %v2593 = vsel %vm2207, %v2035, 0
      %v2596 = vsel %vm2207, %v2036, 0
      %v2599 = vsel %vm2207, %v2037, 0
      %v2602 = vsel %vm2207, %v2038, 0
      %v2605 = vsel %vm2207, %v2039, 0
      %v2608 = vsel %vm2207, %v2040, 0
      %v2611 = vsel %vm2207, %v2041, 0
      %v2614 = vsel %vm2207, %v2042, 0
      %v2617 = vsel %vm2207, %v2043, 0
      %v2620 = vsel %vm2207, %v2044, 0
      %v2623 = vsel %vm2207, %v2045, 0
      %v2626 = vsel %vm2207, %v2046, 0
      %v2629 = vsel %vm2207, %v2047, 0
      %v2632 = vsel %vm2207, %v2048, 0
      %v2635 = vsel %vm2207, %v2049, 0
      %v2638 = vsel %vm2207, %v2050, 0
      %v2641 = vsel %vm2207, %v2051, 0
      %v2644 = vsel %vm2207, %v2052, 0
      %v2647 = vsel %vm2207, %v2053, 0
      %v2650 = vsel %vm2207, %v2054, 0
      %v2653 = vsel %vm2207, %v2055, 0
      %v2656 = vsel %vm2207, %v2056, 0
      %v2659 = vsel %vm2207, %v2057, 0
      %v2662 = vsel %vm2207, %v2058, 0
      %v2665 = vsel %vm2207, %v2059, 0
      %v2668 = vsel %vm2207, %v2060, 0
      %v2671 = vsel %vm2207, %v2061, 0
      %v2674 = vsel %vm2207, %v2062, 0
      %v2677 = vsel %vm2207, %v2063, 0
      %v2680 = vsel %vm2207, %v2064, 0
      %v2683 = vsel %vm2207, %v2065, 0
      %v2686 = vsel %vm2207, %v2066, 0
      %v2689 = vsel %vm2207, %v2067, 0
      %v2692 = vsel %vm2207, %v2068, 0
      %v2695 = vsel %vm2207, %v2069, 0
      %v2698 = vsel %vm2207, %v2070, 0
      %v2701 = vsel %vm2207, %v2071, 0
      %v2704 = vsel %vm2207, %v2072, 0
      %v2707 = vsel %vm2207, %v2073, 0
      %v2710 = vsel %vm2207, %v2074, 0
      %v2713 = vsel %vm2207, %v2075, 0
      %v2716 = vsel %vm2207, %v2076, 0
      %v2719 = vsel %vm2207, %v2077, 0
      %v2722 = vsel %vm2207, %v2078, 0
      %v2725 = vsel %vm2207, %v2079, 0
      %v2728 = vsel %vm2207, %v2080, 0
      %v2731 = vsel %vm2207, %v2081, 0
      %v2734 = vsel %vm2207, %v2082, 0
      %v2737 = vsel %vm2207, %v2083, 0
      %v2740 = vsel %vm2207, %v2084, 0
      %v2743 = vsel %vm2207, %v2085, 0
      %v2746 = vsel %vm2207, %v2086, 0
      %v2749 = vsel %vm2207, %v2087, 0
      %v2752 = vsel %vm2207, %v2088, 0
      %v2755 = vsel %vm2207, %v2089, 0
      %v2758 = vsel %vm2207, %v2090, 0
      %v2761 = vsel %vm2207, %v2091, 0
      %v2764 = vsel %vm2207, %v2092, 0
      %v2767 = vsel %vm2207, %v2093, 0
      %v2770 = vsel %vm2207, %v2094, 0
      %v2773 = vsel %vm2207, %v2095, 0
      %v2776 = vsel %vm2207, %v2096, 0
      %v2779 = vsel %vm2207, %v2097, 0
      %v2782 = vsel %vm2207, %v2098, 0
      %v2785 = vsel %vm2207, %v2099, 0
      %v2788 = vsel %vm2207, %v2100, 0
      %v2791 = vsel %vm2207, %v2101, 0
      %v2794 = vsel %vm2207, %v2102, 0
      %v2797 = vsel %vm2207, %v2103, 0
      %v2800 = vsel %vm2207, %v2104, 0
      %v2803 = vsel %vm2207, %v2105, 0
      %v2806 = vsel %vm2207, %v2106, 0
      %v2809 = vsel %vm2207, %v2107, 0
      %v2812 = vsel %vm2207, %v2108, 0
      %v2815 = vsel %vm2207, %v2109, 0
      %v2818 = vsel %vm2207, %v2110, 0
      %v2821 = vsel %vm2207, %v2111, 0
      %v2824 = vsel %vm2207, %v2112, 0
      %v2827 = vsel %vm2207, %v2113, 0
      %v2830 = vsel %vm2207, %v2114, 0
      %v2833 = vsel %vm2207, %v2115, 0
      %v2836 = vsel %vm2207, %v2116, 0
      %v2839 = vsel %vm2207, %v2117, 0
      %v2842 = vsel %vm2207, %v2118, 0
      %v2845 = vsel %vm2207, %v2119, 0
      %v2848 = vsel %vm2207, %v2120, 0
      %v2851 = vsel %vm2207, %v2121, 0
      %v2854 = vsel %vm2207, %v2122, 0
      %v2857 = vsel %vm2207, %v2123, 0
      %v2860 = vsel %vm2207, %v2124, 0
      %v2863 = vsel %vm2207, %v2125, 0
      %v2866 = vsel %vm2207, %v2126, 0
      %v2869 = vsel %vm2207, %v2127, 0
      %v2872 = vsel %vm2207, %v2128, 0
      %v2875 = vsel %vm2207, %v2129, 0
      %v2878 = vsel %vm2207, %v2130, 0
      %v2881 = vsel %vm2207, %v2131, 0
      %v2884 = vsel %vm2207, %v2132, 0
      %v2887 = vsel %vm2207, %v2133, 0
      %v2890 = vsel %vm2207, %v2134, 0
      %v2893 = vsel %vm2207, %v2135, 0
      %v2896 = vsel %vm2207, %v2136, 0
      %v2899 = vsel %vm2207, %v2137, 0
      %v2902 = vsel %vm2207, %v2138, 0
      %v2905 = vsel %vm2207, %v2139, 0
      %v2908 = vsel %vm2207, %v2140, 0
      %v2911 = vsel %vm2207, %v2141, 0
      %v2914 = vsel %vm2207, %v2142, 0
      %v2917 = vsel %vm2207, %v2143, 0
      %v2920 = vsel %vm2207, %v2144, 0
      %v2923 = vsel %vm2207, %v2145, 0
      %v2926 = vsel %vm2207, %v2146, 0
      %v2929 = vsel %vm2207, %v2147, 0
      %v2932 = vsel %vm2207, %v2148, 0
      %v2935 = vsel %vm2207, %v2149, 0
      %v2938 = vsel %vm2207, %v2150, 0
      %v2941 = vsel %vm2207, %v2151, 0
      %v2944 = vsel %vm2207, %v2152, 0
      %v2947 = vsel %vm2207, %v2153, 0
      %v2950 = vsel %vm2207, %v2154, 0
      %v2953 = vsel %vm2207, %v2155, 0
      %v2956 = vsel %vm2207, %v2156, 0
      %v2959 = vsel %vm2207, %v2157, 0
      %v2962 = vsel %vm2207, %v2158, 0
      %v2965 = vsel %vm2207, %v2159, 0
      %v2968 = vsel %vm2207, %v2160, 0
      %v2971 = vsel %vm2207, %v2161, 0
      %v2974 = vsel %vm2207, %v2162, 0
      %v2977 = vsel %vm2207, %v2163, 0
      %v2980 = vsel %vm2207, %v2164, 0
      %v2983 = vsel %vm2207, %v2165, 0
      %v2986 = vsel %vm2207, %v2166, 0
      %v2989 = vsel %vm2207, %v2167, 0
      %v2992 = vsel %vm2207, %v2168, 0
      %v2995 = vsel %vm2207, %v2169, 0
      %v2998 = vsel %vm2207, %v2170, 0
      %v3001 = vsel %vm2207, %v2171, 0
      %v3004 = vsel %vm2207, %v2172, 0
      %v3007 = vsel %vm2207, %v2173, 0
      %v3010 = vsel %vm2207, %v2174, 0
      %v3013 = vsel %vm2207, %v2175, 0
      %v3016 = vsel %vm2207, %v2176, 0
      %v3019 = vsel %vm2207, %v2177, 0
      %v3022 = vsel %vm2207, %v2178, 0
      %v3025 = vsel %vm2207, %v2179, 0
      %v3028 = vsel %vm2207, %v2180, 0
      %v3031 = vsel %vm2207, %v2181, 0
      %v3034 = vsel %vm2207, %v2182, 0
      %v3037 = vsel %vm2207, %v2183, 0
      %v3040 = vsel %vm2207, %v2184, 0
      %v3043 = vsel %vm2207, %v2185, 0
      %v3046 = vsel %vm2207, %v2186, 0
      %v3049 = vsel %vm2207, %v2187, 0
      %v3052 = vsel %vm2207, %v2188, 0
      %v3055 = vsel %vm2207, %v2189, 0
      %v3058 = vsel %vm2207, %v2190, 0
      %v3061 = vsel %vm2207, %v2191, 0
      %v3064 = vsel %vm2207, %v2192, 0
      %v3067 = vsel %vm2207, %v2193, 0
      %v3070 = vsel %vm2207, %v2194, 0
      %3072 = vmatprep.subr.bf16.mxu0 0
      %3073 = vmatpush1.bf16.msra.mxu0 %v2203
      %3074 = vmatprep.subr.bf16.mxu0 0
      %3075 = vmatpush1.bf16.msra.mxu0 %v2204
      %3076 = vmatprep.subr.bf16.mxu0 0
      %3077 = vmatpush1.bf16.msra.mxu0 0
      %3078 = vmatprep.subr.bf16.mxu0 0
      %3079 = vmatpush1.bf16.msra.mxu0 0
      %3080 = vmatprep.subr.bf16.mxu0 0
      %3081 = vmatpush1.bf16.msra.mxu0 0
      %3082 = vmatprep.subr.bf16.mxu0 0
      %3083 = vmatpush1.bf16.msra.mxu0 0
      %3084 = vmatprep.subr.bf16.mxu0 0
      %3085 = vmatpush1.bf16.msra.mxu0 0
      %3086 = vmatprep.subr.bf16.mxu0 0
      %3087 = vmatpush1.bf16.msra.mxu0 0
      %3088 = vmatprep.subr.bf16.mxu0 0
      %3089 = vmatpush1.bf16.msra.mxu0 0
      %3090 = vmatprep.subr.bf16.mxu0 0
      %3091 = vmatpush1.bf16.msra.mxu0 0
      %3092 = vmatprep.subr.bf16.mxu0 0
      %3093 = vmatpush1.bf16.msra.mxu0 0
      %3094 = vmatprep.subr.bf16.mxu0 0
      %3095 = vmatpush1.bf16.msra.mxu0 0
      %3096 = vmatprep.subr.bf16.mxu0 0
      %3097 = vmatpush1.bf16.msra.mxu0 0
      %3098 = vmatprep.subr.bf16.mxu0 0
      %3099 = vmatpush1.bf16.msra.mxu0 0
      %3100 = vmatprep.subr.bf16.mxu0 0
      %3101 = vmatpush1.bf16.msra.mxu0 0
      %3102 = vmatprep.subr.bf16.mxu0 0
      %3103 = vmatpush1.bf16.msra.mxu0 0
      %3104 = vmatprep.mubr.bf16.mxu0 0
      %3105 = vmatmul.mubr.bf16.gmra.mrb[0].mxu0 %v2209
      %v3106 = vpop.f32.mrb[0].mxu0
      %v3107 = vadd.f32 0.0, %v3106
      %v3108 = vpop.f32.mrb[0].mxu0
      %v3109 = vpop.f32.mrb[0].mxu0
      %v3110 = vadd.f32 0.0, %v3109
      %v3111 = vpop.f32.mrb[0].mxu0
      %3112 = vmatprep.mubr.bf16.mxu0 0
      %3113 = vmatmul.mubr.bf16.gmra.mrb[0].mxu0 %v2212
      %v3114 = vpop.f32.mrb[0].mxu0
      %v3115 = vadd.f32 0.0, %v3114
      %v3116 = vpop.f32.mrb[0].mxu0
      %v3117 = vpop.f32.mrb[0].mxu0
      %v3118 = vadd.f32 0.0, %v3117
      %v3119 = vpop.f32.mrb[0].mxu0
      %3120 = vmatprep.mubr.bf16.mxu0 0
      %3121 = vmatmul.mubr.bf16.gmra.mrb[0].mxu0 %v2215
      %v3122 = vpop.f32.mrb[0].mxu0
      %v3123 = vadd.f32 0.0, %v3122
      %v3124 = vpop.f32.mrb[0].mxu0
      %v3125 = vpop.f32.mrb[0].mxu0
      %v3126 = vadd.f32 0.0, %v3125
      %v3127 = vpop.f32.mrb[0].mxu0
      %3128 = vmatprep.mubr.bf16.mxu0 0
      %3129 = vmatmul.mubr.bf16.gmra.mrb[0].mxu0 %v2218
      %v3130 = vpop.f32.mrb[0].mxu0
      %v3131 = vadd.f32 0.0, %v3130
      %v3132 = vpop.f32.mrb[0].mxu0
      %v3133 = vpop.f32.mrb[0].mxu0
      %v3134 = vadd.f32 0.0, %v3133
      %v3135 = vpop.f32.mrb[0].mxu0
      %3136 = vmatprep.mubr.bf16.mxu0 0
      %3137 = vmatmul.mubr.bf16.gmra.mrb[0].mxu0 %v2221
      %v3138 = vpop.f32.mrb[0].mxu0
      %v3139 = vadd.f32 0.0, %v3138
      %v3140 = vpop.f32.mrb[0].mxu0
      %v3141 = vpop.f32.mrb[0].mxu0
      %v3142 = vadd.f32 0.0, %v3141
      %v3143 = vpop.f32.mrb[0].mxu0
      %3144 = vmatprep.mubr.bf16.mxu0 0
      %3145 = vmatmul.mubr.bf16.gmra.mrb[0].mxu0 %v2224
      %v3146 = vpop.f32.mrb[0].mxu0
      %v3147 = vadd.f32 0.0, %v3146
      %v3148 = vpop.f32.mrb[0].mxu0
      %v3149 = vpop.f32.mrb[0].mxu0
      %v3150 = vadd.f32 0.0, %v3149
      %v3151 = vpop.f32.mrb[0].mxu0
      %3152 = vmatprep.mubr.bf16.mxu0 0
      %3153 = vmatmul.mubr.bf16.gmra.mrb[0].mxu0 %v2227
      %v3154 = vpop.f32.mrb[0].mxu0
      %v3155 = vadd.f32 0.0, %v3154
      %v3156 = vpop.f32.mrb[0].mxu0
      %v3157 = vpop.f32.mrb[0].mxu0
      %v3158 = vadd.f32 0.0, %v3157
      %v3159 = vpop.f32.mrb[0].mxu0
      %3160 = vmatprep.mubr.bf16.mxu0 0
      %3161 = vmatmul.mubr.bf16.gmra.mrb[0].mxu0 %v2230
      %v3162 = vpop.f32.mrb[0].mxu0
      %v3163 = vadd.f32 0.0, %v3162
      %v3164 = vpop.f32.mrb[0].mxu0
      %v3165 = vpop.f32.mrb[0].mxu0
      %v3166 = vadd.f32 0.0, %v3165
      %v3167 = vpop.f32.mrb[0].mxu0
      %3168 = vmatprep.mubr.bf16.mxu0 0
      %3169 = vmatmul.mubr.bf16.gmra.mrb[0].mxu0 %v2233
      %v3170 = vpop.f32.mrb[0].mxu0
      %v3171 = vadd.f32 0.0, %v3170
      %v3172 = vpop.f32.mrb[0].mxu0
      %v3173 = vpop.f32.mrb[0].mxu0
      %v3174 = vadd.f32 0.0, %v3173
      %v3175 = vpop.f32.mrb[0].mxu0
      %3176 = vmatprep.mubr.bf16.mxu0 0
      %3177 = vmatmul.mubr.bf16.gmra.mrb[0].mxu0 %v2236
      %v3178 = vpop.f32.mrb[0].mxu0
      %v3179 = vadd.f32 0.0, %v3178
      %v3180 = vpop.f32.mrb[0].mxu0
      %v3181 = vpop.f32.mrb[0].mxu0
      %v3182 = vadd.f32 0.0, %v3181
      %v3183 = vpop.f32.mrb[0].mxu0
      %3184 = vmatprep.mubr.bf16.mxu0 0
      %3185 = vmatmul.mubr.bf16.gmra.mrb[0].mxu0 %v2239
      %v3186 = vpop.f32.mrb[0].mxu0
      %v3187 = vadd.f32 0.0, %v3186
      %v3188 = vpop.f32.mrb[0].mxu0
      %v3189 = vpop.f32.mrb[0].mxu0
      %v3190 = vadd.f32 0.0, %v3189
      %v3191 = vpop.f32.mrb[0].mxu0
      %3192 = vmatprep.mubr.bf16.mxu0 0
      %3193 = vmatmul.mubr.bf16.gmra.mrb[0].mxu0 %v2242
      %v3194 = vpop.f32.mrb[0].mxu0
      %v3195 = vadd.f32 0.0, %v3194
      %v3196 = vpop.f32.mrb[0].mxu0
      %v3197 = vpop.f32.mrb[0].mxu0
      %v3198 = vadd.f32 0.0, %v3197
      %v3199 = vpop.f32.mrb[0].mxu0
      %3200 = vmatprep.mubr.bf16.mxu0 0
      %3201 = vmatmul.mubr.bf16.gmra.mrb[0].mxu0 %v2245
      %v3202 = vpop.f32.mrb[0].mxu0
      %v3203 = vadd.f32 0.0, %v3202
      %v3204 = vpop.f32.mrb[0].mxu0
      %v3205 = vpop.f32.mrb[0].mxu0
      %v3206 = vadd.f32 0.0, %v3205
      %v3207 = vpop.f32.mrb[0].mxu0
      %3208 = vmatprep.mubr.bf16.mxu0 0
      %3209 = vmatmul.mubr.bf16.gmra.mrb[0].mxu0 %v2248
      %v3210 = vpop.f32.mrb[0].mxu0
      %v3211 = vadd.f32 0.0, %v3210
      %v3212 = vpop.f32.mrb[0].mxu0
      %v3213 = vpop.f32.mrb[0].mxu0
      %v3214 = vadd.f32 0.0, %v3213
      %v3215 = vpop.f32.mrb[0].mxu0
      %3216 = vmatprep.mubr.bf16.mxu0 0
      %3217 = vmatmul.mubr.bf16.gmra.mrb[0].mxu0 %v2251
      %v3218 = vpop.f32.mrb[0].mxu0
      %v3219 = vadd.f32 0.0, %v3218
      %v3220 = vpop.f32.mrb[0].mxu0
      %v3221 = vpop.f32.mrb[0].mxu0
      %v3222 = vadd.f32 0.0, %v3221
      %v3223 = vpop.f32.mrb[0].mxu0
      %3224 = vmatprep.mubr.bf16.mxu0 0
      %3225 = vmatmul.mubr.bf16.gmra.mrb[0].mxu0 %v2254
      %v3226 = vpop.f32.mrb[0].mxu0
      %v3227 = vadd.f32 0.0, %v3226
      %v3228 = vpop.f32.mrb[0].mxu0
      %v3229 = vpop.f32.mrb[0].mxu0
      %v3230 = vadd.f32 0.0, %v3229
      %v3231 = vpop.f32.mrb[0].mxu0
      %3232 = vmatprep.mubr.bf16.mxu0 0
      %3233 = vmatmul.mubr.bf16.gmra.mrb[0].mxu0 %v2257
      %v3234 = vpop.f32.mrb[0].mxu0
      %v3235 = vadd.f32 0.0, %v3234
      %v3236 = vpop.f32.mrb[0].mxu0
      %v3237 = vpop.f32.mrb[0].mxu0
      %v3238 = vadd.f32 0.0, %v3237
      %v3239 = vpop.f32.mrb[0].mxu0
      %3240 = vmatprep.mubr.bf16.mxu0 0
      %3241 = vmatmul.mubr.bf16.gmra.mrb[0].mxu0 %v2260
      %v3242 = vpop.f32.mrb[0].mxu0
      %v3243 = vadd.f32 0.0, %v3242
      %v3244 = vpop.f32.mrb[0].mxu0
      %v3245 = vpop.f32.mrb[0].mxu0
      %v3246 = vadd.f32 0.0, %v3245
      %v3247 = vpop.f32.mrb[0].mxu0
      %3248 = vmatprep.mubr.bf16.mxu0 0
      %3249 = vmatmul.mubr.bf16.gmra.mrb[0].mxu0 %v2263
      %v3250 = vpop.f32.mrb[0].mxu0
      %v3251 = vadd.f32 0.0, %v3250
      %v3252 = vpop.f32.mrb[0].mxu0
      %v3253 = vpop.f32.mrb[0].mxu0
      %v3254 = vadd.f32 0.0, %v3253
      %v3255 = vpop.f32.mrb[0].mxu0
      %3256 = vmatprep.mubr.bf16.mxu0 0
      %3257 = vmatmul.mubr.bf16.gmra.mrb[0].mxu0 %v2266
      %v3258 = vpop.f32.mrb[0].mxu0
      %v3259 = vadd.f32 0.0, %v3258
      %v3260 = vpop.f32.mrb[0].mxu0
      %v3261 = vpop.f32.mrb[0].mxu0
      %v3262 = vadd.f32 0.0, %v3261
      %v3263 = vpop.f32.mrb[0].mxu0
      %3264 = vmatprep.mubr.bf16.mxu0 0
      %3265 = vmatmul.mubr.bf16.gmra.mrb[0].mxu0 %v2269
      %v3266 = vpop.f32.mrb[0].mxu0
      %v3267 = vadd.f32 0.0, %v3266
      %v3268 = vpop.f32.mrb[0].mxu0
      %v3269 = vpop.f32.mrb[0].mxu0
      %v3270 = vadd.f32 0.0, %v3269
      %v3271 = vpop.f32.mrb[0].mxu0
      %3272 = vmatprep.mubr.bf16.mxu0 0
      %3273 = vmatmul.mubr.bf16.gmra.mrb[0].mxu0 %v2272
      %v3274 = vpop.f32.mrb[0].mxu0
      %v3275 = vadd.f32 0.0, %v3274
      %v3276 = vpop.f32.mrb[0].mxu0
      %v3277 = vpop.f32.mrb[0].mxu0
      %v3278 = vadd.f32 0.0, %v3277
      %v3279 = vpop.f32.mrb[0].mxu0
      %3280 = vmatprep.mubr.bf16.mxu0 0
      %3281 = vmatmul.mubr.bf16.gmra.mrb[0].mxu0 %v2275
      %v3282 = vpop.f32.mrb[0].mxu0
      %v3283 = vadd.f32 0.0, %v3282
      %v3284 = vpop.f32.mrb[0].mxu0
      %v3285 = vpop.f32.mrb[0].mxu0
      %v3286 = vadd.f32 0.0, %v3285
      %v3287 = vpop.f32.mrb[0].mxu0
      %3288 = vmatprep.mubr.bf16.mxu0 0
      %3289 = vmatmul.mubr.bf16.gmra.mrb[0].mxu0 %v2278
      %v3290 = vpop.f32.mrb[0].mxu0
      %v3291 = vadd.f32 0.0, %v3290
      %v3292 = vpop.f32.mrb[0].mxu0
      %v3293 = vpop.f32.mrb[0].mxu0
      %v3294 = vadd.f32 0.0, %v3293
      %v3295 = vpop.f32.mrb[0].mxu0
      %3296 = vmatprep.mubr.bf16.mxu0 0
      %3297 = vmatmul.mubr.bf16.gmra.mrb[0].mxu0 %v2281
      %v3298 = vpop.f32.mrb[0].mxu0
      %v3299 = vadd.f32 0.0, %v3298
      %v3300 = vpop.f32.mrb[0].mxu0
      %v3301 = vpop.f32.mrb[0].mxu0
      %v3302 = vadd.f32 0.0, %v3301
      %v3303 = vpop.f32.mrb[0].mxu0
      %3304 = vmatprep.mubr.bf16.mxu0 0
      %3305 = vmatmul.mubr.bf16.gmra.mrb[0].mxu0 %v2284
      %v3306 = vpop.f32.mrb[0].mxu0
      %v3307 = vadd.f32 0.0, %v3306
      %v3308 = vpop.f32.mrb[0].mxu0
      %v3309 = vpop.f32.mrb[0].mxu0
      %v3310 = vadd.f32 0.0, %v3309
      %v3311 = vpop.f32.mrb[0].mxu0
      %3312 = vmatprep.mubr.bf16.mxu0 0
      %3313 = vmatmul.mubr.bf16.gmra.mrb[0].mxu0 %v2287
      %v3314 = vpop.f32.mrb[0].mxu0
      %v3315 = vadd.f32 0.0, %v3314
      %v3316 = vpop.f32.mrb[0].mxu0
      %v3317 = vpop.f32.mrb[0].mxu0
      %v3318 = vadd.f32 0.0, %v3317
      %v3319 = vpop.f32.mrb[0].mxu0
      %3320 = vmatprep.mubr.bf16.mxu0 0
      %3321 = vmatmul.mubr.bf16.gmra.mrb[0].mxu0 %v2290
      %v3322 = vpop.f32.mrb[0].mxu0
      %v3323 = vadd.f32 0.0, %v3322
      %v3324 = vpop.f32.mrb[0].mxu0
      %v3325 = vpop.f32.mrb[0].mxu0
      %v3326 = vadd.f32 0.0, %v3325
      %v3327 = vpop.f32.mrb[0].mxu0
      %3328 = vmatprep.mubr.bf16.mxu0 0
      %3329 = vmatmul.mubr.bf16.gmra.mrb[0].mxu0 %v2293
      %v3330 = vpop.f32.mrb[0].mxu0
      %v3331 = vadd.f32 0.0, %v3330
      %v3332 = vpop.f32.mrb[0].mxu0
      %v3333 = vpop.f32.mrb[0].mxu0
      %v3334 = vadd.f32 0.0, %v3333
      %v3335 = vpop.f32.mrb[0].mxu0
      %3336 = vmatprep.mubr.bf16.mxu0 0
      %3337 = vmatmul.mubr.bf16.gmra.mrb[0].mxu0 %v2296
      %v3338 = vpop.f32.mrb[0].mxu0
      %v3339 = vadd.f32 0.0, %v3338
      %v3340 = vpop.f32.mrb[0].mxu0
      %v3341 = vpop.f32.mrb[0].mxu0
      %v3342 = vadd.f32 0.0, %v3341
      %v3343 = vpop.f32.mrb[0].mxu0
      %3344 = vmatprep.mubr.bf16.mxu0 0
      %3345 = vmatmul.mubr.bf16.gmra.mrb[0].mxu0 %v2299
      %v3346 = vpop.f32.mrb[0].mxu0
      %v3347 = vadd.f32 0.0, %v3346
      %v3348 = vpop.f32.mrb[0].mxu0
      %v3349 = vpop.f32.mrb[0].mxu0
      %v3350 = vadd.f32 0.0, %v3349
      %v3351 = vpop.f32.mrb[0].mxu0
      %3352 = vmatprep.mubr.bf16.mxu0 0
      %3353 = vmatmul.mubr.bf16.gmra.mrb[0].mxu0 %v2302
      %v3354 = vpop.f32.mrb[0].mxu0
      %v3355 = vadd.f32 0.0, %v3354
      %v3356 = vpop.f32.mrb[0].mxu0
      %v3357 = vpop.f32.mrb[0].mxu0
      %v3358 = vadd.f32 0.0, %v3357
      %v3359 = vpop.f32.mrb[0].mxu0
      %3360 = vmatprep.mubr.bf16.mxu0 0
      %3361 = vmatmul.mubr.bf16.gmra.mrb[0].mxu0 %v2305
      %v3362 = vpop.f32.mrb[0].mxu0
      %v3363 = vadd.f32 0.0, %v3362
      %v3364 = vpop.f32.mrb[0].mxu0
      %v3365 = vpop.f32.mrb[0].mxu0
      %v3366 = vadd.f32 0.0, %v3365
      %v3367 = vpop.f32.mrb[0].mxu0
      %3368 = vmatprep.mubr.bf16.mxu0 0
      %3369 = vmatmul.mubr.bf16.gmra.mrb[0].mxu0 %v2308
      %v3370 = vpop.f32.mrb[0].mxu0
      %v3371 = vadd.f32 0.0, %v3370
      %v3372 = vpop.f32.mrb[0].mxu0
      %v3373 = vpop.f32.mrb[0].mxu0
      %v3374 = vadd.f32 0.0, %v3373
      %v3375 = vpop.f32.mrb[0].mxu0
      %3376 = vmatprep.mubr.bf16.mxu0 0
      %3377 = vmatmul.mubr.bf16.gmra.mrb[0].mxu0 %v2311
      %v3378 = vpop.f32.mrb[0].mxu0
      %v3379 = vadd.f32 0.0, %v3378
      %v3380 = vpop.f32.mrb[0].mxu0
      %v3381 = vpop.f32.mrb[0].mxu0
      %v3382 = vadd.f32 0.0, %v3381
      %v3383 = vpop.f32.mrb[0].mxu0
      %3384 = vmatprep.mubr.bf16.mxu0 0
      %3385 = vmatmul.mubr.bf16.gmra.mrb[0].mxu0 %v2314
      %v3386 = vpop.f32.mrb[0].mxu0
      %v3387 = vadd.f32 0.0, %v3386
      %v3388 = vpop.f32.mrb[0].mxu0
      %v3389 = vpop.f32.mrb[0].mxu0
      %v3390 = vadd.f32 0.0, %v3389
      %v3391 = vpop.f32.mrb[0].mxu0
      %3392 = vmatprep.mubr.bf16.mxu0 0
      %3393 = vmatmul.mubr.bf16.gmra.mrb[0].mxu0 %v2317
      %v3394 = vpop.f32.mrb[0].mxu0
      %v3395 = vadd.f32 0.0, %v3394
      %v3396 = vpop.f32.mrb[0].mxu0
      %v3397 = vpop.f32.mrb[0].mxu0
      %v3398 = vadd.f32 0.0, %v3397
      %v3399 = vpop.f32.mrb[0].mxu0
      %3400 = vmatprep.mubr.bf16.mxu0 0
      %3401 = vmatmul.mubr.bf16.gmra.mrb[0].mxu0 %v2320
      %v3402 = vpop.f32.mrb[0].mxu0
      %v3403 = vadd.f32 0.0, %v3402
      %v3404 = vpop.f32.mrb[0].mxu0
      %v3405 = vpop.f32.mrb[0].mxu0
      %v3406 = vadd.f32 0.0, %v3405
      %v3407 = vpop.f32.mrb[0].mxu0
      %3408 = vmatprep.mubr.bf16.mxu0 0
      %3409 = vmatmul.mubr.bf16.gmra.mrb[0].mxu0 %v2323
      %v3410 = vpop.f32.mrb[0].mxu0
      %v3411 = vadd.f32 0.0, %v3410
      %v3412 = vpop.f32.mrb[0].mxu0
      %v3413 = vpop.f32.mrb[0].mxu0
      %v3414 = vadd.f32 0.0, %v3413
      %v3415 = vpop.f32.mrb[0].mxu0
      %3416 = vmatprep.mubr.bf16.mxu0 0
      %3417 = vmatmul.mubr.bf16.gmra.mrb[0].mxu0 %v2326
      %v3418 = vpop.f32.mrb[0].mxu0
      %v3419 = vadd.f32 0.0, %v3418
      %v3420 = vpop.f32.mrb[0].mxu0
      %v3421 = vpop.f32.mrb[0].mxu0
      %v3422 = vadd.f32 0.0, %v3421
      %v3423 = vpop.f32.mrb[0].mxu0
      %3424 = vmatprep.mubr.bf16.mxu0 0
      %3425 = vmatmul.mubr.bf16.gmra.mrb[0].mxu0 %v2329
      %v3426 = vpop.f32.mrb[0].mxu0
      %v3427 = vadd.f32 0.0, %v3426
      %v3428 = vpop.f32.mrb[0].mxu0
      %v3429 = vpop.f32.mrb[0].mxu0
      %v3430 = vadd.f32 0.0, %v3429
      %v3431 = vpop.f32.mrb[0].mxu0
      %3432 = vmatprep.mubr.bf16.mxu0 0
      %3433 = vmatmul.mubr.bf16.gmra.mrb[0].mxu0 %v2332
      %v3434 = vpop.f32.mrb[0].mxu0
      %v3435 = vadd.f32 0.0, %v3434
      %v3436 = vpop.f32.mrb[0].mxu0
      %v3437 = vpop.f32.mrb[0].mxu0
      %v3438 = vadd.f32 0.0, %v3437
      %v3439 = vpop.f32.mrb[0].mxu0
      %3440 = vmatprep.mubr.bf16.mxu0 0
      %3441 = vmatmul.mubr.bf16.gmra.mrb[0].mxu0 %v2335
      %v3442 = vpop.f32.mrb[0].mxu0
      %v3443 = vadd.f32 0.0, %v3442
      %v3444 = vpop.f32.mrb[0].mxu0
      %v3445 = vpop.f32.mrb[0].mxu0
      %v3446 = vadd.f32 0.0, %v3445
      %v3447 = vpop.f32.mrb[0].mxu0
      %3448 = vmatprep.mubr.bf16.mxu0 0
      %3449 = vmatmul.mubr.bf16.gmra.mrb[0].mxu0 %v2338
      %v3450 = vpop.f32.mrb[0].mxu0
      %v3451 = vadd.f32 0.0, %v3450
      %v3452 = vpop.f32.mrb[0].mxu0
      %v3453 = vpop.f32.mrb[0].mxu0
      %v3454 = vadd.f32 0.0, %v3453
      %v3455 = vpop.f32.mrb[0].mxu0
      %3456 = vmatprep.mubr.bf16.mxu0 0
      %3457 = vmatmul.mubr.bf16.gmra.mrb[0].mxu0 %v2341
      %v3458 = vpop.f32.mrb[0].mxu0
      %v3459 = vadd.f32 0.0, %v3458
      %v3460 = vpop.f32.mrb[0].mxu0
      %v3461 = vpop.f32.mrb[0].mxu0
      %v3462 = vadd.f32 0.0, %v3461
      %v3463 = vpop.f32.mrb[0].mxu0
      %3464 = vmatprep.mubr.bf16.mxu0 0
      %3465 = vmatmul.mubr.bf16.gmra.mrb[0].mxu0 %v2344
      %v3466 = vpop.f32.mrb[0].mxu0
      %v3467 = vadd.f32 0.0, %v3466
      %v3468 = vpop.f32.mrb[0].mxu0
      %v3469 = vpop.f32.mrb[0].mxu0
      %v3470 = vadd.f32 0.0, %v3469
      %v3471 = vpop.f32.mrb[0].mxu0
      %3472 = vmatprep.mubr.bf16.mxu0 0
      %3473 = vmatmul.mubr.bf16.gmra.mrb[0].mxu0 %v2347
      %v3474 = vpop.f32.mrb[0].mxu0
      %v3475 = vadd.f32 0.0, %v3474
      %v3476 = vpop.f32.mrb[0].mxu0
      %v3477 = vpop.f32.mrb[0].mxu0
      %v3478 = vadd.f32 0.0, %v3477
      %v3479 = vpop.f32.mrb[0].mxu0
      %3480 = vmatprep.mubr.bf16.mxu0 0
      %3481 = vmatmul.mubr.bf16.gmra.mrb[0].mxu0 %v2350
      %v3482 = vpop.f32.mrb[0].mxu0
      %v3483 = vadd.f32 0.0, %v3482
      %v3484 = vpop.f32.mrb[0].mxu0
      %v3485 = vpop.f32.mrb[0].mxu0
      %v3486 = vadd.f32 0.0, %v3485
      %v3487 = vpop.f32.mrb[0].mxu0
      %3488 = vmatprep.mubr.bf16.mxu0 0
      %3489 = vmatmul.mubr.bf16.gmra.mrb[0].mxu0 %v2353
      %v3490 = vpop.f32.mrb[0].mxu0
      %v3491 = vadd.f32 0.0, %v3490
      %v3492 = vpop.f32.mrb[0].mxu0
      %v3493 = vpop.f32.mrb[0].mxu0
      %v3494 = vadd.f32 0.0, %v3493
      %v3495 = vpop.f32.mrb[0].mxu0
      %3496 = vmatprep.mubr.bf16.mxu0 0
      %3497 = vmatmul.mubr.bf16.gmra.mrb[0].mxu0 %v2356
      %v3498 = vpop.f32.mrb[0].mxu0
      %v3499 = vadd.f32 0.0, %v3498
      %v3500 = vpop.f32.mrb[0].mxu0
      %v3501 = vpop.f32.mrb[0].mxu0
      %v3502 = vadd.f32 0.0, %v3501
      %v3503 = vpop.f32.mrb[0].mxu0
      %3504 = vmatprep.mubr.bf16.mxu0 0
      %3505 = vmatmul.mubr.bf16.gmra.mrb[0].mxu0 %v2359
      %v3506 = vpop.f32.mrb[0].mxu0
      %v3507 = vadd.f32 0.0, %v3506
      %v3508 = vpop.f32.mrb[0].mxu0
      %v3509 = vpop.f32.mrb[0].mxu0
      %v3510 = vadd.f32 0.0, %v3509
      %v3511 = vpop.f32.mrb[0].mxu0
      %3512 = vmatprep.mubr.bf16.mxu0 0
      %3513 = vmatmul.mubr.bf16.gmra.mrb[0].mxu0 %v2362
      %v3514 = vpop.f32.mrb[0].mxu0
      %v3515 = vadd.f32 0.0, %v3514
      %v3516 = vpop.f32.mrb[0].mxu0
      %v3517 = vpop.f32.mrb[0].mxu0
      %v3518 = vadd.f32 0.0, %v3517
      %v3519 = vpop.f32.mrb[0].mxu0
      %3520 = vmatprep.mubr.bf16.mxu0 0
      %3521 = vmatmul.mubr.bf16.gmra.mrb[0].mxu0 %v2365
      %v3522 = vpop.f32.mrb[0].mxu0
      %v3523 = vadd.f32 0.0, %v3522
      %v3524 = vpop.f32.mrb[0].mxu0
      %v3525 = vpop.f32.mrb[0].mxu0
      %v3526 = vadd.f32 0.0, %v3525
      %v3527 = vpop.f32.mrb[0].mxu0
      %3528 = vmatprep.mubr.bf16.mxu0 0
      %3529 = vmatmul.mubr.bf16.gmra.mrb[0].mxu0 %v2368
      %v3530 = vpop.f32.mrb[0].mxu0
      %v3531 = vadd.f32 0.0, %v3530
      %v3532 = vpop.f32.mrb[0].mxu0
      %v3533 = vpop.f32.mrb[0].mxu0
      %v3534 = vadd.f32 0.0, %v3533
      %v3535 = vpop.f32.mrb[0].mxu0
      %3536 = vmatprep.mubr.bf16.mxu0 0
      %3537 = vmatmul.mubr.bf16.gmra.mrb[0].mxu0 %v2371
      %v3538 = vpop.f32.mrb[0].mxu0
      %v3539 = vadd.f32 0.0, %v3538
      %v3540 = vpop.f32.mrb[0].mxu0
      %v3541 = vpop.f32.mrb[0].mxu0
      %v3542 = vadd.f32 0.0, %v3541
      %v3543 = vpop.f32.mrb[0].mxu0
      %3544 = vmatprep.mubr.bf16.mxu0 0
      %3545 = vmatmul.mubr.bf16.gmra.mrb[0].mxu0 %v2374
      %v3546 = vpop.f32.mrb[0].mxu0
      %v3547 = vadd.f32 0.0, %v3546
      %v3548 = vpop.f32.mrb[0].mxu0
      %v3549 = vpop.f32.mrb[0].mxu0
      %v3550 = vadd.f32 0.0, %v3549
      %v3551 = vpop.f32.mrb[0].mxu0
      %3552 = vmatprep.mubr.bf16.mxu0 0
      %3553 = vmatmul.mubr.bf16.gmra.mrb[0].mxu0 %v2377
      %v3554 = vpop.f32.mrb[0].mxu0
      %v3555 = vadd.f32 0.0, %v3554
      %v3556 = vpop.f32.mrb[0].mxu0
      %v3557 = vpop.f32.mrb[0].mxu0
      %v3558 = vadd.f32 0.0, %v3557
      %v3559 = vpop.f32.mrb[0].mxu0
      %3560 = vmatprep.mubr.bf16.mxu0 0
      %3561 = vmatmul.mubr.bf16.gmra.mrb[0].mxu0 %v2380
      %v3562 = vpop.f32.mrb[0].mxu0
      %v3563 = vadd.f32 0.0, %v3562
      %v3564 = vpop.f32.mrb[0].mxu0
      %v3565 = vpop.f32.mrb[0].mxu0
      %v3566 = vadd.f32 0.0, %v3565
      %v3567 = vpop.f32.mrb[0].mxu0
      %3568 = vmatprep.mubr.bf16.mxu0 0
      %3569 = vmatmul.mubr.bf16.gmra.mrb[0].mxu0 %v2383
      %v3570 = vpop.f32.mrb[0].mxu0
      %v3571 = vadd.f32 0.0, %v3570
      %v3572 = vpop.f32.mrb[0].mxu0
      %v3573 = vpop.f32.mrb[0].mxu0
      %v3574 = vadd.f32 0.0, %v3573
      %v3575 = vpop.f32.mrb[0].mxu0
      %3576 = vmatprep.mubr.bf16.mxu0 0
      %3577 = vmatmul.mubr.bf16.gmra.mrb[0].mxu0 %v2386
      %v3578 = vpop.f32.mrb[0].mxu0
      %v3579 = vadd.f32 0.0, %v3578
      %v3580 = vpop.f32.mrb[0].mxu0
      %v3581 = vpop.f32.mrb[0].mxu0
      %v3582 = vadd.f32 0.0, %v3581
      %v3583 = vpop.f32.mrb[0].mxu0
      %3584 = vmatprep.mubr.bf16.mxu0 0
      %3585 = vmatmul.mubr.bf16.gmra.mrb[0].mxu0 %v2389
      %v3586 = vpop.f32.mrb[0].mxu0
      %v3587 = vadd.f32 0.0, %v3586
      %v3588 = vpop.f32.mrb[0].mxu0
      %v3589 = vpop.f32.mrb[0].mxu0
      %v3590 = vadd.f32 0.0, %v3589
      %v3591 = vpop.f32.mrb[0].mxu0
      %3592 = vmatprep.mubr.bf16.mxu0 0
      %3593 = vmatmul.mubr.bf16.gmra.mrb[0].mxu0 %v2392
      %v3594 = vpop.f32.mrb[0].mxu0
      %v3595 = vadd.f32 0.0, %v3594
      %v3596 = vpop.f32.mrb[0].mxu0
      %v3597 = vpop.f32.mrb[0].mxu0
      %v3598 = vadd.f32 0.0, %v3597
      %v3599 = vpop.f32.mrb[0].mxu0
      %3600 = vmatprep.mubr.bf16.mxu0 0
      %3601 = vmatmul.mubr.bf16.gmra.mrb[0].mxu0 %v2395
      %v3602 = vpop.f32.mrb[0].mxu0
      %v3603 = vadd.f32 0.0, %v3602
      %v3604 = vpop.f32.mrb[0].mxu0
      %v3605 = vpop.f32.mrb[0].mxu0
      %v3606 = vadd.f32 0.0, %v3605
      %v3607 = vpop.f32.mrb[0].mxu0
      %3608 = vmatprep.mubr.bf16.mxu0 0
      %3609 = vmatmul.mubr.bf16.gmra.mrb[0].mxu0 %v2398
      %v3610 = vpop.f32.mrb[0].mxu0
      %v3611 = vadd.f32 0.0, %v3610
      %v3612 = vpop.f32.mrb[0].mxu0
      %v3613 = vpop.f32.mrb[0].mxu0
      %v3614 = vadd.f32 0.0, %v3613
      %v3615 = vpop.f32.mrb[0].mxu0
      %3616 = vmatprep.mubr.bf16.mxu0 0
      %3617 = vmatmul.mubr.bf16.gmra.mrb[0].mxu0 %v2401
      %v3618 = vpop.f32.mrb[0].mxu0
      %v3619 = vadd.f32 0.0, %v3618
      %v3620 = vpop.f32.mrb[0].mxu0
      %v3621 = vpop.f32.mrb[0].mxu0
      %v3622 = vadd.f32 0.0, %v3621
      %v3623 = vpop.f32.mrb[0].mxu0
      %3624 = vmatprep.mubr.bf16.mxu0 0
      %3625 = vmatmul.mubr.bf16.gmra.mrb[0].mxu0 %v2404
      %v3626 = vpop.f32.mrb[0].mxu0
      %v3627 = vadd.f32 0.0, %v3626
      %v3628 = vpop.f32.mrb[0].mxu0
      %v3629 = vpop.f32.mrb[0].mxu0
      %v3630 = vadd.f32 0.0, %v3629
      %v3631 = vpop.f32.mrb[0].mxu0
      %3632 = vmatprep.mubr.bf16.mxu0 0
      %3633 = vmatmul.mubr.bf16.gmra.mrb[0].mxu0 %v2407
      %v3634 = vpop.f32.mrb[0].mxu0
      %v3635 = vadd.f32 0.0, %v3634
      %v3636 = vpop.f32.mrb[0].mxu0
      %v3637 = vpop.f32.mrb[0].mxu0
      %v3638 = vadd.f32 0.0, %v3637
      %v3639 = vpop.f32.mrb[0].mxu0
      %3640 = vmatprep.mubr.bf16.mxu0 0
      %3641 = vmatmul.mubr.bf16.gmra.mrb[0].mxu0 %v2410
      %v3642 = vpop.f32.mrb[0].mxu0
      %v3643 = vadd.f32 0.0, %v3642
      %v3644 = vpop.f32.mrb[0].mxu0
      %v3645 = vpop.f32.mrb[0].mxu0
      %v3646 = vadd.f32 0.0, %v3645
      %v3647 = vpop.f32.mrb[0].mxu0
      %3648 = vmatprep.mubr.bf16.mxu0 0
      %3649 = vmatmul.mubr.bf16.gmra.mrb[0].mxu0 %v2413
      %v3650 = vpop.f32.mrb[0].mxu0
      %v3651 = vadd.f32 0.0, %v3650
      %v3652 = vpop.f32.mrb[0].mxu0
      %v3653 = vpop.f32.mrb[0].mxu0
      %v3654 = vadd.f32 0.0, %v3653
      %v3655 = vpop.f32.mrb[0].mxu0
      %3656 = vmatprep.mubr.bf16.mxu0 0
      %3657 = vmatmul.mubr.bf16.gmra.mrb[0].mxu0 %v2416
      %v3658 = vpop.f32.mrb[0].mxu0
      %v3659 = vadd.f32 0.0, %v3658
      %v3660 = vpop.f32.mrb[0].mxu0
      %v3661 = vpop.f32.mrb[0].mxu0
      %v3662 = vadd.f32 0.0, %v3661
      %v3663 = vpop.f32.mrb[0].mxu0
      %3664 = vmatprep.mubr.bf16.mxu0 0
      %3665 = vmatmul.mubr.bf16.gmra.mrb[0].mxu0 %v2419
      %v3666 = vpop.f32.mrb[0].mxu0
      %v3667 = vadd.f32 0.0, %v3666
      %v3668 = vpop.f32.mrb[0].mxu0
      %v3669 = vpop.f32.mrb[0].mxu0
      %v3670 = vadd.f32 0.0, %v3669
      %v3671 = vpop.f32.mrb[0].mxu0
      %3672 = vmatprep.mubr.bf16.mxu0 0
      %3673 = vmatmul.mubr.bf16.gmra.mrb[0].mxu0 %v2422
      %v3674 = vpop.f32.mrb[0].mxu0
      %v3675 = vadd.f32 0.0, %v3674
      %v3676 = vpop.f32.mrb[0].mxu0
      %v3677 = vpop.f32.mrb[0].mxu0
      %v3678 = vadd.f32 0.0, %v3677
      %v3679 = vpop.f32.mrb[0].mxu0
      %3680 = vmatprep.mubr.bf16.mxu0 0
      %3681 = vmatmul.mubr.bf16.gmra.mrb[0].mxu0 %v2425
      %v3682 = vpop.f32.mrb[0].mxu0
      %v3683 = vadd.f32 0.0, %v3682
      %v3684 = vpop.f32.mrb[0].mxu0
      %v3685 = vpop.f32.mrb[0].mxu0
      %v3686 = vadd.f32 0.0, %v3685
      %v3687 = vpop.f32.mrb[0].mxu0
      %3688 = vmatprep.mubr.bf16.mxu0 0
      %3689 = vmatmul.mubr.bf16.gmra.mrb[0].mxu0 %v2428
      %v3690 = vpop.f32.mrb[0].mxu0
      %v3691 = vadd.f32 0.0, %v3690
      %v3692 = vpop.f32.mrb[0].mxu0
      %v3693 = vpop.f32.mrb[0].mxu0
      %v3694 = vadd.f32 0.0, %v3693
      %v3695 = vpop.f32.mrb[0].mxu0
      %3696 = vmatprep.mubr.bf16.mxu0 0
      %3697 = vmatmul.mubr.bf16.gmra.mrb[0].mxu0 %v2431
      %v3698 = vpop.f32.mrb[0].mxu0
      %v3699 = vadd.f32 0.0, %v3698
      %v3700 = vpop.f32.mrb[0].mxu0
      %v3701 = vpop.f32.mrb[0].mxu0
      %v3702 = vadd.f32 0.0, %v3701
      %v3703 = vpop.f32.mrb[0].mxu0
      %3704 = vmatprep.mubr.bf16.mxu0 0
      %3705 = vmatmul.mubr.bf16.gmra.mrb[0].mxu0 %v2434
      %v3706 = vpop.f32.mrb[0].mxu0
      %v3707 = vadd.f32 0.0, %v3706
      %v3708 = vpop.f32.mrb[0].mxu0
      %v3709 = vpop.f32.mrb[0].mxu0
      %v3710 = vadd.f32 0.0, %v3709
      %v3711 = vpop.f32.mrb[0].mxu0
      %3712 = vmatprep.mubr.bf16.mxu0 0
      %3713 = vmatmul.mubr.bf16.gmra.mrb[0].mxu0 %v2437
      %v3714 = vpop.f32.mrb[0].mxu0
      %v3715 = vadd.f32 0.0, %v3714
      %v3716 = vpop.f32.mrb[0].mxu0
      %v3717 = vpop.f32.mrb[0].mxu0
      %v3718 = vadd.f32 0.0, %v3717
      %v3719 = vpop.f32.mrb[0].mxu0
      %3720 = vmatprep.mubr.bf16.mxu0 0
      %3721 = vmatmul.mubr.bf16.gmra.mrb[0].mxu0 %v2440
      %v3722 = vpop.f32.mrb[0].mxu0
      %v3723 = vadd.f32 0.0, %v3722
      %v3724 = vpop.f32.mrb[0].mxu0
      %v3725 = vpop.f32.mrb[0].mxu0
      %v3726 = vadd.f32 0.0, %v3725
      %v3727 = vpop.f32.mrb[0].mxu0
      %3728 = vmatprep.mubr.bf16.mxu0 0
      %3729 = vmatmul.mubr.bf16.gmra.mrb[0].mxu0 %v2443
      %v3730 = vpop.f32.mrb[0].mxu0
      %v3731 = vadd.f32 0.0, %v3730
      %v3732 = vpop.f32.mrb[0].mxu0
      %v3733 = vpop.f32.mrb[0].mxu0
      %v3734 = vadd.f32 0.0, %v3733
      %v3735 = vpop.f32.mrb[0].mxu0
      %3736 = vmatprep.mubr.bf16.mxu0 0
      %3737 = vmatmul.mubr.bf16.gmra.mrb[0].mxu0 %v2446
      %v3738 = vpop.f32.mrb[0].mxu0
      %v3739 = vadd.f32 0.0, %v3738
      %v3740 = vpop.f32.mrb[0].mxu0
      %v3741 = vpop.f32.mrb[0].mxu0
      %v3742 = vadd.f32 0.0, %v3741
      %v3743 = vpop.f32.mrb[0].mxu0
      %3744 = vmatprep.mubr.bf16.mxu0 0
      %3745 = vmatmul.mubr.bf16.gmra.mrb[0].mxu0 %v2449
      %v3746 = vpop.f32.mrb[0].mxu0
      %v3747 = vadd.f32 0.0, %v3746
      %v3748 = vpop.f32.mrb[0].mxu0
      %v3749 = vpop.f32.mrb[0].mxu0
      %v3750 = vadd.f32 0.0, %v3749
      %v3751 = vpop.f32.mrb[0].mxu0
      %3752 = vmatprep.mubr.bf16.mxu0 0
      %3753 = vmatmul.mubr.bf16.gmra.mrb[0].mxu0 %v2452
      %v3754 = vpop.f32.mrb[0].mxu0
      %v3755 = vadd.f32 0.0, %v3754
      %v3756 = vpop.f32.mrb[0].mxu0
      %v3757 = vpop.f32.mrb[0].mxu0
      %v3758 = vadd.f32 0.0, %v3757
      %v3759 = vpop.f32.mrb[0].mxu0
      %3760 = vmatprep.mubr.bf16.mxu0 0
      %3761 = vmatmul.mubr.bf16.gmra.mrb[0].mxu0 %v2455
      %v3762 = vpop.f32.mrb[0].mxu0
      %v3763 = vadd.f32 0.0, %v3762
      %v3764 = vpop.f32.mrb[0].mxu0
      %v3765 = vpop.f32.mrb[0].mxu0
      %v3766 = vadd.f32 0.0, %v3765
      %v3767 = vpop.f32.mrb[0].mxu0
      %3768 = vmatprep.mubr.bf16.mxu0 0
      %3769 = vmatmul.mubr.bf16.gmra.mrb[0].mxu0 %v2458
      %v3770 = vpop.f32.mrb[0].mxu0
      %v3771 = vadd.f32 0.0, %v3770
      %v3772 = vpop.f32.mrb[0].mxu0
      %v3773 = vpop.f32.mrb[0].mxu0
      %v3774 = vadd.f32 0.0, %v3773
      %v3775 = vpop.f32.mrb[0].mxu0
      %3776 = vmatprep.mubr.bf16.mxu0 0
      %3777 = vmatmul.mubr.bf16.gmra.mrb[0].mxu0 %v2461
      %v3778 = vpop.f32.mrb[0].mxu0
      %v3779 = vadd.f32 0.0, %v3778
      %v3780 = vpop.f32.mrb[0].mxu0
      %v3781 = vpop.f32.mrb[0].mxu0
      %v3782 = vadd.f32 0.0, %v3781
      %v3783 = vpop.f32.mrb[0].mxu0
      %3784 = vmatprep.mubr.bf16.mxu0 0
      %3785 = vmatmul.mubr.bf16.gmra.mrb[0].mxu0 %v2464
      %v3786 = vpop.f32.mrb[0].mxu0
      %v3787 = vadd.f32 0.0, %v3786
      %v3788 = vpop.f32.mrb[0].mxu0
      %v3789 = vpop.f32.mrb[0].mxu0
      %v3790 = vadd.f32 0.0, %v3789
      %v3791 = vpop.f32.mrb[0].mxu0
      %3792 = vmatprep.mubr.bf16.mxu0 0
      %3793 = vmatmul.mubr.bf16.gmra.mrb[0].mxu0 %v2467
      %v3794 = vpop.f32.mrb[0].mxu0
      %v3795 = vadd.f32 0.0, %v3794
      %v3796 = vpop.f32.mrb[0].mxu0
      %v3797 = vpop.f32.mrb[0].mxu0
      %v3798 = vadd.f32 0.0, %v3797
      %v3799 = vpop.f32.mrb[0].mxu0
      %3800 = vmatprep.mubr.bf16.mxu0 0
      %3801 = vmatmul.mubr.bf16.gmra.mrb[0].mxu0 %v2470
      %v3802 = vpop.f32.mrb[0].mxu0
      %v3803 = vadd.f32 0.0, %v3802
      %v3804 = vpop.f32.mrb[0].mxu0
      %v3805 = vpop.f32.mrb[0].mxu0
      %v3806 = vadd.f32 0.0, %v3805
      %v3807 = vpop.f32.mrb[0].mxu0
      %3808 = vmatprep.mubr.bf16.mxu0 0
      %3809 = vmatmul.mubr.bf16.gmra.mrb[0].mxu0 %v2473
      %v3810 = vpop.f32.mrb[0].mxu0
      %v3811 = vadd.f32 0.0, %v3810
      %v3812 = vpop.f32.mrb[0].mxu0
      %v3813 = vpop.f32.mrb[0].mxu0
      %v3814 = vadd.f32 0.0, %v3813
      %v3815 = vpop.f32.mrb[0].mxu0
      %3816 = vmatprep.mubr.bf16.mxu0 0
      %3817 = vmatmul.mubr.bf16.gmra.mrb[0].mxu0 %v2476
      %v3818 = vpop.f32.mrb[0].mxu0
      %v3819 = vadd.f32 0.0, %v3818
      %v3820 = vpop.f32.mrb[0].mxu0
      %v3821 = vpop.f32.mrb[0].mxu0
      %v3822 = vadd.f32 0.0, %v3821
      %v3823 = vpop.f32.mrb[0].mxu0
      %3824 = vmatprep.mubr.bf16.mxu0 0
      %3825 = vmatmul.mubr.bf16.gmra.mrb[0].mxu0 %v2479
      %v3826 = vpop.f32.mrb[0].mxu0
      %v3827 = vadd.f32 0.0, %v3826
      %v3828 = vpop.f32.mrb[0].mxu0
      %v3829 = vpop.f32.mrb[0].mxu0
      %v3830 = vadd.f32 0.0, %v3829
      %v3831 = vpop.f32.mrb[0].mxu0
      %3832 = vmatprep.mubr.bf16.mxu0 0
      %3833 = vmatmul.mubr.bf16.gmra.mrb[0].mxu0 %v2482
      %v3834 = vpop.f32.mrb[0].mxu0
      %v3835 = vadd.f32 0.0, %v3834
      %v3836 = vpop.f32.mrb[0].mxu0
      %v3837 = vpop.f32.mrb[0].mxu0
      %v3838 = vadd.f32 0.0, %v3837
      %v3839 = vpop.f32.mrb[0].mxu0
      %3840 = vmatprep.mubr.bf16.mxu0 0
      %3841 = vmatmul.mubr.bf16.gmra.mrb[0].mxu0 %v2485
      %v3842 = vpop.f32.mrb[0].mxu0
      %v3843 = vadd.f32 0.0, %v3842
      %v3844 = vpop.f32.mrb[0].mxu0
      %v3845 = vpop.f32.mrb[0].mxu0
      %v3846 = vadd.f32 0.0, %v3845
      %v3847 = vpop.f32.mrb[0].mxu0
      %3848 = vmatprep.mubr.bf16.mxu0 0
      %3849 = vmatmul.mubr.bf16.gmra.mrb[0].mxu0 %v2488
      %v3850 = vpop.f32.mrb[0].mxu0
      %v3851 = vadd.f32 0.0, %v3850
      %v3852 = vpop.f32.mrb[0].mxu0
      %v3853 = vpop.f32.mrb[0].mxu0
      %v3854 = vadd.f32 0.0, %v3853
      %v3855 = vpop.f32.mrb[0].mxu0
      %3856 = vmatprep.mubr.bf16.mxu0 0
      %3857 = vmatmul.mubr.bf16.gmra.mrb[0].mxu0 %v2491
      %v3858 = vpop.f32.mrb[0].mxu0
      %v3859 = vadd.f32 0.0, %v3858
      %v3860 = vpop.f32.mrb[0].mxu0
      %v3861 = vpop.f32.mrb[0].mxu0
      %v3862 = vadd.f32 0.0, %v3861
      %v3863 = vpop.f32.mrb[0].mxu0
      %3864 = vmatprep.mubr.bf16.mxu0 0
      %3865 = vmatmul.mubr.bf16.gmra.mrb[0].mxu0 %v2494
      %v3866 = vpop.f32.mrb[0].mxu0
      %v3867 = vadd.f32 0.0, %v3866
      %v3868 = vpop.f32.mrb[0].mxu0
      %v3869 = vpop.f32.mrb[0].mxu0
      %v3870 = vadd.f32 0.0, %v3869
      %v3871 = vpop.f32.mrb[0].mxu0
      %3872 = vmatprep.mubr.bf16.mxu0 0
      %3873 = vmatmul.mubr.bf16.gmra.mrb[0].mxu0 %v2497
      %v3874 = vpop.f32.mrb[0].mxu0
      %v3875 = vadd.f32 0.0, %v3874
      %v3876 = vpop.f32.mrb[0].mxu0
      %v3877 = vpop.f32.mrb[0].mxu0
      %v3878 = vadd.f32 0.0, %v3877
      %v3879 = vpop.f32.mrb[0].mxu0
      %3880 = vmatprep.mubr.bf16.mxu0 0
      %3881 = vmatmul.mubr.bf16.gmra.mrb[0].mxu0 %v2500
      %v3882 = vpop.f32.mrb[0].mxu0
      %v3883 = vadd.f32 0.0, %v3882
      %v3884 = vpop.f32.mrb[0].mxu0
      %v3885 = vpop.f32.mrb[0].mxu0
      %v3886 = vadd.f32 0.0, %v3885
      %v3887 = vpop.f32.mrb[0].mxu0
      %3888 = vmatprep.mubr.bf16.mxu0 0
      %3889 = vmatmul.mubr.bf16.gmra.mrb[0].mxu0 %v2503
      %v3890 = vpop.f32.mrb[0].mxu0
      %v3891 = vadd.f32 0.0, %v3890
      %v3892 = vpop.f32.mrb[0].mxu0
      %v3893 = vpop.f32.mrb[0].mxu0
      %v3894 = vadd.f32 0.0, %v3893
      %v3895 = vpop.f32.mrb[0].mxu0
      %3896 = vmatprep.mubr.bf16.mxu0 0
      %3897 = vmatmul.mubr.bf16.gmra.mrb[0].mxu0 %v2506
      %v3898 = vpop.f32.mrb[0].mxu0
      %v3899 = vadd.f32 0.0, %v3898
      %v3900 = vpop.f32.mrb[0].mxu0
      %v3901 = vpop.f32.mrb[0].mxu0
      %v3902 = vadd.f32 0.0, %v3901
      %v3903 = vpop.f32.mrb[0].mxu0
      %3904 = vmatprep.mubr.bf16.mxu0 0
      %3905 = vmatmul.mubr.bf16.gmra.mrb[0].mxu0 %v2509
      %v3906 = vpop.f32.mrb[0].mxu0
      %v3907 = vadd.f32 0.0, %v3906
      %v3908 = vpop.f32.mrb[0].mxu0
      %v3909 = vpop.f32.mrb[0].mxu0
      %v3910 = vadd.f32 0.0, %v3909
      %v3911 = vpop.f32.mrb[0].mxu0
      %3912 = vmatprep.mubr.bf16.mxu0 0
      %3913 = vmatmul.mubr.bf16.gmra.mrb[0].mxu0 %v2512
      %v3914 = vpop.f32.mrb[0].mxu0
      %v3915 = vadd.f32 0.0, %v3914
      %v3916 = vpop.f32.mrb[0].mxu0
      %v3917 = vpop.f32.mrb[0].mxu0
      %v3918 = vadd.f32 0.0, %v3917
      %v3919 = vpop.f32.mrb[0].mxu0
      %3920 = vmatprep.mubr.bf16.mxu0 0
      %3921 = vmatmul.mubr.bf16.gmra.mrb[0].mxu0 %v2515
      %v3922 = vpop.f32.mrb[0].mxu0
      %v3923 = vadd.f32 0.0, %v3922
      %v3924 = vpop.f32.mrb[0].mxu0
      %v3925 = vpop.f32.mrb[0].mxu0
      %v3926 = vadd.f32 0.0, %v3925
      %v3927 = vpop.f32.mrb[0].mxu0
      %3928 = vmatprep.mubr.bf16.mxu0 0
      %3929 = vmatmul.mubr.bf16.gmra.mrb[0].mxu0 %v2518
      %v3930 = vpop.f32.mrb[0].mxu0
      %v3931 = vadd.f32 0.0, %v3930
      %v3932 = vpop.f32.mrb[0].mxu0
      %v3933 = vpop.f32.mrb[0].mxu0
      %v3934 = vadd.f32 0.0, %v3933
      %v3935 = vpop.f32.mrb[0].mxu0
      %3936 = vmatprep.mubr.bf16.mxu0 0
      %3937 = vmatmul.mubr.bf16.gmra.mrb[0].mxu0 %v2521
      %v3938 = vpop.f32.mrb[0].mxu0
      %v3939 = vadd.f32 0.0, %v3938
      %v3940 = vpop.f32.mrb[0].mxu0
      %v3941 = vpop.f32.mrb[0].mxu0
      %v3942 = vadd.f32 0.0, %v3941
      %v3943 = vpop.f32.mrb[0].mxu0
      %3944 = vmatprep.mubr.bf16.mxu0 0
      %3945 = vmatmul.mubr.bf16.gmra.mrb[0].mxu0 %v2524
      %v3946 = vpop.f32.mrb[0].mxu0
      %v3947 = vadd.f32 0.0, %v3946
      %v3948 = vpop.f32.mrb[0].mxu0
      %v3949 = vpop.f32.mrb[0].mxu0
      %v3950 = vadd.f32 0.0, %v3949
      %v3951 = vpop.f32.mrb[0].mxu0
      %3952 = vmatprep.mubr.bf16.mxu0 0
      %3953 = vmatmul.mubr.bf16.gmra.mrb[0].mxu0 %v2527
      %v3954 = vpop.f32.mrb[0].mxu0
      %v3955 = vadd.f32 0.0, %v3954
      %v3956 = vpop.f32.mrb[0].mxu0
      %v3957 = vpop.f32.mrb[0].mxu0
      %v3958 = vadd.f32 0.0, %v3957
      %v3959 = vpop.f32.mrb[0].mxu0
      %3960 = vmatprep.mubr.bf16.mxu0 0
      %3961 = vmatmul.mubr.bf16.gmra.mrb[0].mxu0 %v2530
      %v3962 = vpop.f32.mrb[0].mxu0
      %v3963 = vadd.f32 0.0, %v3962
      %v3964 = vpop.f32.mrb[0].mxu0
      %v3965 = vpop.f32.mrb[0].mxu0
      %v3966 = vadd.f32 0.0, %v3965
      %v3967 = vpop.f32.mrb[0].mxu0
      %3968 = vmatprep.mubr.bf16.mxu0 0
      %3969 = vmatmul.mubr.bf16.gmra.mrb[0].mxu0 %v2533
      %v3970 = vpop.f32.mrb[0].mxu0
      %v3971 = vadd.f32 0.0, %v3970
      %v3972 = vpop.f32.mrb[0].mxu0
      %v3973 = vpop.f32.mrb[0].mxu0
      %v3974 = vadd.f32 0.0, %v3973
      %v3975 = vpop.f32.mrb[0].mxu0
      %3976 = vmatprep.mubr.bf16.mxu0 0
      %3977 = vmatmul.mubr.bf16.gmra.mrb[0].mxu0 %v2536
      %v3978 = vpop.f32.mrb[0].mxu0
      %v3979 = vadd.f32 0.0, %v3978
      %v3980 = vpop.f32.mrb[0].mxu0
      %v3981 = vpop.f32.mrb[0].mxu0
      %v3982 = vadd.f32 0.0, %v3981
      %v3983 = vpop.f32.mrb[0].mxu0
      %3984 = vmatprep.mubr.bf16.mxu0 0
      %3985 = vmatmul.mubr.bf16.gmra.mrb[0].mxu0 %v2539
      %v3986 = vpop.f32.mrb[0].mxu0
      %v3987 = vadd.f32 0.0, %v3986
      %v3988 = vpop.f32.mrb[0].mxu0
      %v3989 = vpop.f32.mrb[0].mxu0
      %v3990 = vadd.f32 0.0, %v3989
      %v3991 = vpop.f32.mrb[0].mxu0
      %3992 = vmatprep.mubr.bf16.mxu0 0
      %3993 = vmatmul.mubr.bf16.gmra.mrb[0].mxu0 %v2542
      %v3994 = vpop.f32.mrb[0].mxu0
      %v3995 = vadd.f32 0.0, %v3994
      %v3996 = vpop.f32.mrb[0].mxu0
      %v3997 = vpop.f32.mrb[0].mxu0
      %v3998 = vadd.f32 0.0, %v3997
      %v3999 = vpop.f32.mrb[0].mxu0
      %4000 = vmatprep.mubr.bf16.mxu0 0
      %4001 = vmatmul.mubr.bf16.gmra.mrb[0].mxu0 %v2545
      %v4002 = vpop.f32.mrb[0].mxu0
      %v4003 = vadd.f32 0.0, %v4002
      %v4004 = vpop.f32.mrb[0].mxu0
      %v4005 = vpop.f32.mrb[0].mxu0
      %v4006 = vadd.f32 0.0, %v4005
      %v4007 = vpop.f32.mrb[0].mxu0
      %4008 = vmatprep.mubr.bf16.mxu0 0
      %4009 = vmatmul.mubr.bf16.gmra.mrb[0].mxu0 %v2548
      %v4010 = vpop.f32.mrb[0].mxu0
      %v4011 = vadd.f32 0.0, %v4010
      %v4012 = vpop.f32.mrb[0].mxu0
      %v4013 = vpop.f32.mrb[0].mxu0
      %v4014 = vadd.f32 0.0, %v4013
      %v4015 = vpop.f32.mrb[0].mxu0
      %4016 = vmatprep.mubr.bf16.mxu0 0
      %4017 = vmatmul.mubr.bf16.gmra.mrb[0].mxu0 %v2551
      %v4018 = vpop.f32.mrb[0].mxu0
      %v4019 = vadd.f32 0.0, %v4018
      %v4020 = vpop.f32.mrb[0].mxu0
      %v4021 = vpop.f32.mrb[0].mxu0
      %v4022 = vadd.f32 0.0, %v4021
      %v4023 = vpop.f32.mrb[0].mxu0
      %4024 = vmatprep.mubr.bf16.mxu0 0
      %4025 = vmatmul.mubr.bf16.gmra.mrb[0].mxu0 %v2554
      %v4026 = vpop.f32.mrb[0].mxu0
      %v4027 = vadd.f32 0.0, %v4026
      %v4028 = vpop.f32.mrb[0].mxu0
      %v4029 = vpop.f32.mrb[0].mxu0
      %v4030 = vadd.f32 0.0, %v4029
      %v4031 = vpop.f32.mrb[0].mxu0
      %4032 = vmatprep.mubr.bf16.mxu0 0
      %4033 = vmatmul.mubr.bf16.gmra.mrb[0].mxu0 %v2557
      %v4034 = vpop.f32.mrb[0].mxu0
      %v4035 = vadd.f32 0.0, %v4034
      %v4036 = vpop.f32.mrb[0].mxu0
      %v4037 = vpop.f32.mrb[0].mxu0
      %v4038 = vadd.f32 0.0, %v4037
      %v4039 = vpop.f32.mrb[0].mxu0
      %4040 = vmatprep.mubr.bf16.mxu0 0
      %4041 = vmatmul.mubr.bf16.gmra.mrb[0].mxu0 %v2560
      %v4042 = vpop.f32.mrb[0].mxu0
      %v4043 = vadd.f32 0.0, %v4042
      %v4044 = vpop.f32.mrb[0].mxu0
      %v4045 = vpop.f32.mrb[0].mxu0
      %v4046 = vadd.f32 0.0, %v4045
      %v4047 = vpop.f32.mrb[0].mxu0
      %4048 = vmatprep.mubr.bf16.mxu0 0
      %4049 = vmatmul.mubr.bf16.gmra.mrb[0].mxu0 %v2563
      %v4050 = vpop.f32.mrb[0].mxu0
      %v4051 = vadd.f32 0.0, %v4050
      %v4052 = vpop.f32.mrb[0].mxu0
      %v4053 = vpop.f32.mrb[0].mxu0
      %v4054 = vadd.f32 0.0, %v4053
      %v4055 = vpop.f32.mrb[0].mxu0
      %4056 = vmatprep.mubr.bf16.mxu0 0
      %4057 = vmatmul.mubr.bf16.gmra.mrb[0].mxu0 %v2566
      %v4058 = vpop.f32.mrb[0].mxu0
      %v4059 = vadd.f32 0.0, %v4058
      %v4060 = vpop.f32.mrb[0].mxu0
      %v4061 = vpop.f32.mrb[0].mxu0
      %v4062 = vadd.f32 0.0, %v4061
      %v4063 = vpop.f32.mrb[0].mxu0
      %4064 = vmatprep.mubr.bf16.mxu0 0
      %4065 = vmatmul.mubr.bf16.gmra.mrb[0].mxu0 %v2569
      %v4066 = vpop.f32.mrb[0].mxu0
      %v4067 = vadd.f32 0.0, %v4066
      %v4068 = vpop.f32.mrb[0].mxu0
      %v4069 = vpop.f32.mrb[0].mxu0
      %v4070 = vadd.f32 0.0, %v4069
      %v4071 = vpop.f32.mrb[0].mxu0
      %4072 = vmatprep.mubr.bf16.mxu0 0
      %4073 = vmatmul.mubr.bf16.gmra.mrb[0].mxu0 %v2572
      %v4074 = vpop.f32.mrb[0].mxu0
      %v4075 = vadd.f32 0.0, %v4074
      %v4076 = vpop.f32.mrb[0].mxu0
      %v4077 = vpop.f32.mrb[0].mxu0
      %v4078 = vadd.f32 0.0, %v4077
      %v4079 = vpop.f32.mrb[0].mxu0
      %4080 = vmatprep.mubr.bf16.mxu0 0
      %4081 = vmatmul.mubr.bf16.gmra.mrb[0].mxu0 %v2575
      %v4082 = vpop.f32.mrb[0].mxu0
      %v4083 = vadd.f32 0.0, %v4082
      %v4084 = vpop.f32.mrb[0].mxu0
      %v4085 = vpop.f32.mrb[0].mxu0
      %v4086 = vadd.f32 0.0, %v4085
      %v4087 = vpop.f32.mrb[0].mxu0
      %4088 = vmatprep.mubr.bf16.mxu0 0
      %4089 = vmatmul.mubr.bf16.gmra.mrb[0].mxu0 %v2578
      %v4090 = vpop.f32.mrb[0].mxu0
      %v4091 = vadd.f32 0.0, %v4090
      %v4092 = vpop.f32.mrb[0].mxu0
      %v4093 = vpop.f32.mrb[0].mxu0
      %v4094 = vadd.f32 0.0, %v4093
      %v4095 = vpop.f32.mrb[0].mxu0
      %4096 = vmatprep.mubr.bf16.mxu0 0
      %4097 = vmatmul.mubr.bf16.gmra.mrb[0].mxu0 %v2581
      %v4098 = vpop.f32.mrb[0].mxu0
      %v4099 = vadd.f32 0.0, %v4098
      %v4100 = vpop.f32.mrb[0].mxu0
      %v4101 = vpop.f32.mrb[0].mxu0
      %v4102 = vadd.f32 0.0, %v4101
      %v4103 = vpop.f32.mrb[0].mxu0
      %4104 = vmatprep.mubr.bf16.mxu0 0
      %4105 = vmatmul.mubr.bf16.gmra.mrb[0].mxu0 %v2584
      %v4106 = vpop.f32.mrb[0].mxu0
      %v4107 = vadd.f32 0.0, %v4106
      %v4108 = vpop.f32.mrb[0].mxu0
      %v4109 = vpop.f32.mrb[0].mxu0
      %v4110 = vadd.f32 0.0, %v4109
      %v4111 = vpop.f32.mrb[0].mxu0
      %4112 = vmatprep.mubr.bf16.mxu0 0
      %4113 = vmatmul.mubr.bf16.gmra.mrb[0].mxu0 %v2587
      %v4114 = vpop.f32.mrb[0].mxu0
      %v4115 = vadd.f32 0.0, %v4114
      %v4116 = vpop.f32.mrb[0].mxu0
      %v4117 = vpop.f32.mrb[0].mxu0
      %v4118 = vadd.f32 0.0, %v4117
      %v4119 = vpop.f32.mrb[0].mxu0
      %4120 = vmatprep.mubr.bf16.mxu0 0
      %4121 = vmatmul.mubr.bf16.gmra.mrb[0].mxu0 %v2590
      %v4122 = vpop.f32.mrb[0].mxu0
      %v4123 = vadd.f32 0.0, %v4122
      %v4124 = vpop.f32.mrb[0].mxu0
      %v4125 = vpop.f32.mrb[0].mxu0
      %v4126 = vadd.f32 0.0, %v4125
      %v4127 = vpop.f32.mrb[0].mxu0
      %4128 = vmatprep.mubr.bf16.mxu0 0
      %4129 = vmatmul.mubr.bf16.gmra.mrb[0].mxu0 %v2593
      %v4130 = vpop.f32.mrb[0].mxu0
      %v4131 = vadd.f32 0.0, %v4130
      %v4132 = vpop.f32.mrb[0].mxu0
      %v4133 = vpop.f32.mrb[0].mxu0
      %v4134 = vadd.f32 0.0, %v4133
      %v4135 = vpop.f32.mrb[0].mxu0
      %4136 = vmatprep.mubr.bf16.mxu0 0
      %4137 = vmatmul.mubr.bf16.gmra.mrb[0].mxu0 %v2596
      %v4138 = vpop.f32.mrb[0].mxu0
      %v4139 = vadd.f32 0.0, %v4138
      %v4140 = vpop.f32.mrb[0].mxu0
      %v4141 = vpop.f32.mrb[0].mxu0
      %v4142 = vadd.f32 0.0, %v4141
      %v4143 = vpop.f32.mrb[0].mxu0
      %4144 = vmatprep.mubr.bf16.mxu0 0
      %4145 = vmatmul.mubr.bf16.gmra.mrb[0].mxu0 %v2599
      %v4146 = vpop.f32.mrb[0].mxu0
      %v4147 = vadd.f32 0.0, %v4146
      %v4148 = vpop.f32.mrb[0].mxu0
      %v4149 = vpop.f32.mrb[0].mxu0
      %v4150 = vadd.f32 0.0, %v4149
      %v4151 = vpop.f32.mrb[0].mxu0
      %4152 = vmatprep.mubr.bf16.mxu0 0
      %4153 = vmatmul.mubr.bf16.gmra.mrb[0].mxu0 %v2602
      %v4154 = vpop.f32.mrb[0].mxu0
      %v4155 = vadd.f32 0.0, %v4154
      %v4156 = vpop.f32.mrb[0].mxu0
      %v4157 = vpop.f32.mrb[0].mxu0
      %v4158 = vadd.f32 0.0, %v4157
      %v4159 = vpop.f32.mrb[0].mxu0
      %4160 = vmatprep.mubr.bf16.mxu0 0
      %4161 = vmatmul.mubr.bf16.gmra.mrb[0].mxu0 %v2605
      %v4162 = vpop.f32.mrb[0].mxu0
      %v4163 = vadd.f32 0.0, %v4162
      %v4164 = vpop.f32.mrb[0].mxu0
      %v4165 = vpop.f32.mrb[0].mxu0
      %v4166 = vadd.f32 0.0, %v4165
      %v4167 = vpop.f32.mrb[0].mxu0
      %4168 = vmatprep.mubr.bf16.mxu0 0
      %4169 = vmatmul.mubr.bf16.gmra.mrb[0].mxu0 %v2608
      %v4170 = vpop.f32.mrb[0].mxu0
      %v4171 = vadd.f32 0.0, %v4170
      %v4172 = vpop.f32.mrb[0].mxu0
      %v4173 = vpop.f32.mrb[0].mxu0
      %v4174 = vadd.f32 0.0, %v4173
      %v4175 = vpop.f32.mrb[0].mxu0
      %4176 = vmatprep.mubr.bf16.mxu0 0
      %4177 = vmatmul.mubr.bf16.gmra.mrb[0].mxu0 %v2611
      %v4178 = vpop.f32.mrb[0].mxu0
      %v4179 = vadd.f32 0.0, %v4178
      %v4180 = vpop.f32.mrb[0].mxu0
      %v4181 = vpop.f32.mrb[0].mxu0
      %v4182 = vadd.f32 0.0, %v4181
      %v4183 = vpop.f32.mrb[0].mxu0
      %4184 = vmatprep.mubr.bf16.mxu0 0
      %4185 = vmatmul.mubr.bf16.gmra.mrb[0].mxu0 %v2614
      %v4186 = vpop.f32.mrb[0].mxu0
      %v4187 = vadd.f32 0.0, %v4186
      %v4188 = vpop.f32.mrb[0].mxu0
      %v4189 = vpop.f32.mrb[0].mxu0
      %v4190 = vadd.f32 0.0, %v4189
      %v4191 = vpop.f32.mrb[0].mxu0
      %4192 = vmatprep.mubr.bf16.mxu0 0
      %4193 = vmatmul.mubr.bf16.gmra.mrb[0].mxu0 %v2617
      %v4194 = vpop.f32.mrb[0].mxu0
      %v4195 = vadd.f32 0.0, %v4194
      %v4196 = vpop.f32.mrb[0].mxu0
      %v4197 = vpop.f32.mrb[0].mxu0
      %v4198 = vadd.f32 0.0, %v4197
      %v4199 = vpop.f32.mrb[0].mxu0
      %4200 = vmatprep.mubr.bf16.mxu0 0
      %4201 = vmatmul.mubr.bf16.gmra.mrb[0].mxu0 %v2620
      %v4202 = vpop.f32.mrb[0].mxu0
      %v4203 = vadd.f32 0.0, %v4202
      %v4204 = vpop.f32.mrb[0].mxu0
      %v4205 = vpop.f32.mrb[0].mxu0
      %v4206 = vadd.f32 0.0, %v4205
      %v4207 = vpop.f32.mrb[0].mxu0
      %4208 = vmatprep.mubr.bf16.mxu0 0
      %4209 = vmatmul.mubr.bf16.gmra.mrb[0].mxu0 %v2623
      %v4210 = vpop.f32.mrb[0].mxu0
      %v4211 = vadd.f32 0.0, %v4210
      %v4212 = vpop.f32.mrb[0].mxu0
      %v4213 = vpop.f32.mrb[0].mxu0
      %v4214 = vadd.f32 0.0, %v4213
      %v4215 = vpop.f32.mrb[0].mxu0
      %4216 = vmatprep.mubr.bf16.mxu0 0
      %4217 = vmatmul.mubr.bf16.gmra.mrb[0].mxu0 %v2626
      %v4218 = vpop.f32.mrb[0].mxu0
      %v4219 = vadd.f32 0.0, %v4218
      %v4220 = vpop.f32.mrb[0].mxu0
      %v4221 = vpop.f32.mrb[0].mxu0
      %v4222 = vadd.f32 0.0, %v4221
      %v4223 = vpop.f32.mrb[0].mxu0
      %4224 = vmatprep.mubr.bf16.mxu0 0
      %4225 = vmatmul.mubr.bf16.gmra.mrb[0].mxu0 %v2629
      %v4226 = vpop.f32.mrb[0].mxu0
      %v4227 = vadd.f32 0.0, %v4226
      %v4228 = vpop.f32.mrb[0].mxu0
      %v4229 = vpop.f32.mrb[0].mxu0
      %v4230 = vadd.f32 0.0, %v4229
      %v4231 = vpop.f32.mrb[0].mxu0
      %4232 = vmatprep.mubr.bf16.mxu0 0
      %4233 = vmatmul.mubr.bf16.gmra.mrb[0].mxu0 %v2632
      %v4234 = vpop.f32.mrb[0].mxu0
      %v4235 = vadd.f32 0.0, %v4234
      %v4236 = vpop.f32.mrb[0].mxu0
      %v4237 = vpop.f32.mrb[0].mxu0
      %v4238 = vadd.f32 0.0, %v4237
      %v4239 = vpop.f32.mrb[0].mxu0
      %4240 = vmatprep.mubr.bf16.mxu0 0
      %4241 = vmatmul.mubr.bf16.gmra.mrb[0].mxu0 %v2635
      %v4242 = vpop.f32.mrb[0].mxu0
      %v4243 = vadd.f32 0.0, %v4242
      %v4244 = vpop.f32.mrb[0].mxu0
      %v4245 = vpop.f32.mrb[0].mxu0
      %v4246 = vadd.f32 0.0, %v4245
      %v4247 = vpop.f32.mrb[0].mxu0
      %4248 = vmatprep.mubr.bf16.mxu0 0
      %4249 = vmatmul.mubr.bf16.gmra.mrb[0].mxu0 %v2638
      %v4250 = vpop.f32.mrb[0].mxu0
      %v4251 = vadd.f32 0.0, %v4250
      %v4252 = vpop.f32.mrb[0].mxu0
      %v4253 = vpop.f32.mrb[0].mxu0
      %v4254 = vadd.f32 0.0, %v4253
      %v4255 = vpop.f32.mrb[0].mxu0
      %4256 = vmatprep.mubr.bf16.mxu0 0
      %4257 = vmatmul.mubr.bf16.gmra.mrb[0].mxu0 %v2641
      %v4258 = vpop.f32.mrb[0].mxu0
      %v4259 = vadd.f32 0.0, %v4258
      %v4260 = vpop.f32.mrb[0].mxu0
      %v4261 = vpop.f32.mrb[0].mxu0
      %v4262 = vadd.f32 0.0, %v4261
      %v4263 = vpop.f32.mrb[0].mxu0
      %4264 = vmatprep.mubr.bf16.mxu0 0
      %4265 = vmatmul.mubr.bf16.gmra.mrb[0].mxu0 %v2644
      %v4266 = vpop.f32.mrb[0].mxu0
      %v4267 = vadd.f32 0.0, %v4266
      %v4268 = vpop.f32.mrb[0].mxu0
      %v4269 = vpop.f32.mrb[0].mxu0
      %v4270 = vadd.f32 0.0, %v4269
      %v4271 = vpop.f32.mrb[0].mxu0
      %4272 = vmatprep.mubr.bf16.mxu0 0
      %4273 = vmatmul.mubr.bf16.gmra.mrb[0].mxu0 %v2647
      %v4274 = vpop.f32.mrb[0].mxu0
      %v4275 = vadd.f32 0.0, %v4274
      %v4276 = vpop.f32.mrb[0].mxu0
      %v4277 = vpop.f32.mrb[0].mxu0
      %v4278 = vadd.f32 0.0, %v4277
      %v4279 = vpop.f32.mrb[0].mxu0
      %4280 = vmatprep.mubr.bf16.mxu0 0
      %4281 = vmatmul.mubr.bf16.gmra.mrb[0].mxu0 %v2650
      %v4282 = vpop.f32.mrb[0].mxu0
      %v4283 = vadd.f32 0.0, %v4282
      %v4284 = vpop.f32.mrb[0].mxu0
      %v4285 = vpop.f32.mrb[0].mxu0
      %v4286 = vadd.f32 0.0, %v4285
      %v4287 = vpop.f32.mrb[0].mxu0
      %4288 = vmatprep.mubr.bf16.mxu0 0
      %4289 = vmatmul.mubr.bf16.gmra.mrb[0].mxu0 %v2653
      %v4290 = vpop.f32.mrb[0].mxu0
      %v4291 = vadd.f32 0.0, %v4290
      %v4292 = vpop.f32.mrb[0].mxu0
      %v4293 = vpop.f32.mrb[0].mxu0
      %v4294 = vadd.f32 0.0, %v4293
      %v4295 = vpop.f32.mrb[0].mxu0
      %4296 = vmatprep.mubr.bf16.mxu0 0
      %4297 = vmatmul.mubr.bf16.gmra.mrb[0].mxu0 %v2656
      %v4298 = vpop.f32.mrb[0].mxu0
      %v4299 = vadd.f32 0.0, %v4298
      %v4300 = vpop.f32.mrb[0].mxu0
      %v4301 = vpop.f32.mrb[0].mxu0
      %v4302 = vadd.f32 0.0, %v4301
      %v4303 = vpop.f32.mrb[0].mxu0
      %4304 = vmatprep.mubr.bf16.mxu0 0
      %4305 = vmatmul.mubr.bf16.gmra.mrb[0].mxu0 %v2659
      %v4306 = vpop.f32.mrb[0].mxu0
      %v4307 = vadd.f32 0.0, %v4306
      %v4308 = vpop.f32.mrb[0].mxu0
      %v4309 = vpop.f32.mrb[0].mxu0
      %v4310 = vadd.f32 0.0, %v4309
      %v4311 = vpop.f32.mrb[0].mxu0
      %4312 = vmatprep.mubr.bf16.mxu0 0
      %4313 = vmatmul.mubr.bf16.gmra.mrb[0].mxu0 %v2662
      %v4314 = vpop.f32.mrb[0].mxu0
      %v4315 = vadd.f32 0.0, %v4314
      %v4316 = vpop.f32.mrb[0].mxu0
      %v4317 = vpop.f32.mrb[0].mxu0
      %v4318 = vadd.f32 0.0, %v4317
      %v4319 = vpop.f32.mrb[0].mxu0
      %4320 = vmatprep.mubr.bf16.mxu0 0
      %4321 = vmatmul.mubr.bf16.gmra.mrb[0].mxu0 %v2665
      %v4322 = vpop.f32.mrb[0].mxu0
      %v4323 = vadd.f32 0.0, %v4322
      %v4324 = vpop.f32.mrb[0].mxu0
      %v4325 = vpop.f32.mrb[0].mxu0
      %v4326 = vadd.f32 0.0, %v4325
      %v4327 = vpop.f32.mrb[0].mxu0
      %4328 = vmatprep.mubr.bf16.mxu0 0
      %4329 = vmatmul.mubr.bf16.gmra.mrb[0].mxu0 %v2668
      %v4330 = vpop.f32.mrb[0].mxu0
      %v4331 = vadd.f32 0.0, %v4330
      %v4332 = vpop.f32.mrb[0].mxu0
      %v4333 = vpop.f32.mrb[0].mxu0
      %v4334 = vadd.f32 0.0, %v4333
      %v4335 = vpop.f32.mrb[0].mxu0
      %4336 = vmatprep.mubr.bf16.mxu0 0
      %4337 = vmatmul.mubr.bf16.gmra.mrb[0].mxu0 %v2671
      %v4338 = vpop.f32.mrb[0].mxu0
      %v4339 = vadd.f32 0.0, %v4338
      %v4340 = vpop.f32.mrb[0].mxu0
      %v4341 = vpop.f32.mrb[0].mxu0
      %v4342 = vadd.f32 0.0, %v4341
      %v4343 = vpop.f32.mrb[0].mxu0
      %4344 = vmatprep.mubr.bf16.mxu0 0
      %4345 = vmatmul.mubr.bf16.gmra.mrb[0].mxu0 %v2674
      %v4346 = vpop.f32.mrb[0].mxu0
      %v4347 = vadd.f32 0.0, %v4346
      %v4348 = vpop.f32.mrb[0].mxu0
      %v4349 = vpop.f32.mrb[0].mxu0
      %v4350 = vadd.f32 0.0, %v4349
      %v4351 = vpop.f32.mrb[0].mxu0
      %4352 = vmatprep.mubr.bf16.mxu0 0
      %4353 = vmatmul.mubr.bf16.gmra.mrb[0].mxu0 %v2677
      %v4354 = vpop.f32.mrb[0].mxu0
      %v4355 = vadd.f32 0.0, %v4354
      %v4356 = vpop.f32.mrb[0].mxu0
      %v4357 = vpop.f32.mrb[0].mxu0
      %v4358 = vadd.f32 0.0, %v4357
      %v4359 = vpop.f32.mrb[0].mxu0
      %4360 = vmatprep.mubr.bf16.mxu0 0
      %4361 = vmatmul.mubr.bf16.gmra.mrb[0].mxu0 %v2680
      %v4362 = vpop.f32.mrb[0].mxu0
      %v4363 = vadd.f32 0.0, %v4362
      %v4364 = vpop.f32.mrb[0].mxu0
      %v4365 = vpop.f32.mrb[0].mxu0
      %v4366 = vadd.f32 0.0, %v4365
      %v4367 = vpop.f32.mrb[0].mxu0
      %4368 = vmatprep.mubr.bf16.mxu0 0
      %4369 = vmatmul.mubr.bf16.gmra.mrb[0].mxu0 %v2683
      %v4370 = vpop.f32.mrb[0].mxu0
      %v4371 = vadd.f32 0.0, %v4370
      %v4372 = vpop.f32.mrb[0].mxu0
      %v4373 = vpop.f32.mrb[0].mxu0
      %v4374 = vadd.f32 0.0, %v4373
      %v4375 = vpop.f32.mrb[0].mxu0
      %4376 = vmatprep.mubr.bf16.mxu0 0
      %4377 = vmatmul.mubr.bf16.gmra.mrb[0].mxu0 %v2686
      %v4378 = vpop.f32.mrb[0].mxu0
      %v4379 = vadd.f32 0.0, %v4378
      %v4380 = vpop.f32.mrb[0].mxu0
      %v4381 = vpop.f32.mrb[0].mxu0
      %v4382 = vadd.f32 0.0, %v4381
      %v4383 = vpop.f32.mrb[0].mxu0
      %4384 = vmatprep.mubr.bf16.mxu0 0
      %4385 = vmatmul.mubr.bf16.gmra.mrb[0].mxu0 %v2689
      %v4386 = vpop.f32.mrb[0].mxu0
      %v4387 = vadd.f32 0.0, %v4386
      %v4388 = vpop.f32.mrb[0].mxu0
      %v4389 = vpop.f32.mrb[0].mxu0
      %v4390 = vadd.f32 0.0, %v4389
      %v4391 = vpop.f32.mrb[0].mxu0
      %4392 = vmatprep.mubr.bf16.mxu0 0
      %4393 = vmatmul.mubr.bf16.gmra.mrb[0].mxu0 %v2692
      %v4394 = vpop.f32.mrb[0].mxu0
      %v4395 = vadd.f32 0.0, %v4394
      %v4396 = vpop.f32.mrb[0].mxu0
      %v4397 = vpop.f32.mrb[0].mxu0
      %v4398 = vadd.f32 0.0, %v4397
      %v4399 = vpop.f32.mrb[0].mxu0
      %4400 = vmatprep.mubr.bf16.mxu0 0
      %4401 = vmatmul.mubr.bf16.gmra.mrb[0].mxu0 %v2695
      %v4402 = vpop.f32.mrb[0].mxu0
      %v4403 = vadd.f32 0.0, %v4402
      %v4404 = vpop.f32.mrb[0].mxu0
      %v4405 = vpop.f32.mrb[0].mxu0
      %v4406 = vadd.f32 0.0, %v4405
      %v4407 = vpop.f32.mrb[0].mxu0
      %4408 = vmatprep.mubr.bf16.mxu0 0
      %4409 = vmatmul.mubr.bf16.gmra.mrb[0].mxu0 %v2698
      %v4410 = vpop.f32.mrb[0].mxu0
      %v4411 = vadd.f32 0.0, %v4410
      %v4412 = vpop.f32.mrb[0].mxu0
      %v4413 = vpop.f32.mrb[0].mxu0
      %v4414 = vadd.f32 0.0, %v4413
      %v4415 = vpop.f32.mrb[0].mxu0
      %4416 = vmatprep.mubr.bf16.mxu0 0
      %4417 = vmatmul.mubr.bf16.gmra.mrb[0].mxu0 %v2701
      %v4418 = vpop.f32.mrb[0].mxu0
      %v4419 = vadd.f32 0.0, %v4418
      %v4420 = vpop.f32.mrb[0].mxu0
      %v4421 = vpop.f32.mrb[0].mxu0
      %v4422 = vadd.f32 0.0, %v4421
      %v4423 = vpop.f32.mrb[0].mxu0
      %4424 = vmatprep.mubr.bf16.mxu0 0
      %4425 = vmatmul.mubr.bf16.gmra.mrb[0].mxu0 %v2704
      %v4426 = vpop.f32.mrb[0].mxu0
      %v4427 = vadd.f32 0.0, %v4426
      %v4428 = vpop.f32.mrb[0].mxu0
      %v4429 = vpop.f32.mrb[0].mxu0
      %v4430 = vadd.f32 0.0, %v4429
      %v4431 = vpop.f32.mrb[0].mxu0
      %4432 = vmatprep.mubr.bf16.mxu0 0
      %4433 = vmatmul.mubr.bf16.gmra.mrb[0].mxu0 %v2707
      %v4434 = vpop.f32.mrb[0].mxu0
      %v4435 = vadd.f32 0.0, %v4434
      %v4436 = vpop.f32.mrb[0].mxu0
      %v4437 = vpop.f32.mrb[0].mxu0
      %v4438 = vadd.f32 0.0, %v4437
      %v4439 = vpop.f32.mrb[0].mxu0
      %4440 = vmatprep.mubr.bf16.mxu0 0
      %4441 = vmatmul.mubr.bf16.gmra.mrb[0].mxu0 %v2710
      %v4442 = vpop.f32.mrb[0].mxu0
      %v4443 = vadd.f32 0.0, %v4442
      %v4444 = vpop.f32.mrb[0].mxu0
      %v4445 = vpop.f32.mrb[0].mxu0
      %v4446 = vadd.f32 0.0, %v4445
      %v4447 = vpop.f32.mrb[0].mxu0
      %4448 = vmatprep.mubr.bf16.mxu0 0
      %4449 = vmatmul.mubr.bf16.gmra.mrb[0].mxu0 %v2713
      %v4450 = vpop.f32.mrb[0].mxu0
      %v4451 = vadd.f32 0.0, %v4450
      %v4452 = vpop.f32.mrb[0].mxu0
      %v4453 = vpop.f32.mrb[0].mxu0
      %v4454 = vadd.f32 0.0, %v4453
      %v4455 = vpop.f32.mrb[0].mxu0
      %4456 = vmatprep.mubr.bf16.mxu0 0
      %4457 = vmatmul.mubr.bf16.gmra.mrb[0].mxu0 %v2716
      %v4458 = vpop.f32.mrb[0].mxu0
      %v4459 = vadd.f32 0.0, %v4458
      %v4460 = vpop.f32.mrb[0].mxu0
      %v4461 = vpop.f32.mrb[0].mxu0
      %v4462 = vadd.f32 0.0, %v4461
      %v4463 = vpop.f32.mrb[0].mxu0
      %4464 = vmatprep.mubr.bf16.mxu0 0
      %4465 = vmatmul.mubr.bf16.gmra.mrb[0].mxu0 %v2719
      %v4466 = vpop.f32.mrb[0].mxu0
      %v4467 = vadd.f32 0.0, %v4466
      %v4468 = vpop.f32.mrb[0].mxu0
      %v4469 = vpop.f32.mrb[0].mxu0
      %v4470 = vadd.f32 0.0, %v4469
      %v4471 = vpop.f32.mrb[0].mxu0
      %4472 = vmatprep.mubr.bf16.mxu0 0
      %4473 = vmatmul.mubr.bf16.gmra.mrb[0].mxu0 %v2722
      %v4474 = vpop.f32.mrb[0].mxu0
      %v4475 = vadd.f32 0.0, %v4474
      %v4476 = vpop.f32.mrb[0].mxu0
      %v4477 = vpop.f32.mrb[0].mxu0
      %v4478 = vadd.f32 0.0, %v4477
      %v4479 = vpop.f32.mrb[0].mxu0
      %4480 = vmatprep.mubr.bf16.mxu0 0
      %4481 = vmatmul.mubr.bf16.gmra.mrb[0].mxu0 %v2725
      %v4482 = vpop.f32.mrb[0].mxu0
      %v4483 = vadd.f32 0.0, %v4482
      %v4484 = vpop.f32.mrb[0].mxu0
      %v4485 = vpop.f32.mrb[0].mxu0
      %v4486 = vadd.f32 0.0, %v4485
      %v4487 = vpop.f32.mrb[0].mxu0
      %4488 = vmatprep.mubr.bf16.mxu0 0
      %4489 = vmatmul.mubr.bf16.gmra.mrb[0].mxu0 %v2728
      %v4490 = vpop.f32.mrb[0].mxu0
      %v4491 = vadd.f32 0.0, %v4490
      %v4492 = vpop.f32.mrb[0].mxu0
      %v4493 = vpop.f32.mrb[0].mxu0
      %v4494 = vadd.f32 0.0, %v4493
      %v4495 = vpop.f32.mrb[0].mxu0
      %4496 = vmatprep.mubr.bf16.mxu0 0
      %4497 = vmatmul.mubr.bf16.gmra.mrb[0].mxu0 %v2731
      %v4498 = vpop.f32.mrb[0].mxu0
      %v4499 = vadd.f32 0.0, %v4498
      %v4500 = vpop.f32.mrb[0].mxu0
      %v4501 = vpop.f32.mrb[0].mxu0
      %v4502 = vadd.f32 0.0, %v4501
      %v4503 = vpop.f32.mrb[0].mxu0
      %4504 = vmatprep.mubr.bf16.mxu0 0
      %4505 = vmatmul.mubr.bf16.gmra.mrb[0].mxu0 %v2734
      %v4506 = vpop.f32.mrb[0].mxu0
      %v4507 = vadd.f32 0.0, %v4506
      %v4508 = vpop.f32.mrb[0].mxu0
      %v4509 = vpop.f32.mrb[0].mxu0
      %v4510 = vadd.f32 0.0, %v4509
      %v4511 = vpop.f32.mrb[0].mxu0
      %4512 = vmatprep.mubr.bf16.mxu0 0
      %4513 = vmatmul.mubr.bf16.gmra.mrb[0].mxu0 %v2737
      %v4514 = vpop.f32.mrb[0].mxu0
      %v4515 = vadd.f32 0.0, %v4514
      %v4516 = vpop.f32.mrb[0].mxu0
      %v4517 = vpop.f32.mrb[0].mxu0
      %v4518 = vadd.f32 0.0, %v4517
      %v4519 = vpop.f32.mrb[0].mxu0
      %4520 = vmatprep.mubr.bf16.mxu0 0
      %4521 = vmatmul.mubr.bf16.gmra.mrb[0].mxu0 %v2740
      %v4522 = vpop.f32.mrb[0].mxu0
      %v4523 = vadd.f32 0.0, %v4522
      %v4524 = vpop.f32.mrb[0].mxu0
      %v4525 = vpop.f32.mrb[0].mxu0
      %v4526 = vadd.f32 0.0, %v4525
      %v4527 = vpop.f32.mrb[0].mxu0
      %4528 = vmatprep.mubr.bf16.mxu0 0
      %4529 = vmatmul.mubr.bf16.gmra.mrb[0].mxu0 %v2743
      %v4530 = vpop.f32.mrb[0].mxu0
      %v4531 = vadd.f32 0.0, %v4530
      %v4532 = vpop.f32.mrb[0].mxu0
      %v4533 = vpop.f32.mrb[0].mxu0
      %v4534 = vadd.f32 0.0, %v4533
      %v4535 = vpop.f32.mrb[0].mxu0
      %4536 = vmatprep.mubr.bf16.mxu0 0
      %4537 = vmatmul.mubr.bf16.gmra.mrb[0].mxu0 %v2746
      %v4538 = vpop.f32.mrb[0].mxu0
      %v4539 = vadd.f32 0.0, %v4538
      %v4540 = vpop.f32.mrb[0].mxu0
      %v4541 = vpop.f32.mrb[0].mxu0
      %v4542 = vadd.f32 0.0, %v4541
      %v4543 = vpop.f32.mrb[0].mxu0
      %4544 = vmatprep.mubr.bf16.mxu0 0
      %4545 = vmatmul.mubr.bf16.gmra.mrb[0].mxu0 %v2749
      %v4546 = vpop.f32.mrb[0].mxu0
      %v4547 = vadd.f32 0.0, %v4546
      %v4548 = vpop.f32.mrb[0].mxu0
      %v4549 = vpop.f32.mrb[0].mxu0
      %v4550 = vadd.f32 0.0, %v4549
      %v4551 = vpop.f32.mrb[0].mxu0
      %4552 = vmatprep.mubr.bf16.mxu0 0
      %4553 = vmatmul.mubr.bf16.gmra.mrb[0].mxu0 %v2752
      %v4554 = vpop.f32.mrb[0].mxu0
      %v4555 = vadd.f32 0.0, %v4554
      %v4556 = vpop.f32.mrb[0].mxu0
      %v4557 = vpop.f32.mrb[0].mxu0
      %v4558 = vadd.f32 0.0, %v4557
      %v4559 = vpop.f32.mrb[0].mxu0
      %4560 = vmatprep.mubr.bf16.mxu0 0
      %4561 = vmatmul.mubr.bf16.gmra.mrb[0].mxu0 %v2755
      %v4562 = vpop.f32.mrb[0].mxu0
      %v4563 = vadd.f32 0.0, %v4562
      %v4564 = vpop.f32.mrb[0].mxu0
      %v4565 = vpop.f32.mrb[0].mxu0
      %v4566 = vadd.f32 0.0, %v4565
      %v4567 = vpop.f32.mrb[0].mxu0
      %4568 = vmatprep.mubr.bf16.mxu0 0
      %4569 = vmatmul.mubr.bf16.gmra.mrb[0].mxu0 %v2758
      %v4570 = vpop.f32.mrb[0].mxu0
      %v4571 = vadd.f32 0.0, %v4570
      %v4572 = vpop.f32.mrb[0].mxu0
      %v4573 = vpop.f32.mrb[0].mxu0
      %v4574 = vadd.f32 0.0, %v4573
      %v4575 = vpop.f32.mrb[0].mxu0
      %4576 = vmatprep.mubr.bf16.mxu0 0
      %4577 = vmatmul.mubr.bf16.gmra.mrb[0].mxu0 %v2761
      %v4578 = vpop.f32.mrb[0].mxu0
      %v4579 = vadd.f32 0.0, %v4578
      %v4580 = vpop.f32.mrb[0].mxu0
      %v4581 = vpop.f32.mrb[0].mxu0
      %v4582 = vadd.f32 0.0, %v4581
      %v4583 = vpop.f32.mrb[0].mxu0
      %4584 = vmatprep.mubr.bf16.mxu0 0
      %4585 = vmatmul.mubr.bf16.gmra.mrb[0].mxu0 %v2764
      %v4586 = vpop.f32.mrb[0].mxu0
      %v4587 = vadd.f32 0.0, %v4586
      %v4588 = vpop.f32.mrb[0].mxu0
      %v4589 = vpop.f32.mrb[0].mxu0
      %v4590 = vadd.f32 0.0, %v4589
      %v4591 = vpop.f32.mrb[0].mxu0
      %4592 = vmatprep.mubr.bf16.mxu0 0
      %4593 = vmatmul.mubr.bf16.gmra.mrb[0].mxu0 %v2767
      %v4594 = vpop.f32.mrb[0].mxu0
      %v4595 = vadd.f32 0.0, %v4594
      %v4596 = vpop.f32.mrb[0].mxu0
      %v4597 = vpop.f32.mrb[0].mxu0
      %v4598 = vadd.f32 0.0, %v4597
      %v4599 = vpop.f32.mrb[0].mxu0
      %4600 = vmatprep.mubr.bf16.mxu0 0
      %4601 = vmatmul.mubr.bf16.gmra.mrb[0].mxu0 %v2770
      %v4602 = vpop.f32.mrb[0].mxu0
      %v4603 = vadd.f32 0.0, %v4602
      %v4604 = vpop.f32.mrb[0].mxu0
      %v4605 = vpop.f32.mrb[0].mxu0
      %v4606 = vadd.f32 0.0, %v4605
      %v4607 = vpop.f32.mrb[0].mxu0
      %4608 = vmatprep.mubr.bf16.mxu0 0
      %4609 = vmatmul.mubr.bf16.gmra.mrb[0].mxu0 %v2773
      %v4610 = vpop.f32.mrb[0].mxu0
      %v4611 = vadd.f32 0.0, %v4610
      %v4612 = vpop.f32.mrb[0].mxu0
      %v4613 = vpop.f32.mrb[0].mxu0
      %v4614 = vadd.f32 0.0, %v4613
      %v4615 = vpop.f32.mrb[0].mxu0
      %4616 = vmatprep.mubr.bf16.mxu0 0
      %4617 = vmatmul.mubr.bf16.gmra.mrb[0].mxu0 %v2776
      %v4618 = vpop.f32.mrb[0].mxu0
      %v4619 = vadd.f32 0.0, %v4618
      %v4620 = vpop.f32.mrb[0].mxu0
      %v4621 = vpop.f32.mrb[0].mxu0
      %v4622 = vadd.f32 0.0, %v4621
      %v4623 = vpop.f32.mrb[0].mxu0
      %4624 = vmatprep.mubr.bf16.mxu0 0
      %4625 = vmatmul.mubr.bf16.gmra.mrb[0].mxu0 %v2779
      %v4626 = vpop.f32.mrb[0].mxu0
      %v4627 = vadd.f32 0.0, %v4626
      %v4628 = vpop.f32.mrb[0].mxu0
      %v4629 = vpop.f32.mrb[0].mxu0
      %v4630 = vadd.f32 0.0, %v4629
      %v4631 = vpop.f32.mrb[0].mxu0
      %4632 = vmatprep.mubr.bf16.mxu0 0
      %4633 = vmatmul.mubr.bf16.gmra.mrb[0].mxu0 %v2782
      %v4634 = vpop.f32.mrb[0].mxu0
      %v4635 = vadd.f32 0.0, %v4634
      %v4636 = vpop.f32.mrb[0].mxu0
      %v4637 = vpop.f32.mrb[0].mxu0
      %v4638 = vadd.f32 0.0, %v4637
      %v4639 = vpop.f32.mrb[0].mxu0
      %4640 = vmatprep.mubr.bf16.mxu0 0
      %4641 = vmatmul.mubr.bf16.gmra.mrb[0].mxu0 %v2785
      %v4642 = vpop.f32.mrb[0].mxu0
      %v4643 = vadd.f32 0.0, %v4642
      %v4644 = vpop.f32.mrb[0].mxu0
      %v4645 = vpop.f32.mrb[0].mxu0
      %v4646 = vadd.f32 0.0, %v4645
      %v4647 = vpop.f32.mrb[0].mxu0
      %4648 = vmatprep.mubr.bf16.mxu0 0
      %4649 = vmatmul.mubr.bf16.gmra.mrb[0].mxu0 %v2788
      %v4650 = vpop.f32.mrb[0].mxu0
      %v4651 = vadd.f32 0.0, %v4650
      %v4652 = vpop.f32.mrb[0].mxu0
      %v4653 = vpop.f32.mrb[0].mxu0
      %v4654 = vadd.f32 0.0, %v4653
      %v4655 = vpop.f32.mrb[0].mxu0
      %4656 = vmatprep.mubr.bf16.mxu0 0
      %4657 = vmatmul.mubr.bf16.gmra.mrb[0].mxu0 %v2791
      %v4658 = vpop.f32.mrb[0].mxu0
      %v4659 = vadd.f32 0.0, %v4658
      %v4660 = vpop.f32.mrb[0].mxu0
      %v4661 = vpop.f32.mrb[0].mxu0
      %v4662 = vadd.f32 0.0, %v4661
      %v4663 = vpop.f32.mrb[0].mxu0
      %4664 = vmatprep.mubr.bf16.mxu0 0
      %4665 = vmatmul.mubr.bf16.gmra.mrb[0].mxu0 %v2794
      %v4666 = vpop.f32.mrb[0].mxu0
      %v4667 = vadd.f32 0.0, %v4666
      %v4668 = vpop.f32.mrb[0].mxu0
      %v4669 = vpop.f32.mrb[0].mxu0
      %v4670 = vadd.f32 0.0, %v4669
      %v4671 = vpop.f32.mrb[0].mxu0
      %4672 = vmatprep.mubr.bf16.mxu0 0
      %4673 = vmatmul.mubr.bf16.gmra.mrb[0].mxu0 %v2797
      %v4674 = vpop.f32.mrb[0].mxu0
      %v4675 = vadd.f32 0.0, %v4674
      %v4676 = vpop.f32.mrb[0].mxu0
      %v4677 = vpop.f32.mrb[0].mxu0
      %v4678 = vadd.f32 0.0, %v4677
      %v4679 = vpop.f32.mrb[0].mxu0
      %4680 = vmatprep.mubr.bf16.mxu0 0
      %4681 = vmatmul.mubr.bf16.gmra.mrb[0].mxu0 %v2800
      %v4682 = vpop.f32.mrb[0].mxu0
      %v4683 = vadd.f32 0.0, %v4682
      %v4684 = vpop.f32.mrb[0].mxu0
      %v4685 = vpop.f32.mrb[0].mxu0
      %v4686 = vadd.f32 0.0, %v4685
      %v4687 = vpop.f32.mrb[0].mxu0
      %4688 = vmatprep.mubr.bf16.mxu0 0
      %4689 = vmatmul.mubr.bf16.gmra.mrb[0].mxu0 %v2803
      %v4690 = vpop.f32.mrb[0].mxu0
      %v4691 = vadd.f32 0.0, %v4690
      %v4692 = vpop.f32.mrb[0].mxu0
      %v4693 = vpop.f32.mrb[0].mxu0
      %v4694 = vadd.f32 0.0, %v4693
      %v4695 = vpop.f32.mrb[0].mxu0
      %4696 = vmatprep.mubr.bf16.mxu0 0
      %4697 = vmatmul.mubr.bf16.gmra.mrb[0].mxu0 %v2806
      %v4698 = vpop.f32.mrb[0].mxu0
      %v4699 = vadd.f32 0.0, %v4698
      %v4700 = vpop.f32.mrb[0].mxu0
      %v4701 = vpop.f32.mrb[0].mxu0
      %v4702 = vadd.f32 0.0, %v4701
      %v4703 = vpop.f32.mrb[0].mxu0
      %4704 = vmatprep.mubr.bf16.mxu0 0
      %4705 = vmatmul.mubr.bf16.gmra.mrb[0].mxu0 %v2809
      %v4706 = vpop.f32.mrb[0].mxu0
      %v4707 = vadd.f32 0.0, %v4706
      %v4708 = vpop.f32.mrb[0].mxu0
      %v4709 = vpop.f32.mrb[0].mxu0
      %v4710 = vadd.f32 0.0, %v4709
      %v4711 = vpop.f32.mrb[0].mxu0
      %4712 = vmatprep.mubr.bf16.mxu0 0
      %4713 = vmatmul.mubr.bf16.gmra.mrb[0].mxu0 %v2812
      %v4714 = vpop.f32.mrb[0].mxu0
      %v4715 = vadd.f32 0.0, %v4714
      %v4716 = vpop.f32.mrb[0].mxu0
      %v4717 = vpop.f32.mrb[0].mxu0
      %v4718 = vadd.f32 0.0, %v4717
      %v4719 = vpop.f32.mrb[0].mxu0
      %4720 = vmatprep.mubr.bf16.mxu0 0
      %4721 = vmatmul.mubr.bf16.gmra.mrb[0].mxu0 %v2815
      %v4722 = vpop.f32.mrb[0].mxu0
      %v4723 = vadd.f32 0.0, %v4722
      %v4724 = vpop.f32.mrb[0].mxu0
      %v4725 = vpop.f32.mrb[0].mxu0
      %v4726 = vadd.f32 0.0, %v4725
      %v4727 = vpop.f32.mrb[0].mxu0
      %4728 = vmatprep.mubr.bf16.mxu0 0
      %4729 = vmatmul.mubr.bf16.gmra.mrb[0].mxu0 %v2818
      %v4730 = vpop.f32.mrb[0].mxu0
      %v4731 = vadd.f32 0.0, %v4730
      %v4732 = vpop.f32.mrb[0].mxu0
      %v4733 = vpop.f32.mrb[0].mxu0
      %v4734 = vadd.f32 0.0, %v4733
      %v4735 = vpop.f32.mrb[0].mxu0
      %4736 = vmatprep.mubr.bf16.mxu0 0
      %4737 = vmatmul.mubr.bf16.gmra.mrb[0].mxu0 %v2821
      %v4738 = vpop.f32.mrb[0].mxu0
      %v4739 = vadd.f32 0.0, %v4738
      %v4740 = vpop.f32.mrb[0].mxu0
      %v4741 = vpop.f32.mrb[0].mxu0
      %v4742 = vadd.f32 0.0, %v4741
      %v4743 = vpop.f32.mrb[0].mxu0
      %4744 = vmatprep.mubr.bf16.mxu0 0
      %4745 = vmatmul.mubr.bf16.gmra.mrb[0].mxu0 %v2824
      %v4746 = vpop.f32.mrb[0].mxu0
      %v4747 = vadd.f32 0.0, %v4746
      %v4748 = vpop.f32.mrb[0].mxu0
      %v4749 = vpop.f32.mrb[0].mxu0
      %v4750 = vadd.f32 0.0, %v4749
      %v4751 = vpop.f32.mrb[0].mxu0
      %4752 = vmatprep.mubr.bf16.mxu0 0
      %4753 = vmatmul.mubr.bf16.gmra.mrb[0].mxu0 %v2827
      %v4754 = vpop.f32.mrb[0].mxu0
      %v4755 = vadd.f32 0.0, %v4754
      %v4756 = vpop.f32.mrb[0].mxu0
      %v4757 = vpop.f32.mrb[0].mxu0
      %v4758 = vadd.f32 0.0, %v4757
      %v4759 = vpop.f32.mrb[0].mxu0
      %4760 = vmatprep.mubr.bf16.mxu0 0
      %4761 = vmatmul.mubr.bf16.gmra.mrb[0].mxu0 %v2830
      %v4762 = vpop.f32.mrb[0].mxu0
      %v4763 = vadd.f32 0.0, %v4762
      %v4764 = vpop.f32.mrb[0].mxu0
      %v4765 = vpop.f32.mrb[0].mxu0
      %v4766 = vadd.f32 0.0, %v4765
      %v4767 = vpop.f32.mrb[0].mxu0
      %4768 = vmatprep.mubr.bf16.mxu0 0
      %4769 = vmatmul.mubr.bf16.gmra.mrb[0].mxu0 %v2833
      %v4770 = vpop.f32.mrb[0].mxu0
      %v4771 = vadd.f32 0.0, %v4770
      %v4772 = vpop.f32.mrb[0].mxu0
      %v4773 = vpop.f32.mrb[0].mxu0
      %v4774 = vadd.f32 0.0, %v4773
      %v4775 = vpop.f32.mrb[0].mxu0
      %4776 = vmatprep.mubr.bf16.mxu0 0
      %4777 = vmatmul.mubr.bf16.gmra.mrb[0].mxu0 %v2836
      %v4778 = vpop.f32.mrb[0].mxu0
      %v4779 = vadd.f32 0.0, %v4778
      %v4780 = vpop.f32.mrb[0].mxu0
      %v4781 = vpop.f32.mrb[0].mxu0
      %v4782 = vadd.f32 0.0, %v4781
      %v4783 = vpop.f32.mrb[0].mxu0
      %4784 = vmatprep.mubr.bf16.mxu0 0
      %4785 = vmatmul.mubr.bf16.gmra.mrb[0].mxu0 %v2839
      %v4786 = vpop.f32.mrb[0].mxu0
      %v4787 = vadd.f32 0.0, %v4786
      %v4788 = vpop.f32.mrb[0].mxu0
      %v4789 = vpop.f32.mrb[0].mxu0
      %v4790 = vadd.f32 0.0, %v4789
      %v4791 = vpop.f32.mrb[0].mxu0
      %4792 = vmatprep.mubr.bf16.mxu0 0
      %4793 = vmatmul.mubr.bf16.gmra.mrb[0].mxu0 %v2842
      %v4794 = vpop.f32.mrb[0].mxu0
      %v4795 = vadd.f32 0.0, %v4794
      %v4796 = vpop.f32.mrb[0].mxu0
      %v4797 = vpop.f32.mrb[0].mxu0
      %v4798 = vadd.f32 0.0, %v4797
      %v4799 = vpop.f32.mrb[0].mxu0
      %4800 = vmatprep.mubr.bf16.mxu0 0
      %4801 = vmatmul.mubr.bf16.gmra.mrb[0].mxu0 %v2845
      %v4802 = vpop.f32.mrb[0].mxu0
      %v4803 = vadd.f32 0.0, %v4802
      %v4804 = vpop.f32.mrb[0].mxu0
      %v4805 = vpop.f32.mrb[0].mxu0
      %v4806 = vadd.f32 0.0, %v4805
      %v4807 = vpop.f32.mrb[0].mxu0
      %4808 = vmatprep.mubr.bf16.mxu0 0
      %4809 = vmatmul.mubr.bf16.gmra.mrb[0].mxu0 %v2848
      %v4810 = vpop.f32.mrb[0].mxu0
      %v4811 = vadd.f32 0.0, %v4810
      %v4812 = vpop.f32.mrb[0].mxu0
      %v4813 = vpop.f32.mrb[0].mxu0
      %v4814 = vadd.f32 0.0, %v4813
      %v4815 = vpop.f32.mrb[0].mxu0
      %4816 = vmatprep.mubr.bf16.mxu0 0
      %4817 = vmatmul.mubr.bf16.gmra.mrb[0].mxu0 %v2851
      %v4818 = vpop.f32.mrb[0].mxu0
      %v4819 = vadd.f32 0.0, %v4818
      %v4820 = vpop.f32.mrb[0].mxu0
      %v4821 = vpop.f32.mrb[0].mxu0
      %v4822 = vadd.f32 0.0, %v4821
      %v4823 = vpop.f32.mrb[0].mxu0
      %4824 = vmatprep.mubr.bf16.mxu0 0
      %4825 = vmatmul.mubr.bf16.gmra.mrb[0].mxu0 %v2854
      %v4826 = vpop.f32.mrb[0].mxu0
      %v4827 = vadd.f32 0.0, %v4826
      %v4828 = vpop.f32.mrb[0].mxu0
      %v4829 = vpop.f32.mrb[0].mxu0
      %v4830 = vadd.f32 0.0, %v4829
      %v4831 = vpop.f32.mrb[0].mxu0
      %4832 = vmatprep.mubr.bf16.mxu0 0
      %4833 = vmatmul.mubr.bf16.gmra.mrb[0].mxu0 %v2857
      %v4834 = vpop.f32.mrb[0].mxu0
      %v4835 = vadd.f32 0.0, %v4834
      %v4836 = vpop.f32.mrb[0].mxu0
      %v4837 = vpop.f32.mrb[0].mxu0
      %v4838 = vadd.f32 0.0, %v4837
      %v4839 = vpop.f32.mrb[0].mxu0
      %4840 = vmatprep.mubr.bf16.mxu0 0
      %4841 = vmatmul.mubr.bf16.gmra.mrb[0].mxu0 %v2860
      %v4842 = vpop.f32.mrb[0].mxu0
      %v4843 = vadd.f32 0.0, %v4842
      %v4844 = vpop.f32.mrb[0].mxu0
      %v4845 = vpop.f32.mrb[0].mxu0
      %v4846 = vadd.f32 0.0, %v4845
      %v4847 = vpop.f32.mrb[0].mxu0
      %4848 = vmatprep.mubr.bf16.mxu0 0
      %4849 = vmatmul.mubr.bf16.gmra.mrb[0].mxu0 %v2863
      %v4850 = vpop.f32.mrb[0].mxu0
      %v4851 = vadd.f32 0.0, %v4850
      %v4852 = vpop.f32.mrb[0].mxu0
      %v4853 = vpop.f32.mrb[0].mxu0
      %v4854 = vadd.f32 0.0, %v4853
      %v4855 = vpop.f32.mrb[0].mxu0
      %4856 = vmatprep.mubr.bf16.mxu0 0
      %4857 = vmatmul.mubr.bf16.gmra.mrb[0].mxu0 %v2866
      %v4858 = vpop.f32.mrb[0].mxu0
      %v4859 = vadd.f32 0.0, %v4858
      %v4860 = vpop.f32.mrb[0].mxu0
      %v4861 = vpop.f32.mrb[0].mxu0
      %v4862 = vadd.f32 0.0, %v4861
      %v4863 = vpop.f32.mrb[0].mxu0
      %4864 = vmatprep.mubr.bf16.mxu0 0
      %4865 = vmatmul.mubr.bf16.gmra.mrb[0].mxu0 %v2869
      %v4866 = vpop.f32.mrb[0].mxu0
      %v4867 = vadd.f32 0.0, %v4866
      %v4868 = vpop.f32.mrb[0].mxu0
      %v4869 = vpop.f32.mrb[0].mxu0
      %v4870 = vadd.f32 0.0, %v4869
      %v4871 = vpop.f32.mrb[0].mxu0
      %4872 = vmatprep.mubr.bf16.mxu0 0
      %4873 = vmatmul.mubr.bf16.gmra.mrb[0].mxu0 %v2872
      %v4874 = vpop.f32.mrb[0].mxu0
      %v4875 = vadd.f32 0.0, %v4874
      %v4876 = vpop.f32.mrb[0].mxu0
      %v4877 = vpop.f32.mrb[0].mxu0
      %v4878 = vadd.f32 0.0, %v4877
      %v4879 = vpop.f32.mrb[0].mxu0
      %4880 = vmatprep.mubr.bf16.mxu0 0
      %4881 = vmatmul.mubr.bf16.gmra.mrb[0].mxu0 %v2875
      %v4882 = vpop.f32.mrb[0].mxu0
      %v4883 = vadd.f32 0.0, %v4882
      %v4884 = vpop.f32.mrb[0].mxu0
      %v4885 = vpop.f32.mrb[0].mxu0
      %v4886 = vadd.f32 0.0, %v4885
      %v4887 = vpop.f32.mrb[0].mxu0
      %4888 = vmatprep.mubr.bf16.mxu0 0
      %4889 = vmatmul.mubr.bf16.gmra.mrb[0].mxu0 %v2878
      %v4890 = vpop.f32.mrb[0].mxu0
      %v4891 = vadd.f32 0.0, %v4890
      %v4892 = vpop.f32.mrb[0].mxu0
      %v4893 = vpop.f32.mrb[0].mxu0
      %v4894 = vadd.f32 0.0, %v4893
      %v4895 = vpop.f32.mrb[0].mxu0
      %4896 = vmatprep.mubr.bf16.mxu0 0
      %4897 = vmatmul.mubr.bf16.gmra.mrb[0].mxu0 %v2881
      %v4898 = vpop.f32.mrb[0].mxu0
      %v4899 = vadd.f32 0.0, %v4898
      %v4900 = vpop.f32.mrb[0].mxu0
      %v4901 = vpop.f32.mrb[0].mxu0
      %v4902 = vadd.f32 0.0, %v4901
      %v4903 = vpop.f32.mrb[0].mxu0
      %4904 = vmatprep.mubr.bf16.mxu0 0
      %4905 = vmatmul.mubr.bf16.gmra.mrb[0].mxu0 %v2884
      %v4906 = vpop.f32.mrb[0].mxu0
      %v4907 = vadd.f32 0.0, %v4906
      %v4908 = vpop.f32.mrb[0].mxu0
      %v4909 = vpop.f32.mrb[0].mxu0
      %v4910 = vadd.f32 0.0, %v4909
      %v4911 = vpop.f32.mrb[0].mxu0
      %4912 = vmatprep.mubr.bf16.mxu0 0
      %4913 = vmatmul.mubr.bf16.gmra.mrb[0].mxu0 %v2887
      %v4914 = vpop.f32.mrb[0].mxu0
      %v4915 = vadd.f32 0.0, %v4914
      %v4916 = vpop.f32.mrb[0].mxu0
      %v4917 = vpop.f32.mrb[0].mxu0
      %v4918 = vadd.f32 0.0, %v4917
      %v4919 = vpop.f32.mrb[0].mxu0
      %4920 = vmatprep.mubr.bf16.mxu0 0
      %4921 = vmatmul.mubr.bf16.gmra.mrb[0].mxu0 %v2890
      %v4922 = vpop.f32.mrb[0].mxu0
      %v4923 = vadd.f32 0.0, %v4922
      %v4924 = vpop.f32.mrb[0].mxu0
      %v4925 = vpop.f32.mrb[0].mxu0
      %v4926 = vadd.f32 0.0, %v4925
      %v4927 = vpop.f32.mrb[0].mxu0
      %4928 = vmatprep.mubr.bf16.mxu0 0
      %4929 = vmatmul.mubr.bf16.gmra.mrb[0].mxu0 %v2893
      %v4930 = vpop.f32.mrb[0].mxu0
      %v4931 = vadd.f32 0.0, %v4930
      %v4932 = vpop.f32.mrb[0].mxu0
      %v4933 = vpop.f32.mrb[0].mxu0
      %v4934 = vadd.f32 0.0, %v4933
      %v4935 = vpop.f32.mrb[0].mxu0
      %4936 = vmatprep.mubr.bf16.mxu0 0
      %4937 = vmatmul.mubr.bf16.gmra.mrb[0].mxu0 %v2896
      %v4938 = vpop.f32.mrb[0].mxu0
      %v4939 = vadd.f32 0.0, %v4938
      %v4940 = vpop.f32.mrb[0].mxu0
      %v4941 = vpop.f32.mrb[0].mxu0
      %v4942 = vadd.f32 0.0, %v4941
      %v4943 = vpop.f32.mrb[0].mxu0
      %4944 = vmatprep.mubr.bf16.mxu0 0
      %4945 = vmatmul.mubr.bf16.gmra.mrb[0].mxu0 %v2899
      %v4946 = vpop.f32.mrb[0].mxu0
      %v4947 = vadd.f32 0.0, %v4946
      %v4948 = vpop.f32.mrb[0].mxu0
      %v4949 = vpop.f32.mrb[0].mxu0
      %v4950 = vadd.f32 0.0, %v4949
      %v4951 = vpop.f32.mrb[0].mxu0
      %4952 = vmatprep.mubr.bf16.mxu0 0
      %4953 = vmatmul.mubr.bf16.gmra.mrb[0].mxu0 %v2902
      %v4954 = vpop.f32.mrb[0].mxu0
      %v4955 = vadd.f32 0.0, %v4954
      %v4956 = vpop.f32.mrb[0].mxu0
      %v4957 = vpop.f32.mrb[0].mxu0
      %v4958 = vadd.f32 0.0, %v4957
      %v4959 = vpop.f32.mrb[0].mxu0
      %4960 = vmatprep.mubr.bf16.mxu0 0
      %4961 = vmatmul.mubr.bf16.gmra.mrb[0].mxu0 %v2905
      %v4962 = vpop.f32.mrb[0].mxu0
      %v4963 = vadd.f32 0.0, %v4962
      %v4964 = vpop.f32.mrb[0].mxu0
      %v4965 = vpop.f32.mrb[0].mxu0
      %v4966 = vadd.f32 0.0, %v4965
      %v4967 = vpop.f32.mrb[0].mxu0
      %4968 = vmatprep.mubr.bf16.mxu0 0
      %4969 = vmatmul.mubr.bf16.gmra.mrb[0].mxu0 %v2908
      %v4970 = vpop.f32.mrb[0].mxu0
      %v4971 = vadd.f32 0.0, %v4970
      %v4972 = vpop.f32.mrb[0].mxu0
      %v4973 = vpop.f32.mrb[0].mxu0
      %v4974 = vadd.f32 0.0, %v4973
      %v4975 = vpop.f32.mrb[0].mxu0
      %4976 = vmatprep.mubr.bf16.mxu0 0
      %4977 = vmatmul.mubr.bf16.gmra.mrb[0].mxu0 %v2911
      %v4978 = vpop.f32.mrb[0].mxu0
      %v4979 = vadd.f32 0.0, %v4978
      %v4980 = vpop.f32.mrb[0].mxu0
      %v4981 = vpop.f32.mrb[0].mxu0
      %v4982 = vadd.f32 0.0, %v4981
      %v4983 = vpop.f32.mrb[0].mxu0
      %4984 = vmatprep.mubr.bf16.mxu0 0
      %4985 = vmatmul.mubr.bf16.gmra.mrb[0].mxu0 %v2914
      %v4986 = vpop.f32.mrb[0].mxu0
      %v4987 = vadd.f32 0.0, %v4986
      %v4988 = vpop.f32.mrb[0].mxu0
      %v4989 = vpop.f32.mrb[0].mxu0
      %v4990 = vadd.f32 0.0, %v4989
      %v4991 = vpop.f32.mrb[0].mxu0
      %4992 = vmatprep.mubr.bf16.mxu0 0
      %4993 = vmatmul.mubr.bf16.gmra.mrb[0].mxu0 %v2917
      %v4994 = vpop.f32.mrb[0].mxu0
      %v4995 = vadd.f32 0.0, %v4994
      %v4996 = vpop.f32.mrb[0].mxu0
      %v4997 = vpop.f32.mrb[0].mxu0
      %v4998 = vadd.f32 0.0, %v4997
      %v4999 = vpop.f32.mrb[0].mxu0
      %5000 = vmatprep.mubr.bf16.mxu0 0
      %5001 = vmatmul.mubr.bf16.gmra.mrb[0].mxu0 %v2920
      %v5002 = vpop.f32.mrb[0].mxu0
      %v5003 = vadd.f32 0.0, %v5002
      %v5004 = vpop.f32.mrb[0].mxu0
      %v5005 = vpop.f32.mrb[0].mxu0
      %v5006 = vadd.f32 0.0, %v5005
      %v5007 = vpop.f32.mrb[0].mxu0
      %5008 = vmatprep.mubr.bf16.mxu0 0
      %5009 = vmatmul.mubr.bf16.gmra.mrb[0].mxu0 %v2923
      %v5010 = vpop.f32.mrb[0].mxu0
      %v5011 = vadd.f32 0.0, %v5010
      %v5012 = vpop.f32.mrb[0].mxu0
      %v5013 = vpop.f32.mrb[0].mxu0
      %v5014 = vadd.f32 0.0, %v5013
      %v5015 = vpop.f32.mrb[0].mxu0
      %5016 = vmatprep.mubr.bf16.mxu0 0
      %5017 = vmatmul.mubr.bf16.gmra.mrb[0].mxu0 %v2926
      %v5018 = vpop.f32.mrb[0].mxu0
      %v5019 = vadd.f32 0.0, %v5018
      %v5020 = vpop.f32.mrb[0].mxu0
      %v5021 = vpop.f32.mrb[0].mxu0
      %v5022 = vadd.f32 0.0, %v5021
      %v5023 = vpop.f32.mrb[0].mxu0
      %5024 = vmatprep.mubr.bf16.mxu0 0
      %5025 = vmatmul.mubr.bf16.gmra.mrb[0].mxu0 %v2929
      %v5026 = vpop.f32.mrb[0].mxu0
      %v5027 = vadd.f32 0.0, %v5026
      %v5028 = vpop.f32.mrb[0].mxu0
      %v5029 = vpop.f32.mrb[0].mxu0
      %v5030 = vadd.f32 0.0, %v5029
      %v5031 = vpop.f32.mrb[0].mxu0
      %5032 = vmatprep.mubr.bf16.mxu0 0
      %5033 = vmatmul.mubr.bf16.gmra.mrb[0].mxu0 %v2932
      %v5034 = vpop.f32.mrb[0].mxu0
      %v5035 = vadd.f32 0.0, %v5034
      %v5036 = vpop.f32.mrb[0].mxu0
      %v5037 = vpop.f32.mrb[0].mxu0
      %v5038 = vadd.f32 0.0, %v5037
      %v5039 = vpop.f32.mrb[0].mxu0
      %5040 = vmatprep.mubr.bf16.mxu0 0
      %5041 = vmatmul.mubr.bf16.gmra.mrb[0].mxu0 %v2935
      %v5042 = vpop.f32.mrb[0].mxu0
      %v5043 = vadd.f32 0.0, %v5042
      %v5044 = vpop.f32.mrb[0].mxu0
      %v5045 = vpop.f32.mrb[0].mxu0
      %v5046 = vadd.f32 0.0, %v5045
      %v5047 = vpop.f32.mrb[0].mxu0
      %5048 = vmatprep.mubr.bf16.mxu0 0
      %5049 = vmatmul.mubr.bf16.gmra.mrb[0].mxu0 %v2938
      %v5050 = vpop.f32.mrb[0].mxu0
      %v5051 = vadd.f32 0.0, %v5050
      %v5052 = vpop.f32.mrb[0].mxu0
      %v5053 = vpop.f32.mrb[0].mxu0
      %v5054 = vadd.f32 0.0, %v5053
      %v5055 = vpop.f32.mrb[0].mxu0
      %5056 = vmatprep.mubr.bf16.mxu0 0
      %5057 = vmatmul.mubr.bf16.gmra.mrb[0].mxu0 %v2941
      %v5058 = vpop.f32.mrb[0].mxu0
      %v5059 = vadd.f32 0.0, %v5058
      %v5060 = vpop.f32.mrb[0].mxu0
      %v5061 = vpop.f32.mrb[0].mxu0
      %v5062 = vadd.f32 0.0, %v5061
      %v5063 = vpop.f32.mrb[0].mxu0
      %5064 = vmatprep.mubr.bf16.mxu0 0
      %5065 = vmatmul.mubr.bf16.gmra.mrb[0].mxu0 %v2944
      %v5066 = vpop.f32.mrb[0].mxu0
      %v5067 = vadd.f32 0.0, %v5066
      %v5068 = vpop.f32.mrb[0].mxu0
      %v5069 = vpop.f32.mrb[0].mxu0
      %v5070 = vadd.f32 0.0, %v5069
      %v5071 = vpop.f32.mrb[0].mxu0
      %5072 = vmatprep.mubr.bf16.mxu0 0
      %5073 = vmatmul.mubr.bf16.gmra.mrb[0].mxu0 %v2947
      %v5074 = vpop.f32.mrb[0].mxu0
      %v5075 = vadd.f32 0.0, %v5074
      %v5076 = vpop.f32.mrb[0].mxu0
      %v5077 = vpop.f32.mrb[0].mxu0
      %v5078 = vadd.f32 0.0, %v5077
      %v5079 = vpop.f32.mrb[0].mxu0
      %5080 = vmatprep.mubr.bf16.mxu0 0
      %5081 = vmatmul.mubr.bf16.gmra.mrb[0].mxu0 %v2950
      %v5082 = vpop.f32.mrb[0].mxu0
      %v5083 = vadd.f32 0.0, %v5082
      %v5084 = vpop.f32.mrb[0].mxu0
      %v5085 = vpop.f32.mrb[0].mxu0
      %v5086 = vadd.f32 0.0, %v5085
      %v5087 = vpop.f32.mrb[0].mxu0
      %5088 = vmatprep.mubr.bf16.mxu0 0
      %5089 = vmatmul.mubr.bf16.gmra.mrb[0].mxu0 %v2953
      %v5090 = vpop.f32.mrb[0].mxu0
      %v5091 = vadd.f32 0.0, %v5090
      %v5092 = vpop.f32.mrb[0].mxu0
      %v5093 = vpop.f32.mrb[0].mxu0
      %v5094 = vadd.f32 0.0, %v5093
      %v5095 = vpop.f32.mrb[0].mxu0
      %5096 = vmatprep.mubr.bf16.mxu0 0
      %5097 = vmatmul.mubr.bf16.gmra.mrb[0].mxu0 %v2956
      %v5098 = vpop.f32.mrb[0].mxu0
      %v5099 = vadd.f32 0.0, %v5098
      %v5100 = vpop.f32.mrb[0].mxu0
      %v5101 = vpop.f32.mrb[0].mxu0
      %v5102 = vadd.f32 0.0, %v5101
      %v5103 = vpop.f32.mrb[0].mxu0
      %5104 = vmatprep.mubr.bf16.mxu0 0
      %5105 = vmatmul.mubr.bf16.gmra.mrb[0].mxu0 %v2959
      %v5106 = vpop.f32.mrb[0].mxu0
      %v5107 = vadd.f32 0.0, %v5106
      %v5108 = vpop.f32.mrb[0].mxu0
      %v5109 = vpop.f32.mrb[0].mxu0
      %v5110 = vadd.f32 0.0, %v5109
      %v5111 = vpop.f32.mrb[0].mxu0
      %5112 = vmatprep.mubr.bf16.mxu0 0
      %5113 = vmatmul.mubr.bf16.gmra.mrb[0].mxu0 %v2962
      %v5114 = vpop.f32.mrb[0].mxu0
      %v5115 = vadd.f32 0.0, %v5114
      %v5116 = vpop.f32.mrb[0].mxu0
      %v5117 = vpop.f32.mrb[0].mxu0
      %v5118 = vadd.f32 0.0, %v5117
      %v5119 = vpop.f32.mrb[0].mxu0
      %5120 = vmatprep.mubr.bf16.mxu0 0
      %5121 = vmatmul.mubr.bf16.gmra.mrb[0].mxu0 %v2965
      %v5122 = vpop.f32.mrb[0].mxu0
      %v5123 = vadd.f32 0.0, %v5122
      %v5124 = vpop.f32.mrb[0].mxu0
      %v5125 = vpop.f32.mrb[0].mxu0
      %v5126 = vadd.f32 0.0, %v5125
      %v5127 = vpop.f32.mrb[0].mxu0
      %5128 = vmatprep.mubr.bf16.mxu0 0
      %5129 = vmatmul.mubr.bf16.gmra.mrb[0].mxu0 %v2968
      %v5130 = vpop.f32.mrb[0].mxu0
      %v5131 = vadd.f32 0.0, %v5130
      %v5132 = vpop.f32.mrb[0].mxu0
      %v5133 = vpop.f32.mrb[0].mxu0
      %v5134 = vadd.f32 0.0, %v5133
      %v5135 = vpop.f32.mrb[0].mxu0
      %5136 = vmatprep.mubr.bf16.mxu0 0
      %5137 = vmatmul.mubr.bf16.gmra.mrb[0].mxu0 %v2971
      %v5138 = vpop.f32.mrb[0].mxu0
      %v5139 = vadd.f32 0.0, %v5138
      %v5140 = vpop.f32.mrb[0].mxu0
      %v5141 = vpop.f32.mrb[0].mxu0
      %v5142 = vadd.f32 0.0, %v5141
      %v5143 = vpop.f32.mrb[0].mxu0
      %5144 = vmatprep.mubr.bf16.mxu0 0
      %5145 = vmatmul.mubr.bf16.gmra.mrb[0].mxu0 %v2974
      %v5146 = vpop.f32.mrb[0].mxu0
      %v5147 = vadd.f32 0.0, %v5146
      %v5148 = vpop.f32.mrb[0].mxu0
      %v5149 = vpop.f32.mrb[0].mxu0
      %v5150 = vadd.f32 0.0, %v5149
      %v5151 = vpop.f32.mrb[0].mxu0
      %5152 = vmatprep.mubr.bf16.mxu0 0
      %5153 = vmatmul.mubr.bf16.gmra.mrb[0].mxu0 %v2977
      %v5154 = vpop.f32.mrb[0].mxu0
      %v5155 = vadd.f32 0.0, %v5154
      %v5156 = vpop.f32.mrb[0].mxu0
      %v5157 = vpop.f32.mrb[0].mxu0
      %v5158 = vadd.f32 0.0, %v5157
      %v5159 = vpop.f32.mrb[0].mxu0
      %5160 = vmatprep.mubr.bf16.mxu0 0
      %5161 = vmatmul.mubr.bf16.gmra.mrb[0].mxu0 %v2980
      %v5162 = vpop.f32.mrb[0].mxu0
      %v5163 = vadd.f32 0.0, %v5162
      %v5164 = vpop.f32.mrb[0].mxu0
      %v5165 = vpop.f32.mrb[0].mxu0
      %v5166 = vadd.f32 0.0, %v5165
      %v5167 = vpop.f32.mrb[0].mxu0
      %5168 = vmatprep.mubr.bf16.mxu0 0
      %5169 = vmatmul.mubr.bf16.gmra.mrb[0].mxu0 %v2983
      %v5170 = vpop.f32.mrb[0].mxu0
      %v5171 = vadd.f32 0.0, %v5170
      %v5172 = vpop.f32.mrb[0].mxu0
      %v5173 = vpop.f32.mrb[0].mxu0
      %v5174 = vadd.f32 0.0, %v5173
      %v5175 = vpop.f32.mrb[0].mxu0
      %5176 = vmatprep.mubr.bf16.mxu0 0
      %5177 = vmatmul.mubr.bf16.gmra.mrb[0].mxu0 %v2986
      %v5178 = vpop.f32.mrb[0].mxu0
      %v5179 = vadd.f32 0.0, %v5178
      %v5180 = vpop.f32.mrb[0].mxu0
      %v5181 = vpop.f32.mrb[0].mxu0
      %v5182 = vadd.f32 0.0, %v5181
      %v5183 = vpop.f32.mrb[0].mxu0
      %5184 = vmatprep.mubr.bf16.mxu0 0
      %5185 = vmatmul.mubr.bf16.gmra.mrb[0].mxu0 %v2989
      %v5186 = vpop.f32.mrb[0].mxu0
      %v5187 = vadd.f32 0.0, %v5186
      %v5188 = vpop.f32.mrb[0].mxu0
      %v5189 = vpop.f32.mrb[0].mxu0
      %v5190 = vadd.f32 0.0, %v5189
      %v5191 = vpop.f32.mrb[0].mxu0
      %5192 = vmatprep.mubr.bf16.mxu0 0
      %5193 = vmatmul.mubr.bf16.gmra.mrb[0].mxu0 %v2992
      %v5194 = vpop.f32.mrb[0].mxu0
      %v5195 = vadd.f32 0.0, %v5194
      %v5196 = vpop.f32.mrb[0].mxu0
      %v5197 = vpop.f32.mrb[0].mxu0
      %v5198 = vadd.f32 0.0, %v5197
      %v5199 = vpop.f32.mrb[0].mxu0
      %5200 = vmatprep.mubr.bf16.mxu0 0
      %5201 = vmatmul.mubr.bf16.gmra.mrb[0].mxu0 %v2995
      %v5202 = vpop.f32.mrb[0].mxu0
      %v5203 = vadd.f32 0.0, %v5202
      %v5204 = vpop.f32.mrb[0].mxu0
      %v5205 = vpop.f32.mrb[0].mxu0
      %v5206 = vadd.f32 0.0, %v5205
      %v5207 = vpop.f32.mrb[0].mxu0
      %5208 = vmatprep.mubr.bf16.mxu0 0
      %5209 = vmatmul.mubr.bf16.gmra.mrb[0].mxu0 %v2998
      %v5210 = vpop.f32.mrb[0].mxu0
      %v5211 = vadd.f32 0.0, %v5210
      %v5212 = vpop.f32.mrb[0].mxu0
      %v5213 = vpop.f32.mrb[0].mxu0
      %v5214 = vadd.f32 0.0, %v5213
      %v5215 = vpop.f32.mrb[0].mxu0
      %5216 = vmatprep.mubr.bf16.mxu0 0
      %5217 = vmatmul.mubr.bf16.gmra.mrb[0].mxu0 %v3001
      %v5218 = vpop.f32.mrb[0].mxu0
      %v5219 = vadd.f32 0.0, %v5218
      %v5220 = vpop.f32.mrb[0].mxu0
      %v5221 = vpop.f32.mrb[0].mxu0
      %v5222 = vadd.f32 0.0, %v5221
      %v5223 = vpop.f32.mrb[0].mxu0
      %5224 = vmatprep.mubr.bf16.mxu0 0
      %5225 = vmatmul.mubr.bf16.gmra.mrb[0].mxu0 %v3004
      %v5226 = vpop.f32.mrb[0].mxu0
      %v5227 = vadd.f32 0.0, %v5226
      %v5228 = vpop.f32.mrb[0].mxu0
      %v5229 = vpop.f32.mrb[0].mxu0
      %v5230 = vadd.f32 0.0, %v5229
      %v5231 = vpop.f32.mrb[0].mxu0
      %5232 = vmatprep.mubr.bf16.mxu0 0
      %5233 = vmatmul.mubr.bf16.gmra.mrb[0].mxu0 %v3007
      %v5234 = vpop.f32.mrb[0].mxu0
      %v5235 = vadd.f32 0.0, %v5234
      %v5236 = vpop.f32.mrb[0].mxu0
      %v5237 = vpop.f32.mrb[0].mxu0
      %v5238 = vadd.f32 0.0, %v5237
      %v5239 = vpop.f32.mrb[0].mxu0
      %5240 = vmatprep.mubr.bf16.mxu0 0
      %5241 = vmatmul.mubr.bf16.gmra.mrb[0].mxu0 %v3010
      %v5242 = vpop.f32.mrb[0].mxu0
      %v5243 = vadd.f32 0.0, %v5242
      %v5244 = vpop.f32.mrb[0].mxu0
      %v5245 = vpop.f32.mrb[0].mxu0
      %v5246 = vadd.f32 0.0, %v5245
      %v5247 = vpop.f32.mrb[0].mxu0
      %5248 = vmatprep.mubr.bf16.mxu0 0
      %5249 = vmatmul.mubr.bf16.gmra.mrb[0].mxu0 %v3013
      %v5250 = vpop.f32.mrb[0].mxu0
      %v5251 = vadd.f32 0.0, %v5250
      %v5252 = vpop.f32.mrb[0].mxu0
      %v5253 = vpop.f32.mrb[0].mxu0
      %v5254 = vadd.f32 0.0, %v5253
      %v5255 = vpop.f32.mrb[0].mxu0
      %5256 = vmatprep.mubr.bf16.mxu0 0
      %5257 = vmatmul.mubr.bf16.gmra.mrb[0].mxu0 %v3016
      %v5258 = vpop.f32.mrb[0].mxu0
      %v5259 = vadd.f32 0.0, %v5258
      %v5260 = vpop.f32.mrb[0].mxu0
      %v5261 = vpop.f32.mrb[0].mxu0
      %v5262 = vadd.f32 0.0, %v5261
      %v5263 = vpop.f32.mrb[0].mxu0
      %5264 = vmatprep.mubr.bf16.mxu0 0
      %5265 = vmatmul.mubr.bf16.gmra.mrb[0].mxu0 %v3019
      %v5266 = vpop.f32.mrb[0].mxu0
      %v5267 = vadd.f32 0.0, %v5266
      %v5268 = vpop.f32.mrb[0].mxu0
      %v5269 = vpop.f32.mrb[0].mxu0
      %v5270 = vadd.f32 0.0, %v5269
      %v5271 = vpop.f32.mrb[0].mxu0
      %5272 = vmatprep.mubr.bf16.mxu0 0
      %5273 = vmatmul.mubr.bf16.gmra.mrb[0].mxu0 %v3022
      %v5274 = vpop.f32.mrb[0].mxu0
      %v5275 = vadd.f32 0.0, %v5274
      %v5276 = vpop.f32.mrb[0].mxu0
      %v5277 = vpop.f32.mrb[0].mxu0
      %v5278 = vadd.f32 0.0, %v5277
      %v5279 = vpop.f32.mrb[0].mxu0
      %5280 = vmatprep.mubr.bf16.mxu0 0
      %5281 = vmatmul.mubr.bf16.gmra.mrb[0].mxu0 %v3025
      %v5282 = vpop.f32.mrb[0].mxu0
      %v5283 = vadd.f32 0.0, %v5282
      %v5284 = vpop.f32.mrb[0].mxu0
      %v5285 = vpop.f32.mrb[0].mxu0
      %v5286 = vadd.f32 0.0, %v5285
      %v5287 = vpop.f32.mrb[0].mxu0
      %5288 = vmatprep.mubr.bf16.mxu0 0
      %5289 = vmatmul.mubr.bf16.gmra.mrb[0].mxu0 %v3028
      %v5290 = vpop.f32.mrb[0].mxu0
      %v5291 = vadd.f32 0.0, %v5290
      %v5292 = vpop.f32.mrb[0].mxu0
      %v5293 = vpop.f32.mrb[0].mxu0
      %v5294 = vadd.f32 0.0, %v5293
      %v5295 = vpop.f32.mrb[0].mxu0
      %5296 = vmatprep.mubr.bf16.mxu0 0
      %5297 = vmatmul.mubr.bf16.gmra.mrb[0].mxu0 %v3031
      %v5298 = vpop.f32.mrb[0].mxu0
      %v5299 = vadd.f32 0.0, %v5298
      %v5300 = vpop.f32.mrb[0].mxu0
      %v5301 = vpop.f32.mrb[0].mxu0
      %v5302 = vadd.f32 0.0, %v5301
      %v5303 = vpop.f32.mrb[0].mxu0
      %5304 = vmatprep.mubr.bf16.mxu0 0
      %5305 = vmatmul.mubr.bf16.gmra.mrb[0].mxu0 %v3034
      %v5306 = vpop.f32.mrb[0].mxu0
      %v5307 = vadd.f32 0.0, %v5306
      %v5308 = vpop.f32.mrb[0].mxu0
      %v5309 = vpop.f32.mrb[0].mxu0
      %v5310 = vadd.f32 0.0, %v5309
      %v5311 = vpop.f32.mrb[0].mxu0
      %5312 = vmatprep.mubr.bf16.mxu0 0
      %5313 = vmatmul.mubr.bf16.gmra.mrb[0].mxu0 %v3037
      %v5314 = vpop.f32.mrb[0].mxu0
      %v5315 = vadd.f32 0.0, %v5314
      %v5316 = vpop.f32.mrb[0].mxu0
      %v5317 = vpop.f32.mrb[0].mxu0
      %v5318 = vadd.f32 0.0, %v5317
      %v5319 = vpop.f32.mrb[0].mxu0
      %5320 = vmatprep.mubr.bf16.mxu0 0
      %5321 = vmatmul.mubr.bf16.gmra.mrb[0].mxu0 %v3040
      %v5322 = vpop.f32.mrb[0].mxu0
      %v5323 = vadd.f32 0.0, %v5322
      %v5324 = vpop.f32.mrb[0].mxu0
      %v5325 = vpop.f32.mrb[0].mxu0
      %v5326 = vadd.f32 0.0, %v5325
      %v5327 = vpop.f32.mrb[0].mxu0
      %5328 = vmatprep.mubr.bf16.mxu0 0
      %5329 = vmatmul.mubr.bf16.gmra.mrb[0].mxu0 %v3043
      %v5330 = vpop.f32.mrb[0].mxu0
      %v5331 = vadd.f32 0.0, %v5330
      %v5332 = vpop.f32.mrb[0].mxu0
      %v5333 = vpop.f32.mrb[0].mxu0
      %v5334 = vadd.f32 0.0, %v5333
      %v5335 = vpop.f32.mrb[0].mxu0
      %5336 = vmatprep.mubr.bf16.mxu0 0
      %5337 = vmatmul.mubr.bf16.gmra.mrb[0].mxu0 %v3046
      %v5338 = vpop.f32.mrb[0].mxu0
      %v5339 = vadd.f32 0.0, %v5338
      %v5340 = vpop.f32.mrb[0].mxu0
      %v5341 = vpop.f32.mrb[0].mxu0
      %v5342 = vadd.f32 0.0, %v5341
      %v5343 = vpop.f32.mrb[0].mxu0
      %5344 = vmatprep.mubr.bf16.mxu0 0
      %5345 = vmatmul.mubr.bf16.gmra.mrb[0].mxu0 %v3049
      %v5346 = vpop.f32.mrb[0].mxu0
      %v5347 = vadd.f32 0.0, %v5346
      %v5348 = vpop.f32.mrb[0].mxu0
      %v5349 = vpop.f32.mrb[0].mxu0
      %v5350 = vadd.f32 0.0, %v5349
      %v5351 = vpop.f32.mrb[0].mxu0
      %5352 = vmatprep.mubr.bf16.mxu0 0
      %5353 = vmatmul.mubr.bf16.gmra.mrb[0].mxu0 %v3052
      %v5354 = vpop.f32.mrb[0].mxu0
      %v5355 = vadd.f32 0.0, %v5354
      %v5356 = vpop.f32.mrb[0].mxu0
      %v5357 = vpop.f32.mrb[0].mxu0
      %v5358 = vadd.f32 0.0, %v5357
      %v5359 = vpop.f32.mrb[0].mxu0
      %5360 = vmatprep.mubr.bf16.mxu0 0
      %5361 = vmatmul.mubr.bf16.gmra.mrb[0].mxu0 %v3055
      %v5362 = vpop.f32.mrb[0].mxu0
      %v5363 = vadd.f32 0.0, %v5362
      %v5364 = vpop.f32.mrb[0].mxu0
      %v5365 = vpop.f32.mrb[0].mxu0
      %v5366 = vadd.f32 0.0, %v5365
      %v5367 = vpop.f32.mrb[0].mxu0
      %5368 = vmatprep.mubr.bf16.mxu0 0
      %5369 = vmatmul.mubr.bf16.gmra.mrb[0].mxu0 %v3058
      %v5370 = vpop.f32.mrb[0].mxu0
      %v5371 = vadd.f32 0.0, %v5370
      %v5372 = vpop.f32.mrb[0].mxu0
      %v5373 = vpop.f32.mrb[0].mxu0
      %v5374 = vadd.f32 0.0, %v5373
      %v5375 = vpop.f32.mrb[0].mxu0
      %5376 = vmatprep.mubr.bf16.mxu0 0
      %5377 = vmatmul.mubr.bf16.gmra.mrb[0].mxu0 %v3061
      %v5378 = vpop.f32.mrb[0].mxu0
      %v5379 = vadd.f32 0.0, %v5378
      %v5380 = vpop.f32.mrb[0].mxu0
      %v5381 = vpop.f32.mrb[0].mxu0
      %v5382 = vadd.f32 0.0, %v5381
      %v5383 = vpop.f32.mrb[0].mxu0
      %5384 = vmatprep.mubr.bf16.mxu0 0
      %5385 = vmatmul.mubr.bf16.gmra.mrb[0].mxu0 %v3064
      %v5386 = vpop.f32.mrb[0].mxu0
      %v5387 = vadd.f32 0.0, %v5386
      %v5388 = vpop.f32.mrb[0].mxu0
      %v5389 = vpop.f32.mrb[0].mxu0
      %v5390 = vadd.f32 0.0, %v5389
      %v5391 = vpop.f32.mrb[0].mxu0
      %5392 = vmatprep.mubr.bf16.mxu0 0
      %5393 = vmatmul.mubr.bf16.gmra.mrb[0].mxu0 %v3067
      %v5394 = vpop.f32.mrb[0].mxu0
      %v5395 = vadd.f32 0.0, %v5394
      %v5396 = vpop.f32.mrb[0].mxu0
      %v5397 = vpop.f32.mrb[0].mxu0
      %v5398 = vadd.f32 0.0, %v5397
      %v5399 = vpop.f32.mrb[0].mxu0
      %5400 = vmatprep.mubr.bf16.mxu0 0
      %5401 = vmatmul.mubr.bf16.gmra.mrb[0].mxu0 %v3070
      %v5402 = vpop.f32.mrb[0].mxu0
      %v5403 = vadd.f32 0.0, %v5402
      %v5404 = vpop.f32.mrb[0].mxu0
      %v5405 = vpop.f32.mrb[0].mxu0
      %v5406 = vadd.f32 0.0, %v5405
      %v5407 = vpop.f32.mrb[0].mxu0
      %5408 = vdwg.mxu0
      %v5409 = vmax.f32 %v3107, %v3683
      %v5410 = vmax.f32 %v3110, %v3686
      %v5411 = vmax.f32 %v3115, %v3691
      %v5412 = vmax.f32 %v3118, %v3694
      %v5413 = vmax.f32 %v3123, %v3699
      %v5414 = vmax.f32 %v3126, %v3702
      %v5415 = vmax.f32 %v3131, %v3707
      %v5416 = vmax.f32 %v3134, %v3710
      %v5417 = vmax.f32 %v3139, %v3715
      %v5418 = vmax.f32 %v3142, %v3718
      %v5419 = vmax.f32 %v3147, %v3723
      %v5420 = vmax.f32 %v3150, %v3726
      %v5421 = vmax.f32 %v3155, %v3731
      %v5422 = vmax.f32 %v3158, %v3734
      %v5423 = vmax.f32 %v3163, %v3739
      %v5424 = vmax.f32 %v3166, %v3742
      %v5425 = vmax.f32 %v3171, %v3747
      %v5426 = vmax.f32 %v3174, %v3750
      %v5427 = vmax.f32 %v3179, %v3755
      %v5428 = vmax.f32 %v3182, %v3758
      %v5429 = vmax.f32 %v3187, %v3763
      %v5430 = vmax.f32 %v3190, %v3766
      %v5431 = vmax.f32 %v3195, %v3771
      %v5432 = vmax.f32 %v3198, %v3774
      %v5433 = vmax.f32 %v3203, %v3779
      %v5434 = vmax.f32 %v3206, %v3782
      %v5435 = vmax.f32 %v3211, %v3787
      %v5436 = vmax.f32 %v3214, %v3790
      %v5437 = vmax.f32 %v3219, %v3795
      %v5438 = vmax.f32 %v3222, %v3798
      %v5439 = vmax.f32 %v3227, %v3803
      %v5440 = vmax.f32 %v3230, %v3806
      %v5441 = vmax.f32 %v3235, %v3811
      %v5442 = vmax.f32 %v3238, %v3814
      %v5443 = vmax.f32 %v3243, %v3819
      %v5444 = vmax.f32 %v3246, %v3822
      %v5445 = vmax.f32 %v3251, %v3827
      %v5446 = vmax.f32 %v3254, %v3830
      %v5447 = vmax.f32 %v3259, %v3835
      %v5448 = vmax.f32 %v3262, %v3838
      %v5449 = vmax.f32 %v3267, %v3843
      %v5450 = vmax.f32 %v3270, %v3846
      %v5451 = vmax.f32 %v3275, %v3851
      %v5452 = vmax.f32 %v3278, %v3854
      %v5453 = vmax.f32 %v3283, %v3859
      %v5454 = vmax.f32 %v3286, %v3862
      %v5455 = vmax.f32 %v3291, %v3867
      %v5456 = vmax.f32 %v3294, %v3870
      %v5457 = vmax.f32 %v3299, %v3875
      %v5458 = vmax.f32 %v3302, %v3878
      %v5459 = vmax.f32 %v3307, %v3883
      %v5460 = vmax.f32 %v3310, %v3886
      %v5461 = vmax.f32 %v3315, %v3891
      %v5462 = vmax.f32 %v3318, %v3894
      %v5463 = vmax.f32 %v3323, %v3899
      %v5464 = vmax.f32 %v3326, %v3902
      %v5465 = vmax.f32 %v3331, %v3907
      %v5466 = vmax.f32 %v3334, %v3910
      %v5467 = vmax.f32 %v3339, %v3915
      %v5468 = vmax.f32 %v3342, %v3918
      %v5469 = vmax.f32 %v3347, %v3923
      %v5470 = vmax.f32 %v3350, %v3926
      %v5471 = vmax.f32 %v3355, %v3931
      %v5472 = vmax.f32 %v3358, %v3934
      %v5473 = vmax.f32 %v3363, %v3939
      %v5474 = vmax.f32 %v3366, %v3942
      %v5475 = vmax.f32 %v3371, %v3947
      %v5476 = vmax.f32 %v3374, %v3950
      %v5477 = vmax.f32 %v3379, %v3955
      %v5478 = vmax.f32 %v3382, %v3958
      %v5479 = vmax.f32 %v3387, %v3963
      %v5480 = vmax.f32 %v3390, %v3966
      %v5481 = vmax.f32 %v3395, %v3971
      %v5482 = vmax.f32 %v3398, %v3974
      %v5483 = vmax.f32 %v3403, %v3979
      %v5484 = vmax.f32 %v3406, %v3982
      %v5485 = vmax.f32 %v3411, %v3987
      %v5486 = vmax.f32 %v3414, %v3990
      %v5487 = vmax.f32 %v3419, %v3995
      %v5488 = vmax.f32 %v3422, %v3998
      %v5489 = vmax.f32 %v3427, %v4003
      %v5490 = vmax.f32 %v3430, %v4006
      %v5491 = vmax.f32 %v3435, %v4011
      %v5492 = vmax.f32 %v3438, %v4014
      %v5493 = vmax.f32 %v3443, %v4019
      %v5494 = vmax.f32 %v3446, %v4022
      %v5495 = vmax.f32 %v3451, %v4027
      %v5496 = vmax.f32 %v3454, %v4030
      %v5497 = vmax.f32 %v3459, %v4035
      %v5498 = vmax.f32 %v3462, %v4038
      %v5499 = vmax.f32 %v3467, %v4043
      %v5500 = vmax.f32 %v3470, %v4046
      %v5501 = vmax.f32 %v3475, %v4051
      %v5502 = vmax.f32 %v3478, %v4054
      %v5503 = vmax.f32 %v3483, %v4059
      %v5504 = vmax.f32 %v3486, %v4062
      %v5505 = vmax.f32 %v3491, %v4067
      %v5506 = vmax.f32 %v3494, %v4070
      %v5507 = vmax.f32 %v3499, %v4075
      %v5508 = vmax.f32 %v3502, %v4078
      %v5509 = vmax.f32 %v3507, %v4083
      %v5510 = vmax.f32 %v3510, %v4086
      %v5511 = vmax.f32 %v3515, %v4091
      %v5512 = vmax.f32 %v3518, %v4094
      %v5513 = vmax.f32 %v3523, %v4099
      %v5514 = vmax.f32 %v3526, %v4102
      %v5515 = vmax.f32 %v3531, %v4107
      %v5516 = vmax.f32 %v3534, %v4110
      %v5517 = vmax.f32 %v3539, %v4115
      %v5518 = vmax.f32 %v3542, %v4118
      %v5519 = vmax.f32 %v3547, %v4123
      %v5520 = vmax.f32 %v3550, %v4126
      %v5521 = vmax.f32 %v3555, %v4131
      %v5522 = vmax.f32 %v3558, %v4134
      %v5523 = vmax.f32 %v3563, %v4139
      %v5524 = vmax.f32 %v3566, %v4142
      %v5525 = vmax.f32 %v3571, %v4147
      %v5526 = vmax.f32 %v3574, %v4150
      %v5527 = vmax.f32 %v3579, %v4155
      %v5528 = vmax.f32 %v3582, %v4158
      %v5529 = vmax.f32 %v3587, %v4163
      %v5530 = vmax.f32 %v3590, %v4166
      %v5531 = vmax.f32 %v3595, %v4171
      %v5532 = vmax.f32 %v3598, %v4174
      %v5533 = vmax.f32 %v3603, %v4179
      %v5534 = vmax.f32 %v3606, %v4182
      %v5535 = vmax.f32 %v3611, %v4187
      %v5536 = vmax.f32 %v3614, %v4190
      %v5537 = vmax.f32 %v3619, %v4195
      %v5538 = vmax.f32 %v3622, %v4198
      %v5539 = vmax.f32 %v3627, %v4203
      %v5540 = vmax.f32 %v3630, %v4206
      %v5541 = vmax.f32 %v3635, %v4211
      %v5542 = vmax.f32 %v3638, %v4214
      %v5543 = vmax.f32 %v3643, %v4219
      %v5544 = vmax.f32 %v3646, %v4222
      %v5545 = vmax.f32 %v3651, %v4227
      %v5546 = vmax.f32 %v3654, %v4230
      %v5547 = vmax.f32 %v3659, %v4235
      %v5548 = vmax.f32 %v3662, %v4238
      %v5549 = vmax.f32 %v3667, %v4243
      %v5550 = vmax.f32 %v3670, %v4246
      %v5551 = vmax.f32 %v3675, %v4251
      %v5552 = vmax.f32 %v3678, %v4254
      %v5553 = vmax.f32 %v4259, %v4835
      %v5554 = vmax.f32 %v4262, %v4838
      %v5555 = vmax.f32 %v4267, %v4843
      %v5556 = vmax.f32 %v4270, %v4846
      %v5557 = vmax.f32 %v4275, %v4851
      %v5558 = vmax.f32 %v4278, %v4854
      %v5559 = vmax.f32 %v4283, %v4859
      %v5560 = vmax.f32 %v4286, %v4862
      %v5561 = vmax.f32 %v4291, %v4867
      %v5562 = vmax.f32 %v4294, %v4870
      %v5563 = vmax.f32 %v4299, %v4875
      %v5564 = vmax.f32 %v4302, %v4878
      %v5565 = vmax.f32 %v4307, %v4883
      %v5566 = vmax.f32 %v4310, %v4886
      %v5567 = vmax.f32 %v4315, %v4891
      %v5568 = vmax.f32 %v4318, %v4894
      %v5569 = vmax.f32 %v4323, %v4899
      %v5570 = vmax.f32 %v4326, %v4902
      %v5571 = vmax.f32 %v4331, %v4907
      %v5572 = vmax.f32 %v4334, %v4910
      %v5573 = vmax.f32 %v4339, %v4915
      %v5574 = vmax.f32 %v4342, %v4918
      %v5575 = vmax.f32 %v4347, %v4923
      %v5576 = vmax.f32 %v4350, %v4926
      %v5577 = vmax.f32 %v4355, %v4931
      %v5578 = vmax.f32 %v4358, %v4934
      %v5579 = vmax.f32 %v4363, %v4939
      %v5580 = vmax.f32 %v4366, %v4942
      %v5581 = vmax.f32 %v4371, %v4947
      %v5582 = vmax.f32 %v4374, %v4950
      %v5583 = vmax.f32 %v4379, %v4955
      %v5584 = vmax.f32 %v4382, %v4958
      %v5585 = vmax.f32 %v4387, %v4963
      %v5586 = vmax.f32 %v4390, %v4966
      %v5587 = vmax.f32 %v4395, %v4971
      %v5588 = vmax.f32 %v4398, %v4974
      %v5589 = vmax.f32 %v4403, %v4979
      %v5590 = vmax.f32 %v4406, %v4982
      %v5591 = vmax.f32 %v4411, %v4987
      %v5592 = vmax.f32 %v4414, %v4990
      %v5593 = vmax.f32 %v4419, %v4995
      %v5594 = vmax.f32 %v4422, %v4998
      %v5595 = vmax.f32 %v4427, %v5003
      %v5596 = vmax.f32 %v4430, %v5006
      %v5597 = vmax.f32 %v4435, %v5011
      %v5598 = vmax.f32 %v4438, %v5014
      %v5599 = vmax.f32 %v4443, %v5019
      %v5600 = vmax.f32 %v4446, %v5022
      %v5601 = vmax.f32 %v4451, %v5027
      %v5602 = vmax.f32 %v4454, %v5030
      %v5603 = vmax.f32 %v4459, %v5035
      %v5604 = vmax.f32 %v4462, %v5038
      %v5605 = vmax.f32 %v4467, %v5043
      %v5606 = vmax.f32 %v4470, %v5046
      %v5607 = vmax.f32 %v4475, %v5051
      %v5608 = vmax.f32 %v4478, %v5054
      %v5609 = vmax.f32 %v4483, %v5059
      %v5610 = vmax.f32 %v4486, %v5062
      %v5611 = vmax.f32 %v4491, %v5067
      %v5612 = vmax.f32 %v4494, %v5070
      %v5613 = vmax.f32 %v4499, %v5075
      %v5614 = vmax.f32 %v4502, %v5078
      %v5615 = vmax.f32 %v4507, %v5083
      %v5616 = vmax.f32 %v4510, %v5086
      %v5617 = vmax.f32 %v4515, %v5091
      %v5618 = vmax.f32 %v4518, %v5094
      %v5619 = vmax.f32 %v4523, %v5099
      %v5620 = vmax.f32 %v4526, %v5102
      %v5621 = vmax.f32 %v4531, %v5107
      %v5622 = vmax.f32 %v4534, %v5110
      %v5623 = vmax.f32 %v4539, %v5115
      %v5624 = vmax.f32 %v4542, %v5118
      %v5625 = vmax.f32 %v4547, %v5123
      %v5626 = vmax.f32 %v4550, %v5126
      %v5627 = vmax.f32 %v4555, %v5131
      %v5628 = vmax.f32 %v4558, %v5134
      %v5629 = vmax.f32 %v4563, %v5139
      %v5630 = vmax.f32 %v4566, %v5142
      %v5631 = vmax.f32 %v4571, %v5147
      %v5632 = vmax.f32 %v4574, %v5150
      %v5633 = vmax.f32 %v4579, %v5155
      %v5634 = vmax.f32 %v4582, %v5158
      %v5635 = vmax.f32 %v4587, %v5163
      %v5636 = vmax.f32 %v4590, %v5166
      %v5637 = vmax.f32 %v4595, %v5171
      %v5638 = vmax.f32 %v4598, %v5174
      %v5639 = vmax.f32 %v4603, %v5179
      %v5640 = vmax.f32 %v4606, %v5182
      %v5641 = vmax.f32 %v4611, %v5187
      %v5642 = vmax.f32 %v4614, %v5190
      %v5643 = vmax.f32 %v4619, %v5195
      %v5644 = vmax.f32 %v4622, %v5198
      %v5645 = vmax.f32 %v4627, %v5203
      %v5646 = vmax.f32 %v4630, %v5206
      %v5647 = vmax.f32 %v4635, %v5211
      %v5648 = vmax.f32 %v4638, %v5214
      %v5649 = vmax.f32 %v4643, %v5219
      %v5650 = vmax.f32 %v4646, %v5222
      %v5651 = vmax.f32 %v4651, %v5227
      %v5652 = vmax.f32 %v4654, %v5230
      %v5653 = vmax.f32 %v4659, %v5235
      %v5654 = vmax.f32 %v4662, %v5238
      %v5655 = vmax.f32 %v4667, %v5243
      %v5656 = vmax.f32 %v4670, %v5246
      %v5657 = vmax.f32 %v4675, %v5251
      %v5658 = vmax.f32 %v4678, %v5254
      %v5659 = vmax.f32 %v4683, %v5259
      %v5660 = vmax.f32 %v4686, %v5262
      %v5661 = vmax.f32 %v4691, %v5267
      %v5662 = vmax.f32 %v4694, %v5270
      %v5663 = vmax.f32 %v4699, %v5275
      %v5664 = vmax.f32 %v4702, %v5278
      %v5665 = vmax.f32 %v4707, %v5283
      %v5666 = vmax.f32 %v4710, %v5286
      %v5667 = vmax.f32 %v4715, %v5291
      %v5668 = vmax.f32 %v4718, %v5294
      %v5669 = vmax.f32 %v4723, %v5299
      %v5670 = vmax.f32 %v4726, %v5302
      %v5671 = vmax.f32 %v4731, %v5307
      %v5672 = vmax.f32 %v4734, %v5310
      %v5673 = vmax.f32 %v4739, %v5315
      %v5674 = vmax.f32 %v4742, %v5318
      %v5675 = vmax.f32 %v4747, %v5323
      %v5676 = vmax.f32 %v4750, %v5326
      %v5677 = vmax.f32 %v4755, %v5331
      %v5678 = vmax.f32 %v4758, %v5334
      %v5679 = vmax.f32 %v4763, %v5339
      %v5680 = vmax.f32 %v4766, %v5342
      %v5681 = vmax.f32 %v4771, %v5347
      %v5682 = vmax.f32 %v4774, %v5350
      %v5683 = vmax.f32 %v4779, %v5355
      %v5684 = vmax.f32 %v4782, %v5358
      %v5685 = vmax.f32 %v4787, %v5363
      %v5686 = vmax.f32 %v4790, %v5366
      %v5687 = vmax.f32 %v4795, %v5371
      %v5688 = vmax.f32 %v4798, %v5374
      %v5689 = vmax.f32 %v4803, %v5379
      %v5690 = vmax.f32 %v4806, %v5382
      %v5691 = vmax.f32 %v4811, %v5387
      %v5692 = vmax.f32 %v4814, %v5390
      %v5693 = vmax.f32 %v4819, %v5395
      %v5694 = vmax.f32 %v4822, %v5398
      %v5695 = vmax.f32 %v4827, %v5403
      %v5696 = vmax.f32 %v4830, %v5406
      %v5697 = vmax.f32 %v5409, %v5553
      %v5698 = vmax.f32 %v5410, %v5554
      %v5699 = vmax.f32 %v5411, %v5555
      %v5700 = vmax.f32 %v5412, %v5556
      %v5701 = vmax.f32 %v5413, %v5557
      %v5702 = vmax.f32 %v5414, %v5558
      %v5703 = vmax.f32 %v5415, %v5559
      %v5704 = vmax.f32 %v5416, %v5560
      %v5705 = vmax.f32 %v5417, %v5561
      %v5706 = vmax.f32 %v5418, %v5562
      %v5707 = vmax.f32 %v5419, %v5563
      %v5708 = vmax.f32 %v5420, %v5564
      %v5709 = vmax.f32 %v5421, %v5565
      %v5710 = vmax.f32 %v5422, %v5566
      %v5711 = vmax.f32 %v5423, %v5567
      %v5712 = vmax.f32 %v5424, %v5568
      %v5713 = vmax.f32 %v5425, %v5569
      %v5714 = vmax.f32 %v5426, %v5570
      %v5715 = vmax.f32 %v5427, %v5571
      %v5716 = vmax.f32 %v5428, %v5572
      %v5717 = vmax.f32 %v5429, %v5573
      %v5718 = vmax.f32 %v5430, %v5574
      %v5719 = vmax.f32 %v5431, %v5575
      %v5720 = vmax.f32 %v5432, %v5576
      %v5721 = vmax.f32 %v5433, %v5577
      %v5722 = vmax.f32 %v5434, %v5578
      %v5723 = vmax.f32 %v5435, %v5579
      %v5724 = vmax.f32 %v5436, %v5580
      %v5725 = vmax.f32 %v5437, %v5581
      %v5726 = vmax.f32 %v5438, %v5582
      %v5727 = vmax.f32 %v5439, %v5583
      %v5728 = vmax.f32 %v5440, %v5584
      %v5729 = vmax.f32 %v5441, %v5585
      %v5730 = vmax.f32 %v5442, %v5586
      %v5731 = vmax.f32 %v5443, %v5587
      %v5732 = vmax.f32 %v5444, %v5588
      %v5733 = vmax.f32 %v5445, %v5589
      %v5734 = vmax.f32 %v5446, %v5590
      %v5735 = vmax.f32 %v5447, %v5591
      %v5736 = vmax.f32 %v5448, %v5592
      %v5737 = vmax.f32 %v5449, %v5593
      %v5738 = vmax.f32 %v5450, %v5594
      %v5739 = vmax.f32 %v5451, %v5595
      %v5740 = vmax.f32 %v5452, %v5596
      %v5741 = vmax.f32 %v5453, %v5597
      %v5742 = vmax.f32 %v5454, %v5598
      %v5743 = vmax.f32 %v5455, %v5599
      %v5744 = vmax.f32 %v5456, %v5600
      %v5745 = vmax.f32 %v5457, %v5601
      %v5746 = vmax.f32 %v5458, %v5602
      %v5747 = vmax.f32 %v5459, %v5603
      %v5748 = vmax.f32 %v5460, %v5604
      %v5749 = vmax.f32 %v5461, %v5605
      %v5750 = vmax.f32 %v5462, %v5606
      %v5751 = vmax.f32 %v5463, %v5607
      %v5752 = vmax.f32 %v5464, %v5608
      %v5753 = vmax.f32 %v5465, %v5609
      %v5754 = vmax.f32 %v5466, %v5610
      %v5755 = vmax.f32 %v5467, %v5611
      %v5756 = vmax.f32 %v5468, %v5612
      %v5757 = vmax.f32 %v5469, %v5613
      %v5758 = vmax.f32 %v5470, %v5614
      %v5759 = vmax.f32 %v5471, %v5615
      %v5760 = vmax.f32 %v5472, %v5616
      %v5761 = vmax.f32 %v5473, %v5617
      %v5762 = vmax.f32 %v5474, %v5618
      %v5763 = vmax.f32 %v5475, %v5619
      %v5764 = vmax.f32 %v5476, %v5620
      %v5765 = vmax.f32 %v5477, %v5621
      %v5766 = vmax.f32 %v5478, %v5622
      %v5767 = vmax.f32 %v5479, %v5623
      %v5768 = vmax.f32 %v5480, %v5624
      %v5769 = vmax.f32 %v5481, %v5625
      %v5770 = vmax.f32 %v5482, %v5626
      %v5771 = vmax.f32 %v5483, %v5627
      %v5772 = vmax.f32 %v5484, %v5628
      %v5773 = vmax.f32 %v5485, %v5629
      %v5774 = vmax.f32 %v5486, %v5630
      %v5775 = vmax.f32 %v5487, %v5631
      %v5776 = vmax.f32 %v5488, %v5632
      %v5777 = vmax.f32 %v5489, %v5633
      %v5778 = vmax.f32 %v5490, %v5634
      %v5779 = vmax.f32 %v5491, %v5635
      %v5780 = vmax.f32 %v5492, %v5636
      %v5781 = vmax.f32 %v5493, %v5637
      %v5782 = vmax.f32 %v5494, %v5638
      %v5783 = vmax.f32 %v5495, %v5639
      %v5784 = vmax.f32 %v5496, %v5640
      %v5785 = vmax.f32 %v5497, %v5641
      %v5786 = vmax.f32 %v5498, %v5642
      %v5787 = vmax.f32 %v5499, %v5643
      %v5788 = vmax.f32 %v5500, %v5644
      %v5789 = vmax.f32 %v5501, %v5645
      %v5790 = vmax.f32 %v5502, %v5646
      %v5791 = vmax.f32 %v5503, %v5647
      %v5792 = vmax.f32 %v5504, %v5648
      %v5793 = vmax.f32 %v5505, %v5649
      %v5794 = vmax.f32 %v5506, %v5650
      %v5795 = vmax.f32 %v5507, %v5651
      %v5796 = vmax.f32 %v5508, %v5652
      %v5797 = vmax.f32 %v5509, %v5653
      %v5798 = vmax.f32 %v5510, %v5654
      %v5799 = vmax.f32 %v5511, %v5655
      %v5800 = vmax.f32 %v5512, %v5656
      %v5801 = vmax.f32 %v5513, %v5657
      %v5802 = vmax.f32 %v5514, %v5658
      %v5803 = vmax.f32 %v5515, %v5659
      %v5804 = vmax.f32 %v5516, %v5660
      %v5805 = vmax.f32 %v5517, %v5661
      %v5806 = vmax.f32 %v5518, %v5662
      %v5807 = vmax.f32 %v5519, %v5663
      %v5808 = vmax.f32 %v5520, %v5664
      %v5809 = vmax.f32 %v5521, %v5665
      %v5810 = vmax.f32 %v5522, %v5666
      %v5811 = vmax.f32 %v5523, %v5667
      %v5812 = vmax.f32 %v5524, %v5668
      %v5813 = vmax.f32 %v5525, %v5669
      %v5814 = vmax.f32 %v5526, %v5670
      %v5815 = vmax.f32 %v5527, %v5671
      %v5816 = vmax.f32 %v5528, %v5672
      %v5817 = vmax.f32 %v5529, %v5673
      %v5818 = vmax.f32 %v5530, %v5674
      %v5819 = vmax.f32 %v5531, %v5675
      %v5820 = vmax.f32 %v5532, %v5676
      %v5821 = vmax.f32 %v5533, %v5677
      %v5822 = vmax.f32 %v5534, %v5678
      %v5823 = vmax.f32 %v5535, %v5679
      %v5824 = vmax.f32 %v5536, %v5680
      %v5825 = vmax.f32 %v5537, %v5681
      %v5826 = vmax.f32 %v5538, %v5682
      %v5827 = vmax.f32 %v5539, %v5683
      %v5828 = vmax.f32 %v5540, %v5684
      %v5829 = vmax.f32 %v5541, %v5685
      %v5830 = vmax.f32 %v5542, %v5686
      %v5831 = vmax.f32 %v5543, %v5687
      %v5832 = vmax.f32 %v5544, %v5688
      %v5833 = vmax.f32 %v5545, %v5689
      %v5834 = vmax.f32 %v5546, %v5690
      %v5835 = vmax.f32 %v5547, %v5691
      %v5836 = vmax.f32 %v5548, %v5692
      %v5837 = vmax.f32 %v5549, %v5693
      %v5838 = vmax.f32 %v5550, %v5694
      %v5839 = vmax.f32 %v5551, %v5695
      %v5840 = vmax.f32 %v5552, %v5696
      %v5841 = vld [vmem:[%s2] sm:$0x1]
      %v5843 = vlaneseq
      %v5844 = vshrl.u32 %v5843, 7
      %v5845 = vsub.s32 0, %v5844
      %v5846 = vrot.slane %v5841, %v5845
      %v5848 = vadd.f32 %v5697, %v5846
      %v5849 = vadd.f32 %v5698, %v5846
      %v5850 = vadd.f32 %v5699, %v5846
      %v5851 = vadd.f32 %v5700, %v5846
      %v5852 = vadd.f32 %v5701, %v5846
      %v5853 = vadd.f32 %v5702, %v5846
      %v5854 = vadd.f32 %v5703, %v5846
      %v5855 = vadd.f32 %v5704, %v5846
      %v5856 = vadd.f32 %v5705, %v5846
      %v5857 = vadd.f32 %v5706, %v5846
      %v5858 = vadd.f32 %v5707, %v5846
      %v5859 = vadd.f32 %v5708, %v5846
      %v5860 = vadd.f32 %v5709, %v5846
      %v5861 = vadd.f32 %v5710, %v5846
      %v5862 = vadd.f32 %v5711, %v5846
      %v5863 = vadd.f32 %v5712, %v5846
      %v5864 = vadd.f32 %v5713, %v5846
      %v5865 = vadd.f32 %v5714, %v5846
      %v5866 = vadd.f32 %v5715, %v5846
      %v5867 = vadd.f32 %v5716, %v5846
      %v5868 = vadd.f32 %v5717, %v5846
      %v5869 = vadd.f32 %v5718, %v5846
      %v5870 = vadd.f32 %v5719, %v5846
      %v5871 = vadd.f32 %v5720, %v5846
      %v5872 = vadd.f32 %v5721, %v5846
      %v5873 = vadd.f32 %v5722, %v5846
      %v5874 = vadd.f32 %v5723, %v5846
      %v5875 = vadd.f32 %v5724, %v5846
      %v5876 = vadd.f32 %v5725, %v5846
      %v5877 = vadd.f32 %v5726, %v5846
      %v5878 = vadd.f32 %v5727, %v5846
      %v5879 = vadd.f32 %v5728, %v5846
      %v5880 = vadd.f32 %v5729, %v5846
      %v5881 = vadd.f32 %v5730, %v5846
      %v5882 = vadd.f32 %v5731, %v5846
      %v5883 = vadd.f32 %v5732, %v5846
      %v5884 = vadd.f32 %v5733, %v5846
      %v5885 = vadd.f32 %v5734, %v5846
      %v5886 = vadd.f32 %v5735, %v5846
      %v5887 = vadd.f32 %v5736, %v5846
      %v5888 = vadd.f32 %v5737, %v5846
      %v5889 = vadd.f32 %v5738, %v5846
      %v5890 = vadd.f32 %v5739, %v5846
      %v5891 = vadd.f32 %v5740, %v5846
      %v5892 = vadd.f32 %v5741, %v5846
      %v5893 = vadd.f32 %v5742, %v5846
      %v5894 = vadd.f32 %v5743, %v5846
      %v5895 = vadd.f32 %v5744, %v5846
      %v5896 = vadd.f32 %v5745, %v5846
      %v5897 = vadd.f32 %v5746, %v5846
      %v5898 = vadd.f32 %v5747, %v5846
      %v5899 = vadd.f32 %v5748, %v5846
      %v5900 = vadd.f32 %v5749, %v5846
      %v5901 = vadd.f32 %v5750, %v5846
      %v5902 = vadd.f32 %v5751, %v5846
      %v5903 = vadd.f32 %v5752, %v5846
      %v5904 = vadd.f32 %v5753, %v5846
      %v5905 = vadd.f32 %v5754, %v5846
      %v5906 = vadd.f32 %v5755, %v5846
      %v5907 = vadd.f32 %v5756, %v5846
      %v5908 = vadd.f32 %v5757, %v5846
      %v5909 = vadd.f32 %v5758, %v5846
      %v5910 = vadd.f32 %v5759, %v5846
      %v5911 = vadd.f32 %v5760, %v5846
      %v5912 = vadd.f32 %v5761, %v5846
      %v5913 = vadd.f32 %v5762, %v5846
      %v5914 = vadd.f32 %v5763, %v5846
      %v5915 = vadd.f32 %v5764, %v5846
      %v5916 = vadd.f32 %v5765, %v5846
      %v5917 = vadd.f32 %v5766, %v5846
      %v5918 = vadd.f32 %v5767, %v5846
      %v5919 = vadd.f32 %v5768, %v5846
      %v5920 = vadd.f32 %v5769, %v5846
      %v5921 = vadd.f32 %v5770, %v5846
      %v5922 = vadd.f32 %v5771, %v5846
      %v5923 = vadd.f32 %v5772, %v5846
      %v5924 = vadd.f32 %v5773, %v5846
      %v5925 = vadd.f32 %v5774, %v5846
      %v5926 = vadd.f32 %v5775, %v5846
      %v5927 = vadd.f32 %v5776, %v5846
      %v5928 = vadd.f32 %v5777, %v5846
      %v5929 = vadd.f32 %v5778, %v5846
      %v5930 = vadd.f32 %v5779, %v5846
      %v5931 = vadd.f32 %v5780, %v5846
      %v5932 = vadd.f32 %v5781, %v5846
      %v5933 = vadd.f32 %v5782, %v5846
      %v5934 = vadd.f32 %v5783, %v5846
      %v5935 = vadd.f32 %v5784, %v5846
      %v5936 = vadd.f32 %v5785, %v5846
      %v5937 = vadd.f32 %v5786, %v5846
      %v5938 = vadd.f32 %v5787, %v5846
      %v5939 = vadd.f32 %v5788, %v5846
      %v5940 = vadd.f32 %v5789, %v5846
      %v5941 = vadd.f32 %v5790, %v5846
      %v5942 = vadd.f32 %v5791, %v5846
      %v5943 = vadd.f32 %v5792, %v5846
      %v5944 = vadd.f32 %v5793, %v5846
      %v5945 = vadd.f32 %v5794, %v5846
      %v5946 = vadd.f32 %v5795, %v5846
      %v5947 = vadd.f32 %v5796, %v5846
      %v5948 = vadd.f32 %v5797, %v5846
      %v5949 = vadd.f32 %v5798, %v5846
      %v5950 = vadd.f32 %v5799, %v5846
      %v5951 = vadd.f32 %v5800, %v5846
      %v5952 = vadd.f32 %v5801, %v5846
      %v5953 = vadd.f32 %v5802, %v5846
      %v5954 = vadd.f32 %v5803, %v5846
      %v5955 = vadd.f32 %v5804, %v5846
      %v5956 = vadd.f32 %v5805, %v5846
      %v5957 = vadd.f32 %v5806, %v5846
      %v5958 = vadd.f32 %v5807, %v5846
      %v5959 = vadd.f32 %v5808, %v5846
      %v5960 = vadd.f32 %v5809, %v5846
      %v5961 = vadd.f32 %v5810, %v5846
      %v5962 = vadd.f32 %v5811, %v5846
      %v5963 = vadd.f32 %v5812, %v5846
      %v5964 = vadd.f32 %v5813, %v5846
      %v5965 = vadd.f32 %v5814, %v5846
      %v5966 = vadd.f32 %v5815, %v5846
      %v5967 = vadd.f32 %v5816, %v5846
      %v5968 = vadd.f32 %v5817, %v5846
      %v5969 = vadd.f32 %v5818, %v5846
      %v5970 = vadd.f32 %v5819, %v5846
      %v5971 = vadd.f32 %v5820, %v5846
      %v5972 = vadd.f32 %v5821, %v5846
      %v5973 = vadd.f32 %v5822, %v5846
      %v5974 = vadd.f32 %v5823, %v5846
      %v5975 = vadd.f32 %v5824, %v5846
      %v5976 = vadd.f32 %v5825, %v5846
      %v5977 = vadd.f32 %v5826, %v5846
      %v5978 = vadd.f32 %v5827, %v5846
      %v5979 = vadd.f32 %v5828, %v5846
      %v5980 = vadd.f32 %v5829, %v5846
      %v5981 = vadd.f32 %v5830, %v5846
      %v5982 = vadd.f32 %v5831, %v5846
      %v5983 = vadd.f32 %v5832, %v5846
      %v5984 = vadd.f32 %v5833, %v5846
      %v5985 = vadd.f32 %v5834, %v5846
      %v5986 = vadd.f32 %v5835, %v5846
      %v5987 = vadd.f32 %v5836, %v5846
      %v5988 = vadd.f32 %v5837, %v5846
      %v5989 = vadd.f32 %v5838, %v5846
      %v5990 = vadd.f32 %v5839, %v5846
      %v5991 = vadd.f32 %v5840, %v5846
      %v5992 = vmax.f32 %v5848, 0.0
      %v5993 = vmax.f32 %v5849, 0.0
      %v5994 = vmax.f32 %v5850, 0.0
      %v5995 = vmax.f32 %v5851, 0.0
      %v5996 = vmax.f32 %v5852, 0.0
      %v5997 = vmax.f32 %v5853, 0.0
      %v5998 = vmax.f32 %v5854, 0.0
      %v5999 = vmax.f32 %v5855, 0.0
      %v6000 = vmax.f32 %v5856, 0.0
      %v6001 = vmax.f32 %v5857, 0.0
      %v6002 = vmax.f32 %v5858, 0.0
      %v6003 = vmax.f32 %v5859, 0.0
      %v6004 = vmax.f32 %v5860, 0.0
      %v6005 = vmax.f32 %v5861, 0.0
      %v6006 = vmax.f32 %v5862, 0.0
      %v6007 = vmax.f32 %v5863, 0.0
      %v6008 = vmax.f32 %v5864, 0.0
      %v6009 = vmax.f32 %v5865, 0.0
      %v6010 = vmax.f32 %v5866, 0.0
      %v6011 = vmax.f32 %v5867, 0.0
      %v6012 = vmax.f32 %v5868, 0.0
      %v6013 = vmax.f32 %v5869, 0.0
      %v6014 = vmax.f32 %v5870, 0.0
      %v6015 = vmax.f32 %v5871, 0.0
      %v6016 = vmax.f32 %v5872, 0.0
      %v6017 = vmax.f32 %v5873, 0.0
      %v6018 = vmax.f32 %v5874, 0.0
      %v6019 = vmax.f32 %v5875, 0.0
      %v6020 = vmax.f32 %v5876, 0.0
      %v6021 = vmax.f32 %v5877, 0.0
      %v6022 = vmax.f32 %v5878, 0.0
      %v6023 = vmax.f32 %v5879, 0.0
      %v6024 = vmax.f32 %v5880, 0.0
      %v6025 = vmax.f32 %v5881, 0.0
      %v6026 = vmax.f32 %v5882, 0.0
      %v6027 = vmax.f32 %v5883, 0.0
      %v6028 = vmax.f32 %v5884, 0.0
      %v6029 = vmax.f32 %v5885, 0.0
      %v6030 = vmax.f32 %v5886, 0.0
      %v6031 = vmax.f32 %v5887, 0.0
      %v6032 = vmax.f32 %v5888, 0.0
      %v6033 = vmax.f32 %v5889, 0.0
      %v6034 = vmax.f32 %v5890, 0.0
      %v6035 = vmax.f32 %v5891, 0.0
      %v6036 = vmax.f32 %v5892, 0.0
      %v6037 = vmax.f32 %v5893, 0.0
      %v6038 = vmax.f32 %v5894, 0.0
      %v6039 = vmax.f32 %v5895, 0.0
      %v6040 = vmax.f32 %v5896, 0.0
      %v6041 = vmax.f32 %v5897, 0.0
      %v6042 = vmax.f32 %v5898, 0.0
      %v6043 = vmax.f32 %v5899, 0.0
      %v6044 = vmax.f32 %v5900, 0.0
      %v6045 = vmax.f32 %v5901, 0.0
      %v6046 = vmax.f32 %v5902, 0.0
      %v6047 = vmax.f32 %v5903, 0.0
      %v6048 = vmax.f32 %v5904, 0.0
      %v6049 = vmax.f32 %v5905, 0.0
      %v6050 = vmax.f32 %v5906, 0.0
      %v6051 = vmax.f32 %v5907, 0.0
      %v6052 = vmax.f32 %v5908, 0.0
      %v6053 = vmax.f32 %v5909, 0.0
      %v6054 = vmax.f32 %v5910, 0.0
      %v6055 = vmax.f32 %v5911, 0.0
      %v6056 = vmax.f32 %v5912, 0.0
      %v6057 = vmax.f32 %v5913, 0.0
      %v6058 = vmax.f32 %v5914, 0.0
      %v6059 = vmax.f32 %v5915, 0.0
      %v6060 = vmax.f32 %v5916, 0.0
      %v6061 = vmax.f32 %v5917, 0.0
      %v6062 = vmax.f32 %v5918, 0.0
      %v6063 = vmax.f32 %v5919, 0.0
      %v6064 = vmax.f32 %v5920, 0.0
      %v6065 = vmax.f32 %v5921, 0.0
      %v6066 = vmax.f32 %v5922, 0.0
      %v6067 = vmax.f32 %v5923, 0.0
      %v6068 = vmax.f32 %v5924, 0.0
      %v6069 = vmax.f32 %v5925, 0.0
      %v6070 = vmax.f32 %v5926, 0.0
      %v6071 = vmax.f32 %v5927, 0.0
      %v6072 = vmax.f32 %v5928, 0.0
      %v6073 = vmax.f32 %v5929, 0.0
      %v6074 = vmax.f32 %v5930, 0.0
      %v6075 = vmax.f32 %v5931, 0.0
      %v6076 = vmax.f32 %v5932, 0.0
      %v6077 = vmax.f32 %v5933, 0.0
      %v6078 = vmax.f32 %v5934, 0.0
      %v6079 = vmax.f32 %v5935, 0.0
      %v6080 = vmax.f32 %v5936, 0.0
      %v6081 = vmax.f32 %v5937, 0.0
      %v6082 = vmax.f32 %v5938, 0.0
      %v6083 = vmax.f32 %v5939, 0.0
      %v6084 = vmax.f32 %v5940, 0.0
      %v6085 = vmax.f32 %v5941, 0.0
      %v6086 = vmax.f32 %v5942, 0.0
      %v6087 = vmax.f32 %v5943, 0.0
      %v6088 = vmax.f32 %v5944, 0.0
      %v6089 = vmax.f32 %v5945, 0.0
      %v6090 = vmax.f32 %v5946, 0.0
      %v6091 = vmax.f32 %v5947, 0.0
      %v6092 = vmax.f32 %v5948, 0.0
      %v6093 = vmax.f32 %v5949, 0.0
      %v6094 = vmax.f32 %v5950, 0.0
      %v6095 = vmax.f32 %v5951, 0.0
      %v6096 = vmax.f32 %v5952, 0.0
      %v6097 = vmax.f32 %v5953, 0.0
      %v6098 = vmax.f32 %v5954, 0.0
      %v6099 = vmax.f32 %v5955, 0.0
      %v6100 = vmax.f32 %v5956, 0.0
      %v6101 = vmax.f32 %v5957, 0.0
      %v6102 = vmax.f32 %v5958, 0.0
      %v6103 = vmax.f32 %v5959, 0.0
      %v6104 = vmax.f32 %v5960, 0.0
      %v6105 = vmax.f32 %v5961, 0.0
      %v6106 = vmax.f32 %v5962, 0.0
      %v6107 = vmax.f32 %v5963, 0.0
      %v6108 = vmax.f32 %v5964, 0.0
      %v6109 = vmax.f32 %v5965, 0.0
      %v6110 = vmax.f32 %v5966, 0.0
      %v6111 = vmax.f32 %v5967, 0.0
      %v6112 = vmax.f32 %v5968, 0.0
      %v6113 = vmax.f32 %v5969, 0.0
      %v6114 = vmax.f32 %v5970, 0.0
      %v6115 = vmax.f32 %v5971, 0.0
      %v6116 = vmax.f32 %v5972, 0.0
      %v6117 = vmax.f32 %v5973, 0.0
      %v6118 = vmax.f32 %v5974, 0.0
      %v6119 = vmax.f32 %v5975, 0.0
      %v6120 = vmax.f32 %v5976, 0.0
      %v6121 = vmax.f32 %v5977, 0.0
      %v6122 = vmax.f32 %v5978, 0.0
      %v6123 = vmax.f32 %v5979, 0.0
      %v6124 = vmax.f32 %v5980, 0.0
      %v6125 = vmax.f32 %v5981, 0.0
      %v6126 = vmax.f32 %v5982, 0.0
      %v6127 = vmax.f32 %v5983, 0.0
      %v6128 = vmax.f32 %v5984, 0.0
      %v6129 = vmax.f32 %v5985, 0.0
      %v6130 = vmax.f32 %v5986, 0.0
      %v6131 = vmax.f32 %v5987, 0.0
      %v6132 = vmax.f32 %v5988, 0.0
      %v6133 = vmax.f32 %v5989, 0.0
      %v6134 = vmax.f32 %v5990, 0.0
      %v6135 = vmax.f32 %v5991, 0.0
      %v6136 = vpack.c.bf16 %v5993, %v5992
      %v6137 = vpack.c.bf16 %v5995, %v5994
      %v6138 = vpack.c.bf16 %v5997, %v5996
      %v6139 = vpack.c.bf16 %v5999, %v5998
      %v6140 = vpack.c.bf16 %v6001, %v6000
      %v6141 = vpack.c.bf16 %v6003, %v6002
      %v6142 = vpack.c.bf16 %v6005, %v6004
      %v6143 = vpack.c.bf16 %v6007, %v6006
      %v6144 = vpack.c.bf16 %v6009, %v6008
      %v6145 = vpack.c.bf16 %v6011, %v6010
      %v6146 = vpack.c.bf16 %v6013, %v6012
      %v6147 = vpack.c.bf16 %v6015, %v6014
      %v6148 = vpack.c.bf16 %v6017, %v6016
      %v6149 = vpack.c.bf16 %v6019, %v6018
      %v6150 = vpack.c.bf16 %v6021, %v6020
      %v6151 = vpack.c.bf16 %v6023, %v6022
      %v6152 = vpack.c.bf16 %v6025, %v6024
      %v6153 = vpack.c.bf16 %v6027, %v6026
      %v6154 = vpack.c.bf16 %v6029, %v6028
      %v6155 = vpack.c.bf16 %v6031, %v6030
      %v6156 = vpack.c.bf16 %v6033, %v6032
      %v6157 = vpack.c.bf16 %v6035, %v6034
      %v6158 = vpack.c.bf16 %v6037, %v6036
      %v6159 = vpack.c.bf16 %v6039, %v6038
      %v6160 = vpack.c.bf16 %v6041, %v6040
      %v6161 = vpack.c.bf16 %v6043, %v6042
      %v6162 = vpack.c.bf16 %v6045, %v6044
      %v6163 = vpack.c.bf16 %v6047, %v6046
      %v6164 = vpack.c.bf16 %v6049, %v6048
      %v6165 = vpack.c.bf16 %v6051, %v6050
      %v6166 = vpack.c.bf16 %v6053, %v6052
      %v6167 = vpack.c.bf16 %v6055, %v6054
      %v6168 = vpack.c.bf16 %v6057, %v6056
      %v6169 = vpack.c.bf16 %v6059, %v6058
      %v6170 = vpack.c.bf16 %v6061, %v6060
      %v6171 = vpack.c.bf16 %v6063, %v6062
      %v6172 = vpack.c.bf16 %v6065, %v6064
      %v6173 = vpack.c.bf16 %v6067, %v6066
      %v6174 = vpack.c.bf16 %v6069, %v6068
      %v6175 = vpack.c.bf16 %v6071, %v6070
      %v6176 = vpack.c.bf16 %v6073, %v6072
      %v6177 = vpack.c.bf16 %v6075, %v6074
      %v6178 = vpack.c.bf16 %v6077, %v6076
      %v6179 = vpack.c.bf16 %v6079, %v6078
      %v6180 = vpack.c.bf16 %v6081, %v6080
      %v6181 = vpack.c.bf16 %v6083, %v6082
      %v6182 = vpack.c.bf16 %v6085, %v6084
      %v6183 = vpack.c.bf16 %v6087, %v6086
      %v6184 = vpack.c.bf16 %v6089, %v6088
      %v6185 = vpack.c.bf16 %v6091, %v6090
      %v6186 = vpack.c.bf16 %v6093, %v6092
      %v6187 = vpack.c.bf16 %v6095, %v6094
      %v6188 = vpack.c.bf16 %v6097, %v6096
      %v6189 = vpack.c.bf16 %v6099, %v6098
      %v6190 = vpack.c.bf16 %v6101, %v6100
      %v6191 = vpack.c.bf16 %v6103, %v6102
      %v6192 = vpack.c.bf16 %v6105, %v6104
      %v6193 = vpack.c.bf16 %v6107, %v6106
      %v6194 = vpack.c.bf16 %v6109, %v6108
      %v6195 = vpack.c.bf16 %v6111, %v6110
      %v6196 = vpack.c.bf16 %v6113, %v6112
      %v6197 = vpack.c.bf16 %v6115, %v6114
      %v6198 = vpack.c.bf16 %v6117, %v6116
      %v6199 = vpack.c.bf16 %v6119, %v6118
      %v6200 = vpack.c.bf16 %v6121, %v6120
      %v6201 = vpack.c.bf16 %v6123, %v6122
      %v6202 = vpack.c.bf16 %v6125, %v6124
      %v6203 = vpack.c.bf16 %v6127, %v6126
      %v6204 = vpack.c.bf16 %v6129, %v6128
      %v6205 = vpack.c.bf16 %v6131, %v6130
      %v6206 = vpack.c.bf16 %v6133, %v6132
      %v6207 = vpack.c.bf16 %v6135, %v6134
      %v6280 = vunpack.c.l.b16 %v6136
      %v6281 = vunpack.c.h.b16 %v6136
      %v6282 = vunpack.c.l.b16 %v6137
      %v6283 = vunpack.c.h.b16 %v6137
      %v6284 = vunpack.c.l.b16 %v6138
      %v6285 = vunpack.c.h.b16 %v6138
      %v6286 = vunpack.c.l.b16 %v6139
      %v6287 = vunpack.c.h.b16 %v6139
      %v6288 = vunpack.c.l.b16 %v6140
      %v6289 = vunpack.c.h.b16 %v6140
      %v6290 = vunpack.c.l.b16 %v6141
      %v6291 = vunpack.c.h.b16 %v6141
      %v6292 = vunpack.c.l.b16 %v6142
      %v6293 = vunpack.c.h.b16 %v6142
      %v6294 = vunpack.c.l.b16 %v6143
      %v6295 = vunpack.c.h.b16 %v6143
      %v6296 = vunpack.c.l.b16 %v6144
      %v6297 = vunpack.c.h.b16 %v6144
      %v6298 = vunpack.c.l.b16 %v6145
      %v6299 = vunpack.c.h.b16 %v6145
      %v6300 = vunpack.c.l.b16 %v6146
      %v6301 = vunpack.c.h.b16 %v6146
      %v6302 = vunpack.c.l.b16 %v6147
      %v6303 = vunpack.c.h.b16 %v6147
      %v6304 = vunpack.c.l.b16 %v6148
      %v6305 = vunpack.c.h.b16 %v6148
      %v6306 = vunpack.c.l.b16 %v6149
      %v6307 = vunpack.c.h.b16 %v6149
      %v6308 = vunpack.c.l.b16 %v6150
      %v6309 = vunpack.c.h.b16 %v6150
      %v6310 = vunpack.c.l.b16 %v6151
      %v6311 = vunpack.c.h.b16 %v6151
      %v6312 = vunpack.c.l.b16 %v6152
      %v6313 = vunpack.c.h.b16 %v6152
      %v6314 = vunpack.c.l.b16 %v6153
      %v6315 = vunpack.c.h.b16 %v6153
      %v6316 = vunpack.c.l.b16 %v6154
      %v6317 = vunpack.c.h.b16 %v6154
      %v6318 = vunpack.c.l.b16 %v6155
      %v6319 = vunpack.c.h.b16 %v6155
      %v6320 = vunpack.c.l.b16 %v6156
      %v6321 = vunpack.c.h.b16 %v6156
      %v6322 = vunpack.c.l.b16 %v6157
      %v6323 = vunpack.c.h.b16 %v6157
      %v6324 = vunpack.c.l.b16 %v6158
      %v6325 = vunpack.c.h.b16 %v6158
      %v6326 = vunpack.c.l.b16 %v6159
      %v6327 = vunpack.c.h.b16 %v6159
      %v6328 = vunpack.c.l.b16 %v6160
      %v6329 = vunpack.c.h.b16 %v6160
      %v6330 = vunpack.c.l.b16 %v6161
      %v6331 = vunpack.c.h.b16 %v6161
      %v6332 = vunpack.c.l.b16 %v6162
      %v6333 = vunpack.c.h.b16 %v6162
      %v6334 = vunpack.c.l.b16 %v6163
      %v6335 = vunpack.c.h.b16 %v6163
      %v6336 = vunpack.c.l.b16 %v6164
      %v6337 = vunpack.c.h.b16 %v6164
      %v6338 = vunpack.c.l.b16 %v6165
      %v6339 = vunpack.c.h.b16 %v6165
      %v6340 = vunpack.c.l.b16 %v6166
      %v6341 = vunpack.c.h.b16 %v6166
      %v6342 = vunpack.c.l.b16 %v6167
      %v6343 = vunpack.c.h.b16 %v6167
      %v6344 = vunpack.c.l.b16 %v6168
      %v6345 = vunpack.c.h.b16 %v6168
      %v6346 = vunpack.c.l.b16 %v6169
      %v6347 = vunpack.c.h.b16 %v6169
      %v6348 = vunpack.c.l.b16 %v6170
      %v6349 = vunpack.c.h.b16 %v6170
      %v6350 = vunpack.c.l.b16 %v6171
      %v6351 = vunpack.c.h.b16 %v6171
      %v6352 = vunpack.c.l.b16 %v6172
      %v6353 = vunpack.c.h.b16 %v6172
      %v6354 = vunpack.c.l.b16 %v6173
      %v6355 = vunpack.c.h.b16 %v6173
      %v6356 = vunpack.c.l.b16 %v6174
      %v6357 = vunpack.c.h.b16 %v6174
      %v6358 = vunpack.c.l.b16 %v6175
      %v6359 = vunpack.c.h.b16 %v6175
      %v6360 = vunpack.c.l.b16 %v6176
      %v6361 = vunpack.c.h.b16 %v6176
      %v6362 = vunpack.c.l.b16 %v6177
      %v6363 = vunpack.c.h.b16 %v6177
      %v6364 = vunpack.c.l.b16 %v6178
      %v6365 = vunpack.c.h.b16 %v6178
      %v6366 = vunpack.c.l.b16 %v6179
      %v6367 = vunpack.c.h.b16 %v6179
      %v6368 = vunpack.c.l.b16 %v6180
      %v6369 = vunpack.c.h.b16 %v6180
      %v6370 = vunpack.c.l.b16 %v6181
      %v6371 = vunpack.c.h.b16 %v6181
      %v6372 = vunpack.c.l.b16 %v6182
      %v6373 = vunpack.c.h.b16 %v6182
      %v6374 = vunpack.c.l.b16 %v6183
      %v6375 = vunpack.c.h.b16 %v6183
      %v6376 = vunpack.c.l.b16 %v6184
      %v6377 = vunpack.c.h.b16 %v6184
      %v6378 = vunpack.c.l.b16 %v6185
      %v6379 = vunpack.c.h.b16 %v6185
      %v6380 = vunpack.c.l.b16 %v6186
      %v6381 = vunpack.c.h.b16 %v6186
      %v6382 = vunpack.c.l.b16 %v6187
      %v6383 = vunpack.c.h.b16 %v6187
      %v6384 = vunpack.c.l.b16 %v6188
      %v6385 = vunpack.c.h.b16 %v6188
      %v6386 = vunpack.c.l.b16 %v6189
      %v6387 = vunpack.c.h.b16 %v6189
      %v6388 = vunpack.c.l.b16 %v6190
      %v6389 = vunpack.c.h.b16 %v6190
      %v6390 = vunpack.c.l.b16 %v6191
      %v6391 = vunpack.c.h.b16 %v6191
      %v6392 = vunpack.c.l.b16 %v6192
      %v6393 = vunpack.c.h.b16 %v6192
      %v6394 = vunpack.c.l.b16 %v6193
      %v6395 = vunpack.c.h.b16 %v6193
      %v6396 = vunpack.c.l.b16 %v6194
      %v6397 = vunpack.c.h.b16 %v6194
      %v6398 = vunpack.c.l.b16 %v6195
      %v6399 = vunpack.c.h.b16 %v6195
      %v6400 = vunpack.c.l.b16 %v6196
      %v6401 = vunpack.c.h.b16 %v6196
      %v6402 = vunpack.c.l.b16 %v6197
      %v6403 = vunpack.c.h.b16 %v6197
      %v6404 = vunpack.c.l.b16 %v6198
      %v6405 = vunpack.c.h.b16 %v6198
      %v6406 = vunpack.c.l.b16 %v6199
      %v6407 = vunpack.c.h.b16 %v6199
      %v6408 = vunpack.c.l.b16 %v6200
      %v6409 = vunpack.c.h.b16 %v6200
      %v6410 = vunpack.c.l.b16 %v6201
      %v6411 = vunpack.c.h.b16 %v6201
      %v6412 = vunpack.c.l.b16 %v6202
      %v6413 = vunpack.c.h.b16 %v6202
      %v6414 = vunpack.c.l.b16 %v6203
      %v6415 = vunpack.c.h.b16 %v6203
      %v6416 = vunpack.c.l.b16 %v6204
      %v6417 = vunpack.c.h.b16 %v6204
      %v6418 = vunpack.c.l.b16 %v6205
      %v6419 = vunpack.c.h.b16 %v6205
      %v6420 = vunpack.c.l.b16 %v6206
      %v6421 = vunpack.c.h.b16 %v6206
      %v6422 = vunpack.c.l.b16 %v6207
      %v6423 = vunpack.c.h.b16 %v6207
      %v6424 = vpack.c.b16 %v6280, %v6280
      %v6425 = vpack.c.b16 %v6281, %v6281
      %v6426 = vpack.c.b16 %v6282, %v6282
      %v6427 = vpack.c.b16 %v6283, %v6283
      %v6428 = vpack.c.b16 %v6284, %v6284
      %v6429 = vpack.c.b16 %v6285, %v6285
      %v6430 = vpack.c.b16 %v6286, %v6286
      %v6431 = vpack.c.b16 %v6287, %v6287
      %v6432 = vpack.c.b16 %v6288, %v6288
      %v6433 = vpack.c.b16 %v6289, %v6289
      %v6434 = vpack.c.b16 %v6290, %v6290
      %v6435 = vpack.c.b16 %v6291, %v6291
      %v6436 = vpack.c.b16 %v6292, %v6292
      %v6437 = vpack.c.b16 %v6293, %v6293
      %v6438 = vpack.c.b16 %v6294, %v6294
      %v6439 = vpack.c.b16 %v6295, %v6295
      %v6440 = vpack.c.b16 %v6296, %v6296
      %v6441 = vpack.c.b16 %v6297, %v6297
      %v6442 = vpack.c.b16 %v6298, %v6298
      %v6443 = vpack.c.b16 %v6299, %v6299
      %v6444 = vpack.c.b16 %v6300, %v6300
      %v6445 = vpack.c.b16 %v6301, %v6301
      %v6446 = vpack.c.b16 %v6302, %v6302
      %v6447 = vpack.c.b16 %v6303, %v6303
      %v6448 = vpack.c.b16 %v6304, %v6304
      %v6449 = vpack.c.b16 %v6305, %v6305
      %v6450 = vpack.c.b16 %v6306, %v6306
      %v6451 = vpack.c.b16 %v6307, %v6307
      %v6452 = vpack.c.b16 %v6308, %v6308
      %v6453 = vpack.c.b16 %v6309, %v6309
      %v6454 = vpack.c.b16 %v6310, %v6310
      %v6455 = vpack.c.b16 %v6311, %v6311
      %v6456 = vpack.c.b16 %v6312, %v6312
      %v6457 = vpack.c.b16 %v6313, %v6313
      %v6458 = vpack.c.b16 %v6314, %v6314
      %v6459 = vpack.c.b16 %v6315, %v6315
      %v6460 = vpack.c.b16 %v6316, %v6316
      %v6461 = vpack.c.b16 %v6317, %v6317
      %v6462 = vpack.c.b16 %v6318, %v6318
      %v6463 = vpack.c.b16 %v6319, %v6319
      %v6464 = vpack.c.b16 %v6320, %v6320
      %v6465 = vpack.c.b16 %v6321, %v6321
      %v6466 = vpack.c.b16 %v6322, %v6322
      %v6467 = vpack.c.b16 %v6323, %v6323
      %v6468 = vpack.c.b16 %v6324, %v6324
      %v6469 = vpack.c.b16 %v6325, %v6325
      %v6470 = vpack.c.b16 %v6326, %v6326
      %v6471 = vpack.c.b16 %v6327, %v6327
      %v6472 = vpack.c.b16 %v6328, %v6328
      %v6473 = vpack.c.b16 %v6329, %v6329
      %v6474 = vpack.c.b16 %v6330, %v6330
      %v6475 = vpack.c.b16 %v6331, %v6331
      %v6476 = vpack.c.b16 %v6332, %v6332
      %v6477 = vpack.c.b16 %v6333, %v6333
      %v6478 = vpack.c.b16 %v6334, %v6334
      %v6479 = vpack.c.b16 %v6335, %v6335
      %v6480 = vpack.c.b16 %v6336, %v6336
      %v6481 = vpack.c.b16 %v6337, %v6337
      %v6482 = vpack.c.b16 %v6338, %v6338
      %v6483 = vpack.c.b16 %v6339, %v6339
      %v6484 = vpack.c.b16 %v6340, %v6340
      %v6485 = vpack.c.b16 %v6341, %v6341
      %v6486 = vpack.c.b16 %v6342, %v6342
      %v6487 = vpack.c.b16 %v6343, %v6343
      %v6488 = vpack.c.b16 %v6344, %v6344
      %v6489 = vpack.c.b16 %v6345, %v6345
      %v6490 = vpack.c.b16 %v6346, %v6346
      %v6491 = vpack.c.b16 %v6347, %v6347
      %v6492 = vpack.c.b16 %v6348, %v6348
      %v6493 = vpack.c.b16 %v6349, %v6349
      %v6494 = vpack.c.b16 %v6350, %v6350
      %v6495 = vpack.c.b16 %v6351, %v6351
      %v6496 = vpack.c.b16 %v6352, %v6352
      %v6497 = vpack.c.b16 %v6353, %v6353
      %v6498 = vpack.c.b16 %v6354, %v6354
      %v6499 = vpack.c.b16 %v6355, %v6355
      %v6500 = vpack.c.b16 %v6356, %v6356
      %v6501 = vpack.c.b16 %v6357, %v6357
      %v6502 = vpack.c.b16 %v6358, %v6358
      %v6503 = vpack.c.b16 %v6359, %v6359
      %v6504 = vpack.c.b16 %v6360, %v6360
      %v6505 = vpack.c.b16 %v6361, %v6361
      %v6506 = vpack.c.b16 %v6362, %v6362
      %v6507 = vpack.c.b16 %v6363, %v6363
      %v6508 = vpack.c.b16 %v6364, %v6364
      %v6509 = vpack.c.b16 %v6365, %v6365
      %v6510 = vpack.c.b16 %v6366, %v6366
      %v6511 = vpack.c.b16 %v6367, %v6367
      %v6512 = vpack.c.b16 %v6368, %v6368
      %v6513 = vpack.c.b16 %v6369, %v6369
      %v6514 = vpack.c.b16 %v6370, %v6370
      %v6515 = vpack.c.b16 %v6371, %v6371
      %v6516 = vpack.c.b16 %v6372, %v6372
      %v6517 = vpack.c.b16 %v6373, %v6373
      %v6518 = vpack.c.b16 %v6374, %v6374
      %v6519 = vpack.c.b16 %v6375, %v6375
      %v6520 = vpack.c.b16 %v6376, %v6376
      %v6521 = vpack.c.b16 %v6377, %v6377
      %v6522 = vpack.c.b16 %v6378, %v6378
      %v6523 = vpack.c.b16 %v6379, %v6379
      %v6524 = vpack.c.b16 %v6380, %v6380
      %v6525 = vpack.c.b16 %v6381, %v6381
      %v6526 = vpack.c.b16 %v6382, %v6382
      %v6527 = vpack.c.b16 %v6383, %v6383
      %v6528 = vpack.c.b16 %v6384, %v6384
      %v6529 = vpack.c.b16 %v6385, %v6385
      %v6530 = vpack.c.b16 %v6386, %v6386
      %v6531 = vpack.c.b16 %v6387, %v6387
      %v6532 = vpack.c.b16 %v6388, %v6388
      %v6533 = vpack.c.b16 %v6389, %v6389
      %v6534 = vpack.c.b16 %v6390, %v6390
      %v6535 = vpack.c.b16 %v6391, %v6391
      %v6536 = vpack.c.b16 %v6392, %v6392
      %v6537 = vpack.c.b16 %v6393, %v6393
      %v6538 = vpack.c.b16 %v6394, %v6394
      %v6539 = vpack.c.b16 %v6395, %v6395
      %v6540 = vpack.c.b16 %v6396, %v6396
      %v6541 = vpack.c.b16 %v6397, %v6397
      %v6542 = vpack.c.b16 %v6398, %v6398
      %v6543 = vpack.c.b16 %v6399, %v6399
      %v6544 = vpack.c.b16 %v6400, %v6400
      %v6545 = vpack.c.b16 %v6401, %v6401
      %v6546 = vpack.c.b16 %v6402, %v6402
      %v6547 = vpack.c.b16 %v6403, %v6403
      %v6548 = vpack.c.b16 %v6404, %v6404
      %v6549 = vpack.c.b16 %v6405, %v6405
      %v6550 = vpack.c.b16 %v6406, %v6406
      %v6551 = vpack.c.b16 %v6407, %v6407
      %v6552 = vpack.c.b16 %v6408, %v6408
      %v6553 = vpack.c.b16 %v6409, %v6409
      %v6554 = vpack.c.b16 %v6410, %v6410
      %v6555 = vpack.c.b16 %v6411, %v6411
      %v6556 = vpack.c.b16 %v6412, %v6412
      %v6557 = vpack.c.b16 %v6413, %v6413
      %v6558 = vpack.c.b16 %v6414, %v6414
      %v6559 = vpack.c.b16 %v6415, %v6415
      %v6560 = vpack.c.b16 %v6416, %v6416
      %v6561 = vpack.c.b16 %v6417, %v6417
      %v6562 = vpack.c.b16 %v6418, %v6418
      %v6563 = vpack.c.b16 %v6419, %v6419
      %v6564 = vpack.c.b16 %v6420, %v6420
      %v6565 = vpack.c.b16 %v6421, %v6421
      %v6566 = vpack.c.b16 %v6422, %v6422
      %v6567 = vpack.c.b16 %v6423, %v6423
      %vm6712 = vcmask 76800
      %6713 = vst.msk [vmem:[%s172] sm:$0xf] %vm6712, %v6424
      %6714 = vst.msk [vmem:[%s172 + $0x4] sm:$0xf] %vm6712, %v6425
      %6715 = vst.msk [vmem:[%s172 + $0x8] sm:$0xf] %vm6712, %v6426
      %6716 = vst.msk [vmem:[%s172 + $0xc] sm:$0xf] %vm6712, %v6427
      %6717 = vst.msk [vmem:[%s172 + $0x10] sm:$0xf] %vm6712, %v6428
      %6718 = vst.msk [vmem:[%s172 + $0x14] sm:$0xf] %vm6712, %v6429
      %6719 = vst.msk [vmem:[%s172 + $0x18] sm:$0xf] %vm6712, %v6430
      %6720 = vst.msk [vmem:[%s172 + $0x1c] sm:$0xf] %vm6712, %v6431
      %6721 = vst.msk [vmem:[%s172 + $0x20] sm:$0xf] %vm6712, %v6432
      %6722 = vst.msk [vmem:[%s172 + $0x24] sm:$0xf] %vm6712, %v6433
      %6723 = vst.msk [vmem:[%s172 + $0x28] sm:$0xf] %vm6712, %v6434
      %6724 = vst.msk [vmem:[%s172 + $0x2c] sm:$0xf] %vm6712, %v6435
      %6725 = vst.msk [vmem:[%s172 + $0x30] sm:$0xf] %vm6712, %v6436
      %6726 = vst.msk [vmem:[%s172 + $0x34] sm:$0xf] %vm6712, %v6437
      %6727 = vst.msk [vmem:[%s172 + $0x38] sm:$0xf] %vm6712, %v6438
      %6728 = vst.msk [vmem:[%s172 + $0x3c] sm:$0xf] %vm6712, %v6439
      %6729 = vst.msk [vmem:[%s172 + $0x40] sm:$0xf] %vm6712, %v6440
      %6730 = vst.msk [vmem:[%s172 + $0x44] sm:$0xf] %vm6712, %v6441
      %6731 = vst.msk [vmem:[%s172 + $0x48] sm:$0xf] %vm6712, %v6442
      %6732 = vst.msk [vmem:[%s172 + $0x4c] sm:$0xf] %vm6712, %v6443
      %6733 = vst.msk [vmem:[%s172 + $0x50] sm:$0xf] %vm6712, %v6444
      %6734 = vst.msk [vmem:[%s172 + $0x54] sm:$0xf] %vm6712, %v6445
      %6735 = vst.msk [vmem:[%s172 + $0x58] sm:$0xf] %vm6712, %v6446
      %6736 = vst.msk [vmem:[%s172 + $0x5c] sm:$0xf] %vm6712, %v6447
      %6737 = vst.msk [vmem:[%s172 + $0x60] sm:$0xf] %vm6712, %v6448
      %6738 = vst.msk [vmem:[%s172 + $0x64] sm:$0xf] %vm6712, %v6449
      %6739 = vst.msk [vmem:[%s172 + $0x68] sm:$0xf] %vm6712, %v6450
      %6740 = vst.msk [vmem:[%s172 + $0x6c] sm:$0xf] %vm6712, %v6451
      %6741 = vst.msk [vmem:[%s172 + $0x70] sm:$0xf] %vm6712, %v6452
      %6742 = vst.msk [vmem:[%s172 + $0x74] sm:$0xf] %vm6712, %v6453
      %6743 = vst.msk [vmem:[%s172 + $0x78] sm:$0xf] %vm6712, %v6454
      %6744 = vst.msk [vmem:[%s172 + $0x7c] sm:$0xf] %vm6712, %v6455
      %6745 = vst.msk [vmem:[%s172 + $0x80] sm:$0xf] %vm6712, %v6456
      %6746 = vst.msk [vmem:[%s172 + $0x84] sm:$0xf] %vm6712, %v6457
      %6747 = vst.msk [vmem:[%s172 + $0x88] sm:$0xf] %vm6712, %v6458
      %6748 = vst.msk [vmem:[%s172 + $0x8c] sm:$0xf] %vm6712, %v6459
      %6749 = vst.msk [vmem:[%s172 + $0x90] sm:$0xf] %vm6712, %v6460
      %6750 = vst.msk [vmem:[%s172 + $0x94] sm:$0xf] %vm6712, %v6461
      %6751 = vst.msk [vmem:[%s172 + $0x98] sm:$0xf] %vm6712, %v6462
      %6752 = vst.msk [vmem:[%s172 + $0x9c] sm:$0xf] %vm6712, %v6463
      %6753 = vst.msk [vmem:[%s172 + $0xa0] sm:$0xf] %vm6712, %v6464
      %6754 = vst.msk [vmem:[%s172 + $0xa4] sm:$0xf] %vm6712, %v6465
      %6755 = vst.msk [vmem:[%s172 + $0xa8] sm:$0xf] %vm6712, %v6466
      %6756 = vst.msk [vmem:[%s172 + $0xac] sm:$0xf] %vm6712, %v6467
      %6757 = vst.msk [vmem:[%s172 + $0xb0] sm:$0xf] %vm6712, %v6468
      %6758 = vst.msk [vmem:[%s172 + $0xb4] sm:$0xf] %vm6712, %v6469
      %6759 = vst.msk [vmem:[%s172 + $0xb8] sm:$0xf] %vm6712, %v6470
      %6760 = vst.msk [vmem:[%s172 + $0xbc] sm:$0xf] %vm6712, %v6471
      %6761 = vst.msk [vmem:[%s172 + $0xc0] sm:$0xf] %vm6712, %v6472
      %6762 = vst.msk [vmem:[%s172 + $0xc4] sm:$0xf] %vm6712, %v6473
      %6763 = vst.msk [vmem:[%s172 + $0xc8] sm:$0xf] %vm6712, %v6474
      %6764 = vst.msk [vmem:[%s172 + $0xcc] sm:$0xf] %vm6712, %v6475
      %6765 = vst.msk [vmem:[%s172 + $0xd0] sm:$0xf] %vm6712, %v6476
      %6766 = vst.msk [vmem:[%s172 + $0xd4] sm:$0xf] %vm6712, %v6477
      %6767 = vst.msk [vmem:[%s172 + $0xd8] sm:$0xf] %vm6712, %v6478
      %6768 = vst.msk [vmem:[%s172 + $0xdc] sm:$0xf] %vm6712, %v6479
      %6769 = vst.msk [vmem:[%s172 + $0xe0] sm:$0xf] %vm6712, %v6480
      %6770 = vst.msk [vmem:[%s172 + $0xe4] sm:$0xf] %vm6712, %v6481
      %6771 = vst.msk [vmem:[%s172 + $0xe8] sm:$0xf] %vm6712, %v6482
      %6772 = vst.msk [vmem:[%s172 + $0xec] sm:$0xf] %vm6712, %v6483
      %6773 = vst.msk [vmem:[%s172 + $0xf0] sm:$0xf] %vm6712, %v6484
      %6774 = vst.msk [vmem:[%s172 + $0xf4] sm:$0xf] %vm6712, %v6485
      %6775 = vst.msk [vmem:[%s172 + $0xf8] sm:$0xf] %vm6712, %v6486
      %6776 = vst.msk [vmem:[%s172 + $0xfc] sm:$0xf] %vm6712, %v6487
      %6777 = vst.msk [vmem:[%s172 + $0x100] sm:$0xf] %vm6712, %v6488
      %6778 = vst.msk [vmem:[%s172 + $0x104] sm:$0xf] %vm6712, %v6489
      %6779 = vst.msk [vmem:[%s172 + $0x108] sm:$0xf] %vm6712, %v6490
      %6780 = vst.msk [vmem:[%s172 + $0x10c] sm:$0xf] %vm6712, %v6491
      %6781 = vst.msk [vmem:[%s172 + $0x110] sm:$0xf] %vm6712, %v6492
      %6782 = vst.msk [vmem:[%s172 + $0x114] sm:$0xf] %vm6712, %v6493
      %6783 = vst.msk [vmem:[%s172 + $0x118] sm:$0xf] %vm6712, %v6494
      %6784 = vst.msk [vmem:[%s172 + $0x11c] sm:$0xf] %vm6712, %v6495
      %6785 = vst.msk [vmem:[%s172 + $0x120] sm:$0xf] %vm6712, %v6496
      %6786 = vst.msk [vmem:[%s172 + $0x124] sm:$0xf] %vm6712, %v6497
      %6787 = vst.msk [vmem:[%s172 + $0x128] sm:$0xf] %vm6712, %v6498
      %6788 = vst.msk [vmem:[%s172 + $0x12c] sm:$0xf] %vm6712, %v6499
      %6789 = vst.msk [vmem:[%s172 + $0x130] sm:$0xf] %vm6712, %v6500
      %6790 = vst.msk [vmem:[%s172 + $0x134] sm:$0xf] %vm6712, %v6501
      %6791 = vst.msk [vmem:[%s172 + $0x138] sm:$0xf] %vm6712, %v6502
      %6792 = vst.msk [vmem:[%s172 + $0x13c] sm:$0xf] %vm6712, %v6503
      %6793 = vst.msk [vmem:[%s172 + $0x140] sm:$0xf] %vm6712, %v6504
      %6794 = vst.msk [vmem:[%s172 + $0x144] sm:$0xf] %vm6712, %v6505
      %6795 = vst.msk [vmem:[%s172 + $0x148] sm:$0xf] %vm6712, %v6506
      %6796 = vst.msk [vmem:[%s172 + $0x14c] sm:$0xf] %vm6712, %v6507
      %6797 = vst.msk [vmem:[%s172 + $0x150] sm:$0xf] %vm6712, %v6508
      %6798 = vst.msk [vmem:[%s172 + $0x154] sm:$0xf] %vm6712, %v6509
      %6799 = vst.msk [vmem:[%s172 + $0x158] sm:$0xf] %vm6712, %v6510
      %6800 = vst.msk [vmem:[%s172 + $0x15c] sm:$0xf] %vm6712, %v6511
      %6801 = vst.msk [vmem:[%s172 + $0x160] sm:$0xf] %vm6712, %v6512
      %6802 = vst.msk [vmem:[%s172 + $0x164] sm:$0xf] %vm6712, %v6513
      %6803 = vst.msk [vmem:[%s172 + $0x168] sm:$0xf] %vm6712, %v6514
      %6804 = vst.msk [vmem:[%s172 + $0x16c] sm:$0xf] %vm6712, %v6515
      %6805 = vst.msk [vmem:[%s172 + $0x170] sm:$0xf] %vm6712, %v6516
      %6806 = vst.msk [vmem:[%s172 + $0x174] sm:$0xf] %vm6712, %v6517
      %6807 = vst.msk [vmem:[%s172 + $0x178] sm:$0xf] %vm6712, %v6518
      %6808 = vst.msk [vmem:[%s172 + $0x17c] sm:$0xf] %vm6712, %v6519
      %6809 = vst.msk [vmem:[%s172 + $0x180] sm:$0xf] %vm6712, %v6520
      %6810 = vst.msk [vmem:[%s172 + $0x184] sm:$0xf] %vm6712, %v6521
      %6811 = vst.msk [vmem:[%s172 + $0x188] sm:$0xf] %vm6712, %v6522
      %6812 = vst.msk [vmem:[%s172 + $0x18c] sm:$0xf] %vm6712, %v6523
      %6813 = vst.msk [vmem:[%s172 + $0x190] sm:$0xf] %vm6712, %v6524
      %6814 = vst.msk [vmem:[%s172 + $0x194] sm:$0xf] %vm6712, %v6525
      %6815 = vst.msk [vmem:[%s172 + $0x198] sm:$0xf] %vm6712, %v6526
      %6816 = vst.msk [vmem:[%s172 + $0x19c] sm:$0xf] %vm6712, %v6527
      %6817 = vst.msk [vmem:[%s172 + $0x1a0] sm:$0xf] %vm6712, %v6528
      %6818 = vst.msk [vmem:[%s172 + $0x1a4] sm:$0xf] %vm6712, %v6529
      %6819 = vst.msk [vmem:[%s172 + $0x1a8] sm:$0xf] %vm6712, %v6530
      %6820 = vst.msk [vmem:[%s172 + $0x1ac] sm:$0xf] %vm6712, %v6531
      %6821 = vst.msk [vmem:[%s172 + $0x1b0] sm:$0xf] %vm6712, %v6532
      %6822 = vst.msk [vmem:[%s172 + $0x1b4] sm:$0xf] %vm6712, %v6533
      %6823 = vst.msk [vmem:[%s172 + $0x1b8] sm:$0xf] %vm6712, %v6534
      %6824 = vst.msk [vmem:[%s172 + $0x1bc] sm:$0xf] %vm6712, %v6535
      %6825 = vst.msk [vmem:[%s172 + $0x1c0] sm:$0xf] %vm6712, %v6536
      %6826 = vst.msk [vmem:[%s172 + $0x1c4] sm:$0xf] %vm6712, %v6537
      %6827 = vst.msk [vmem:[%s172 + $0x1c8] sm:$0xf] %vm6712, %v6538
      %6828 = vst.msk [vmem:[%s172 + $0x1cc] sm:$0xf] %vm6712, %v6539
      %6829 = vst.msk [vmem:[%s172 + $0x1d0] sm:$0xf] %vm6712, %v6540
      %6830 = vst.msk [vmem:[%s172 + $0x1d4] sm:$0xf] %vm6712, %v6541
      %6831 = vst.msk [vmem:[%s172 + $0x1d8] sm:$0xf] %vm6712, %v6542
      %6832 = vst.msk [vmem:[%s172 + $0x1dc] sm:$0xf] %vm6712, %v6543
      %6833 = vst.msk [vmem:[%s172 + $0x1e0] sm:$0xf] %vm6712, %v6544
      %6834 = vst.msk [vmem:[%s172 + $0x1e4] sm:$0xf] %vm6712, %v6545
      %6835 = vst.msk [vmem:[%s172 + $0x1e8] sm:$0xf] %vm6712, %v6546
      %6836 = vst.msk [vmem:[%s172 + $0x1ec] sm:$0xf] %vm6712, %v6547
      %6837 = vst.msk [vmem:[%s172 + $0x1f0] sm:$0xf] %vm6712, %v6548
      %6838 = vst.msk [vmem:[%s172 + $0x1f4] sm:$0xf] %vm6712, %v6549
      %6839 = vst.msk [vmem:[%s172 + $0x1f8] sm:$0xf] %vm6712, %v6550
      %6840 = vst.msk [vmem:[%s172 + $0x1fc] sm:$0xf] %vm6712, %v6551
      %6841 = vst.msk [vmem:[%s172 + $0x200] sm:$0xf] %vm6712, %v6552
      %6842 = vst.msk [vmem:[%s172 + $0x204] sm:$0xf] %vm6712, %v6553
      %6843 = vst.msk [vmem:[%s172 + $0x208] sm:$0xf] %vm6712, %v6554
      %6844 = vst.msk [vmem:[%s172 + $0x20c] sm:$0xf] %vm6712, %v6555
      %6845 = vst.msk [vmem:[%s172 + $0x210] sm:$0xf] %vm6712, %v6556
      %6846 = vst.msk [vmem:[%s172 + $0x214] sm:$0xf] %vm6712, %v6557
      %6847 = vst.msk [vmem:[%s172 + $0x218] sm:$0xf] %vm6712, %v6558
      %6848 = vst.msk [vmem:[%s172 + $0x21c] sm:$0xf] %vm6712, %v6559
      %6849 = vst.msk [vmem:[%s172 + $0x220] sm:$0xf] %vm6712, %v6560
      %6850 = vst.msk [vmem:[%s172 + $0x224] sm:$0xf] %vm6712, %v6561
      %6851 = vst.msk [vmem:[%s172 + $0x228] sm:$0xf] %vm6712, %v6562
      %6852 = vst.msk [vmem:[%s172 + $0x22c] sm:$0xf] %vm6712, %v6563
      %6853 = vst.msk [vmem:[%s172 + $0x230] sm:$0xf] %vm6712, %v6564
      %6854 = vst.msk [vmem:[%s172 + $0x234] sm:$0xf] %vm6712, %v6565
      %6855 = vst.msk [vmem:[%s172 + $0x238] sm:$0xf] %vm6712, %v6566
      %6856 = vst.msk [vmem:[%s172 + $0x23c] sm:$0xf] %vm6712, %v6567
      %s6857 = smul.u32 144, %s14
      %p6858 = scmp.lt.s32.totalorder %s6857, 575
      %s6859 = scalar_select %p6858, %s6857, 575
      %s6860 = smul.addr %s6859, 4
      %s6861 = scalar_lea.vmem %s3, %s6860
      // Predicated region
      $region33: #{mnist_cnn_forward.2} parent=31 // pred_check
        %p6862 = pneg %p100
      $region34: #{mnist_cnn_forward.2} parent=31 // pred_check_branch
        %6864 = sbr.rel (%p6862) target = $region36
      $region35: #{mnist_cnn_forward.2} parent=31 // pred_region
        %s6865 = smul.u32 144, %s14
      $region36: #{mnist_cnn_forward.2} parent=31 // pred_fallthru
        _
    $region32: #{mnist_cnn_forward.2} parent=5 // pred_fallthru
      _
    %p6866 = scmp.le.s32.totalorder 2, %s9
    // Predicated region
    $region37: #{mnist_cnn_forward.2} parent=5 // pred_check
      %p6867 = pneg %p6866
    $region38: #{mnist_cnn_forward.2} parent=5 // pred_check_branch
      %6869 = sbr.rel (%p6867) target = $region40
    $region39: #{mnist_cnn_forward.2} parent=5 // pred_region
      %s6870 = ssub.s32 %s9, 2
      // Predicated region
      $region41: #{mnist_cnn_forward.2} parent=39 // pred_check
        %p6871 = pneg %p106
      $region42: #{mnist_cnn_forward.2} parent=39 // pred_check_branch
        %6873 = sbr.rel (%p6871) target = $region44
      $region43: #{mnist_cnn_forward.2} parent=39 // pred_region
        %s6874 = smul.u32 144, %s15
        %p6875 = scmp.lt.s32.totalorder %s6874, 575
        %s6876 = scalar_select %p6875, %s6874, 575
        %s6877 = smul.addr %s6876, 4
        %s6878 = scalar_lea.vmem %s3, %s6877
      $region44: #{mnist_cnn_forward.2} parent=39 // pred_fallthru
        _
    $region40: #{mnist_cnn_forward.2} parent=5 // pred_fallthru
      _
  $region6: #{mnist_cnn_forward.2} parent=0 // loop_footer
    %s13 = sadd.s32 1, %s9
  $region7: #{mnist_cnn_forward.2} parent=0 // loop_footer_branch
    %8 = sbr.rel target = $region3
  $region8: #{mnist_cnn_forward.2} parent=0 // loop_exit
    _

// kernel: mnist_cnn_forward.3
$region0: #{mnist_cnn_forward.3}
  #allocation0 [shape = 'u32[]', space=smem, size = 0x4, offset = 0x4, fixed_abs, tag = 'smem constant byte address 0x4 - core index']
  #allocation1 [shape = 'u32[144,128]{1,0:T(1,128)}', space=vmem, size = 0x12000, scoped, tag = 'internal scratch']
  %s0 = inlined_call_operand.vmem [shape: bf16[2048,256], index: 0, kind: input, shape index: {}]
  %s1 = inlined_call_operand.vmem [shape: bf16[256,32], index: 1, kind: input, shape index: {}]
  %s2 = inlined_call_operand.vmem [shape: f32[1,32], index: 2, kind: input, shape index: {}]
  %s3 = inlined_call_operand.vmem [shape: bf16[16,32,64], index: 3, kind: input, shape index: {}]
  %s4 = inlined_call_operand.vmem [shape: f32[1,64], index: 4, kind: input, shape index: {}]
  %s5 = inlined_call_operand.vmem [shape: bf16[64,128], index: 5, kind: input, shape index: {}]
  %s6 = inlined_call_operand.vmem [shape: f32[1,128], index: 6, kind: input, shape index: {}]
  %s7 = inlined_call_operand.vmem [shape: f32[32,128], index: 7, kind: output, shape index: {}]
  %s8 = sld [smem:[#allocation0]]
  $region61: #{mnist_cnn_forward.3} parent=0
    _
  %s10 = ssub.s32 1, %s8
  %s11 = scalar_select 0, %s10, %s8
  loop: start=0, step=1, limit=4
  $region2: #{mnist_cnn_forward.3} parent=0 // loop_pre_header
    _
  $region3: #{mnist_cnn_forward.3} parent=0 // loop_header
    %s13 = sphi 0, %s17
    %p14 = scmp.ge.s32.totalorder %s13, 4
    %s23 = sphi 0, %s25
    %s26 = sphi 0, %s23
    %s27 = sphi 0, %s26
    %s43 = sphi 0, %s27
    %s47 = sphi 0, %s47
    %s49 = sphi 0, %s47
    %s50 = sphi 0, %s49
    %s64 = sphi 0, %s50
    %s68 = sphi 0, %s68
    %s70 = sphi 0, %s68
    %s71 = sphi 0, %s70
    %s85 = sphi 0, %s71
    %s89 = sphi 0, %s89
    %s91 = sphi 0, %s89
    %s92 = sphi 0, %s91
    %s106 = sphi 0, %s92
    %s110 = sphi 0, %s110
    %s112 = sphi 0, %s110
    %s113 = sphi 0, %s112
    %s127 = sphi 0, %s113
    %s131 = sphi 0, %s131
    %s133 = sphi 0, %s131
    %s134 = sphi 0, %s133
    %s148 = sphi 0, %s134
    %s152 = sphi 0, %s152
    %s154 = sphi 0, %s152
    %s155 = sphi 0, %s154
    %s169 = sphi 0, %s155
    %s175 = sphi 0, %s177
    %s178 = sphi 0, %s175
    %s179 = sphi 0, %s178
    %s195 = sphi 0, %s179
  $region4: #{mnist_cnn_forward.3} parent=0 // loop_header_branch
    %16 = sbr.rel (%p14) target = $region8
  $region5: #{mnist_cnn_forward.3} parent=0 // loop_body
    %s18 = ssub.s32 %s13, 1
    %s19 = ssub.s32 %s13, 2
    %s20 = sadd.s32 %s13, 1
    %s21 = ssub.s32 %s13, %s20
    %p22 = scmp.eq.s32.totalorder %s21, 0
    %s24 = sadd.s32 %s23, 1
    %s25 = scalar_select %p22, %s23, %s24
    %p28 = pneg %p22
    %p29 = scmp.eq.s32.totalorder %s13, 1
    %p30 = por %p28, %p29
    %p31 = scmp.ne.s32.totalorder %s23, %s26
    %p32 = scmp.eq.s32.totalorder %s13, 0
    %p33 = por %p31, %p32
    %p34 = scmp.ne.s32.totalorder %s23, %s26
    %p35 = scmp.eq.s32.totalorder %s18, 1
    %p36 = por %p34, %p35
    %p37 = scmp.ne.s32.totalorder %s26, %s27
    %p38 = scmp.eq.s32.totalorder %s18, 0
    %p39 = por %p37, %p38
    %p40 = scmp.ne.s32.totalorder %s26, %s27
    %p41 = scmp.eq.s32.totalorder %s19, 1
    %p42 = por %p40, %p41
    %p44 = scmp.ne.s32.totalorder %s27, %s43
    %p45 = scmp.eq.s32.totalorder %s19, 0
    %p46 = por %p44, %p45
    %s48 = sadd.s32 %s47, 1
    %p51 = scmp.eq.s32.totalorder %s13, 1
    %p52 = scmp.ne.s32.totalorder %s47, %s49
    %p53 = scmp.eq.s32.totalorder %s13, 0
    %p54 = por %p52, %p53
    %p55 = scmp.ne.s32.totalorder %s47, %s49
    %p56 = scmp.eq.s32.totalorder %s18, 1
    %p57 = por %p55, %p56
    %p58 = scmp.ne.s32.totalorder %s49, %s50
    %p59 = scmp.eq.s32.totalorder %s18, 0
    %p60 = por %p58, %p59
    %p61 = scmp.ne.s32.totalorder %s49, %s50
    %p62 = scmp.eq.s32.totalorder %s19, 1
    %p63 = por %p61, %p62
    %p65 = scmp.ne.s32.totalorder %s50, %s64
    %p66 = scmp.eq.s32.totalorder %s19, 0
    %p67 = por %p65, %p66
    %s69 = sadd.s32 %s68, 1
    %p72 = scmp.eq.s32.totalorder %s13, 1
    %p73 = scmp.ne.s32.totalorder %s68, %s70
    %p74 = scmp.eq.s32.totalorder %s13, 0
    %p75 = por %p73, %p74
    %p76 = scmp.ne.s32.totalorder %s68, %s70
    %p77 = scmp.eq.s32.totalorder %s18, 1
    %p78 = por %p76, %p77
    %p79 = scmp.ne.s32.totalorder %s70, %s71
    %p80 = scmp.eq.s32.totalorder %s18, 0
    %p81 = por %p79, %p80
    %p82 = scmp.ne.s32.totalorder %s70, %s71
    %p83 = scmp.eq.s32.totalorder %s19, 1
    %p84 = por %p82, %p83
    %p86 = scmp.ne.s32.totalorder %s71, %s85
    %p87 = scmp.eq.s32.totalorder %s19, 0
    %p88 = por %p86, %p87
    %s90 = sadd.s32 %s89, 1
    %p93 = scmp.eq.s32.totalorder %s13, 1
    %p94 = scmp.ne.s32.totalorder %s89, %s91
    %p95 = scmp.eq.s32.totalorder %s13, 0
    %p96 = por %p94, %p95
    %p97 = scmp.ne.s32.totalorder %s89, %s91
    %p98 = scmp.eq.s32.totalorder %s18, 1
    %p99 = por %p97, %p98
    %p100 = scmp.ne.s32.totalorder %s91, %s92
    %p101 = scmp.eq.s32.totalorder %s18, 0
    %p102 = por %p100, %p101
    %p103 = scmp.ne.s32.totalorder %s91, %s92
    %p104 = scmp.eq.s32.totalorder %s19, 1
    %p105 = por %p103, %p104
    %p107 = scmp.ne.s32.totalorder %s92, %s106
    %p108 = scmp.eq.s32.totalorder %s19, 0
    %p109 = por %p107, %p108
    %s111 = sadd.s32 %s110, 1
    %p114 = scmp.eq.s32.totalorder %s13, 1
    %p115 = scmp.ne.s32.totalorder %s110, %s112
    %p116 = scmp.eq.s32.totalorder %s13, 0
    %p117 = por %p115, %p116
    %p118 = scmp.ne.s32.totalorder %s110, %s112
    %p119 = scmp.eq.s32.totalorder %s18, 1
    %p120 = por %p118, %p119
    %p121 = scmp.ne.s32.totalorder %s112, %s113
    %p122 = scmp.eq.s32.totalorder %s18, 0
    %p123 = por %p121, %p122
    %p124 = scmp.ne.s32.totalorder %s112, %s113
    %p125 = scmp.eq.s32.totalorder %s19, 1
    %p126 = por %p124, %p125
    %p128 = scmp.ne.s32.totalorder %s113, %s127
    %p129 = scmp.eq.s32.totalorder %s19, 0
    %p130 = por %p128, %p129
    %s132 = sadd.s32 %s131, 1
    %p135 = scmp.eq.s32.totalorder %s13, 1
    %p136 = scmp.ne.s32.totalorder %s131, %s133
    %p137 = scmp.eq.s32.totalorder %s13, 0
    %p138 = por %p136, %p137
    %p139 = scmp.ne.s32.totalorder %s131, %s133
    %p140 = scmp.eq.s32.totalorder %s18, 1
    %p141 = por %p139, %p140
    %p142 = scmp.ne.s32.totalorder %s133, %s134
    %p143 = scmp.eq.s32.totalorder %s18, 0
    %p144 = por %p142, %p143
    %p145 = scmp.ne.s32.totalorder %s133, %s134
    %p146 = scmp.eq.s32.totalorder %s19, 1
    %p147 = por %p145, %p146
    %p149 = scmp.ne.s32.totalorder %s134, %s148
    %p150 = scmp.eq.s32.totalorder %s19, 0
    %p151 = por %p149, %p150
    %s153 = sadd.s32 %s152, 1
    %p156 = scmp.eq.s32.totalorder %s13, 1
    %p157 = scmp.ne.s32.totalorder %s152, %s154
    %p158 = scmp.eq.s32.totalorder %s13, 0
    %p159 = por %p157, %p158
    %p160 = scmp.ne.s32.totalorder %s152, %s154
    %p161 = scmp.eq.s32.totalorder %s18, 1
    %p162 = por %p160, %p161
    %p163 = scmp.ne.s32.totalorder %s154, %s155
    %p164 = scmp.eq.s32.totalorder %s18, 0
    %p165 = por %p163, %p164
    %p166 = scmp.ne.s32.totalorder %s154, %s155
    %p167 = scmp.eq.s32.totalorder %s19, 1
    %p168 = por %p166, %p167
    %p170 = scmp.ne.s32.totalorder %s155, %s169
    %p171 = scmp.eq.s32.totalorder %s19, 0
    %p172 = por %p170, %p171
    %s173 = ssub.s32 %s13, %s20
    %p174 = scmp.eq.s32.totalorder %s173, 0
    %s176 = sadd.s32 %s175, 1
    %s177 = scalar_select %p174, %s175, %s176
    %p180 = pneg %p174
    %p181 = scmp.eq.s32.totalorder %s13, 1
    %p182 = por %p180, %p181
    %p183 = scmp.ne.s32.totalorder %s175, %s178
    %p184 = scmp.eq.s32.totalorder %s13, 0
    %p185 = por %p183, %p184
    %p186 = scmp.ne.s32.totalorder %s175, %s178
    %p187 = scmp.eq.s32.totalorder %s18, 1
    %p188 = por %p186, %p187
    %p189 = scmp.ne.s32.totalorder %s178, %s179
    %p190 = scmp.eq.s32.totalorder %s18, 0
    %p191 = por %p189, %p190
    %p192 = scmp.ne.s32.totalorder %s178, %s179
    %p193 = scmp.eq.s32.totalorder %s19, 1
    %p194 = por %p192, %p193
    %p196 = scmp.ne.s32.totalorder %s179, %s195
    %p197 = scmp.eq.s32.totalorder %s19, 0
    %p198 = por %p196, %p197
    %p199 = scmp.le.s32.totalorder 1, %s13
    %p200 = scmp.lt.s32.totalorder %s13, 3
    %p201 = pnand %p199, %p200
    %p202 = pneg %p201
    // Predicated region
    $region9: #{mnist_cnn_forward.3} parent=5 // pred_check
      _
    $region10: #{mnist_cnn_forward.3} parent=5 // pred_check_branch
      %204 = sbr.rel (%p201) target = $region12
    $region11: #{mnist_cnn_forward.3} parent=5 // pred_region
      %s205 = ssub.s32 %s13, 1
      // Predicated region
      $region13: #{mnist_cnn_forward.3} parent=11 // pred_check
        %p206 = pneg %p60
      $region14: #{mnist_cnn_forward.3} parent=11 // pred_check_branch
        %208 = sbr.rel (%p206) target = $region16
      $region15: #{mnist_cnn_forward.3} parent=11 // pred_region
        _
      $region16: #{mnist_cnn_forward.3} parent=11 // pred_fallthru
        _
      // Predicated region
      $region17: #{mnist_cnn_forward.3} parent=11 // pred_check
        %p209 = pneg %p81
      $region18: #{mnist_cnn_forward.3} parent=11 // pred_check_branch
        %211 = sbr.rel (%p209) target = $region20
      $region19: #{mnist_cnn_forward.3} parent=11 // pred_region
        _
      $region20: #{mnist_cnn_forward.3} parent=11 // pred_fallthru
        _
      // Predicated region
      $region21: #{mnist_cnn_forward.3} parent=11 // pred_check
        %p212 = pneg %p102
      $region22: #{mnist_cnn_forward.3} parent=11 // pred_check_branch
        %214 = sbr.rel (%p212) target = $region24
      $region23: #{mnist_cnn_forward.3} parent=11 // pred_region
        _
      $region24: #{mnist_cnn_forward.3} parent=11 // pred_fallthru
        _
      // Predicated region
      $region25: #{mnist_cnn_forward.3} parent=11 // pred_check
        %p215 = pneg %p123
      $region26: #{mnist_cnn_forward.3} parent=11 // pred_check_branch
        %217 = sbr.rel (%p215) target = $region28
      $region27: #{mnist_cnn_forward.3} parent=11 // pred_region
        _
      $region28: #{mnist_cnn_forward.3} parent=11 // pred_fallthru
        _
      // Predicated region
      $region29: #{mnist_cnn_forward.3} parent=11 // pred_check
        %p218 = pneg %p144
      $region30: #{mnist_cnn_forward.3} parent=11 // pred_check_branch
        %220 = sbr.rel (%p218) target = $region32
      $region31: #{mnist_cnn_forward.3} parent=11 // pred_region
        _
      $region32: #{mnist_cnn_forward.3} parent=11 // pred_fallthru
        _
      // Predicated region
      $region33: #{mnist_cnn_forward.3} parent=11 // pred_check
        %p221 = pneg %p165
      $region34: #{mnist_cnn_forward.3} parent=11 // pred_check_branch
        %223 = sbr.rel (%p221) target = $region36
      $region35: #{mnist_cnn_forward.3} parent=11 // pred_region
        _
      $region36: #{mnist_cnn_forward.3} parent=11 // pred_fallthru
        _
    $region12: #{mnist_cnn_forward.3} parent=5 // pred_fallthru
      _
    %p224 = scmp.lt.s32.totalorder %s13, 2
    // Predicated region
    $region37: #{mnist_cnn_forward.3} parent=5 // pred_check
      %p225 = pneg %p224
    $region38: #{mnist_cnn_forward.3} parent=5 // pred_check_branch
      %227 = sbr.rel (%p225) target = $region40
    $region39: #{mnist_cnn_forward.3} parent=5 // pred_region
      // Predicated region
      $region41: #{mnist_cnn_forward.3} parent=39 // pred_check
        %p228 = pneg %p33
      $region42: #{mnist_cnn_forward.3} parent=39 // pred_check_branch
        %230 = sbr.rel (%p228) target = $region44
      $region43: #{mnist_cnn_forward.3} parent=39 // pred_region
        %s231 = smul.u32 128, %s13
        %p232 = scmp.lt.s32.totalorder %s231, 255
        %s233 = scalar_select %p232, %s231, 255
        %s234 = smul.addr %s233, 2
        %s235 = smul.addr %s234, 4
        %s236 = scalar_lea.vmem %s0, %s235
        %s237 = smul.u32 128, %s13
      $region44: #{mnist_cnn_forward.3} parent=39 // pred_fallthru
        _
    $region40: #{mnist_cnn_forward.3} parent=5 // pred_fallthru
      _
    %p238 = scmp.le.s32.totalorder 1, %s13
    %p239 = scmp.lt.s32.totalorder %s13, 3
    %p240 = pnand %p238, %p239
    %p241 = pneg %p240
    // Predicated region
    $region45: #{mnist_cnn_forward.3} parent=5 // pred_check
      _
    $region46: #{mnist_cnn_forward.3} parent=5 // pred_check_branch
      %243 = sbr.rel (%p240) target = $region48
    $region47: #{mnist_cnn_forward.3} parent=5 // pred_region
      %s244 = ssub.s32 %s13, 1
      %s245 = smul.u32 128, %s18
      %p246 = scmp.lt.s32.totalorder %s245, 255
      %s247 = scalar_select %p246, %s245, 255
      %s248 = smul.addr %s247, 2
      %s249 = smul.addr %s248, 4
      %s250 = scalar_lea.vmem %s0, %s249
      %p251 = pneg %p39
      %p252 = pneg %p36
      %p253 = pneg %p60
      %p254 = pneg %p57
      %p255 = pneg %p81
      %p256 = pneg %p78
      %p257 = pneg %p102
      %p258 = pneg %p99
      %p259 = pneg %p123
      %p260 = pneg %p120
      %p261 = pneg %p144
      %p262 = pneg %p141
      %p263 = pneg %p165
      %p264 = pneg %p162
      %p265 = pneg %p191
      %p266 = pneg %p188
      %s267 = smul.u32 2, %s18
      %p268 = scmp.lt.s32.totalorder %s267, 3
      %s269 = scalar_select %p268, %s267, 3
      %s270 = smul.addr %s269, 8
      %s271 = scalar_lea.vmem %s7, %s270
      %s272 = smul.u32 128, %s18
      %p273 = scmp.lt.s32.totalorder %s272, 255
      %s274 = scalar_select %p273, %s272, 255
      %s275 = smul.addr %s274, 2
      %s276 = smul.addr %s275, 4
      %s277 = scalar_lea.vmem %s0, %s276
      %s278 = smul.u32 128, %s18
      %s279 = smul.u32 2, %s18
      %p280 = scmp.lt.s32.totalorder %s279, 3
      %s281 = scalar_select %p280, %s279, 3
      %s282 = smul.addr %s281, 8
      %s283 = scalar_lea.vmem %s7, %s282
      %s284 = smul.u32 2, %s18
      %v286 = vld [vmem:[%s277] sm:$0xff]
      %v287 = vld [vmem:[%s277 + $0x8] sm:$0xff]
      %v288 = vld [vmem:[%s277 + $0x10] sm:$0xff]
      %v289 = vld [vmem:[%s277 + $0x18] sm:$0xff]
      %v290 = vld [vmem:[%s277 + $0x20] sm:$0xff]
      %v291 = vld [vmem:[%s277 + $0x28] sm:$0xff]
      %v292 = vld [vmem:[%s277 + $0x30] sm:$0xff]
      %v293 = vld [vmem:[%s277 + $0x38] sm:$0xff]
      %v294 = vld [vmem:[%s277 + $0x40] sm:$0xff]
      %v295 = vld [vmem:[%s277 + $0x48] sm:$0xff]
      %v296 = vld [vmem:[%s277 + $0x50] sm:$0xff]
      %v297 = vld [vmem:[%s277 + $0x58] sm:$0xff]
      %v298 = vld [vmem:[%s277 + $0x60] sm:$0xff]
      %v299 = vld [vmem:[%s277 + $0x68] sm:$0xff]
      %v300 = vld [vmem:[%s277 + $0x70] sm:$0xff]
      %v301 = vld [vmem:[%s277 + $0x78] sm:$0xff]
      %v302 = vld [vmem:[%s277 + $0x80] sm:$0xff]
      %v303 = vld [vmem:[%s277 + $0x88] sm:$0xff]
      %v304 = vld [vmem:[%s277 + $0x90] sm:$0xff]
      %v305 = vld [vmem:[%s277 + $0x98] sm:$0xff]
      %v306 = vld [vmem:[%s277 + $0xa0] sm:$0xff]
      %v307 = vld [vmem:[%s277 + $0xa8] sm:$0xff]
      %v308 = vld [vmem:[%s277 + $0xb0] sm:$0xff]
      %v309 = vld [vmem:[%s277 + $0xb8] sm:$0xff]
      %v310 = vld [vmem:[%s277 + $0xc0] sm:$0xff]
      %v311 = vld [vmem:[%s277 + $0xc8] sm:$0xff]
      %v312 = vld [vmem:[%s277 + $0xd0] sm:$0xff]
      %v313 = vld [vmem:[%s277 + $0xd8] sm:$0xff]
      %v314 = vld [vmem:[%s277 + $0xe0] sm:$0xff]
      %v315 = vld [vmem:[%s277 + $0xe8] sm:$0xff]
      %v316 = vld [vmem:[%s277 + $0xf0] sm:$0xff]
      %v317 = vld [vmem:[%s277 + $0xf8] sm:$0xff]
      %v318 = vld [vmem:[%s277 + $0x100] sm:$0xff]
      %v319 = vld [vmem:[%s277 + $0x108] sm:$0xff]
      %v320 = vld [vmem:[%s277 + $0x110] sm:$0xff]
      %v321 = vld [vmem:[%s277 + $0x118] sm:$0xff]
      %v322 = vld [vmem:[%s277 + $0x120] sm:$0xff]
      %v323 = vld [vmem:[%s277 + $0x128] sm:$0xff]
      %v324 = vld [vmem:[%s277 + $0x130] sm:$0xff]
      %v325 = vld [vmem:[%s277 + $0x138] sm:$0xff]
      %v326 = vld [vmem:[%s277 + $0x140] sm:$0xff]
      %v327 = vld [vmem:[%s277 + $0x148] sm:$0xff]
      %v328 = vld [vmem:[%s277 + $0x150] sm:$0xff]
      %v329 = vld [vmem:[%s277 + $0x158] sm:$0xff]
      %v330 = vld [vmem:[%s277 + $0x160] sm:$0xff]
      %v331 = vld [vmem:[%s277 + $0x168] sm:$0xff]
      %v332 = vld [vmem:[%s277 + $0x170] sm:$0xff]
      %v333 = vld [vmem:[%s277 + $0x178] sm:$0xff]
      %v334 = vld [vmem:[%s277 + $0x180] sm:$0xff]
      %v335 = vld [vmem:[%s277 + $0x188] sm:$0xff]
      %v336 = vld [vmem:[%s277 + $0x190] sm:$0xff]
      %v337 = vld [vmem:[%s277 + $0x198] sm:$0xff]
      %v338 = vld [vmem:[%s277 + $0x1a0] sm:$0xff]
      %v339 = vld [vmem:[%s277 + $0x1a8] sm:$0xff]
      %v340 = vld [vmem:[%s277 + $0x1b0] sm:$0xff]
      %v341 = vld [vmem:[%s277 + $0x1b8] sm:$0xff]
      %v342 = vld [vmem:[%s277 + $0x1c0] sm:$0xff]
      %v343 = vld [vmem:[%s277 + $0x1c8] sm:$0xff]
      %v344 = vld [vmem:[%s277 + $0x1d0] sm:$0xff]
      %v345 = vld [vmem:[%s277 + $0x1d8] sm:$0xff]
      %v346 = vld [vmem:[%s277 + $0x1e0] sm:$0xff]
      %v347 = vld [vmem:[%s277 + $0x1e8] sm:$0xff]
      %v348 = vld [vmem:[%s277 + $0x1f0] sm:$0xff]
      %v349 = vld [vmem:[%s277 + $0x1f8] sm:$0xff]
      %v350 = vld [vmem:[%s277 + $0x200] sm:$0xff]
      %v351 = vld [vmem:[%s277 + $0x208] sm:$0xff]
      %v352 = vld [vmem:[%s277 + $0x210] sm:$0xff]
      %v353 = vld [vmem:[%s277 + $0x218] sm:$0xff]
      %v354 = vld [vmem:[%s277 + $0x220] sm:$0xff]
      %v355 = vld [vmem:[%s277 + $0x228] sm:$0xff]
      %v356 = vld [vmem:[%s277 + $0x230] sm:$0xff]
      %v357 = vld [vmem:[%s277 + $0x238] sm:$0xff]
      %v358 = vld [vmem:[%s277 + $0x240] sm:$0xff]
      %v359 = vld [vmem:[%s277 + $0x248] sm:$0xff]
      %v360 = vld [vmem:[%s277 + $0x250] sm:$0xff]
      %v361 = vld [vmem:[%s277 + $0x258] sm:$0xff]
      %v362 = vld [vmem:[%s277 + $0x260] sm:$0xff]
      %v363 = vld [vmem:[%s277 + $0x268] sm:$0xff]
      %v364 = vld [vmem:[%s277 + $0x270] sm:$0xff]
      %v365 = vld [vmem:[%s277 + $0x278] sm:$0xff]
      %v366 = vld [vmem:[%s277 + $0x280] sm:$0xff]
      %v367 = vld [vmem:[%s277 + $0x288] sm:$0xff]
      %v368 = vld [vmem:[%s277 + $0x290] sm:$0xff]
      %v369 = vld [vmem:[%s277 + $0x298] sm:$0xff]
      %v370 = vld [vmem:[%s277 + $0x2a0] sm:$0xff]
      %v371 = vld [vmem:[%s277 + $0x2a8] sm:$0xff]
      %v372 = vld [vmem:[%s277 + $0x2b0] sm:$0xff]
      %v373 = vld [vmem:[%s277 + $0x2b8] sm:$0xff]
      %v374 = vld [vmem:[%s277 + $0x2c0] sm:$0xff]
      %v375 = vld [vmem:[%s277 + $0x2c8] sm:$0xff]
      %v376 = vld [vmem:[%s277 + $0x2d0] sm:$0xff]
      %v377 = vld [vmem:[%s277 + $0x2d8] sm:$0xff]
      %v378 = vld [vmem:[%s277 + $0x2e0] sm:$0xff]
      %v379 = vld [vmem:[%s277 + $0x2e8] sm:$0xff]
      %v380 = vld [vmem:[%s277 + $0x2f0] sm:$0xff]
      %v381 = vld [vmem:[%s277 + $0x2f8] sm:$0xff]
      %v382 = vld [vmem:[%s277 + $0x300] sm:$0xff]
      %v383 = vld [vmem:[%s277 + $0x308] sm:$0xff]
      %v384 = vld [vmem:[%s277 + $0x310] sm:$0xff]
      %v385 = vld [vmem:[%s277 + $0x318] sm:$0xff]
      %v386 = vld [vmem:[%s277 + $0x320] sm:$0xff]
      %v387 = vld [vmem:[%s277 + $0x328] sm:$0xff]
      %v388 = vld [vmem:[%s277 + $0x330] sm:$0xff]
      %v389 = vld [vmem:[%s277 + $0x338] sm:$0xff]
      %v390 = vld [vmem:[%s277 + $0x340] sm:$0xff]
      %v391 = vld [vmem:[%s277 + $0x348] sm:$0xff]
      %v392 = vld [vmem:[%s277 + $0x350] sm:$0xff]
      %v393 = vld [vmem:[%s277 + $0x358] sm:$0xff]
      %v394 = vld [vmem:[%s277 + $0x360] sm:$0xff]
      %v395 = vld [vmem:[%s277 + $0x368] sm:$0xff]
      %v396 = vld [vmem:[%s277 + $0x370] sm:$0xff]
      %v397 = vld [vmem:[%s277 + $0x378] sm:$0xff]
      %v398 = vld [vmem:[%s277 + $0x380] sm:$0xff]
      %v399 = vld [vmem:[%s277 + $0x388] sm:$0xff]
      %v400 = vld [vmem:[%s277 + $0x390] sm:$0xff]
      %v401 = vld [vmem:[%s277 + $0x398] sm:$0xff]
      %v402 = vld [vmem:[%s277 + $0x3a0] sm:$0xff]
      %v403 = vld [vmem:[%s277 + $0x3a8] sm:$0xff]
      %v404 = vld [vmem:[%s277 + $0x3b0] sm:$0xff]
      %v405 = vld [vmem:[%s277 + $0x3b8] sm:$0xff]
      %v406 = vld [vmem:[%s277 + $0x3c0] sm:$0xff]
      %v407 = vld [vmem:[%s277 + $0x3c8] sm:$0xff]
      %v408 = vld [vmem:[%s277 + $0x3d0] sm:$0xff]
      %v409 = vld [vmem:[%s277 + $0x3d8] sm:$0xff]
      %v410 = vld [vmem:[%s277 + $0x3e0] sm:$0xff]
      %v411 = vld [vmem:[%s277 + $0x3e8] sm:$0xff]
      %v412 = vld [vmem:[%s277 + $0x3f0] sm:$0xff]
      %v413 = vld [vmem:[%s277 + $0x3f8] sm:$0xff]
      %v414 = vld [vmem:[%s1] sm:$0xf]
      %v415 = vld [vmem:[%s1 + $0x4] sm:$0xf]
      %v416 = vld [vmem:[%s1 + $0x8] sm:$0xf]
      %v417 = vld [vmem:[%s1 + $0xc] sm:$0xf]
      %v418 = vld [vmem:[%s1 + $0x10] sm:$0xf]
      %v419 = vld [vmem:[%s1 + $0x14] sm:$0xf]
      %v420 = vld [vmem:[%s1 + $0x18] sm:$0xf]
      %v421 = vld [vmem:[%s1 + $0x1c] sm:$0xf]
      %v422 = vld [vmem:[%s1 + $0x20] sm:$0xf]
      %v423 = vld [vmem:[%s1 + $0x24] sm:$0xf]
      %v424 = vld [vmem:[%s1 + $0x28] sm:$0xf]
      %v425 = vld [vmem:[%s1 + $0x2c] sm:$0xf]
      %v426 = vld [vmem:[%s1 + $0x30] sm:$0xf]
      %v427 = vld [vmem:[%s1 + $0x34] sm:$0xf]
      %v428 = vld [vmem:[%s1 + $0x38] sm:$0xf]
      %v429 = vld [vmem:[%s1 + $0x3c] sm:$0xf]
      %v430 = vld [vmem:[%s1 + $0x40] sm:$0xf]
      %v431 = vld [vmem:[%s1 + $0x44] sm:$0xf]
      %v432 = vld [vmem:[%s1 + $0x48] sm:$0xf]
      %v433 = vld [vmem:[%s1 + $0x4c] sm:$0xf]
      %v434 = vld [vmem:[%s1 + $0x50] sm:$0xf]
      %v435 = vld [vmem:[%s1 + $0x54] sm:$0xf]
      %v436 = vld [vmem:[%s1 + $0x58] sm:$0xf]
      %v437 = vld [vmem:[%s1 + $0x5c] sm:$0xf]
      %v438 = vld [vmem:[%s1 + $0x60] sm:$0xf]
      %v439 = vld [vmem:[%s1 + $0x64] sm:$0xf]
      %v440 = vld [vmem:[%s1 + $0x68] sm:$0xf]
      %v441 = vld [vmem:[%s1 + $0x6c] sm:$0xf]
      %v442 = vld [vmem:[%s1 + $0x70] sm:$0xf]
      %v443 = vld [vmem:[%s1 + $0x74] sm:$0xf]
      %v444 = vld [vmem:[%s1 + $0x78] sm:$0xf]
      %v445 = vld [vmem:[%s1 + $0x7c] sm:$0xf]
      %v574 = vunpack.c.l.b16 %v286
      %v575 = vunpack.c.h.b16 %v286
      %v576 = vunpack.c.l.b16 %v287
      %v577 = vunpack.c.h.b16 %v287
      %v578 = vunpack.c.l.b16 %v288
      %v579 = vunpack.c.h.b16 %v288
      %v580 = vunpack.c.l.b16 %v289
      %v581 = vunpack.c.h.b16 %v289
      %v582 = vunpack.c.l.b16 %v290
      %v583 = vunpack.c.h.b16 %v290
      %v584 = vunpack.c.l.b16 %v291
      %v585 = vunpack.c.h.b16 %v291
      %v586 = vunpack.c.l.b16 %v292
      %v587 = vunpack.c.h.b16 %v292
      %v588 = vunpack.c.l.b16 %v293
      %v589 = vunpack.c.h.b16 %v293
      %v590 = vunpack.c.l.b16 %v294
      %v591 = vunpack.c.h.b16 %v294
      %v592 = vunpack.c.l.b16 %v295
      %v593 = vunpack.c.h.b16 %v295
      %v594 = vunpack.c.l.b16 %v296
      %v595 = vunpack.c.h.b16 %v296
      %v596 = vunpack.c.l.b16 %v297
      %v597 = vunpack.c.h.b16 %v297
      %v598 = vunpack.c.l.b16 %v298
      %v599 = vunpack.c.h.b16 %v298
      %v600 = vunpack.c.l.b16 %v299
      %v601 = vunpack.c.h.b16 %v299
      %v602 = vunpack.c.l.b16 %v300
      %v603 = vunpack.c.h.b16 %v300
      %v604 = vunpack.c.l.b16 %v301
      %v605 = vunpack.c.h.b16 %v301
      %v606 = vunpack.c.l.b16 %v302
      %v607 = vunpack.c.h.b16 %v302
      %v608 = vunpack.c.l.b16 %v303
      %v609 = vunpack.c.h.b16 %v303
      %v610 = vunpack.c.l.b16 %v304
      %v611 = vunpack.c.h.b16 %v304
      %v612 = vunpack.c.l.b16 %v305
      %v613 = vunpack.c.h.b16 %v305
      %v614 = vunpack.c.l.b16 %v306
      %v615 = vunpack.c.h.b16 %v306
      %v616 = vunpack.c.l.b16 %v307
      %v617 = vunpack.c.h.b16 %v307
      %v618 = vunpack.c.l.b16 %v308
      %v619 = vunpack.c.h.b16 %v308
      %v620 = vunpack.c.l.b16 %v309
      %v621 = vunpack.c.h.b16 %v309
      %v622 = vunpack.c.l.b16 %v310
      %v623 = vunpack.c.h.b16 %v310
      %v624 = vunpack.c.l.b16 %v311
      %v625 = vunpack.c.h.b16 %v311
      %v626 = vunpack.c.l.b16 %v312
      %v627 = vunpack.c.h.b16 %v312
      %v628 = vunpack.c.l.b16 %v313
      %v629 = vunpack.c.h.b16 %v313
      %v630 = vunpack.c.l.b16 %v314
      %v631 = vunpack.c.h.b16 %v314
      %v632 = vunpack.c.l.b16 %v315
      %v633 = vunpack.c.h.b16 %v315
      %v634 = vunpack.c.l.b16 %v316
      %v635 = vunpack.c.h.b16 %v316
      %v636 = vunpack.c.l.b16 %v317
      %v637 = vunpack.c.h.b16 %v317
      %v638 = vunpack.c.l.b16 %v318
      %v639 = vunpack.c.h.b16 %v318
      %v640 = vunpack.c.l.b16 %v319
      %v641 = vunpack.c.h.b16 %v319
      %v642 = vunpack.c.l.b16 %v320
      %v643 = vunpack.c.h.b16 %v320
      %v644 = vunpack.c.l.b16 %v321
      %v645 = vunpack.c.h.b16 %v321
      %v646 = vunpack.c.l.b16 %v322
      %v647 = vunpack.c.h.b16 %v322
      %v648 = vunpack.c.l.b16 %v323
      %v649 = vunpack.c.h.b16 %v323
      %v650 = vunpack.c.l.b16 %v324
      %v651 = vunpack.c.h.b16 %v324
      %v652 = vunpack.c.l.b16 %v325
      %v653 = vunpack.c.h.b16 %v325
      %v654 = vunpack.c.l.b16 %v326
      %v655 = vunpack.c.h.b16 %v326
      %v656 = vunpack.c.l.b16 %v327
      %v657 = vunpack.c.h.b16 %v327
      %v658 = vunpack.c.l.b16 %v328
      %v659 = vunpack.c.h.b16 %v328
      %v660 = vunpack.c.l.b16 %v329
      %v661 = vunpack.c.h.b16 %v329
      %v662 = vunpack.c.l.b16 %v330
      %v663 = vunpack.c.h.b16 %v330
      %v664 = vunpack.c.l.b16 %v331
      %v665 = vunpack.c.h.b16 %v331
      %v666 = vunpack.c.l.b16 %v332
      %v667 = vunpack.c.h.b16 %v332
      %v668 = vunpack.c.l.b16 %v333
      %v669 = vunpack.c.h.b16 %v333
      %v670 = vunpack.c.l.b16 %v334
      %v671 = vunpack.c.h.b16 %v334
      %v672 = vunpack.c.l.b16 %v335
      %v673 = vunpack.c.h.b16 %v335
      %v674 = vunpack.c.l.b16 %v336
      %v675 = vunpack.c.h.b16 %v336
      %v676 = vunpack.c.l.b16 %v337
      %v677 = vunpack.c.h.b16 %v337
      %v678 = vunpack.c.l.b16 %v338
      %v679 = vunpack.c.h.b16 %v338
      %v680 = vunpack.c.l.b16 %v339
      %v681 = vunpack.c.h.b16 %v339
      %v682 = vunpack.c.l.b16 %v340
      %v683 = vunpack.c.h.b16 %v340
      %v684 = vunpack.c.l.b16 %v341
      %v685 = vunpack.c.h.b16 %v341
      %v686 = vunpack.c.l.b16 %v342
      %v687 = vunpack.c.h.b16 %v342
      %v688 = vunpack.c.l.b16 %v343
      %v689 = vunpack.c.h.b16 %v343
      %v690 = vunpack.c.l.b16 %v344
      %v691 = vunpack.c.h.b16 %v344
      %v692 = vunpack.c.l.b16 %v345
      %v693 = vunpack.c.h.b16 %v345
      %v694 = vunpack.c.l.b16 %v346
      %v695 = vunpack.c.h.b16 %v346
      %v696 = vunpack.c.l.b16 %v347
      %v697 = vunpack.c.h.b16 %v347
      %v698 = vunpack.c.l.b16 %v348
      %v699 = vunpack.c.h.b16 %v348
      %v700 = vunpack.c.l.b16 %v349
      %v701 = vunpack.c.h.b16 %v349
      %v702 = vunpack.c.l.b16 %v350
      %v703 = vunpack.c.h.b16 %v350
      %v704 = vunpack.c.l.b16 %v351
      %v705 = vunpack.c.h.b16 %v351
      %v706 = vunpack.c.l.b16 %v352
      %v707 = vunpack.c.h.b16 %v352
      %v708 = vunpack.c.l.b16 %v353
      %v709 = vunpack.c.h.b16 %v353
      %v710 = vunpack.c.l.b16 %v354
      %v711 = vunpack.c.h.b16 %v354
      %v712 = vunpack.c.l.b16 %v355
      %v713 = vunpack.c.h.b16 %v355
      %v714 = vunpack.c.l.b16 %v356
      %v715 = vunpack.c.h.b16 %v356
      %v716 = vunpack.c.l.b16 %v357
      %v717 = vunpack.c.h.b16 %v357
      %v718 = vunpack.c.l.b16 %v358
      %v719 = vunpack.c.h.b16 %v358
      %v720 = vunpack.c.l.b16 %v359
      %v721 = vunpack.c.h.b16 %v359
      %v722 = vunpack.c.l.b16 %v360
      %v723 = vunpack.c.h.b16 %v360
      %v724 = vunpack.c.l.b16 %v361
      %v725 = vunpack.c.h.b16 %v361
      %v726 = vunpack.c.l.b16 %v362
      %v727 = vunpack.c.h.b16 %v362
      %v728 = vunpack.c.l.b16 %v363
      %v729 = vunpack.c.h.b16 %v363
      %v730 = vunpack.c.l.b16 %v364
      %v731 = vunpack.c.h.b16 %v364
      %v732 = vunpack.c.l.b16 %v365
      %v733 = vunpack.c.h.b16 %v365
      %v734 = vunpack.c.l.b16 %v366
      %v735 = vunpack.c.h.b16 %v366
      %v736 = vunpack.c.l.b16 %v367
      %v737 = vunpack.c.h.b16 %v367
      %v738 = vunpack.c.l.b16 %v368
      %v739 = vunpack.c.h.b16 %v368
      %v740 = vunpack.c.l.b16 %v369
      %v741 = vunpack.c.h.b16 %v369
      %v742 = vunpack.c.l.b16 %v370
      %v743 = vunpack.c.h.b16 %v370
      %v744 = vunpack.c.l.b16 %v371
      %v745 = vunpack.c.h.b16 %v371
      %v746 = vunpack.c.l.b16 %v372
      %v747 = vunpack.c.h.b16 %v372
      %v748 = vunpack.c.l.b16 %v373
      %v749 = vunpack.c.h.b16 %v373
      %v750 = vunpack.c.l.b16 %v374
      %v751 = vunpack.c.h.b16 %v374
      %v752 = vunpack.c.l.b16 %v375
      %v753 = vunpack.c.h.b16 %v375
      %v754 = vunpack.c.l.b16 %v376
      %v755 = vunpack.c.h.b16 %v376
      %v756 = vunpack.c.l.b16 %v377
      %v757 = vunpack.c.h.b16 %v377
      %v758 = vunpack.c.l.b16 %v378
      %v759 = vunpack.c.h.b16 %v378
      %v760 = vunpack.c.l.b16 %v379
      %v761 = vunpack.c.h.b16 %v379
      %v762 = vunpack.c.l.b16 %v380
      %v763 = vunpack.c.h.b16 %v380
      %v764 = vunpack.c.l.b16 %v381
      %v765 = vunpack.c.h.b16 %v381
      %v766 = vunpack.c.l.b16 %v382
      %v767 = vunpack.c.h.b16 %v382
      %v768 = vunpack.c.l.b16 %v383
      %v769 = vunpack.c.h.b16 %v383
      %v770 = vunpack.c.l.b16 %v384
      %v771 = vunpack.c.h.b16 %v384
      %v772 = vunpack.c.l.b16 %v385
      %v773 = vunpack.c.h.b16 %v385
      %v774 = vunpack.c.l.b16 %v386
      %v775 = vunpack.c.h.b16 %v386
      %v776 = vunpack.c.l.b16 %v387
      %v777 = vunpack.c.h.b16 %v387
      %v778 = vunpack.c.l.b16 %v388
      %v779 = vunpack.c.h.b16 %v388
      %v780 = vunpack.c.l.b16 %v389
      %v781 = vunpack.c.h.b16 %v389
      %v782 = vunpack.c.l.b16 %v390
      %v783 = vunpack.c.h.b16 %v390
      %v784 = vunpack.c.l.b16 %v391
      %v785 = vunpack.c.h.b16 %v391
      %v786 = vunpack.c.l.b16 %v392
      %v787 = vunpack.c.h.b16 %v392
      %v788 = vunpack.c.l.b16 %v393
      %v789 = vunpack.c.h.b16 %v393
      %v790 = vunpack.c.l.b16 %v394
      %v791 = vunpack.c.h.b16 %v394
      %v792 = vunpack.c.l.b16 %v395
      %v793 = vunpack.c.h.b16 %v395
      %v794 = vunpack.c.l.b16 %v396
      %v795 = vunpack.c.h.b16 %v396
      %v796 = vunpack.c.l.b16 %v397
      %v797 = vunpack.c.h.b16 %v397
      %v798 = vunpack.c.l.b16 %v398
      %v799 = vunpack.c.h.b16 %v398
      %v800 = vunpack.c.l.b16 %v399
      %v801 = vunpack.c.h.b16 %v399
      %v802 = vunpack.c.l.b16 %v400
      %v803 = vunpack.c.h.b16 %v400
      %v804 = vunpack.c.l.b16 %v401
      %v805 = vunpack.c.h.b16 %v401
      %v806 = vunpack.c.l.b16 %v402
      %v807 = vunpack.c.h.b16 %v402
      %v808 = vunpack.c.l.b16 %v403
      %v809 = vunpack.c.h.b16 %v403
      %v810 = vunpack.c.l.b16 %v404
      %v811 = vunpack.c.h.b16 %v404
      %v812 = vunpack.c.l.b16 %v405
      %v813 = vunpack.c.h.b16 %v405
      %v814 = vunpack.c.l.b16 %v406
      %v815 = vunpack.c.h.b16 %v406
      %v816 = vunpack.c.l.b16 %v407
      %v817 = vunpack.c.h.b16 %v407
      %v818 = vunpack.c.l.b16 %v408
      %v819 = vunpack.c.h.b16 %v408
      %v820 = vunpack.c.l.b16 %v409
      %v821 = vunpack.c.h.b16 %v409
      %v822 = vunpack.c.l.b16 %v410
      %v823 = vunpack.c.h.b16 %v410
      %v824 = vunpack.c.l.b16 %v411
      %v825 = vunpack.c.h.b16 %v411
      %v826 = vunpack.c.l.b16 %v412
      %v827 = vunpack.c.h.b16 %v412
      %v828 = vunpack.c.l.b16 %v413
      %v829 = vunpack.c.h.b16 %v413
      %v830 = vpack.c.b16 %v576, %v574
      %v831 = vpack.c.b16 %v577, %v575
      %v832 = vpack.c.b16 %v580, %v578
      %v833 = vpack.c.b16 %v581, %v579
      %v834 = vpack.c.b16 %v584, %v582
      %v835 = vpack.c.b16 %v585, %v583
      %v836 = vpack.c.b16 %v588, %v586
      %v837 = vpack.c.b16 %v589, %v587
      %v838 = vpack.c.b16 %v592, %v590
      %v839 = vpack.c.b16 %v593, %v591
      %v840 = vpack.c.b16 %v596, %v594
      %v841 = vpack.c.b16 %v597, %v595
      %v842 = vpack.c.b16 %v600, %v598
      %v843 = vpack.c.b16 %v601, %v599
      %v844 = vpack.c.b16 %v604, %v602
      %v845 = vpack.c.b16 %v605, %v603
      %v846 = vpack.c.b16 %v608, %v606
      %v847 = vpack.c.b16 %v609, %v607
      %v848 = vpack.c.b16 %v612, %v610
      %v849 = vpack.c.b16 %v613, %v611
      %v850 = vpack.c.b16 %v616, %v614
      %v851 = vpack.c.b16 %v617, %v615
      %v852 = vpack.c.b16 %v620, %v618
      %v853 = vpack.c.b16 %v621, %v619
      %v854 = vpack.c.b16 %v624, %v622
      %v855 = vpack.c.b16 %v625, %v623
      %v856 = vpack.c.b16 %v628, %v626
      %v857 = vpack.c.b16 %v629, %v627
      %v858 = vpack.c.b16 %v632, %v630
      %v859 = vpack.c.b16 %v633, %v631
      %v860 = vpack.c.b16 %v636, %v634
      %v861 = vpack.c.b16 %v637, %v635
      %v862 = vpack.c.b16 %v640, %v638
      %v863 = vpack.c.b16 %v641, %v639
      %v864 = vpack.c.b16 %v644, %v642
      %v865 = vpack.c.b16 %v645, %v643
      %v866 = vpack.c.b16 %v648, %v646
      %v867 = vpack.c.b16 %v649, %v647
      %v868 = vpack.c.b16 %v652, %v650
      %v869 = vpack.c.b16 %v653, %v651
      %v870 = vpack.c.b16 %v656, %v654
      %v871 = vpack.c.b16 %v657, %v655
      %v872 = vpack.c.b16 %v660, %v658
      %v873 = vpack.c.b16 %v661, %v659
      %v874 = vpack.c.b16 %v664, %v662
      %v875 = vpack.c.b16 %v665, %v663
      %v876 = vpack.c.b16 %v668, %v666
      %v877 = vpack.c.b16 %v669, %v667
      %v878 = vpack.c.b16 %v672, %v670
      %v879 = vpack.c.b16 %v673, %v671
      %v880 = vpack.c.b16 %v676, %v674
      %v881 = vpack.c.b16 %v677, %v675
      %v882 = vpack.c.b16 %v680, %v678
      %v883 = vpack.c.b16 %v681, %v679
      %v884 = vpack.c.b16 %v684, %v682
      %v885 = vpack.c.b16 %v685, %v683
      %v886 = vpack.c.b16 %v688, %v686
      %v887 = vpack.c.b16 %v689, %v687
      %v888 = vpack.c.b16 %v692, %v690
      %v889 = vpack.c.b16 %v693, %v691
      %v890 = vpack.c.b16 %v696, %v694
      %v891 = vpack.c.b16 %v697, %v695
      %v892 = vpack.c.b16 %v700, %v698
      %v893 = vpack.c.b16 %v701, %v699
      %v894 = vpack.c.b16 %v704, %v702
      %v895 = vpack.c.b16 %v705, %v703
      %v896 = vpack.c.b16 %v708, %v706
      %v897 = vpack.c.b16 %v709, %v707
      %v898 = vpack.c.b16 %v712, %v710
      %v899 = vpack.c.b16 %v713, %v711
      %v900 = vpack.c.b16 %v716, %v714
      %v901 = vpack.c.b16 %v717, %v715
      %v902 = vpack.c.b16 %v720, %v718
      %v903 = vpack.c.b16 %v721, %v719
      %v904 = vpack.c.b16 %v724, %v722
      %v905 = vpack.c.b16 %v725, %v723
      %v906 = vpack.c.b16 %v728, %v726
      %v907 = vpack.c.b16 %v729, %v727
      %v908 = vpack.c.b16 %v732, %v730
      %v909 = vpack.c.b16 %v733, %v731
      %v910 = vpack.c.b16 %v736, %v734
      %v911 = vpack.c.b16 %v737, %v735
      %v912 = vpack.c.b16 %v740, %v738
      %v913 = vpack.c.b16 %v741, %v739
      %v914 = vpack.c.b16 %v744, %v742
      %v915 = vpack.c.b16 %v745, %v743
      %v916 = vpack.c.b16 %v748, %v746
      %v917 = vpack.c.b16 %v749, %v747
      %v918 = vpack.c.b16 %v752, %v750
      %v919 = vpack.c.b16 %v753, %v751
      %v920 = vpack.c.b16 %v756, %v754
      %v921 = vpack.c.b16 %v757, %v755
      %v922 = vpack.c.b16 %v760, %v758
      %v923 = vpack.c.b16 %v761, %v759
      %v924 = vpack.c.b16 %v764, %v762
      %v925 = vpack.c.b16 %v765, %v763
      %v926 = vpack.c.b16 %v768, %v766
      %v927 = vpack.c.b16 %v769, %v767
      %v928 = vpack.c.b16 %v772, %v770
      %v929 = vpack.c.b16 %v773, %v771
      %v930 = vpack.c.b16 %v776, %v774
      %v931 = vpack.c.b16 %v777, %v775
      %v932 = vpack.c.b16 %v780, %v778
      %v933 = vpack.c.b16 %v781, %v779
      %v934 = vpack.c.b16 %v784, %v782
      %v935 = vpack.c.b16 %v785, %v783
      %v936 = vpack.c.b16 %v788, %v786
      %v937 = vpack.c.b16 %v789, %v787
      %v938 = vpack.c.b16 %v792, %v790
      %v939 = vpack.c.b16 %v793, %v791
      %v940 = vpack.c.b16 %v796, %v794
      %v941 = vpack.c.b16 %v797, %v795
      %v942 = vpack.c.b16 %v800, %v798
      %v943 = vpack.c.b16 %v801, %v799
      %v944 = vpack.c.b16 %v804, %v802
      %v945 = vpack.c.b16 %v805, %v803
      %v946 = vpack.c.b16 %v808, %v806
      %v947 = vpack.c.b16 %v809, %v807
      %v948 = vpack.c.b16 %v812, %v810
      %v949 = vpack.c.b16 %v813, %v811
      %v950 = vpack.c.b16 %v816, %v814
      %v951 = vpack.c.b16 %v817, %v815
      %v952 = vpack.c.b16 %v820, %v818
      %v953 = vpack.c.b16 %v821, %v819
      %v954 = vpack.c.b16 %v824, %v822
      %v955 = vpack.c.b16 %v825, %v823
      %v956 = vpack.c.b16 %v828, %v826
      %v957 = vpack.c.b16 %v829, %v827
      %v1118 = vunpack.c.l.b16 %v414
      %v1119 = vunpack.c.l.b16 %v415
      %v1120 = vunpack.c.l.b16 %v416
      %v1121 = vunpack.c.l.b16 %v417
      %v1122 = vunpack.c.l.b16 %v418
      %v1123 = vunpack.c.l.b16 %v419
      %v1124 = vunpack.c.l.b16 %v420
      %v1125 = vunpack.c.l.b16 %v421
      %v1126 = vunpack.c.l.b16 %v422
      %v1127 = vunpack.c.l.b16 %v423
      %v1128 = vunpack.c.l.b16 %v424
      %v1129 = vunpack.c.l.b16 %v425
      %v1130 = vunpack.c.l.b16 %v426
      %v1131 = vunpack.c.l.b16 %v427
      %v1132 = vunpack.c.l.b16 %v428
      %v1133 = vunpack.c.l.b16 %v429
      %v1134 = vunpack.c.l.b16 %v430
      %v1135 = vunpack.c.l.b16 %v431
      %v1136 = vunpack.c.l.b16 %v432
      %v1137 = vunpack.c.l.b16 %v433
      %v1138 = vunpack.c.l.b16 %v434
      %v1139 = vunpack.c.l.b16 %v435
      %v1140 = vunpack.c.l.b16 %v436
      %v1141 = vunpack.c.l.b16 %v437
      %v1142 = vunpack.c.l.b16 %v438
      %v1143 = vunpack.c.l.b16 %v439
      %v1144 = vunpack.c.l.b16 %v440
      %v1145 = vunpack.c.l.b16 %v441
      %v1146 = vunpack.c.l.b16 %v442
      %v1147 = vunpack.c.l.b16 %v443
      %v1148 = vunpack.c.l.b16 %v444
      %v1149 = vunpack.c.l.b16 %v445
      %v1150 = vpack.c.b16 %v1119, %v1118
      %v1151 = vpack.c.b16 %v1121, %v1120
      %v1152 = vpack.c.b16 %v1123, %v1122
      %v1153 = vpack.c.b16 %v1125, %v1124
      %v1154 = vpack.c.b16 %v1127, %v1126
      %v1155 = vpack.c.b16 %v1129, %v1128
      %v1156 = vpack.c.b16 %v1131, %v1130
      %v1157 = vpack.c.b16 %v1133, %v1132
      %v1158 = vpack.c.b16 %v1135, %v1134
      %v1159 = vpack.c.b16 %v1137, %v1136
      %v1160 = vpack.c.b16 %v1139, %v1138
      %v1161 = vpack.c.b16 %v1141, %v1140
      %v1162 = vpack.c.b16 %v1143, %v1142
      %v1163 = vpack.c.b16 %v1145, %v1144
      %v1164 = vpack.c.b16 %v1147, %v1146
      %v1165 = vpack.c.b16 %v1149, %v1148
      %1182 = vmatprep.subr.bf16.mxu0 0
      %1183 = vmatpush1.bf16.msra.mxu0 %v1150
      %1184 = vmatprep.subr.bf16.mxu0 0
      %1185 = vmatpush1.bf16.msra.mxu0 %v1151
      %1186 = vmatprep.subr.bf16.mxu0 0
      %1187 = vmatpush1.bf16.msra.mxu0 %v1152
      %1188 = vmatprep.subr.bf16.mxu0 0
      %1189 = vmatpush1.bf16.msra.mxu0 %v1153
      %1190 = vmatprep.subr.bf16.mxu0 0
      %1191 = vmatpush1.bf16.msra.mxu0 %v1154
      %1192 = vmatprep.subr.bf16.mxu0 0
      %1193 = vmatpush1.bf16.msra.mxu0 %v1155
      %1194 = vmatprep.subr.bf16.mxu0 0
      %1195 = vmatpush1.bf16.msra.mxu0 %v1156
      %1196 = vmatprep.subr.bf16.mxu0 0
      %1197 = vmatpush1.bf16.msra.mxu0 %v1157
      %1198 = vmatprep.subr.bf16.mxu0 0
      %1199 = vmatpush1.bf16.msra.mxu0 %v1158
      %1200 = vmatprep.subr.bf16.mxu0 0
      %1201 = vmatpush1.bf16.msra.mxu0 %v1159
      %1202 = vmatprep.subr.bf16.mxu0 0
      %1203 = vmatpush1.bf16.msra.mxu0 %v1160
      %1204 = vmatprep.subr.bf16.mxu0 0
      %1205 = vmatpush1.bf16.msra.mxu0 %v1161
      %1206 = vmatprep.subr.bf16.mxu0 0
      %1207 = vmatpush1.bf16.msra.mxu0 %v1162
      %1208 = vmatprep.subr.bf16.mxu0 0
      %1209 = vmatpush1.bf16.msra.mxu0 %v1163
      %1210 = vmatprep.subr.bf16.mxu0 0
      %1211 = vmatpush1.bf16.msra.mxu0 %v1164
      %1212 = vmatprep.subr.bf16.mxu0 0
      %1213 = vmatpush1.bf16.msra.mxu0 %v1165
      %1214 = vmatprep.mubr.bf16.mxu0 %v831
      %1215 = vmatmul.mubr.bf16.gmra.mrb[0].mxu0 %v830
      %v1216 = vpop.f32.mrb[0].mxu0
      %v1217 = vadd.f32 0.0, %v1216
      %v1218 = vpop.f32.mrb[0].mxu0
      %v1219 = vpop.f32.mrb[0].mxu0
      %v1220 = vadd.f32 0.0, %v1219
      %v1221 = vpop.f32.mrb[0].mxu0
      %1222 = vmatprep.mubr.bf16.mxu0 %v833
      %1223 = vmatmul.mubr.bf16.gmra.mrb[0].mxu0 %v832
      %v1224 = vpop.f32.mrb[0].mxu0
      %v1225 = vadd.f32 0.0, %v1224
      %v1226 = vpop.f32.mrb[0].mxu0
      %v1227 = vpop.f32.mrb[0].mxu0
      %v1228 = vadd.f32 0.0, %v1227
      %v1229 = vpop.f32.mrb[0].mxu0
      %1230 = vmatprep.mubr.bf16.mxu0 %v835
      %1231 = vmatmul.mubr.bf16.gmra.mrb[0].mxu0 %v834
      %v1232 = vpop.f32.mrb[0].mxu0
      %v1233 = vadd.f32 0.0, %v1232
      %v1234 = vpop.f32.mrb[0].mxu0
      %v1235 = vpop.f32.mrb[0].mxu0
      %v1236 = vadd.f32 0.0, %v1235
      %v1237 = vpop.f32.mrb[0].mxu0
      %1238 = vmatprep.mubr.bf16.mxu0 %v837
      %1239 = vmatmul.mubr.bf16.gmra.mrb[0].mxu0 %v836
      %v1240 = vpop.f32.mrb[0].mxu0
      %v1241 = vadd.f32 0.0, %v1240
      %v1242 = vpop.f32.mrb[0].mxu0
      %v1243 = vpop.f32.mrb[0].mxu0
      %v1244 = vadd.f32 0.0, %v1243
      %v1245 = vpop.f32.mrb[0].mxu0
      %1246 = vmatprep.mubr.bf16.mxu0 %v839
      %1247 = vmatmul.mubr.bf16.gmra.mrb[0].mxu0 %v838
      %v1248 = vpop.f32.mrb[0].mxu0
      %v1249 = vadd.f32 0.0, %v1248
      %v1250 = vpop.f32.mrb[0].mxu0
      %v1251 = vpop.f32.mrb[0].mxu0
      %v1252 = vadd.f32 0.0, %v1251
      %v1253 = vpop.f32.mrb[0].mxu0
      %1254 = vmatprep.mubr.bf16.mxu0 %v841
      %1255 = vmatmul.mubr.bf16.gmra.mrb[0].mxu0 %v840
      %v1256 = vpop.f32.mrb[0].mxu0
      %v1257 = vadd.f32 0.0, %v1256
      %v1258 = vpop.f32.mrb[0].mxu0
      %v1259 = vpop.f32.mrb[0].mxu0
      %v1260 = vadd.f32 0.0, %v1259
      %v1261 = vpop.f32.mrb[0].mxu0
      %1262 = vmatprep.mubr.bf16.mxu0 %v843
      %1263 = vmatmul.mubr.bf16.gmra.mrb[0].mxu0 %v842
      %v1264 = vpop.f32.mrb[0].mxu0
      %v1265 = vadd.f32 0.0, %v1264
      %v1266 = vpop.f32.mrb[0].mxu0
      %v1267 = vpop.f32.mrb[0].mxu0
      %v1268 = vadd.f32 0.0, %v1267
      %v1269 = vpop.f32.mrb[0].mxu0
      %1270 = vmatprep.mubr.bf16.mxu0 %v845
      %1271 = vmatmul.mubr.bf16.gmra.mrb[0].mxu0 %v844
      %v1272 = vpop.f32.mrb[0].mxu0
      %v1273 = vadd.f32 0.0, %v1272
      %v1274 = vpop.f32.mrb[0].mxu0
      %v1275 = vpop.f32.mrb[0].mxu0
      %v1276 = vadd.f32 0.0, %v1275
      %v1277 = vpop.f32.mrb[0].mxu0
      %1278 = vmatprep.mubr.bf16.mxu0 %v847
      %1279 = vmatmul.mubr.bf16.gmra.mrb[0].mxu0 %v846
      %v1280 = vpop.f32.mrb[0].mxu0
      %v1281 = vadd.f32 0.0, %v1280
      %v1282 = vpop.f32.mrb[0].mxu0
      %v1283 = vpop.f32.mrb[0].mxu0
      %v1284 = vadd.f32 0.0, %v1283
      %v1285 = vpop.f32.mrb[0].mxu0
      %1286 = vmatprep.mubr.bf16.mxu0 %v849
      %1287 = vmatmul.mubr.bf16.gmra.mrb[0].mxu0 %v848
      %v1288 = vpop.f32.mrb[0].mxu0
      %v1289 = vadd.f32 0.0, %v1288
      %v1290 = vpop.f32.mrb[0].mxu0
      %v1291 = vpop.f32.mrb[0].mxu0
      %v1292 = vadd.f32 0.0, %v1291
      %v1293 = vpop.f32.mrb[0].mxu0
      %1294 = vmatprep.mubr.bf16.mxu0 %v851
      %1295 = vmatmul.mubr.bf16.gmra.mrb[0].mxu0 %v850
      %v1296 = vpop.f32.mrb[0].mxu0
      %v1297 = vadd.f32 0.0, %v1296
      %v1298 = vpop.f32.mrb[0].mxu0
      %v1299 = vpop.f32.mrb[0].mxu0
      %v1300 = vadd.f32 0.0, %v1299
      %v1301 = vpop.f32.mrb[0].mxu0
      %1302 = vmatprep.mubr.bf16.mxu0 %v853
      %1303 = vmatmul.mubr.bf16.gmra.mrb[0].mxu0 %v852
      %v1304 = vpop.f32.mrb[0].mxu0
      %v1305 = vadd.f32 0.0, %v1304
      %v1306 = vpop.f32.mrb[0].mxu0
      %v1307 = vpop.f32.mrb[0].mxu0
      %v1308 = vadd.f32 0.0, %v1307
      %v1309 = vpop.f32.mrb[0].mxu0
      %1310 = vmatprep.mubr.bf16.mxu0 %v855
      %1311 = vmatmul.mubr.bf16.gmra.mrb[0].mxu0 %v854
      %v1312 = vpop.f32.mrb[0].mxu0
      %v1313 = vadd.f32 0.0, %v1312
      %v1314 = vpop.f32.mrb[0].mxu0
      %v1315 = vpop.f32.mrb[0].mxu0
      %v1316 = vadd.f32 0.0, %v1315
      %v1317 = vpop.f32.mrb[0].mxu0
      %1318 = vmatprep.mubr.bf16.mxu0 %v857
      %1319 = vmatmul.mubr.bf16.gmra.mrb[0].mxu0 %v856
      %v1320 = vpop.f32.mrb[0].mxu0
      %v1321 = vadd.f32 0.0, %v1320
      %v1322 = vpop.f32.mrb[0].mxu0
      %v1323 = vpop.f32.mrb[0].mxu0
      %v1324 = vadd.f32 0.0, %v1323
      %v1325 = vpop.f32.mrb[0].mxu0
      %1326 = vmatprep.mubr.bf16.mxu0 %v859
      %1327 = vmatmul.mubr.bf16.gmra.mrb[0].mxu0 %v858
      %v1328 = vpop.f32.mrb[0].mxu0
      %v1329 = vadd.f32 0.0, %v1328
      %v1330 = vpop.f32.mrb[0].mxu0
      %v1331 = vpop.f32.mrb[0].mxu0
      %v1332 = vadd.f32 0.0, %v1331
      %v1333 = vpop.f32.mrb[0].mxu0
      %1334 = vmatprep.mubr.bf16.mxu0 %v861
      %1335 = vmatmul.mubr.bf16.gmra.mrb[0].mxu0 %v860
      %v1336 = vpop.f32.mrb[0].mxu0
      %v1337 = vadd.f32 0.0, %v1336
      %v1338 = vpop.f32.mrb[0].mxu0
      %v1339 = vpop.f32.mrb[0].mxu0
      %v1340 = vadd.f32 0.0, %v1339
      %v1341 = vpop.f32.mrb[0].mxu0
      %1342 = vmatprep.mubr.bf16.mxu0 %v863
      %1343 = vmatmul.mubr.bf16.gmra.mrb[0].mxu0 %v862
      %v1344 = vpop.f32.mrb[0].mxu0
      %v1345 = vadd.f32 0.0, %v1344
      %v1346 = vpop.f32.mrb[0].mxu0
      %v1347 = vpop.f32.mrb[0].mxu0
      %v1348 = vadd.f32 0.0, %v1347
      %v1349 = vpop.f32.mrb[0].mxu0
      %1350 = vmatprep.mubr.bf16.mxu0 %v865
      %1351 = vmatmul.mubr.bf16.gmra.mrb[0].mxu0 %v864
      %v1352 = vpop.f32.mrb[0].mxu0
      %v1353 = vadd.f32 0.0, %v1352
      %v1354 = vpop.f32.mrb[0].mxu0
      %v1355 = vpop.f32.mrb[0].mxu0
      %v1356 = vadd.f32 0.0, %v1355
      %v1357 = vpop.f32.mrb[0].mxu0
      %1358 = vmatprep.mubr.bf16.mxu0 %v867
      %1359 = vmatmul.mubr.bf16.gmra.mrb[0].mxu0 %v866
      %v1360 = vpop.f32.mrb[0].mxu0
      %v1361 = vadd.f32 0.0, %v1360
      %v1362 = vpop.f32.mrb[0].mxu0
      %v1363 = vpop.f32.mrb[0].mxu0
      %v1364 = vadd.f32 0.0, %v1363
      %v1365 = vpop.f32.mrb[0].mxu0
      %1366 = vmatprep.mubr.bf16.mxu0 %v869
      %1367 = vmatmul.mubr.bf16.gmra.mrb[0].mxu0 %v868
      %v1368 = vpop.f32.mrb[0].mxu0
      %v1369 = vadd.f32 0.0, %v1368
      %v1370 = vpop.f32.mrb[0].mxu0
      %v1371 = vpop.f32.mrb[0].mxu0
      %v1372 = vadd.f32 0.0, %v1371
      %v1373 = vpop.f32.mrb[0].mxu0
      %1374 = vmatprep.mubr.bf16.mxu0 %v871
      %1375 = vmatmul.mubr.bf16.gmra.mrb[0].mxu0 %v870
      %v1376 = vpop.f32.mrb[0].mxu0
      %v1377 = vadd.f32 0.0, %v1376
      %v1378 = vpop.f32.mrb[0].mxu0
      %v1379 = vpop.f32.mrb[0].mxu0
      %v1380 = vadd.f32 0.0, %v1379
      %v1381 = vpop.f32.mrb[0].mxu0
      %1382 = vmatprep.mubr.bf16.mxu0 %v873
      %1383 = vmatmul.mubr.bf16.gmra.mrb[0].mxu0 %v872
      %v1384 = vpop.f32.mrb[0].mxu0
      %v1385 = vadd.f32 0.0, %v1384
      %v1386 = vpop.f32.mrb[0].mxu0
      %v1387 = vpop.f32.mrb[0].mxu0
      %v1388 = vadd.f32 0.0, %v1387
      %v1389 = vpop.f32.mrb[0].mxu0
      %1390 = vmatprep.mubr.bf16.mxu0 %v875
      %1391 = vmatmul.mubr.bf16.gmra.mrb[0].mxu0 %v874
      %v1392 = vpop.f32.mrb[0].mxu0
      %v1393 = vadd.f32 0.0, %v1392
      %v1394 = vpop.f32.mrb[0].mxu0
      %v1395 = vpop.f32.mrb[0].mxu0
      %v1396 = vadd.f32 0.0, %v1395
      %v1397 = vpop.f32.mrb[0].mxu0
      %1398 = vmatprep.mubr.bf16.mxu0 %v877
      %1399 = vmatmul.mubr.bf16.gmra.mrb[0].mxu0 %v876
      %v1400 = vpop.f32.mrb[0].mxu0
      %v1401 = vadd.f32 0.0, %v1400
      %v1402 = vpop.f32.mrb[0].mxu0
      %v1403 = vpop.f32.mrb[0].mxu0
      %v1404 = vadd.f32 0.0, %v1403
      %v1405 = vpop.f32.mrb[0].mxu0
      %1406 = vmatprep.mubr.bf16.mxu0 %v879
      %1407 = vmatmul.mubr.bf16.gmra.mrb[0].mxu0 %v878
      %v1408 = vpop.f32.mrb[0].mxu0
      %v1409 = vadd.f32 0.0, %v1408
      %v1410 = vpop.f32.mrb[0].mxu0
      %v1411 = vpop.f32.mrb[0].mxu0
      %v1412 = vadd.f32 0.0, %v1411
      %v1413 = vpop.f32.mrb[0].mxu0
      %1414 = vmatprep.mubr.bf16.mxu0 %v881
      %1415 = vmatmul.mubr.bf16.gmra.mrb[0].mxu0 %v880
      %v1416 = vpop.f32.mrb[0].mxu0
      %v1417 = vadd.f32 0.0, %v1416
      %v1418 = vpop.f32.mrb[0].mxu0
      %v1419 = vpop.f32.mrb[0].mxu0
      %v1420 = vadd.f32 0.0, %v1419
      %v1421 = vpop.f32.mrb[0].mxu0
      %1422 = vmatprep.mubr.bf16.mxu0 %v883
      %1423 = vmatmul.mubr.bf16.gmra.mrb[0].mxu0 %v882
      %v1424 = vpop.f32.mrb[0].mxu0
      %v1425 = vadd.f32 0.0, %v1424
      %v1426 = vpop.f32.mrb[0].mxu0
      %v1427 = vpop.f32.mrb[0].mxu0
      %v1428 = vadd.f32 0.0, %v1427
      %v1429 = vpop.f32.mrb[0].mxu0
      %1430 = vmatprep.mubr.bf16.mxu0 %v885
      %1431 = vmatmul.mubr.bf16.gmra.mrb[0].mxu0 %v884
      %v1432 = vpop.f32.mrb[0].mxu0
      %v1433 = vadd.f32 0.0, %v1432
      %v1434 = vpop.f32.mrb[0].mxu0
      %v1435 = vpop.f32.mrb[0].mxu0
      %v1436 = vadd.f32 0.0, %v1435
      %v1437 = vpop.f32.mrb[0].mxu0
      %1438 = vmatprep.mubr.bf16.mxu0 %v887
      %1439 = vmatmul.mubr.bf16.gmra.mrb[0].mxu0 %v886
      %v1440 = vpop.f32.mrb[0].mxu0
      %v1441 = vadd.f32 0.0, %v1440
      %v1442 = vpop.f32.mrb[0].mxu0
      %v1443 = vpop.f32.mrb[0].mxu0
      %v1444 = vadd.f32 0.0, %v1443
      %v1445 = vpop.f32.mrb[0].mxu0
      %1446 = vmatprep.mubr.bf16.mxu0 %v889
      %1447 = vmatmul.mubr.bf16.gmra.mrb[0].mxu0 %v888
      %v1448 = vpop.f32.mrb[0].mxu0
      %v1449 = vadd.f32 0.0, %v1448
      %v1450 = vpop.f32.mrb[0].mxu0
      %v1451 = vpop.f32.mrb[0].mxu0
      %v1452 = vadd.f32 0.0, %v1451
      %v1453 = vpop.f32.mrb[0].mxu0
      %1454 = vmatprep.mubr.bf16.mxu0 %v891
      %1455 = vmatmul.mubr.bf16.gmra.mrb[0].mxu0 %v890
      %v1456 = vpop.f32.mrb[0].mxu0
      %v1457 = vadd.f32 0.0, %v1456
      %v1458 = vpop.f32.mrb[0].mxu0
      %v1459 = vpop.f32.mrb[0].mxu0
      %v1460 = vadd.f32 0.0, %v1459
      %v1461 = vpop.f32.mrb[0].mxu0
      %1462 = vmatprep.mubr.bf16.mxu0 %v893
      %1463 = vmatmul.mubr.bf16.gmra.mrb[0].mxu0 %v892
      %v1464 = vpop.f32.mrb[0].mxu0
      %v1465 = vadd.f32 0.0, %v1464
      %v1466 = vpop.f32.mrb[0].mxu0
      %v1467 = vpop.f32.mrb[0].mxu0
      %v1468 = vadd.f32 0.0, %v1467
      %v1469 = vpop.f32.mrb[0].mxu0
      %1470 = vmatprep.mubr.bf16.mxu0 %v895
      %1471 = vmatmul.mubr.bf16.gmra.mrb[0].mxu0 %v894
      %v1472 = vpop.f32.mrb[0].mxu0
      %v1473 = vadd.f32 0.0, %v1472
      %v1474 = vpop.f32.mrb[0].mxu0
      %v1475 = vpop.f32.mrb[0].mxu0
      %v1476 = vadd.f32 0.0, %v1475
      %v1477 = vpop.f32.mrb[0].mxu0
      %1478 = vmatprep.mubr.bf16.mxu0 %v897
      %1479 = vmatmul.mubr.bf16.gmra.mrb[0].mxu0 %v896
      %v1480 = vpop.f32.mrb[0].mxu0
      %v1481 = vadd.f32 0.0, %v1480
      %v1482 = vpop.f32.mrb[0].mxu0
      %v1483 = vpop.f32.mrb[0].mxu0
      %v1484 = vadd.f32 0.0, %v1483
      %v1485 = vpop.f32.mrb[0].mxu0
      %1486 = vmatprep.mubr.bf16.mxu0 %v899
      %1487 = vmatmul.mubr.bf16.gmra.mrb[0].mxu0 %v898
      %v1488 = vpop.f32.mrb[0].mxu0
      %v1489 = vadd.f32 0.0, %v1488
      %v1490 = vpop.f32.mrb[0].mxu0
      %v1491 = vpop.f32.mrb[0].mxu0
      %v1492 = vadd.f32 0.0, %v1491
      %v1493 = vpop.f32.mrb[0].mxu0
      %1494 = vmatprep.mubr.bf16.mxu0 %v901
      %1495 = vmatmul.mubr.bf16.gmra.mrb[0].mxu0 %v900
      %v1496 = vpop.f32.mrb[0].mxu0
      %v1497 = vadd.f32 0.0, %v1496
      %v1498 = vpop.f32.mrb[0].mxu0
      %v1499 = vpop.f32.mrb[0].mxu0
      %v1500 = vadd.f32 0.0, %v1499
      %v1501 = vpop.f32.mrb[0].mxu0
      %1502 = vmatprep.mubr.bf16.mxu0 %v903
      %1503 = vmatmul.mubr.bf16.gmra.mrb[0].mxu0 %v902
      %v1504 = vpop.f32.mrb[0].mxu0
      %v1505 = vadd.f32 0.0, %v1504
      %v1506 = vpop.f32.mrb[0].mxu0
      %v1507 = vpop.f32.mrb[0].mxu0
      %v1508 = vadd.f32 0.0, %v1507
      %v1509 = vpop.f32.mrb[0].mxu0
      %1510 = vmatprep.mubr.bf16.mxu0 %v905
      %1511 = vmatmul.mubr.bf16.gmra.mrb[0].mxu0 %v904
      %v1512 = vpop.f32.mrb[0].mxu0
      %v1513 = vadd.f32 0.0, %v1512
      %v1514 = vpop.f32.mrb[0].mxu0
      %v1515 = vpop.f32.mrb[0].mxu0
      %v1516 = vadd.f32 0.0, %v1515
      %v1517 = vpop.f32.mrb[0].mxu0
      %1518 = vmatprep.mubr.bf16.mxu0 %v907
      %1519 = vmatmul.mubr.bf16.gmra.mrb[0].mxu0 %v906
      %v1520 = vpop.f32.mrb[0].mxu0
      %v1521 = vadd.f32 0.0, %v1520
      %v1522 = vpop.f32.mrb[0].mxu0
      %v1523 = vpop.f32.mrb[0].mxu0
      %v1524 = vadd.f32 0.0, %v1523
      %v1525 = vpop.f32.mrb[0].mxu0
      %1526 = vmatprep.mubr.bf16.mxu0 %v909
      %1527 = vmatmul.mubr.bf16.gmra.mrb[0].mxu0 %v908
      %v1528 = vpop.f32.mrb[0].mxu0
      %v1529 = vadd.f32 0.0, %v1528
      %v1530 = vpop.f32.mrb[0].mxu0
      %v1531 = vpop.f32.mrb[0].mxu0
      %v1532 = vadd.f32 0.0, %v1531
      %v1533 = vpop.f32.mrb[0].mxu0
      %1534 = vmatprep.mubr.bf16.mxu0 %v911
      %1535 = vmatmul.mubr.bf16.gmra.mrb[0].mxu0 %v910
      %v1536 = vpop.f32.mrb[0].mxu0
      %v1537 = vadd.f32 0.0, %v1536
      %v1538 = vpop.f32.mrb[0].mxu0
      %v1539 = vpop.f32.mrb[0].mxu0
      %v1540 = vadd.f32 0.0, %v1539
      %v1541 = vpop.f32.mrb[0].mxu0
      %1542 = vmatprep.mubr.bf16.mxu0 %v913
      %1543 = vmatmul.mubr.bf16.gmra.mrb[0].mxu0 %v912
      %v1544 = vpop.f32.mrb[0].mxu0
      %v1545 = vadd.f32 0.0, %v1544
      %v1546 = vpop.f32.mrb[0].mxu0
      %v1547 = vpop.f32.mrb[0].mxu0
      %v1548 = vadd.f32 0.0, %v1547
      %v1549 = vpop.f32.mrb[0].mxu0
      %1550 = vmatprep.mubr.bf16.mxu0 %v915
      %1551 = vmatmul.mubr.bf16.gmra.mrb[0].mxu0 %v914
      %v1552 = vpop.f32.mrb[0].mxu0
      %v1553 = vadd.f32 0.0, %v1552
      %v1554 = vpop.f32.mrb[0].mxu0
      %v1555 = vpop.f32.mrb[0].mxu0
      %v1556 = vadd.f32 0.0, %v1555
      %v1557 = vpop.f32.mrb[0].mxu0
      %1558 = vmatprep.mubr.bf16.mxu0 %v917
      %1559 = vmatmul.mubr.bf16.gmra.mrb[0].mxu0 %v916
      %v1560 = vpop.f32.mrb[0].mxu0
      %v1561 = vadd.f32 0.0, %v1560
      %v1562 = vpop.f32.mrb[0].mxu0
      %v1563 = vpop.f32.mrb[0].mxu0
      %v1564 = vadd.f32 0.0, %v1563
      %v1565 = vpop.f32.mrb[0].mxu0
      %1566 = vmatprep.mubr.bf16.mxu0 %v919
      %1567 = vmatmul.mubr.bf16.gmra.mrb[0].mxu0 %v918
      %v1568 = vpop.f32.mrb[0].mxu0
      %v1569 = vadd.f32 0.0, %v1568
      %v1570 = vpop.f32.mrb[0].mxu0
      %v1571 = vpop.f32.mrb[0].mxu0
      %v1572 = vadd.f32 0.0, %v1571
      %v1573 = vpop.f32.mrb[0].mxu0
      %1574 = vmatprep.mubr.bf16.mxu0 %v921
      %1575 = vmatmul.mubr.bf16.gmra.mrb[0].mxu0 %v920
      %v1576 = vpop.f32.mrb[0].mxu0
      %v1577 = vadd.f32 0.0, %v1576
      %v1578 = vpop.f32.mrb[0].mxu0
      %v1579 = vpop.f32.mrb[0].mxu0
      %v1580 = vadd.f32 0.0, %v1579
      %v1581 = vpop.f32.mrb[0].mxu0
      %1582 = vmatprep.mubr.bf16.mxu0 %v923
      %1583 = vmatmul.mubr.bf16.gmra.mrb[0].mxu0 %v922
      %v1584 = vpop.f32.mrb[0].mxu0
      %v1585 = vadd.f32 0.0, %v1584
      %v1586 = vpop.f32.mrb[0].mxu0
      %v1587 = vpop.f32.mrb[0].mxu0
      %v1588 = vadd.f32 0.0, %v1587
      %v1589 = vpop.f32.mrb[0].mxu0
      %1590 = vmatprep.mubr.bf16.mxu0 %v925
      %1591 = vmatmul.mubr.bf16.gmra.mrb[0].mxu0 %v924
      %v1592 = vpop.f32.mrb[0].mxu0
      %v1593 = vadd.f32 0.0, %v1592
      %v1594 = vpop.f32.mrb[0].mxu0
      %v1595 = vpop.f32.mrb[0].mxu0
      %v1596 = vadd.f32 0.0, %v1595
      %v1597 = vpop.f32.mrb[0].mxu0
      %1598 = vmatprep.mubr.bf16.mxu0 %v927
      %1599 = vmatmul.mubr.bf16.gmra.mrb[0].mxu0 %v926
      %v1600 = vpop.f32.mrb[0].mxu0
      %v1601 = vadd.f32 0.0, %v1600
      %v1602 = vpop.f32.mrb[0].mxu0
      %v1603 = vpop.f32.mrb[0].mxu0
      %v1604 = vadd.f32 0.0, %v1603
      %v1605 = vpop.f32.mrb[0].mxu0
      %1606 = vmatprep.mubr.bf16.mxu0 %v929
      %1607 = vmatmul.mubr.bf16.gmra.mrb[0].mxu0 %v928
      %v1608 = vpop.f32.mrb[0].mxu0
      %v1609 = vadd.f32 0.0, %v1608
      %v1610 = vpop.f32.mrb[0].mxu0
      %v1611 = vpop.f32.mrb[0].mxu0
      %v1612 = vadd.f32 0.0, %v1611
      %v1613 = vpop.f32.mrb[0].mxu0
      %1614 = vmatprep.mubr.bf16.mxu0 %v931
      %1615 = vmatmul.mubr.bf16.gmra.mrb[0].mxu0 %v930
      %v1616 = vpop.f32.mrb[0].mxu0
      %v1617 = vadd.f32 0.0, %v1616
      %v1618 = vpop.f32.mrb[0].mxu0
      %v1619 = vpop.f32.mrb[0].mxu0
      %v1620 = vadd.f32 0.0, %v1619
      %v1621 = vpop.f32.mrb[0].mxu0
      %1622 = vmatprep.mubr.bf16.mxu0 %v933
      %1623 = vmatmul.mubr.bf16.gmra.mrb[0].mxu0 %v932
      %v1624 = vpop.f32.mrb[0].mxu0
      %v1625 = vadd.f32 0.0, %v1624
      %v1626 = vpop.f32.mrb[0].mxu0
      %v1627 = vpop.f32.mrb[0].mxu0
      %v1628 = vadd.f32 0.0, %v1627
      %v1629 = vpop.f32.mrb[0].mxu0
      %1630 = vmatprep.mubr.bf16.mxu0 %v935
      %1631 = vmatmul.mubr.bf16.gmra.mrb[0].mxu0 %v934
      %v1632 = vpop.f32.mrb[0].mxu0
      %v1633 = vadd.f32 0.0, %v1632
      %v1634 = vpop.f32.mrb[0].mxu0
      %v1635 = vpop.f32.mrb[0].mxu0
      %v1636 = vadd.f32 0.0, %v1635
      %v1637 = vpop.f32.mrb[0].mxu0
      %1638 = vmatprep.mubr.bf16.mxu0 %v937
      %1639 = vmatmul.mubr.bf16.gmra.mrb[0].mxu0 %v936
      %v1640 = vpop.f32.mrb[0].mxu0
      %v1641 = vadd.f32 0.0, %v1640
      %v1642 = vpop.f32.mrb[0].mxu0
      %v1643 = vpop.f32.mrb[0].mxu0
      %v1644 = vadd.f32 0.0, %v1643
      %v1645 = vpop.f32.mrb[0].mxu0
      %1646 = vmatprep.mubr.bf16.mxu0 %v939
      %1647 = vmatmul.mubr.bf16.gmra.mrb[0].mxu0 %v938
      %v1648 = vpop.f32.mrb[0].mxu0
      %v1649 = vadd.f32 0.0, %v1648
      %v1650 = vpop.f32.mrb[0].mxu0
      %v1651 = vpop.f32.mrb[0].mxu0
      %v1652 = vadd.f32 0.0, %v1651
      %v1653 = vpop.f32.mrb[0].mxu0
      %1654 = vmatprep.mubr.bf16.mxu0 %v941
      %1655 = vmatmul.mubr.bf16.gmra.mrb[0].mxu0 %v940
      %v1656 = vpop.f32.mrb[0].mxu0
      %v1657 = vadd.f32 0.0, %v1656
      %v1658 = vpop.f32.mrb[0].mxu0
      %v1659 = vpop.f32.mrb[0].mxu0
      %v1660 = vadd.f32 0.0, %v1659
      %v1661 = vpop.f32.mrb[0].mxu0
      %1662 = vmatprep.mubr.bf16.mxu0 %v943
      %1663 = vmatmul.mubr.bf16.gmra.mrb[0].mxu0 %v942
      %v1664 = vpop.f32.mrb[0].mxu0
      %v1665 = vadd.f32 0.0, %v1664
      %v1666 = vpop.f32.mrb[0].mxu0
      %v1667 = vpop.f32.mrb[0].mxu0
      %v1668 = vadd.f32 0.0, %v1667
      %v1669 = vpop.f32.mrb[0].mxu0
      %1670 = vmatprep.mubr.bf16.mxu0 %v945
      %1671 = vmatmul.mubr.bf16.gmra.mrb[0].mxu0 %v944
      %v1672 = vpop.f32.mrb[0].mxu0
      %v1673 = vadd.f32 0.0, %v1672
      %v1674 = vpop.f32.mrb[0].mxu0
      %v1675 = vpop.f32.mrb[0].mxu0
      %v1676 = vadd.f32 0.0, %v1675
      %v1677 = vpop.f32.mrb[0].mxu0
      %1678 = vmatprep.mubr.bf16.mxu0 %v947
      %1679 = vmatmul.mubr.bf16.gmra.mrb[0].mxu0 %v946
      %v1680 = vpop.f32.mrb[0].mxu0
      %v1681 = vadd.f32 0.0, %v1680
      %v1682 = vpop.f32.mrb[0].mxu0
      %v1683 = vpop.f32.mrb[0].mxu0
      %v1684 = vadd.f32 0.0, %v1683
      %v1685 = vpop.f32.mrb[0].mxu0
      %1686 = vmatprep.mubr.bf16.mxu0 %v949
      %1687 = vmatmul.mubr.bf16.gmra.mrb[0].mxu0 %v948
      %v1688 = vpop.f32.mrb[0].mxu0
      %v1689 = vadd.f32 0.0, %v1688
      %v1690 = vpop.f32.mrb[0].mxu0
      %v1691 = vpop.f32.mrb[0].mxu0
      %v1692 = vadd.f32 0.0, %v1691
      %v1693 = vpop.f32.mrb[0].mxu0
      %1694 = vmatprep.mubr.bf16.mxu0 %v951
      %1695 = vmatmul.mubr.bf16.gmra.mrb[0].mxu0 %v950
      %v1696 = vpop.f32.mrb[0].mxu0
      %v1697 = vadd.f32 0.0, %v1696
      %v1698 = vpop.f32.mrb[0].mxu0
      %v1699 = vpop.f32.mrb[0].mxu0
      %v1700 = vadd.f32 0.0, %v1699
      %v1701 = vpop.f32.mrb[0].mxu0
      %1702 = vmatprep.mubr.bf16.mxu0 %v953
      %1703 = vmatmul.mubr.bf16.gmra.mrb[0].mxu0 %v952
      %v1704 = vpop.f32.mrb[0].mxu0
      %v1705 = vadd.f32 0.0, %v1704
      %v1706 = vpop.f32.mrb[0].mxu0
      %v1707 = vpop.f32.mrb[0].mxu0
      %v1708 = vadd.f32 0.0, %v1707
      %v1709 = vpop.f32.mrb[0].mxu0
      %1710 = vmatprep.mubr.bf16.mxu0 %v955
      %1711 = vmatmul.mubr.bf16.gmra.mrb[0].mxu0 %v954
      %v1712 = vpop.f32.mrb[0].mxu0
      %v1713 = vadd.f32 0.0, %v1712
      %v1714 = vpop.f32.mrb[0].mxu0
      %v1715 = vpop.f32.mrb[0].mxu0
      %v1716 = vadd.f32 0.0, %v1715
      %v1717 = vpop.f32.mrb[0].mxu0
      %1718 = vmatprep.mubr.bf16.mxu0 %v957
      %1719 = vmatmul.mubr.bf16.gmra.mrb[0].mxu0 %v956
      %v1720 = vpop.f32.mrb[0].mxu0
      %v1721 = vadd.f32 0.0, %v1720
      %v1722 = vpop.f32.mrb[0].mxu0
      %v1723 = vpop.f32.mrb[0].mxu0
      %v1724 = vadd.f32 0.0, %v1723
      %v1725 = vpop.f32.mrb[0].mxu0
      %1726 = vdwg.mxu0
      %v1727 = vmax.f32 %v1217, %v1345
      %v1728 = vmax.f32 %v1220, %v1348
      %v1729 = vmax.f32 %v1225, %v1353
      %v1730 = vmax.f32 %v1228, %v1356
      %v1731 = vmax.f32 %v1233, %v1361
      %v1732 = vmax.f32 %v1236, %v1364
      %v1733 = vmax.f32 %v1241, %v1369
      %v1734 = vmax.f32 %v1244, %v1372
      %v1735 = vmax.f32 %v1249, %v1377
      %v1736 = vmax.f32 %v1252, %v1380
      %v1737 = vmax.f32 %v1257, %v1385
      %v1738 = vmax.f32 %v1260, %v1388
      %v1739 = vmax.f32 %v1265, %v1393
      %v1740 = vmax.f32 %v1268, %v1396
      %v1741 = vmax.f32 %v1273, %v1401
      %v1742 = vmax.f32 %v1276, %v1404
      %v1743 = vmax.f32 %v1281, %v1409
      %v1744 = vmax.f32 %v1284, %v1412
      %v1745 = vmax.f32 %v1289, %v1417
      %v1746 = vmax.f32 %v1292, %v1420
      %v1747 = vmax.f32 %v1297, %v1425
      %v1748 = vmax.f32 %v1300, %v1428
      %v1749 = vmax.f32 %v1305, %v1433
      %v1750 = vmax.f32 %v1308, %v1436
      %v1751 = vmax.f32 %v1313, %v1441
      %v1752 = vmax.f32 %v1316, %v1444
      %v1753 = vmax.f32 %v1321, %v1449
      %v1754 = vmax.f32 %v1324, %v1452
      %v1755 = vmax.f32 %v1329, %v1457
      %v1756 = vmax.f32 %v1332, %v1460
      %v1757 = vmax.f32 %v1337, %v1465
      %v1758 = vmax.f32 %v1340, %v1468
      %v1759 = vmax.f32 %v1473, %v1601
      %v1760 = vmax.f32 %v1476, %v1604
      %v1761 = vmax.f32 %v1481, %v1609
      %v1762 = vmax.f32 %v1484, %v1612
      %v1763 = vmax.f32 %v1489, %v1617
      %v1764 = vmax.f32 %v1492, %v1620
      %v1765 = vmax.f32 %v1497, %v1625
      %v1766 = vmax.f32 %v1500, %v1628
      %v1767 = vmax.f32 %v1505, %v1633
      %v1768 = vmax.f32 %v1508, %v1636
      %v1769 = vmax.f32 %v1513, %v1641
      %v1770 = vmax.f32 %v1516, %v1644
      %v1771 = vmax.f32 %v1521, %v1649
      %v1772 = vmax.f32 %v1524, %v1652
      %v1773 = vmax.f32 %v1529, %v1657
      %v1774 = vmax.f32 %v1532, %v1660
      %v1775 = vmax.f32 %v1537, %v1665
      %v1776 = vmax.f32 %v1540, %v1668
      %v1777 = vmax.f32 %v1545, %v1673
      %v1778 = vmax.f32 %v1548, %v1676
      %v1779 = vmax.f32 %v1553, %v1681
      %v1780 = vmax.f32 %v1556, %v1684
      %v1781 = vmax.f32 %v1561, %v1689
      %v1782 = vmax.f32 %v1564, %v1692
      %v1783 = vmax.f32 %v1569, %v1697
      %v1784 = vmax.f32 %v1572, %v1700
      %v1785 = vmax.f32 %v1577, %v1705
      %v1786 = vmax.f32 %v1580, %v1708
      %v1787 = vmax.f32 %v1585, %v1713
      %v1788 = vmax.f32 %v1588, %v1716
      %v1789 = vmax.f32 %v1593, %v1721
      %v1790 = vmax.f32 %v1596, %v1724
      %v1791 = vmax.f32 %v1727, %v1759
      %v1792 = vmax.f32 %v1728, %v1760
      %v1793 = vmax.f32 %v1729, %v1761
      %v1794 = vmax.f32 %v1730, %v1762
      %v1795 = vmax.f32 %v1731, %v1763
      %v1796 = vmax.f32 %v1732, %v1764
      %v1797 = vmax.f32 %v1733, %v1765
      %v1798 = vmax.f32 %v1734, %v1766
      %v1799 = vmax.f32 %v1735, %v1767
      %v1800 = vmax.f32 %v1736, %v1768
      %v1801 = vmax.f32 %v1737, %v1769
      %v1802 = vmax.f32 %v1738, %v1770
      %v1803 = vmax.f32 %v1739, %v1771
      %v1804 = vmax.f32 %v1740, %v1772
      %v1805 = vmax.f32 %v1741, %v1773
      %v1806 = vmax.f32 %v1742, %v1774
      %v1807 = vmax.f32 %v1743, %v1775
      %v1808 = vmax.f32 %v1744, %v1776
      %v1809 = vmax.f32 %v1745, %v1777
      %v1810 = vmax.f32 %v1746, %v1778
      %v1811 = vmax.f32 %v1747, %v1779
      %v1812 = vmax.f32 %v1748, %v1780
      %v1813 = vmax.f32 %v1749, %v1781
      %v1814 = vmax.f32 %v1750, %v1782
      %v1815 = vmax.f32 %v1751, %v1783
      %v1816 = vmax.f32 %v1752, %v1784
      %v1817 = vmax.f32 %v1753, %v1785
      %v1818 = vmax.f32 %v1754, %v1786
      %v1819 = vmax.f32 %v1755, %v1787
      %v1820 = vmax.f32 %v1756, %v1788
      %v1821 = vmax.f32 %v1757, %v1789
      %v1822 = vmax.f32 %v1758, %v1790
      %v1823 = vld [vmem:[%s2] sm:$0x1]
      %v1825 = vlaneseq
      %v1826 = vshrl.u32 %v1825, 7
      %v1827 = vsub.s32 0, %v1826
      %v1828 = vrot.slane %v1823, %v1827
      %v1830 = vadd.f32 %v1791, %v1828
      %v1831 = vadd.f32 %v1792, %v1828
      %v1832 = vadd.f32 %v1793, %v1828
      %v1833 = vadd.f32 %v1794, %v1828
      %v1834 = vadd.f32 %v1795, %v1828
      %v1835 = vadd.f32 %v1796, %v1828
      %v1836 = vadd.f32 %v1797, %v1828
      %v1837 = vadd.f32 %v1798, %v1828
      %v1838 = vadd.f32 %v1799, %v1828
      %v1839 = vadd.f32 %v1800, %v1828
      %v1840 = vadd.f32 %v1801, %v1828
      %v1841 = vadd.f32 %v1802, %v1828
      %v1842 = vadd.f32 %v1803, %v1828
      %v1843 = vadd.f32 %v1804, %v1828
      %v1844 = vadd.f32 %v1805, %v1828
      %v1845 = vadd.f32 %v1806, %v1828
      %v1846 = vadd.f32 %v1807, %v1828
      %v1847 = vadd.f32 %v1808, %v1828
      %v1848 = vadd.f32 %v1809, %v1828
      %v1849 = vadd.f32 %v1810, %v1828
      %v1850 = vadd.f32 %v1811, %v1828
      %v1851 = vadd.f32 %v1812, %v1828
      %v1852 = vadd.f32 %v1813, %v1828
      %v1853 = vadd.f32 %v1814, %v1828
      %v1854 = vadd.f32 %v1815, %v1828
      %v1855 = vadd.f32 %v1816, %v1828
      %v1856 = vadd.f32 %v1817, %v1828
      %v1857 = vadd.f32 %v1818, %v1828
      %v1858 = vadd.f32 %v1819, %v1828
      %v1859 = vadd.f32 %v1820, %v1828
      %v1860 = vadd.f32 %v1821, %v1828
      %v1861 = vadd.f32 %v1822, %v1828
      %v1862 = vmax.f32 %v1830, 0.0
      %v1863 = vmax.f32 %v1831, 0.0
      %v1864 = vmax.f32 %v1832, 0.0
      %v1865 = vmax.f32 %v1833, 0.0
      %v1866 = vmax.f32 %v1834, 0.0
      %v1867 = vmax.f32 %v1835, 0.0
      %v1868 = vmax.f32 %v1836, 0.0
      %v1869 = vmax.f32 %v1837, 0.0
      %v1870 = vmax.f32 %v1838, 0.0
      %v1871 = vmax.f32 %v1839, 0.0
      %v1872 = vmax.f32 %v1840, 0.0
      %v1873 = vmax.f32 %v1841, 0.0
      %v1874 = vmax.f32 %v1842, 0.0
      %v1875 = vmax.f32 %v1843, 0.0
      %v1876 = vmax.f32 %v1844, 0.0
      %v1877 = vmax.f32 %v1845, 0.0
      %v1878 = vmax.f32 %v1846, 0.0
      %v1879 = vmax.f32 %v1847, 0.0
      %v1880 = vmax.f32 %v1848, 0.0
      %v1881 = vmax.f32 %v1849, 0.0
      %v1882 = vmax.f32 %v1850, 0.0
      %v1883 = vmax.f32 %v1851, 0.0
      %v1884 = vmax.f32 %v1852, 0.0
      %v1885 = vmax.f32 %v1853, 0.0
      %v1886 = vmax.f32 %v1854, 0.0
      %v1887 = vmax.f32 %v1855, 0.0
      %v1888 = vmax.f32 %v1856, 0.0
      %v1889 = vmax.f32 %v1857, 0.0
      %v1890 = vmax.f32 %v1858, 0.0
      %v1891 = vmax.f32 %v1859, 0.0
      %v1892 = vmax.f32 %v1860, 0.0
      %v1893 = vmax.f32 %v1861, 0.0
      %v1894 = vpack.c.bf16 %v1863, %v1862
      %v1895 = vpack.c.bf16 %v1865, %v1864
      %v1896 = vpack.c.bf16 %v1867, %v1866
      %v1897 = vpack.c.bf16 %v1869, %v1868
      %v1898 = vpack.c.bf16 %v1871, %v1870
      %v1899 = vpack.c.bf16 %v1873, %v1872
      %v1900 = vpack.c.bf16 %v1875, %v1874
      %v1901 = vpack.c.bf16 %v1877, %v1876
      %v1902 = vpack.c.bf16 %v1879, %v1878
      %v1903 = vpack.c.bf16 %v1881, %v1880
      %v1904 = vpack.c.bf16 %v1883, %v1882
      %v1905 = vpack.c.bf16 %v1885, %v1884
      %v1906 = vpack.c.bf16 %v1887, %v1886
      %v1907 = vpack.c.bf16 %v1889, %v1888
      %v1908 = vpack.c.bf16 %v1891, %v1890
      %v1909 = vpack.c.bf16 %v1893, %v1892
      %v1910 = vld [vmem:[%s3] sm:$0xf]
      %v1911 = vld [vmem:[%s3 + $0x4] sm:$0xf]
      %v1912 = vld [vmem:[%s3 + $0x8] sm:$0xf]
      %v1913 = vld [vmem:[%s3 + $0xc] sm:$0xf]
      %v1914 = vld [vmem:[%s3 + $0x10] sm:$0xf]
      %v1915 = vld [vmem:[%s3 + $0x14] sm:$0xf]
      %v1916 = vld [vmem:[%s3 + $0x18] sm:$0xf]
      %v1917 = vld [vmem:[%s3 + $0x1c] sm:$0xf]
      %v1918 = vld [vmem:[%s3 + $0x20] sm:$0xf]
      %v1919 = vld [vmem:[%s3 + $0x24] sm:$0xf]
      %v1920 = vld [vmem:[%s3 + $0x28] sm:$0xf]
      %v1921 = vld [vmem:[%s3 + $0x2c] sm:$0xf]
      %v1922 = vld [vmem:[%s3 + $0x30] sm:$0xf]
      %v1923 = vld [vmem:[%s3 + $0x34] sm:$0xf]
      %v1924 = vld [vmem:[%s3 + $0x38] sm:$0xf]
      %v1925 = vld [vmem:[%s3 + $0x3c] sm:$0xf]
      %v1926 = vld [vmem:[%s3 + $0x40] sm:$0xf]
      %v1927 = vld [vmem:[%s3 + $0x44] sm:$0xf]
      %v1928 = vld [vmem:[%s3 + $0x48] sm:$0xf]
      %v1929 = vld [vmem:[%s3 + $0x4c] sm:$0xf]
      %v1930 = vld [vmem:[%s3 + $0x50] sm:$0xf]
      %v1931 = vld [vmem:[%s3 + $0x54] sm:$0xf]
      %v1932 = vld [vmem:[%s3 + $0x58] sm:$0xf]
      %v1933 = vld [vmem:[%s3 + $0x5c] sm:$0xf]
      %v1934 = vld [vmem:[%s3 + $0x60] sm:$0xf]
      %v1935 = vld [vmem:[%s3 + $0x64] sm:$0xf]
      %v1936 = vld [vmem:[%s3 + $0x68] sm:$0xf]
      %v1937 = vld [vmem:[%s3 + $0x6c] sm:$0xf]
      %v1938 = vld [vmem:[%s3 + $0x70] sm:$0xf]
      %v1939 = vld [vmem:[%s3 + $0x74] sm:$0xf]
      %v1940 = vld [vmem:[%s3 + $0x78] sm:$0xf]
      %v1941 = vld [vmem:[%s3 + $0x7c] sm:$0xf]
      %v1942 = vld [vmem:[%s3 + $0x80] sm:$0xf]
      %v1943 = vld [vmem:[%s3 + $0x84] sm:$0xf]
      %v1944 = vld [vmem:[%s3 + $0x88] sm:$0xf]
      %v1945 = vld [vmem:[%s3 + $0x8c] sm:$0xf]
      %v1946 = vld [vmem:[%s3 + $0x90] sm:$0xf]
      %v1947 = vld [vmem:[%s3 + $0x94] sm:$0xf]
      %v1948 = vld [vmem:[%s3 + $0x98] sm:$0xf]
      %v1949 = vld [vmem:[%s3 + $0x9c] sm:$0xf]
      %v1950 = vld [vmem:[%s3 + $0xa0] sm:$0xf]
      %v1951 = vld [vmem:[%s3 + $0xa4] sm:$0xf]
      %v1952 = vld [vmem:[%s3 + $0xa8] sm:$0xf]
      %v1953 = vld [vmem:[%s3 + $0xac] sm:$0xf]
      %v1954 = vld [vmem:[%s3 + $0xb0] sm:$0xf]
      %v1955 = vld [vmem:[%s3 + $0xb4] sm:$0xf]
      %v1956 = vld [vmem:[%s3 + $0xb8] sm:$0xf]
      %v1957 = vld [vmem:[%s3 + $0xbc] sm:$0xf]
      %v1958 = vld [vmem:[%s3 + $0xc0] sm:$0xf]
      %v1959 = vld [vmem:[%s3 + $0xc4] sm:$0xf]
      %v1960 = vld [vmem:[%s3 + $0xc8] sm:$0xf]
      %v1961 = vld [vmem:[%s3 + $0xcc] sm:$0xf]
      %v1962 = vld [vmem:[%s3 + $0xd0] sm:$0xf]
      %v1963 = vld [vmem:[%s3 + $0xd4] sm:$0xf]
      %v1964 = vld [vmem:[%s3 + $0xd8] sm:$0xf]
      %v1965 = vld [vmem:[%s3 + $0xdc] sm:$0xf]
      %v1966 = vld [vmem:[%s3 + $0xe0] sm:$0xf]
      %v1967 = vld [vmem:[%s3 + $0xe4] sm:$0xf]
      %v1968 = vld [vmem:[%s3 + $0xe8] sm:$0xf]
      %v1969 = vld [vmem:[%s3 + $0xec] sm:$0xf]
      %v1970 = vld [vmem:[%s3 + $0xf0] sm:$0xf]
      %v1971 = vld [vmem:[%s3 + $0xf4] sm:$0xf]
      %v1972 = vld [vmem:[%s3 + $0xf8] sm:$0xf]
      %v1973 = vld [vmem:[%s3 + $0xfc] sm:$0xf]
      %v1978 = vunpack.c.l.b16 %v1914
      %v1979 = vunpack.c.l.b16 %v1915
      %v1980 = vunpack.c.l.b16 %v1916
      %v1981 = vunpack.c.l.b16 %v1917
      %v1982 = vpack.c.b16 %v1979, %v1978
      %v1983 = vpack.c.b16 %v1981, %v1980
      %vm1986 = vcmask 261120
      %v1988 = vsel %vm1986, %v1895, 0
      %1990 = vmatprep.subr.bf16.mxu0 0
      %1991 = vmatpush1.bf16.msra.mxu0 %v1982
      %1992 = vmatprep.subr.bf16.mxu0 0
      %1993 = vmatpush1.bf16.msra.mxu0 %v1983
      %1994 = vmatprep.subr.bf16.mxu0 0
      %1995 = vmatpush1.bf16.msra.mxu0 0
      %1996 = vmatprep.subr.bf16.mxu0 0
      %1997 = vmatpush1.bf16.msra.mxu0 0
      %1998 = vmatprep.subr.bf16.mxu0 0
      %1999 = vmatpush1.bf16.msra.mxu0 0
      %2000 = vmatprep.subr.bf16.mxu0 0
      %2001 = vmatpush1.bf16.msra.mxu0 0
      %2002 = vmatprep.subr.bf16.mxu0 0
      %2003 = vmatpush1.bf16.msra.mxu0 0
      %2004 = vmatprep.subr.bf16.mxu0 0
      %2005 = vmatpush1.bf16.msra.mxu0 0
      %2006 = vmatprep.subr.bf16.mxu0 0
      %2007 = vmatpush1.bf16.msra.mxu0 0
      %2008 = vmatprep.subr.bf16.mxu0 0
      %2009 = vmatpush1.bf16.msra.mxu0 0
      %2010 = vmatprep.subr.bf16.mxu0 0
      %2011 = vmatpush1.bf16.msra.mxu0 0
      %2012 = vmatprep.subr.bf16.mxu0 0
      %2013 = vmatpush1.bf16.msra.mxu0 0
      %2014 = vmatprep.subr.bf16.mxu0 0
      %2015 = vmatpush1.bf16.msra.mxu0 0
      %2016 = vmatprep.subr.bf16.mxu0 0
      %2017 = vmatpush1.bf16.msra.mxu0 0
      %2018 = vmatprep.subr.bf16.mxu0 0
      %2019 = vmatpush1.bf16.msra.mxu0 0
      %2020 = vmatprep.subr.bf16.mxu0 0
      %2021 = vmatpush1.bf16.msra.mxu0 0
      %2022 = vmatprep.mubr.bf16.mxu0 0
      %2023 = vmatmul.mubr.bf16.gmra.mrb[0].mxu0 %v1988
      %v2024 = vpop.f32.mrb[0].mxu0
      %v2025 = vadd.f32 0.0, %v2024
      %v2026 = vpop.f32.mrb[0].mxu0
      %v2027 = vpop.f32.mrb[0].mxu0
      %v2028 = vadd.f32 0.0, %v2027
      %v2029 = vpop.f32.mrb[0].mxu0
      %2030 = vdwg.mxu0
      %v2035 = vunpack.c.l.b16 %v1910
      %v2036 = vunpack.c.l.b16 %v1911
      %v2037 = vunpack.c.l.b16 %v1912
      %v2038 = vunpack.c.l.b16 %v1913
      %v2039 = vpack.c.b16 %v2036, %v2035
      %v2040 = vpack.c.b16 %v2038, %v2037
      %v2044 = vsel %vm1986, %v1894, 0
      %2046 = vmatprep.subr.bf16.mxu0 0
      %2047 = vmatpush1.bf16.msra.mxu0 %v2039
      %2048 = vmatprep.subr.bf16.mxu0 0
      %2049 = vmatpush1.bf16.msra.mxu0 %v2040
      %2050 = vmatprep.subr.bf16.mxu0 0
      %2051 = vmatpush1.bf16.msra.mxu0 0
      %2052 = vmatprep.subr.bf16.mxu0 0
      %2053 = vmatpush1.bf16.msra.mxu0 0
      %2054 = vmatprep.subr.bf16.mxu0 0
      %2055 = vmatpush1.bf16.msra.mxu0 0
      %2056 = vmatprep.subr.bf16.mxu0 0
      %2057 = vmatpush1.bf16.msra.mxu0 0
      %2058 = vmatprep.subr.bf16.mxu0 0
      %2059 = vmatpush1.bf16.msra.mxu0 0
      %2060 = vmatprep.subr.bf16.mxu0 0
      %2061 = vmatpush1.bf16.msra.mxu0 0
      %2062 = vmatprep.subr.bf16.mxu0 0
      %2063 = vmatpush1.bf16.msra.mxu0 0
      %2064 = vmatprep.subr.bf16.mxu0 0
      %2065 = vmatpush1.bf16.msra.mxu0 0
      %2066 = vmatprep.subr.bf16.mxu0 0
      %2067 = vmatpush1.bf16.msra.mxu0 0
      %2068 = vmatprep.subr.bf16.mxu0 0
      %2069 = vmatpush1.bf16.msra.mxu0 0
      %2070 = vmatprep.subr.bf16.mxu0 0
      %2071 = vmatpush1.bf16.msra.mxu0 0
      %2072 = vmatprep.subr.bf16.mxu0 0
      %2073 = vmatpush1.bf16.msra.mxu0 0
      %2074 = vmatprep.subr.bf16.mxu0 0
      %2075 = vmatpush1.bf16.msra.mxu0 0
      %2076 = vmatprep.subr.bf16.mxu0 0
      %2077 = vmatpush1.bf16.msra.mxu0 0
      %2078 = vmatprep.mubr.bf16.mxu0 0
      %2079 = vmatmul.mubr.bf16.gmra.mrb[0].mxu0 %v2044
      %v2080 = vpop.f32.mrb[0].mxu0
      %v2081 = vadd.f32 %v2025, %v2080
      %v2082 = vpop.f32.mrb[0].mxu0
      %v2083 = vpop.f32.mrb[0].mxu0
      %v2084 = vadd.f32 %v2028, %v2083
      %v2085 = vpop.f32.mrb[0].mxu0
      %2086 = vdwg.mxu0
      %v2091 = vunpack.c.l.b16 %v1918
      %v2092 = vunpack.c.l.b16 %v1919
      %v2093 = vunpack.c.l.b16 %v1920
      %v2094 = vunpack.c.l.b16 %v1921
      %v2095 = vpack.c.b16 %v2092, %v2091
      %v2096 = vpack.c.b16 %v2094, %v2093
      %v2100 = vsel %vm1986, %v1896, 0
      %2102 = vmatprep.subr.bf16.mxu0 0
      %2103 = vmatpush1.bf16.msra.mxu0 %v2095
      %2104 = vmatprep.subr.bf16.mxu0 0
      %2105 = vmatpush1.bf16.msra.mxu0 %v2096
      %2106 = vmatprep.subr.bf16.mxu0 0
      %2107 = vmatpush1.bf16.msra.mxu0 0
      %2108 = vmatprep.subr.bf16.mxu0 0
      %2109 = vmatpush1.bf16.msra.mxu0 0
      %2110 = vmatprep.subr.bf16.mxu0 0
      %2111 = vmatpush1.bf16.msra.mxu0 0
      %2112 = vmatprep.subr.bf16.mxu0 0
      %2113 = vmatpush1.bf16.msra.mxu0 0
      %2114 = vmatprep.subr.bf16.mxu0 0
      %2115 = vmatpush1.bf16.msra.mxu0 0
      %2116 = vmatprep.subr.bf16.mxu0 0
      %2117 = vmatpush1.bf16.msra.mxu0 0
      %2118 = vmatprep.subr.bf16.mxu0 0
      %2119 = vmatpush1.bf16.msra.mxu0 0
      %2120 = vmatprep.subr.bf16.mxu0 0
      %2121 = vmatpush1.bf16.msra.mxu0 0
      %2122 = vmatprep.subr.bf16.mxu0 0
      %2123 = vmatpush1.bf16.msra.mxu0 0
      %2124 = vmatprep.subr.bf16.mxu0 0
      %2125 = vmatpush1.bf16.msra.mxu0 0
      %2126 = vmatprep.subr.bf16.mxu0 0
      %2127 = vmatpush1.bf16.msra.mxu0 0
      %2128 = vmatprep.subr.bf16.mxu0 0
      %2129 = vmatpush1.bf16.msra.mxu0 0
      %2130 = vmatprep.subr.bf16.mxu0 0
      %2131 = vmatpush1.bf16.msra.mxu0 0
      %2132 = vmatprep.subr.bf16.mxu0 0
      %2133 = vmatpush1.bf16.msra.mxu0 0
      %2134 = vmatprep.mubr.bf16.mxu0 0
      %2135 = vmatmul.mubr.bf16.gmra.mrb[0].mxu0 %v2100
      %v2136 = vpop.f32.mrb[0].mxu0
      %v2137 = vadd.f32 0.0, %v2136
      %v2138 = vpop.f32.mrb[0].mxu0
      %v2139 = vpop.f32.mrb[0].mxu0
      %v2140 = vadd.f32 0.0, %v2139
      %v2141 = vpop.f32.mrb[0].mxu0
      %2142 = vdwg.mxu0
      %v2143 = vadd.f32 %v2081, %v2137
      %v2144 = vadd.f32 %v2084, %v2140
      %v2149 = vunpack.c.l.b16 %v1922
      %v2150 = vunpack.c.l.b16 %v1923
      %v2151 = vunpack.c.l.b16 %v1924
      %v2152 = vunpack.c.l.b16 %v1925
      %v2153 = vpack.c.b16 %v2150, %v2149
      %v2154 = vpack.c.b16 %v2152, %v2151
      %v2158 = vsel %vm1986, %v1897, 0
      %2160 = vmatprep.subr.bf16.mxu0 0
      %2161 = vmatpush1.bf16.msra.mxu0 %v2153
      %2162 = vmatprep.subr.bf16.mxu0 0
      %2163 = vmatpush1.bf16.msra.mxu0 %v2154
      %2164 = vmatprep.subr.bf16.mxu0 0
      %2165 = vmatpush1.bf16.msra.mxu0 0
      %2166 = vmatprep.subr.bf16.mxu0 0
      %2167 = vmatpush1.bf16.msra.mxu0 0
      %2168 = vmatprep.subr.bf16.mxu0 0
      %2169 = vmatpush1.bf16.msra.mxu0 0
      %2170 = vmatprep.subr.bf16.mxu0 0
      %2171 = vmatpush1.bf16.msra.mxu0 0
      %2172 = vmatprep.subr.bf16.mxu0 0
      %2173 = vmatpush1.bf16.msra.mxu0 0
      %2174 = vmatprep.subr.bf16.mxu0 0
      %2175 = vmatpush1.bf16.msra.mxu0 0
      %2176 = vmatprep.subr.bf16.mxu0 0
      %2177 = vmatpush1.bf16.msra.mxu0 0
      %2178 = vmatprep.subr.bf16.mxu0 0
      %2179 = vmatpush1.bf16.msra.mxu0 0
      %2180 = vmatprep.subr.bf16.mxu0 0
      %2181 = vmatpush1.bf16.msra.mxu0 0
      %2182 = vmatprep.subr.bf16.mxu0 0
      %2183 = vmatpush1.bf16.msra.mxu0 0
      %2184 = vmatprep.subr.bf16.mxu0 0
      %2185 = vmatpush1.bf16.msra.mxu0 0
      %2186 = vmatprep.subr.bf16.mxu0 0
      %2187 = vmatpush1.bf16.msra.mxu0 0
      %2188 = vmatprep.subr.bf16.mxu0 0
      %2189 = vmatpush1.bf16.msra.mxu0 0
      %2190 = vmatprep.subr.bf16.mxu0 0
      %2191 = vmatpush1.bf16.msra.mxu0 0
      %2192 = vmatprep.mubr.bf16.mxu0 0
      %2193 = vmatmul.mubr.bf16.gmra.mrb[0].mxu0 %v2158
      %v2194 = vpop.f32.mrb[0].mxu0
      %v2195 = vadd.f32 0.0, %v2194
      %v2196 = vpop.f32.mrb[0].mxu0
      %v2197 = vpop.f32.mrb[0].mxu0
      %v2198 = vadd.f32 0.0, %v2197
      %v2199 = vpop.f32.mrb[0].mxu0
      %2200 = vdwg.mxu0
      %v2201 = vadd.f32 %v2143, %v2195
      %v2202 = vadd.f32 %v2144, %v2198
      %v2207 = vunpack.c.l.b16 %v1926
      %v2208 = vunpack.c.l.b16 %v1927
      %v2209 = vunpack.c.l.b16 %v1928
      %v2210 = vunpack.c.l.b16 %v1929
      %v2211 = vpack.c.b16 %v2208, %v2207
      %v2212 = vpack.c.b16 %v2210, %v2209
      %v2216 = vsel %vm1986, %v1898, 0
      %2218 = vmatprep.subr.bf16.mxu0 0
      %2219 = vmatpush1.bf16.msra.mxu0 %v2211
      %2220 = vmatprep.subr.bf16.mxu0 0
      %2221 = vmatpush1.bf16.msra.mxu0 %v2212
      %2222 = vmatprep.subr.bf16.mxu0 0
      %2223 = vmatpush1.bf16.msra.mxu0 0
      %2224 = vmatprep.subr.bf16.mxu0 0
      %2225 = vmatpush1.bf16.msra.mxu0 0
      %2226 = vmatprep.subr.bf16.mxu0 0
      %2227 = vmatpush1.bf16.msra.mxu0 0
      %2228 = vmatprep.subr.bf16.mxu0 0
      %2229 = vmatpush1.bf16.msra.mxu0 0
      %2230 = vmatprep.subr.bf16.mxu0 0
      %2231 = vmatpush1.bf16.msra.mxu0 0
      %2232 = vmatprep.subr.bf16.mxu0 0
      %2233 = vmatpush1.bf16.msra.mxu0 0
      %2234 = vmatprep.subr.bf16.mxu0 0
      %2235 = vmatpush1.bf16.msra.mxu0 0
      %2236 = vmatprep.subr.bf16.mxu0 0
      %2237 = vmatpush1.bf16.msra.mxu0 0
      %2238 = vmatprep.subr.bf16.mxu0 0
      %2239 = vmatpush1.bf16.msra.mxu0 0
      %2240 = vmatprep.subr.bf16.mxu0 0
      %2241 = vmatpush1.bf16.msra.mxu0 0
      %2242 = vmatprep.subr.bf16.mxu0 0
      %2243 = vmatpush1.bf16.msra.mxu0 0
      %2244 = vmatprep.subr.bf16.mxu0 0
      %2245 = vmatpush1.bf16.msra.mxu0 0
      %2246 = vmatprep.subr.bf16.mxu0 0
      %2247 = vmatpush1.bf16.msra.mxu0 0
      %2248 = vmatprep.subr.bf16.mxu0 0
      %2249 = vmatpush1.bf16.msra.mxu0 0
      %2250 = vmatprep.mubr.bf16.mxu0 0
      %2251 = vmatmul.mubr.bf16.gmra.mrb[0].mxu0 %v2216
      %v2252 = vpop.f32.mrb[0].mxu0
      %v2253 = vadd.f32 0.0, %v2252
      %v2254 = vpop.f32.mrb[0].mxu0
      %v2255 = vpop.f32.mrb[0].mxu0
      %v2256 = vadd.f32 0.0, %v2255
      %v2257 = vpop.f32.mrb[0].mxu0
      %2258 = vdwg.mxu0
      %v2259 = vadd.f32 %v2201, %v2253
      %v2260 = vadd.f32 %v2202, %v2256
      %v2265 = vunpack.c.l.b16 %v1930
      %v2266 = vunpack.c.l.b16 %v1931
      %v2267 = vunpack.c.l.b16 %v1932
      %v2268 = vunpack.c.l.b16 %v1933
      %v2269 = vpack.c.b16 %v2266, %v2265
      %v2270 = vpack.c.b16 %v2268, %v2267
      %v2274 = vsel %vm1986, %v1899, 0
      %2276 = vmatprep.subr.bf16.mxu0 0
      %2277 = vmatpush1.bf16.msra.mxu0 %v2269
      %2278 = vmatprep.subr.bf16.mxu0 0
      %2279 = vmatpush1.bf16.msra.mxu0 %v2270
      %2280 = vmatprep.subr.bf16.mxu0 0
      %2281 = vmatpush1.bf16.msra.mxu0 0
      %2282 = vmatprep.subr.bf16.mxu0 0
      %2283 = vmatpush1.bf16.msra.mxu0 0
      %2284 = vmatprep.subr.bf16.mxu0 0
      %2285 = vmatpush1.bf16.msra.mxu0 0
      %2286 = vmatprep.subr.bf16.mxu0 0
      %2287 = vmatpush1.bf16.msra.mxu0 0
      %2288 = vmatprep.subr.bf16.mxu0 0
      %2289 = vmatpush1.bf16.msra.mxu0 0
      %2290 = vmatprep.subr.bf16.mxu0 0
      %2291 = vmatpush1.bf16.msra.mxu0 0
      %2292 = vmatprep.subr.bf16.mxu0 0
      %2293 = vmatpush1.bf16.msra.mxu0 0
      %2294 = vmatprep.subr.bf16.mxu0 0
      %2295 = vmatpush1.bf16.msra.mxu0 0
      %2296 = vmatprep.subr.bf16.mxu0 0
      %2297 = vmatpush1.bf16.msra.mxu0 0
      %2298 = vmatprep.subr.bf16.mxu0 0
      %2299 = vmatpush1.bf16.msra.mxu0 0
      %2300 = vmatprep.subr.bf16.mxu0 0
      %2301 = vmatpush1.bf16.msra.mxu0 0
      %2302 = vmatprep.subr.bf16.mxu0 0
      %2303 = vmatpush1.bf16.msra.mxu0 0
      %2304 = vmatprep.subr.bf16.mxu0 0
      %2305 = vmatpush1.bf16.msra.mxu0 0
      %2306 = vmatprep.subr.bf16.mxu0 0
      %2307 = vmatpush1.bf16.msra.mxu0 0
      %2308 = vmatprep.mubr.bf16.mxu0 0
      %2309 = vmatmul.mubr.bf16.gmra.mrb[0].mxu0 %v2274
      %v2310 = vpop.f32.mrb[0].mxu0
      %v2311 = vadd.f32 0.0, %v2310
      %v2312 = vpop.f32.mrb[0].mxu0
      %v2313 = vpop.f32.mrb[0].mxu0
      %v2314 = vadd.f32 0.0, %v2313
      %v2315 = vpop.f32.mrb[0].mxu0
      %2316 = vdwg.mxu0
      %v2317 = vadd.f32 %v2259, %v2311
      %v2318 = vadd.f32 %v2260, %v2314
      %v2323 = vunpack.c.l.b16 %v1934
      %v2324 = vunpack.c.l.b16 %v1935
      %v2325 = vunpack.c.l.b16 %v1936
      %v2326 = vunpack.c.l.b16 %v1937
      %v2327 = vpack.c.b16 %v2324, %v2323
      %v2328 = vpack.c.b16 %v2326, %v2325
      %v2332 = vsel %vm1986, %v1900, 0
      %2334 = vmatprep.subr.bf16.mxu0 0
      %2335 = vmatpush1.bf16.msra.mxu0 %v2327
      %2336 = vmatprep.subr.bf16.mxu0 0
      %2337 = vmatpush1.bf16.msra.mxu0 %v2328
      %2338 = vmatprep.subr.bf16.mxu0 0
      %2339 = vmatpush1.bf16.msra.mxu0 0
      %2340 = vmatprep.subr.bf16.mxu0 0
      %2341 = vmatpush1.bf16.msra.mxu0 0
      %2342 = vmatprep.subr.bf16.mxu0 0
      %2343 = vmatpush1.bf16.msra.mxu0 0
      %2344 = vmatprep.subr.bf16.mxu0 0
      %2345 = vmatpush1.bf16.msra.mxu0 0
      %2346 = vmatprep.subr.bf16.mxu0 0
      %2347 = vmatpush1.bf16.msra.mxu0 0
      %2348 = vmatprep.subr.bf16.mxu0 0
      %2349 = vmatpush1.bf16.msra.mxu0 0
      %2350 = vmatprep.subr.bf16.mxu0 0
      %2351 = vmatpush1.bf16.msra.mxu0 0
      %2352 = vmatprep.subr.bf16.mxu0 0
      %2353 = vmatpush1.bf16.msra.mxu0 0
      %2354 = vmatprep.subr.bf16.mxu0 0
      %2355 = vmatpush1.bf16.msra.mxu0 0
      %2356 = vmatprep.subr.bf16.mxu0 0
      %2357 = vmatpush1.bf16.msra.mxu0 0
      %2358 = vmatprep.subr.bf16.mxu0 0
      %2359 = vmatpush1.bf16.msra.mxu0 0
      %2360 = vmatprep.subr.bf16.mxu0 0
      %2361 = vmatpush1.bf16.msra.mxu0 0
      %2362 = vmatprep.subr.bf16.mxu0 0
      %2363 = vmatpush1.bf16.msra.mxu0 0
      %2364 = vmatprep.subr.bf16.mxu0 0
      %2365 = vmatpush1.bf16.msra.mxu0 0
      %2366 = vmatprep.mubr.bf16.mxu0 0
      %2367 = vmatmul.mubr.bf16.gmra.mrb[0].mxu0 %v2332
      %v2368 = vpop.f32.mrb[0].mxu0
      %v2369 = vadd.f32 0.0, %v2368
      %v2370 = vpop.f32.mrb[0].mxu0
      %v2371 = vpop.f32.mrb[0].mxu0
      %v2372 = vadd.f32 0.0, %v2371
      %v2373 = vpop.f32.mrb[0].mxu0
      %2374 = vdwg.mxu0
      %v2375 = vadd.f32 %v2317, %v2369
      %v2376 = vadd.f32 %v2318, %v2372
      %v2381 = vunpack.c.l.b16 %v1938
      %v2382 = vunpack.c.l.b16 %v1939
      %v2383 = vunpack.c.l.b16 %v1940
      %v2384 = vunpack.c.l.b16 %v1941
      %v2385 = vpack.c.b16 %v2382, %v2381
      %v2386 = vpack.c.b16 %v2384, %v2383
      %v2390 = vsel %vm1986, %v1901, 0
      %2392 = vmatprep.subr.bf16.mxu0 0
      %2393 = vmatpush1.bf16.msra.mxu0 %v2385
      %2394 = vmatprep.subr.bf16.mxu0 0
      %2395 = vmatpush1.bf16.msra.mxu0 %v2386
      %2396 = vmatprep.subr.bf16.mxu0 0
      %2397 = vmatpush1.bf16.msra.mxu0 0
      %2398 = vmatprep.subr.bf16.mxu0 0
      %2399 = vmatpush1.bf16.msra.mxu0 0
      %2400 = vmatprep.subr.bf16.mxu0 0
      %2401 = vmatpush1.bf16.msra.mxu0 0
      %2402 = vmatprep.subr.bf16.mxu0 0
      %2403 = vmatpush1.bf16.msra.mxu0 0
      %2404 = vmatprep.subr.bf16.mxu0 0
      %2405 = vmatpush1.bf16.msra.mxu0 0
      %2406 = vmatprep.subr.bf16.mxu0 0
      %2407 = vmatpush1.bf16.msra.mxu0 0
      %2408 = vmatprep.subr.bf16.mxu0 0
      %2409 = vmatpush1.bf16.msra.mxu0 0
      %2410 = vmatprep.subr.bf16.mxu0 0
      %2411 = vmatpush1.bf16.msra.mxu0 0
      %2412 = vmatprep.subr.bf16.mxu0 0
      %2413 = vmatpush1.bf16.msra.mxu0 0
      %2414 = vmatprep.subr.bf16.mxu0 0
      %2415 = vmatpush1.bf16.msra.mxu0 0
      %2416 = vmatprep.subr.bf16.mxu0 0
      %2417 = vmatpush1.bf16.msra.mxu0 0
      %2418 = vmatprep.subr.bf16.mxu0 0
      %2419 = vmatpush1.bf16.msra.mxu0 0
      %2420 = vmatprep.subr.bf16.mxu0 0
      %2421 = vmatpush1.bf16.msra.mxu0 0
      %2422 = vmatprep.subr.bf16.mxu0 0
      %2423 = vmatpush1.bf16.msra.mxu0 0
      %2424 = vmatprep.mubr.bf16.mxu0 0
      %2425 = vmatmul.mubr.bf16.gmra.mrb[0].mxu0 %v2390
      %v2426 = vpop.f32.mrb[0].mxu0
      %v2427 = vadd.f32 0.0, %v2426
      %v2428 = vpop.f32.mrb[0].mxu0
      %v2429 = vpop.f32.mrb[0].mxu0
      %v2430 = vadd.f32 0.0, %v2429
      %v2431 = vpop.f32.mrb[0].mxu0
      %2432 = vdwg.mxu0
      %v2433 = vadd.f32 %v2375, %v2427
      %v2434 = vadd.f32 %v2376, %v2430
      %v2439 = vunpack.c.l.b16 %v1942
      %v2440 = vunpack.c.l.b16 %v1943
      %v2441 = vunpack.c.l.b16 %v1944
      %v2442 = vunpack.c.l.b16 %v1945
      %v2443 = vpack.c.b16 %v2440, %v2439
      %v2444 = vpack.c.b16 %v2442, %v2441
      %v2448 = vsel %vm1986, %v1902, 0
      %2450 = vmatprep.subr.bf16.mxu0 0
      %2451 = vmatpush1.bf16.msra.mxu0 %v2443
      %2452 = vmatprep.subr.bf16.mxu0 0
      %2453 = vmatpush1.bf16.msra.mxu0 %v2444
      %2454 = vmatprep.subr.bf16.mxu0 0
      %2455 = vmatpush1.bf16.msra.mxu0 0
      %2456 = vmatprep.subr.bf16.mxu0 0
      %2457 = vmatpush1.bf16.msra.mxu0 0
      %2458 = vmatprep.subr.bf16.mxu0 0
      %2459 = vmatpush1.bf16.msra.mxu0 0
      %2460 = vmatprep.subr.bf16.mxu0 0
      %2461 = vmatpush1.bf16.msra.mxu0 0
      %2462 = vmatprep.subr.bf16.mxu0 0
      %2463 = vmatpush1.bf16.msra.mxu0 0
      %2464 = vmatprep.subr.bf16.mxu0 0
      %2465 = vmatpush1.bf16.msra.mxu0 0
      %2466 = vmatprep.subr.bf16.mxu0 0
      %2467 = vmatpush1.bf16.msra.mxu0 0
      %2468 = vmatprep.subr.bf16.mxu0 0
      %2469 = vmatpush1.bf16.msra.mxu0 0
      %2470 = vmatprep.subr.bf16.mxu0 0
      %2471 = vmatpush1.bf16.msra.mxu0 0
      %2472 = vmatprep.subr.bf16.mxu0 0
      %2473 = vmatpush1.bf16.msra.mxu0 0
      %2474 = vmatprep.subr.bf16.mxu0 0
      %2475 = vmatpush1.bf16.msra.mxu0 0
      %2476 = vmatprep.subr.bf16.mxu0 0
      %2477 = vmatpush1.bf16.msra.mxu0 0
      %2478 = vmatprep.subr.bf16.mxu0 0
      %2479 = vmatpush1.bf16.msra.mxu0 0
      %2480 = vmatprep.subr.bf16.mxu0 0
      %2481 = vmatpush1.bf16.msra.mxu0 0
      %2482 = vmatprep.mubr.bf16.mxu0 0
      %2483 = vmatmul.mubr.bf16.gmra.mrb[0].mxu0 %v2448
      %v2484 = vpop.f32.mrb[0].mxu0
      %v2485 = vadd.f32 0.0, %v2484
      %v2486 = vpop.f32.mrb[0].mxu0
      %v2487 = vpop.f32.mrb[0].mxu0
      %v2488 = vadd.f32 0.0, %v2487
      %v2489 = vpop.f32.mrb[0].mxu0
      %2490 = vdwg.mxu0
      %v2491 = vadd.f32 %v2433, %v2485
      %v2492 = vadd.f32 %v2434, %v2488
      %v2497 = vunpack.c.l.b16 %v1946
      %v2498 = vunpack.c.l.b16 %v1947
      %v2499 = vunpack.c.l.b16 %v1948
      %v2500 = vunpack.c.l.b16 %v1949
      %v2501 = vpack.c.b16 %v2498, %v2497
      %v2502 = vpack.c.b16 %v2500, %v2499
      %v2506 = vsel %vm1986, %v1903, 0
      %2508 = vmatprep.subr.bf16.mxu0 0
      %2509 = vmatpush1.bf16.msra.mxu0 %v2501
      %2510 = vmatprep.subr.bf16.mxu0 0
      %2511 = vmatpush1.bf16.msra.mxu0 %v2502
      %2512 = vmatprep.subr.bf16.mxu0 0
      %2513 = vmatpush1.bf16.msra.mxu0 0
      %2514 = vmatprep.subr.bf16.mxu0 0
      %2515 = vmatpush1.bf16.msra.mxu0 0
      %2516 = vmatprep.subr.bf16.mxu0 0
      %2517 = vmatpush1.bf16.msra.mxu0 0
      %2518 = vmatprep.subr.bf16.mxu0 0
      %2519 = vmatpush1.bf16.msra.mxu0 0
      %2520 = vmatprep.subr.bf16.mxu0 0
      %2521 = vmatpush1.bf16.msra.mxu0 0
      %2522 = vmatprep.subr.bf16.mxu0 0
      %2523 = vmatpush1.bf16.msra.mxu0 0
      %2524 = vmatprep.subr.bf16.mxu0 0
      %2525 = vmatpush1.bf16.msra.mxu0 0
      %2526 = vmatprep.subr.bf16.mxu0 0
      %2527 = vmatpush1.bf16.msra.mxu0 0
      %2528 = vmatprep.subr.bf16.mxu0 0
      %2529 = vmatpush1.bf16.msra.mxu0 0
      %2530 = vmatprep.subr.bf16.mxu0 0
      %2531 = vmatpush1.bf16.msra.mxu0 0
      %2532 = vmatprep.subr.bf16.mxu0 0
      %2533 = vmatpush1.bf16.msra.mxu0 0
      %2534 = vmatprep.subr.bf16.mxu0 0
      %2535 = vmatpush1.bf16.msra.mxu0 0
      %2536 = vmatprep.subr.bf16.mxu0 0
      %2537 = vmatpush1.bf16.msra.mxu0 0
      %2538 = vmatprep.subr.bf16.mxu0 0
      %2539 = vmatpush1.bf16.msra.mxu0 0
      %2540 = vmatprep.mubr.bf16.mxu0 0
      %2541 = vmatmul.mubr.bf16.gmra.mrb[0].mxu0 %v2506
      %v2542 = vpop.f32.mrb[0].mxu0
      %v2543 = vadd.f32 0.0, %v2542
      %v2544 = vpop.f32.mrb[0].mxu0
      %v2545 = vpop.f32.mrb[0].mxu0
      %v2546 = vadd.f32 0.0, %v2545
      %v2547 = vpop.f32.mrb[0].mxu0
      %2548 = vdwg.mxu0
      %v2549 = vadd.f32 %v2491, %v2543
      %v2550 = vadd.f32 %v2492, %v2546
      %v2555 = vunpack.c.l.b16 %v1950
      %v2556 = vunpack.c.l.b16 %v1951
      %v2557 = vunpack.c.l.b16 %v1952
      %v2558 = vunpack.c.l.b16 %v1953
      %v2559 = vpack.c.b16 %v2556, %v2555
      %v2560 = vpack.c.b16 %v2558, %v2557
      %v2564 = vsel %vm1986, %v1904, 0
      %2566 = vmatprep.subr.bf16.mxu0 0
      %2567 = vmatpush1.bf16.msra.mxu0 %v2559
      %2568 = vmatprep.subr.bf16.mxu0 0
      %2569 = vmatpush1.bf16.msra.mxu0 %v2560
      %2570 = vmatprep.subr.bf16.mxu0 0
      %2571 = vmatpush1.bf16.msra.mxu0 0
      %2572 = vmatprep.subr.bf16.mxu0 0
      %2573 = vmatpush1.bf16.msra.mxu0 0
      %2574 = vmatprep.subr.bf16.mxu0 0
      %2575 = vmatpush1.bf16.msra.mxu0 0
      %2576 = vmatprep.subr.bf16.mxu0 0
      %2577 = vmatpush1.bf16.msra.mxu0 0
      %2578 = vmatprep.subr.bf16.mxu0 0
      %2579 = vmatpush1.bf16.msra.mxu0 0
      %2580 = vmatprep.subr.bf16.mxu0 0
      %2581 = vmatpush1.bf16.msra.mxu0 0
      %2582 = vmatprep.subr.bf16.mxu0 0
      %2583 = vmatpush1.bf16.msra.mxu0 0
      %2584 = vmatprep.subr.bf16.mxu0 0
      %2585 = vmatpush1.bf16.msra.mxu0 0
      %2586 = vmatprep.subr.bf16.mxu0 0
      %2587 = vmatpush1.bf16.msra.mxu0 0
      %2588 = vmatprep.subr.bf16.mxu0 0
      %2589 = vmatpush1.bf16.msra.mxu0 0
      %2590 = vmatprep.subr.bf16.mxu0 0
      %2591 = vmatpush1.bf16.msra.mxu0 0
      %2592 = vmatprep.subr.bf16.mxu0 0
      %2593 = vmatpush1.bf16.msra.mxu0 0
      %2594 = vmatprep.subr.bf16.mxu0 0
      %2595 = vmatpush1.bf16.msra.mxu0 0
      %2596 = vmatprep.subr.bf16.mxu0 0
      %2597 = vmatpush1.bf16.msra.mxu0 0
      %2598 = vmatprep.mubr.bf16.mxu0 0
      %2599 = vmatmul.mubr.bf16.gmra.mrb[0].mxu0 %v2564
      %v2600 = vpop.f32.mrb[0].mxu0
      %v2601 = vadd.f32 0.0, %v2600
      %v2602 = vpop.f32.mrb[0].mxu0
      %v2603 = vpop.f32.mrb[0].mxu0
      %v2604 = vadd.f32 0.0, %v2603
      %v2605 = vpop.f32.mrb[0].mxu0
      %2606 = vdwg.mxu0
      %v2607 = vadd.f32 %v2549, %v2601
      %v2608 = vadd.f32 %v2550, %v2604
      %v2613 = vunpack.c.l.b16 %v1954
      %v2614 = vunpack.c.l.b16 %v1955
      %v2615 = vunpack.c.l.b16 %v1956
      %v2616 = vunpack.c.l.b16 %v1957
      %v2617 = vpack.c.b16 %v2614, %v2613
      %v2618 = vpack.c.b16 %v2616, %v2615
      %v2622 = vsel %vm1986, %v1905, 0
      %2624 = vmatprep.subr.bf16.mxu0 0
      %2625 = vmatpush1.bf16.msra.mxu0 %v2617
      %2626 = vmatprep.subr.bf16.mxu0 0
      %2627 = vmatpush1.bf16.msra.mxu0 %v2618
      %2628 = vmatprep.subr.bf16.mxu0 0
      %2629 = vmatpush1.bf16.msra.mxu0 0
      %2630 = vmatprep.subr.bf16.mxu0 0
      %2631 = vmatpush1.bf16.msra.mxu0 0
      %2632 = vmatprep.subr.bf16.mxu0 0
      %2633 = vmatpush1.bf16.msra.mxu0 0
      %2634 = vmatprep.subr.bf16.mxu0 0
      %2635 = vmatpush1.bf16.msra.mxu0 0
      %2636 = vmatprep.subr.bf16.mxu0 0
      %2637 = vmatpush1.bf16.msra.mxu0 0
      %2638 = vmatprep.subr.bf16.mxu0 0
      %2639 = vmatpush1.bf16.msra.mxu0 0
      %2640 = vmatprep.subr.bf16.mxu0 0
      %2641 = vmatpush1.bf16.msra.mxu0 0
      %2642 = vmatprep.subr.bf16.mxu0 0
      %2643 = vmatpush1.bf16.msra.mxu0 0
      %2644 = vmatprep.subr.bf16.mxu0 0
      %2645 = vmatpush1.bf16.msra.mxu0 0
      %2646 = vmatprep.subr.bf16.mxu0 0
      %2647 = vmatpush1.bf16.msra.mxu0 0
      %2648 = vmatprep.subr.bf16.mxu0 0
      %2649 = vmatpush1.bf16.msra.mxu0 0
      %2650 = vmatprep.subr.bf16.mxu0 0
      %2651 = vmatpush1.bf16.msra.mxu0 0
      %2652 = vmatprep.subr.bf16.mxu0 0
      %2653 = vmatpush1.bf16.msra.mxu0 0
      %2654 = vmatprep.subr.bf16.mxu0 0
      %2655 = vmatpush1.bf16.msra.mxu0 0
      %2656 = vmatprep.mubr.bf16.mxu0 0
      %2657 = vmatmul.mubr.bf16.gmra.mrb[0].mxu0 %v2622
      %v2658 = vpop.f32.mrb[0].mxu0
      %v2659 = vadd.f32 0.0, %v2658
      %v2660 = vpop.f32.mrb[0].mxu0
      %v2661 = vpop.f32.mrb[0].mxu0
      %v2662 = vadd.f32 0.0, %v2661
      %v2663 = vpop.f32.mrb[0].mxu0
      %2664 = vdwg.mxu0
      %v2665 = vadd.f32 %v2607, %v2659
      %v2666 = vadd.f32 %v2608, %v2662
      %v2671 = vunpack.c.l.b16 %v1958
      %v2672 = vunpack.c.l.b16 %v1959
      %v2673 = vunpack.c.l.b16 %v1960
      %v2674 = vunpack.c.l.b16 %v1961
      %v2675 = vpack.c.b16 %v2672, %v2671
      %v2676 = vpack.c.b16 %v2674, %v2673
      %v2680 = vsel %vm1986, %v1906, 0
      %2682 = vmatprep.subr.bf16.mxu0 0
      %2683 = vmatpush1.bf16.msra.mxu0 %v2675
      %2684 = vmatprep.subr.bf16.mxu0 0
      %2685 = vmatpush1.bf16.msra.mxu0 %v2676
      %2686 = vmatprep.subr.bf16.mxu0 0
      %2687 = vmatpush1.bf16.msra.mxu0 0
      %2688 = vmatprep.subr.bf16.mxu0 0
      %2689 = vmatpush1.bf16.msra.mxu0 0
      %2690 = vmatprep.subr.bf16.mxu0 0
      %2691 = vmatpush1.bf16.msra.mxu0 0
      %2692 = vmatprep.subr.bf16.mxu0 0
      %2693 = vmatpush1.bf16.msra.mxu0 0
      %2694 = vmatprep.subr.bf16.mxu0 0
      %2695 = vmatpush1.bf16.msra.mxu0 0
      %2696 = vmatprep.subr.bf16.mxu0 0
      %2697 = vmatpush1.bf16.msra.mxu0 0
      %2698 = vmatprep.subr.bf16.mxu0 0
      %2699 = vmatpush1.bf16.msra.mxu0 0
      %2700 = vmatprep.subr.bf16.mxu0 0
      %2701 = vmatpush1.bf16.msra.mxu0 0
      %2702 = vmatprep.subr.bf16.mxu0 0
      %2703 = vmatpush1.bf16.msra.mxu0 0
      %2704 = vmatprep.subr.bf16.mxu0 0
      %2705 = vmatpush1.bf16.msra.mxu0 0
      %2706 = vmatprep.subr.bf16.mxu0 0
      %2707 = vmatpush1.bf16.msra.mxu0 0
      %2708 = vmatprep.subr.bf16.mxu0 0
      %2709 = vmatpush1.bf16.msra.mxu0 0
      %2710 = vmatprep.subr.bf16.mxu0 0
      %2711 = vmatpush1.bf16.msra.mxu0 0
      %2712 = vmatprep.subr.bf16.mxu0 0
      %2713 = vmatpush1.bf16.msra.mxu0 0
      %2714 = vmatprep.mubr.bf16.mxu0 0
      %2715 = vmatmul.mubr.bf16.gmra.mrb[0].mxu0 %v2680
      %v2716 = vpop.f32.mrb[0].mxu0
      %v2717 = vadd.f32 0.0, %v2716
      %v2718 = vpop.f32.mrb[0].mxu0
      %v2719 = vpop.f32.mrb[0].mxu0
      %v2720 = vadd.f32 0.0, %v2719
      %v2721 = vpop.f32.mrb[0].mxu0
      %2722 = vdwg.mxu0
      %v2723 = vadd.f32 %v2665, %v2717
      %v2724 = vadd.f32 %v2666, %v2720
      %v2729 = vunpack.c.l.b16 %v1962
      %v2730 = vunpack.c.l.b16 %v1963
      %v2731 = vunpack.c.l.b16 %v1964
      %v2732 = vunpack.c.l.b16 %v1965
      %v2733 = vpack.c.b16 %v2730, %v2729
      %v2734 = vpack.c.b16 %v2732, %v2731
      %v2738 = vsel %vm1986, %v1907, 0
      %2740 = vmatprep.subr.bf16.mxu0 0
      %2741 = vmatpush1.bf16.msra.mxu0 %v2733
      %2742 = vmatprep.subr.bf16.mxu0 0
      %2743 = vmatpush1.bf16.msra.mxu0 %v2734
      %2744 = vmatprep.subr.bf16.mxu0 0
      %2745 = vmatpush1.bf16.msra.mxu0 0
      %2746 = vmatprep.subr.bf16.mxu0 0
      %2747 = vmatpush1.bf16.msra.mxu0 0
      %2748 = vmatprep.subr.bf16.mxu0 0
      %2749 = vmatpush1.bf16.msra.mxu0 0
      %2750 = vmatprep.subr.bf16.mxu0 0
      %2751 = vmatpush1.bf16.msra.mxu0 0
      %2752 = vmatprep.subr.bf16.mxu0 0
      %2753 = vmatpush1.bf16.msra.mxu0 0
      %2754 = vmatprep.subr.bf16.mxu0 0
      %2755 = vmatpush1.bf16.msra.mxu0 0
      %2756 = vmatprep.subr.bf16.mxu0 0
      %2757 = vmatpush1.bf16.msra.mxu0 0
      %2758 = vmatprep.subr.bf16.mxu0 0
      %2759 = vmatpush1.bf16.msra.mxu0 0
      %2760 = vmatprep.subr.bf16.mxu0 0
      %2761 = vmatpush1.bf16.msra.mxu0 0
      %2762 = vmatprep.subr.bf16.mxu0 0
      %2763 = vmatpush1.bf16.msra.mxu0 0
      %2764 = vmatprep.subr.bf16.mxu0 0
      %2765 = vmatpush1.bf16.msra.mxu0 0
      %2766 = vmatprep.subr.bf16.mxu0 0
      %2767 = vmatpush1.bf16.msra.mxu0 0
      %2768 = vmatprep.subr.bf16.mxu0 0
      %2769 = vmatpush1.bf16.msra.mxu0 0
      %2770 = vmatprep.subr.bf16.mxu0 0
      %2771 = vmatpush1.bf16.msra.mxu0 0
      %2772 = vmatprep.mubr.bf16.mxu0 0
      %2773 = vmatmul.mubr.bf16.gmra.mrb[0].mxu0 %v2738
      %v2774 = vpop.f32.mrb[0].mxu0
      %v2775 = vadd.f32 0.0, %v2774
      %v2776 = vpop.f32.mrb[0].mxu0
      %v2777 = vpop.f32.mrb[0].mxu0
      %v2778 = vadd.f32 0.0, %v2777
      %v2779 = vpop.f32.mrb[0].mxu0
      %2780 = vdwg.mxu0
      %v2781 = vadd.f32 %v2723, %v2775
      %v2782 = vadd.f32 %v2724, %v2778
      %v2787 = vunpack.c.l.b16 %v1966
      %v2788 = vunpack.c.l.b16 %v1967
      %v2789 = vunpack.c.l.b16 %v1968
      %v2790 = vunpack.c.l.b16 %v1969
      %v2791 = vpack.c.b16 %v2788, %v2787
      %v2792 = vpack.c.b16 %v2790, %v2789
      %v2796 = vsel %vm1986, %v1908, 0
      %2798 = vmatprep.subr.bf16.mxu0 0
      %2799 = vmatpush1.bf16.msra.mxu0 %v2791
      %2800 = vmatprep.subr.bf16.mxu0 0
      %2801 = vmatpush1.bf16.msra.mxu0 %v2792
      %2802 = vmatprep.subr.bf16.mxu0 0
      %2803 = vmatpush1.bf16.msra.mxu0 0
      %2804 = vmatprep.subr.bf16.mxu0 0
      %2805 = vmatpush1.bf16.msra.mxu0 0
      %2806 = vmatprep.subr.bf16.mxu0 0
      %2807 = vmatpush1.bf16.msra.mxu0 0
      %2808 = vmatprep.subr.bf16.mxu0 0
      %2809 = vmatpush1.bf16.msra.mxu0 0
      %2810 = vmatprep.subr.bf16.mxu0 0
      %2811 = vmatpush1.bf16.msra.mxu0 0
      %2812 = vmatprep.subr.bf16.mxu0 0
      %2813 = vmatpush1.bf16.msra.mxu0 0
      %2814 = vmatprep.subr.bf16.mxu0 0
      %2815 = vmatpush1.bf16.msra.mxu0 0
      %2816 = vmatprep.subr.bf16.mxu0 0
      %2817 = vmatpush1.bf16.msra.mxu0 0
      %2818 = vmatprep.subr.bf16.mxu0 0
      %2819 = vmatpush1.bf16.msra.mxu0 0
      %2820 = vmatprep.subr.bf16.mxu0 0
      %2821 = vmatpush1.bf16.msra.mxu0 0
      %2822 = vmatprep.subr.bf16.mxu0 0
      %2823 = vmatpush1.bf16.msra.mxu0 0
      %2824 = vmatprep.subr.bf16.mxu0 0
      %2825 = vmatpush1.bf16.msra.mxu0 0
      %2826 = vmatprep.subr.bf16.mxu0 0
      %2827 = vmatpush1.bf16.msra.mxu0 0
      %2828 = vmatprep.subr.bf16.mxu0 0
      %2829 = vmatpush1.bf16.msra.mxu0 0
      %2830 = vmatprep.mubr.bf16.mxu0 0
      %2831 = vmatmul.mubr.bf16.gmra.mrb[0].mxu0 %v2796
      %v2832 = vpop.f32.mrb[0].mxu0
      %v2833 = vadd.f32 0.0, %v2832
      %v2834 = vpop.f32.mrb[0].mxu0
      %v2835 = vpop.f32.mrb[0].mxu0
      %v2836 = vadd.f32 0.0, %v2835
      %v2837 = vpop.f32.mrb[0].mxu0
      %2838 = vdwg.mxu0
      %v2839 = vadd.f32 %v2781, %v2833
      %v2840 = vadd.f32 %v2782, %v2836
      %v2845 = vunpack.c.l.b16 %v1970
      %v2846 = vunpack.c.l.b16 %v1971
      %v2847 = vunpack.c.l.b16 %v1972
      %v2848 = vunpack.c.l.b16 %v1973
      %v2849 = vpack.c.b16 %v2846, %v2845
      %v2850 = vpack.c.b16 %v2848, %v2847
      %v2854 = vsel %vm1986, %v1909, 0
      %2856 = vmatprep.subr.bf16.mxu0 0
      %2857 = vmatpush1.bf16.msra.mxu0 %v2849
      %2858 = vmatprep.subr.bf16.mxu0 0
      %2859 = vmatpush1.bf16.msra.mxu0 %v2850
      %2860 = vmatprep.subr.bf16.mxu0 0
      %2861 = vmatpush1.bf16.msra.mxu0 0
      %2862 = vmatprep.subr.bf16.mxu0 0
      %2863 = vmatpush1.bf16.msra.mxu0 0
      %2864 = vmatprep.subr.bf16.mxu0 0
      %2865 = vmatpush1.bf16.msra.mxu0 0
      %2866 = vmatprep.subr.bf16.mxu0 0
      %2867 = vmatpush1.bf16.msra.mxu0 0
      %2868 = vmatprep.subr.bf16.mxu0 0
      %2869 = vmatpush1.bf16.msra.mxu0 0
      %2870 = vmatprep.subr.bf16.mxu0 0
      %2871 = vmatpush1.bf16.msra.mxu0 0
      %2872 = vmatprep.subr.bf16.mxu0 0
      %2873 = vmatpush1.bf16.msra.mxu0 0
      %2874 = vmatprep.subr.bf16.mxu0 0
      %2875 = vmatpush1.bf16.msra.mxu0 0
      %2876 = vmatprep.subr.bf16.mxu0 0
      %2877 = vmatpush1.bf16.msra.mxu0 0
      %2878 = vmatprep.subr.bf16.mxu0 0
      %2879 = vmatpush1.bf16.msra.mxu0 0
      %2880 = vmatprep.subr.bf16.mxu0 0
      %2881 = vmatpush1.bf16.msra.mxu0 0
      %2882 = vmatprep.subr.bf16.mxu0 0
      %2883 = vmatpush1.bf16.msra.mxu0 0
      %2884 = vmatprep.subr.bf16.mxu0 0
      %2885 = vmatpush1.bf16.msra.mxu0 0
      %2886 = vmatprep.subr.bf16.mxu0 0
      %2887 = vmatpush1.bf16.msra.mxu0 0
      %2888 = vmatprep.mubr.bf16.mxu0 0
      %2889 = vmatmul.mubr.bf16.gmra.mrb[0].mxu0 %v2854
      %v2890 = vpop.f32.mrb[0].mxu0
      %v2891 = vadd.f32 0.0, %v2890
      %v2892 = vpop.f32.mrb[0].mxu0
      %v2893 = vpop.f32.mrb[0].mxu0
      %v2894 = vadd.f32 0.0, %v2893
      %v2895 = vpop.f32.mrb[0].mxu0
      %2896 = vdwg.mxu0
      %v2897 = vadd.f32 %v2839, %v2891
      %v2898 = vadd.f32 %v2840, %v2894
      %v2899 = vld [vmem:[%s4] sm:$0x1]
      %v2901 = vlaneseq
      %v2902 = vshrl.u32 %v2901, 7
      %v2903 = vsub.s32 0, %v2902
      %v2904 = vrot.slane %v2899, %v2903
      %v2906 = vadd.f32 %v2897, %v2904
      %v2907 = vadd.f32 %v2898, %v2904
      %v2908 = vmax.f32 %v2906, 0.0
      %v2909 = vmax.f32 %v2907, 0.0
      %v2910 = vpack.c.bf16 %v2909, %v2908
      %v2911 = vld [vmem:[%s5] sm:$0xf]
      %v2912 = vld [vmem:[%s5 + $0x4] sm:$0xf]
      %v2913 = vld [vmem:[%s5 + $0x8] sm:$0xf]
      %v2914 = vld [vmem:[%s5 + $0xc] sm:$0xf]
      %v2915 = vld [vmem:[%s5 + $0x10] sm:$0xf]
      %v2916 = vld [vmem:[%s5 + $0x14] sm:$0xf]
      %v2917 = vld [vmem:[%s5 + $0x18] sm:$0xf]
      %v2918 = vld [vmem:[%s5 + $0x1c] sm:$0xf]
      %v2919 = vld [vmem:[%s6] sm:$0x1]
      %v2921 = vlaneseq
      %v2922 = vshrl.u32 %v2921, 7
      %v2923 = vsub.s32 0, %v2922
      %v2924 = vrot.slane %v2919, %v2923
      %v2934 = vunpack.c.l.b16 %v2911
      %v2935 = vunpack.c.l.b16 %v2912
      %v2936 = vunpack.c.l.b16 %v2913
      %v2937 = vunpack.c.l.b16 %v2914
      %v2938 = vunpack.c.l.b16 %v2915
      %v2939 = vunpack.c.l.b16 %v2916
      %v2940 = vunpack.c.l.b16 %v2917
      %v2941 = vunpack.c.l.b16 %v2918
      %v2942 = vpack.c.b16 %v2935, %v2934
      %v2943 = vpack.c.b16 %v2937, %v2936
      %v2944 = vpack.c.b16 %v2939, %v2938
      %v2945 = vpack.c.b16 %v2941, %v2940
      %vm2950 = vcmask 523264
      %v2952 = vsel %vm2950, %v2910, 0
      %2954 = vmatprep.subr.bf16.mxu0 0
      %2955 = vmatpush1.bf16.msra.mxu0 %v2942
      %2956 = vmatprep.subr.bf16.mxu0 0
      %2957 = vmatpush1.bf16.msra.mxu0 %v2943
      %2958 = vmatprep.subr.bf16.mxu0 0
      %2959 = vmatpush1.bf16.msra.mxu0 %v2944
      %2960 = vmatprep.subr.bf16.mxu0 0
      %2961 = vmatpush1.bf16.msra.mxu0 %v2945
      %2962 = vmatprep.subr.bf16.mxu0 0
      %2963 = vmatpush1.bf16.msra.mxu0 0
      %2964 = vmatprep.subr.bf16.mxu0 0
      %2965 = vmatpush1.bf16.msra.mxu0 0
      %2966 = vmatprep.subr.bf16.mxu0 0
      %2967 = vmatpush1.bf16.msra.mxu0 0
      %2968 = vmatprep.subr.bf16.mxu0 0
      %2969 = vmatpush1.bf16.msra.mxu0 0
      %2970 = vmatprep.subr.bf16.mxu0 0
      %2971 = vmatpush1.bf16.msra.mxu0 0
      %2972 = vmatprep.subr.bf16.mxu0 0
      %2973 = vmatpush1.bf16.msra.mxu0 0
      %2974 = vmatprep.subr.bf16.mxu0 0
      %2975 = vmatpush1.bf16.msra.mxu0 0
      %2976 = vmatprep.subr.bf16.mxu0 0
      %2977 = vmatpush1.bf16.msra.mxu0 0
      %2978 = vmatprep.subr.bf16.mxu0 0
      %2979 = vmatpush1.bf16.msra.mxu0 0
      %2980 = vmatprep.subr.bf16.mxu0 0
      %2981 = vmatpush1.bf16.msra.mxu0 0
      %2982 = vmatprep.subr.bf16.mxu0 0
      %2983 = vmatpush1.bf16.msra.mxu0 0
      %2984 = vmatprep.subr.bf16.mxu0 0
      %2985 = vmatpush1.bf16.msra.mxu0 0
      %2986 = vmatprep.mubr.bf16.mxu0 0
      %2987 = vmatmul.mubr.bf16.gmra.mrb[0].mxu0 %v2952
      %v2988 = vpop.f32.mrb[0].mxu0
      %v2989 = vadd.f32 %v2924, %v2988
      %v2990 = vpop.f32.mrb[0].mxu0
      %v2991 = vpop.f32.mrb[0].mxu0
      %v2992 = vadd.f32 %v2924, %v2991
      %v2993 = vpop.f32.mrb[0].mxu0
      %2994 = vdwg.mxu0
      %2995 = vst [vmem:[%s283] sm:$0xff] %v2989
      %2996 = vst [vmem:[%s283 + $0x8] sm:$0xff] %v2992
      %s2997 = smul.u32 2, %s18
      %p2998 = scmp.lt.s32.totalorder %s2997, 3
      %s2999 = scalar_select %p2998, %s2997, 3
      %s3000 = smul.addr %s2999, 8
      %s3001 = scalar_lea.vmem %s7, %s3000
      // Predicated region
      $region49: #{mnist_cnn_forward.3} parent=47 // pred_check
        %p3002 = pneg %p188
      $region50: #{mnist_cnn_forward.3} parent=47 // pred_check_branch
        %3004 = sbr.rel (%p3002) target = $region52
      $region51: #{mnist_cnn_forward.3} parent=47 // pred_region
        %s3005 = smul.u32 2, %s18
      $region52: #{mnist_cnn_forward.3} parent=47 // pred_fallthru
        _
    $region48: #{mnist_cnn_forward.3} parent=5 // pred_fallthru
      _
    %p3006 = scmp.le.s32.totalorder 2, %s13
    // Predicated region
    $region53: #{mnist_cnn_forward.3} parent=5 // pred_check
      %p3007 = pneg %p3006
    $region54: #{mnist_cnn_forward.3} parent=5 // pred_check_branch
      %3009 = sbr.rel (%p3007) target = $region56
    $region55: #{mnist_cnn_forward.3} parent=5 // pred_region
      %s3010 = ssub.s32 %s13, 2
      // Predicated region
      $region57: #{mnist_cnn_forward.3} parent=55 // pred_check
        %p3011 = pneg %p194
      $region58: #{mnist_cnn_forward.3} parent=55 // pred_check_branch
        %3013 = sbr.rel (%p3011) target = $region60
      $region59: #{mnist_cnn_forward.3} parent=55 // pred_region
        %s3014 = smul.u32 2, %s19
        %p3015 = scmp.lt.s32.totalorder %s3014, 3
        %s3016 = scalar_select %p3015, %s3014, 3
        %s3017 = smul.addr %s3016, 8
        %s3018 = scalar_lea.vmem %s7, %s3017
      $region60: #{mnist_cnn_forward.3} parent=55 // pred_fallthru
        _
    $region56: #{mnist_cnn_forward.3} parent=5 // pred_fallthru
      _
  $region6: #{mnist_cnn_forward.3} parent=0 // loop_footer
    %s17 = sadd.s32 1, %s13
  $region7: #{mnist_cnn_forward.3} parent=0 // loop_footer_branch
    %12 = sbr.rel target = $region3
  $region8: #{mnist_cnn_forward.3} parent=0 // loop_exit
    _

</llo_original>
